<compile_context>
chip_gen: v6e
topology: v6e:2x2x1
jax: 0.10.0
libtpu: 0.0.40
codegen_flags: <defaults>
</compile_context>

<pallas_src>
import functools

import jax
import jax.numpy as jnp
from jax.experimental import pallas as pl
from jax.experimental.pallas import tpu as pltpu


def _geometry(H, W):
    """Padded-flat row geometry shared by the wrapper and the kernel."""
    Wp = W + 2                       # zero-padded width
    P = (H + 2) * Wp                 # rows of the padded image, flattened
    PAD = -(-(Wp + 1) // 8) * 8      # halo rows so every 3x3 tap is a static row shift
    R = P + 2 * PAD                  # total rows per image for halo'd buffers
    return Wp, P, PAD, R


# ----------------------- upsample (ConvTranspose2d 2x2/2) -----------------------

def _matmul_kernel(a_ref, b_ref, o_ref):
    a = a_ref[...].astype(jnp.bfloat16)      # bf16 MXU operands, f32 accumulate
    b = b_ref[...].astype(jnp.bfloat16)
    o_ref[...] = jnp.dot(a, b, preferred_element_type=jnp.float32).astype(o_ref.dtype)


def pallas_matmul(a, b, *, tile_m=512, out_dtype=jnp.bfloat16):
    """Row-tiled (M, K) @ (K, N) -> (M, N), auto-pipelined, parallel M grid."""
    M, K = a.shape
    _, N = b.shape
    tm = min(tile_m, M)
    cost = pl.CostEstimate(
        flops=2 * M * K * N, transcendentals=0,
        bytes_accessed=4 * (M * K + K * N) + 2 * M * N)
    return pl.pallas_call(
        _matmul_kernel,
        out_shape=jax.ShapeDtypeStruct((M, N), out_dtype),
        grid_spec=pltpu.PrefetchScalarGridSpec(
            num_scalar_prefetch=0,
            grid=(pl.cdiv(M, tm),),
            in_specs=[pl.BlockSpec((tm, K), lambda i: (i, 0)),
                      pl.BlockSpec((K, N), lambda i: (0, 0))],
            out_specs=pl.BlockSpec((tm, N), lambda i: (i, 0)),
        ),
        compiler_params=pltpu.CompilerParams(dimension_semantics=("parallel",)),
        cost_estimate=cost,
    )(a, b)


# --------------------------- fused three-head kernel ----------------------------

def _three_head_kernel(conv_ref, xy_ref, mask_ref,
                       wa_ref, wb_ref, wws_ref, wc1_ref, wc2_ref,
                       o_ref,
                       h_buf, s_buf,
                       *, H, W, C):
    Wp, P, PAD, R = _geometry(H, W)
    offs = [(di - 1) * Wp + (dj - 1) for di in range(3) for dj in range(3)]
    C2 = 2 * C

    mask = mask_ref[...]                                    # (P, 1): 1=interior, 0=ring

    # Zero only the halo strips; interior rows are fully overwritten every image.
    h_buf[0:PAD, :] = jnp.zeros((PAD, C2), jnp.float32)
    h_buf[PAD + P:R, :] = jnp.zeros((R - PAD - P, C2), jnp.float32)
    s_buf[0:PAD, :] = jnp.zeros((PAD, 2), jnp.float32)
    s_buf[PAD + P:R, :] = jnp.zeros((R - PAD - P, 2), jnp.float32)

    # Fused Ws1/Ws2 first conv (Encoder.DefaultLayer: conv3x3 + folded BN + ReLU).
    # conv_ref holds [x | upsampled ag] in 2C lanes; per-tap weights are block
    # diagonal, so one (P, 2C) @ (2C, 2C) bf16 matmul per tap serves both heads.
    acc = jnp.zeros((P, C2), jnp.float32)
    for t, o in enumerate(offs):
        a = conv_ref[pl.ds(PAD + o, P), :].astype(jnp.bfloat16)
        acc = acc + jnp.dot(a, wa_ref[t], preferred_element_type=jnp.float32)
    h_buf[pl.ds(PAD, P), :] = jnp.maximum(acc, 0.0) * mask

    # Fused second conv (C -> 1 per head) on the MXU: (P, 2C) @ (2C, 2) per tap,
    # producing (s1, s2) as two lanes (no cross-lane reductions).
    acc2 = jnp.zeros((P, 2), jnp.float32)
    for t, o in enumerate(offs):
        a = h_buf[pl.ds(PAD + o, P), :].astype(jnp.bfloat16)
        acc2 = acc2 + jnp.dot(a, wb_ref[t], preferred_element_type=jnp.float32)
    s_buf[pl.ds(PAD, P), :] = jax.nn.sigmoid(acc2) * mask

    # Ws: 3x3 conv over the 2-channel (s1, s2) map; one cross-lane sum at the end.
    accw = jnp.zeros((P, 2), jnp.float32)
    for t, o in enumerate(offs):
        accw = accw + s_buf[pl.ds(PAD + o, P), :] * wws_ref[t]
    ws = jax.nn.sigmoid(jnp.sum(accw, axis=1, keepdims=True)) * mask      # (P, 1)

    # Channel gate (SE) fused with the final combine. Ring rows of xy are exactly
    # zero (wrapper pad), so the sum / (H*W) is the interior mean.
    xy = xy_ref[...]                                                       # (P, C)
    pooled = jnp.sum(xy, axis=0, keepdims=True) * (1.0 / (H * W))          # (1, C)
    g = jnp.maximum(
        jnp.dot(pooled, wc1_ref[...], preferred_element_type=jnp.float32), 0.0)
    wc = jax.nn.sigmoid(
        jnp.dot(g, wc2_ref[...], preferred_element_type=jnp.float32))      # (1, C)

    o_ref[...] = xy * wc * ws


# ------------------------------- parameters -------------------------------------

def init_params(key, in_channels, ag_channels, r):
    C, Cag = in_channels, ag_channels
    ks = jax.random.split(key, 8)

    def conv_taps(k, cout, cin):
        # Synthetic PyTorch-layout weights (Cout, Cin, 3, 3) -> per-tap (9, Cin, Cout).
        w = jax.random.normal(k, (cout, cin, 3, 3), jnp.float32) * 0.1
        return jnp.transpose(w, (2, 3, 1, 0)).reshape(9, cin, cout)

    # BatchNorm2d eval with default buffers (mean=0, var=1, gamma=1, beta=0) folds
    # into a per-channel scale 1/sqrt(1 + eps) and zero bias.
    bn_scale = 1.0 / jnp.sqrt(1.0 + 1e-5)

    return {
        "ws1_conv1": conv_taps(ks[0], C, C) * bn_scale,              # (9, C, C)
        "ws1_conv2": conv_taps(ks[1], 1, C).reshape(9, C),           # (9, C)
        "ws2_conv1": conv_taps(ks[2], C, C) * bn_scale,              # (9, C, C)
        "ws2_conv2": conv_taps(ks[3], 1, C).reshape(9, C),           # (9, C)
        "up_w": jax.random.normal(ks[4], (Cag, C, 2, 2), jnp.float32) * 0.1,
        "ws_conv": conv_taps(ks[5], 1, 2).reshape(9, 2),             # (9, 2)
        # PyTorch Linear weights are (out, in); stored transposed for x @ W.
        "wc_fc1": jnp.transpose(jax.random.normal(ks[6], (C // r, C), jnp.float32) * 0.1),
        "wc_fc2": jnp.transpose(jax.random.normal(ks[7], (C, C // r), jnp.float32) * 0.1),
    }


# --------------------------------- forward --------------------------------------

def three_head_attention(params, x, y, ag):
    """x, y: (B, C, H, W); ag: (B, Cag, H//2, W//2). Returns (B, C, H, W)."""
    B, C, H, W = x.shape
    Wp, P, PAD, R = _geometry(H, W)
    Hp = H + 2
    C2 = 2 * C

    # ag = self.upsample(ag, x): ConvTranspose2d(k=2, s=2) == one matmul + reshuffle.
    ag_n = jnp.transpose(ag, (0, 2, 3, 1))
    _, h2, w2, Cag = ag_n.shape
    wm = jnp.transpose(params["up_w"], (0, 2, 3, 1)).reshape(Cag, 4 * C)
    up = pallas_matmul(ag_n.reshape(B * h2 * w2, Cag), wm)            # (B*h*w, 4C) bf16
    up = up.reshape(B, h2, w2, 2, 2, C).transpose(0, 1, 3, 2, 4, 5)
    up = up.reshape(B, H, W, C)                                       # bf16

    # Padded-flat NHWC layout: 3x3 taps become static row shifts inside the kernel.
    def pad_flat(t_nhwc):                       # -> (B, P, Cc), zero ring, no halo
        t = jnp.pad(t_nhwc, ((0, 0), (1, 1), (1, 1), (0, 0)))
        return t.reshape(B, P, t.shape[-1])

    def pad_flat_halo(t_nhwc):                  # -> (B, R, Cc), zero ring + halo
        return jnp.pad(pad_flat(t_nhwc), ((0, 0), (PAD, PAD), (0, 0)))

    x_n = jnp.transpose(x, (0, 2, 3, 1))
    y_n = jnp.transpose(y, (0, 2, 3, 1))
    xyp = pad_flat(x_n + y_n)                                         # (B, P, C)  f32
    conv_in = pad_flat_halo(
        jnp.concatenate([x_n, up.astype(jnp.float32)], axis=-1))      # (B, R, 2C) f32

    ii = jnp.arange(Hp)
    jj = jnp.arange(Wp)
    m2 = ((ii >= 1) & (ii <= H))[:, None] & ((jj >= 1) & (jj <= W))[None, :]
    mask = m2.astype(jnp.float32).reshape(P, 1)

    # Fused, block-diagonal per-tap weights (both heads in one matmul).
    wa = jnp.zeros((9, C2, C2), jnp.float32)
    wa = wa.at[:, :C, :C].set(params["ws1_conv1"])
    wa = wa.at[:, C:, C:].set(params["ws2_conv1"])
    wa = wa.astype(jnp.bfloat16)
    wb = jnp.zeros((9, C2, 2), jnp.float32)
    wb = wb.at[:, :C, 0].set(params["ws1_conv2"])
    wb = wb.at[:, C:, 1].set(params["ws2_conv2"])
    wb = wb.astype(jnp.bfloat16)
    wws = params["ws_conv"].reshape(9, 1, 2)
    wc1 = params["wc_fc1"]
    wc2 = params["wc_fc2"]
    Cr = wc1.shape[1]

    cost = pl.CostEstimate(
        flops=B * (2 * 9 * P * C2 * C2 + 2 * 9 * P * C2 * 2 + 4 * 9 * P + 6 * P * C
                   + 4 * C * Cr),
        transcendentals=B * (3 * P + C),
        bytes_accessed=B * (4 * R * C2 + 4 * P * C + 4 * P * C) + 2 * 9 * C2 * C2,
    )

    # VMEM budget: double-buffered inputs/output + resident scratch, with headroom.
    vmem_need = (2 * (4 * R * C2 + 4 * P * C + 4 * P * C)
                 + 4 * R * C2 + 4 * R * 2 + (2 << 20))
    vmem_limit = int(min(max(vmem_need, 32 * 1024 * 1024), 100 * 1024 * 1024))

    kernel = functools.partial(_three_head_kernel, H=H, W=W, C=C)
    out_p = pl.pallas_call(
        kernel,
        out_shape=jax.ShapeDtypeStruct((B, P, C), jnp.float32),
        grid_spec=pltpu.PrefetchScalarGridSpec(
            num_scalar_prefetch=0,
            grid=(B,),
            in_specs=[
                pl.BlockSpec((None, R, C2), lambda b: (b, 0, 0)),   # [x | ag] halo'd
                pl.BlockSpec((None, P, C), lambda b: (b, 0, 0)),    # xy = x + y
                pl.BlockSpec((P, 1), lambda b: (0, 0)),             # interior mask
                pl.BlockSpec((9, C2, C2), lambda b: (0, 0, 0)),     # fused conv1 (bf16)
                pl.BlockSpec((9, C2, 2), lambda b: (0, 0, 0)),      # fused conv2 (bf16)
                pl.BlockSpec((9, 1, 2), lambda b: (0, 0, 0)),       # Ws conv taps
                pl.BlockSpec((C, Cr), lambda b: (0, 0)),            # Wc fc1
                pl.BlockSpec((Cr, C), lambda b: (0, 0)),            # Wc fc2
            ],
            out_specs=pl.BlockSpec((None, P, C), lambda b: (b, 0, 0)),
            scratch_shapes=[
                pltpu.VMEM((R, C2), jnp.float32),   # h halo buffer (both heads)
                pltpu.VMEM((R, 2), jnp.float32),    # (s1, s2) halo buffer
            ],
        ),
        compiler_params=pltpu.CompilerParams(
            dimension_semantics=("parallel",),       # batch axis -> megacore split
            vmem_limit_bytes=vmem_limit),
        cost_estimate=cost,
    )(conv_in, xyp, mask, wa, wb, wws, wc1, wc2)

    # Strip the zero ring and return NCHW (ring rows are exactly zero).
    out = out_p.reshape(B, Hp, Wp, C)[:, 1:H + 1, 1:W + 1, :]
    return jnp.transpose(out, (0, 3, 1, 2))


# ----------------------------------- main ----------------------------------------

if __name__ == "__main__":
    B, C, H, W = 2, 32, 16, 16       # in_channels=32 so C // r = 2 with r=16
    Cag, r = 64, 16

    key = jax.random.PRNGKey(0)
    kx, ky, kag, kp = jax.random.split(key, 4)
    x = jax.random.normal(kx, (B, C, H, W), jnp.float32)
    y = jax.random.normal(ky, (B, C, H, W), jnp.float32)
    ag = jax.random.normal(kag, (B, Cag, H // 2, W // 2), jnp.float32)

    params = init_params(kp, C, Cag, r)

    fwd = jax.jit(three_head_attention)
    out = jax.block_until_ready(fwd(params, x, y, ag))

    assert out.shape == (B, C, H, W), out.shape
    assert out.dtype == jnp.float32
    assert bool(jnp.all(jnp.isfinite(out)))
    print("KERNEL_OK")
</pallas_src>

<mosaic_0001>
module attributes {stable_mosaic.version = 11 : i64} {
  func.func @_matmul_kernel(%arg0: i32, %arg1: memref<128x64xf32, #tpu.memory_space<vmem>>, %arg2: memref<64x128xf32, #tpu.memory_space<vmem>>, %arg3: memref<128x128xbf16, #tpu.memory_space<vmem>>) attributes {dimension_semantics = [#tpu.dimension_semantics<parallel>], iteration_bounds = array<i64: 1>, scalar_prefetch = 0 : i64, scratch_operands = 0 : i64, tpu.core_type = #tpu.core_type<tc>, window_params = [{transform_indices = @transform_0, window_bounds = array<i64: 128, 64>}, {pipeline_mode = #tpu.pipeline_mode<synchronous>, transform_indices = @transform_1, window_bounds = array<i64: 64, 128>}, {transform_indices = @transform_2, window_bounds = array<i64: 128, 128>}]} {
    %c0 = arith.constant 0 : index
    %c0_0 = arith.constant 0 : index
    %0 = vector.load %arg1[%c0, %c0_0] : memref<128x64xf32, #tpu.memory_space<vmem>>, vector<128x64xf32>
    %1 = arith.truncf %0 : vector<128x64xf32> to vector<128x64xbf16>
    %c0_1 = arith.constant 0 : index
    %c0_2 = arith.constant 0 : index
    %2 = vector.load %arg2[%c0_1, %c0_2] : memref<64x128xf32, #tpu.memory_space<vmem>>, vector<64x128xf32>
    %3 = arith.truncf %2 : vector<64x128xf32> to vector<64x128xbf16>
    %cst = arith.constant dense<0.000000e+00> : vector<128x128xf32>
    %4 = tpu.matmul %1, %3, %cst {dimension_numbers = #tpu.dot_dimension_numbers<[1], [0], [0], [1], [0, 0, 1, 1], [], []>} : vector<128x64xbf16>, vector<64x128xbf16>, vector<128x128xf32> -> vector<128x128xf32>
    %5 = arith.truncf %4 : vector<128x128xf32> to vector<128x128xbf16>
    %c0_3 = arith.constant 0 : index
    %c0_4 = arith.constant 0 : index
    %6 = vector.load %arg3[%c0_3, %c0_4] : memref<128x128xbf16, #tpu.memory_space<vmem>>, vector<128x128xbf16>
    tpu.vector_store %arg3[%c0_3, %c0_4], %5 {strides = array<i32>} : memref<128x128xbf16, #tpu.memory_space<vmem>>, vector<128x128xbf16>,
    return
  }
  func.func @transform_0(%arg0: i32) -> (i32, i32) {
    %c0_i32 = arith.constant 0 : i32
    %c0_i32_0 = arith.constant 0 : i32
    return %arg0, %c0_i32 : i32, i32
  }
  func.func @transform_1(%arg0: i32) -> (i32, i32) {
    %c0_i32 = arith.constant 0 : i32
    %c0_i32_0 = arith.constant 0 : i32
    %c0_i32_1 = arith.constant 0 : i32
    return %c0_i32, %c0_i32_0 : i32, i32
  }
  func.func @transform_2(%arg0: i32) -> (i32, i32) {
    %c0_i32 = arith.constant 0 : i32
    %c0_i32_0 = arith.constant 0 : i32
    return %arg0, %c0_i32 : i32, i32
  }
}

module attributes {stable_mosaic.version = 11 : i64} {
  func.func @_three_head_kernel(%arg0: i32, %arg1: memref<1x372x64xf32, #tpu.memory_space<vmem>>, %arg2: memref<1x324x32xf32, #tpu.memory_space<vmem>>, %arg3: memref<324x1xf32, #tpu.memory_space<vmem>>, %arg4: memref<9x64x64xbf16, #tpu.memory_space<vmem>>, %arg5: memref<9x64x2xbf16, #tpu.memory_space<vmem>>, %arg6: memref<9x1x2xf32, #tpu.memory_space<vmem>>, %arg7: memref<32x2xf32, #tpu.memory_space<vmem>>, %arg8: memref<2x32xf32, #tpu.memory_space<vmem>>, %arg9: memref<1x324x32xf32, #tpu.memory_space<vmem>>, %arg10: memref<372x64xf32, #tpu.memory_space<vmem>>, %arg11: memref<372x2xf32, #tpu.memory_space<vmem>>) attributes {dimension_semantics = [#tpu.dimension_semantics<parallel>], iteration_bounds = array<i64: 2>, scalar_prefetch = 0 : i64, scratch_operands = 2 : i64, tpu.core_type = #tpu.core_type<tc>, window_params = [{transform_indices = @transform_0, window_bounds = array<i64: 1, 372, 64>}, {transform_indices = @transform_1, window_bounds = array<i64: 1, 324, 32>}, {pipeline_mode = #tpu.pipeline_mode<synchronous>, transform_indices = @transform_2, window_bounds = array<i64: 324, 1>}, {pipeline_mode = #tpu.pipeline_mode<synchronous>, transform_indices = @transform_3, window_bounds = array<i64: 9, 64, 64>}, {pipeline_mode = #tpu.pipeline_mode<synchronous>, transform_indices = @transform_4, window_bounds = array<i64: 9, 64, 2>}, {pipeline_mode = #tpu.pipeline_mode<synchronous>, transform_indices = @transform_5, window_bounds = array<i64: 9, 1, 2>}, {pipeline_mode = #tpu.pipeline_mode<synchronous>, transform_indices = @transform_6, window_bounds = array<i64: 32, 2>}, {pipeline_mode = #tpu.pipeline_mode<synchronous>, transform_indices = @transform_7, window_bounds = array<i64: 2, 32>}, {transform_indices = @transform_8, window_bounds = array<i64: 1, 324, 32>}]} {
    %c0 = arith.constant 0 : index
    %c0_0 = arith.constant 0 : index
    %0 = vector.load %arg3[%c0, %c0_0] : memref<324x1xf32, #tpu.memory_space<vmem>>, vector<324x1xf32>
    %cst = arith.constant 0.000000e+00 : f32
    %1 = vector.broadcast %cst : f32 to vector<24x64xf32>
    %c0_1 = arith.constant 0 : index
    %c0_2 = arith.constant 0 : index
    %2 = vector.load %arg10[%c0_1, %c0_2] : memref<372x64xf32, #tpu.memory_space<vmem>>, vector<24x64xf32>
    tpu.vector_store %arg10[%c0_1, %c0_2], %1 {strides = array<i32>} : memref<372x64xf32, #tpu.memory_space<vmem>>, vector<24x64xf32>,
    %cst_3 = arith.constant 0.000000e+00 : f32
    %3 = vector.broadcast %cst_3 : f32 to vector<24x64xf32>
    %c348 = arith.constant 348 : index
    %c0_4 = arith.constant 0 : index
    %4 = vector.load %arg10[%c348, %c0_4] : memref<372x64xf32, #tpu.memory_space<vmem>>, vector<24x64xf32>
    tpu.vector_store %arg10[%c348, %c0_4], %3 {strides = array<i32>} : memref<372x64xf32, #tpu.memory_space<vmem>>, vector<24x64xf32>,
    %cst_5 = arith.constant 0.000000e+00 : f32
    %5 = vector.broadcast %cst_5 : f32 to vector<24x2xf32>
    %c0_6 = arith.constant 0 : index
    %c0_7 = arith.constant 0 : index
    %6 = vector.load %arg11[%c0_6, %c0_7] : memref<372x2xf32, #tpu.memory_space<vmem>>, vector<24x2xf32>
    tpu.vector_store %arg11[%c0_6, %c0_7], %5 {strides = array<i32>} : memref<372x2xf32, #tpu.memory_space<vmem>>, vector<24x2xf32>,
    %cst_8 = arith.constant 0.000000e+00 : f32
    %7 = vector.broadcast %cst_8 : f32 to vector<24x2xf32>
    %c348_9 = arith.constant 348 : index
    %c0_10 = arith.constant 0 : index
    %8 = vector.load %arg11[%c348_9, %c0_10] : memref<372x2xf32, #tpu.memory_space<vmem>>, vector<24x2xf32>
    tpu.vector_store %arg11[%c348_9, %c0_10], %7 {strides = array<i32>} : memref<372x2xf32, #tpu.memory_space<vmem>>, vector<24x2xf32>,
    %cst_11 = arith.constant 0.000000e+00 : f32
    %9 = vector.broadcast %cst_11 : f32 to vector<324x64xf32>
    %c0_12 = arith.constant 0 : index
    %c5 = arith.constant 5 : index
    %c0_13 = arith.constant 0 : index
    %10 = vector.load %arg1[%c0_12, %c5, %c0_13] : memref<1x372x64xf32, #tpu.memory_space<vmem>>, vector<1x324x64xf32>
    %11 = vector.shape_cast %10 : vector<1x324x64xf32> to vector<324x64xf32>
    %12 = arith.truncf %11 : vector<324x64xf32> to vector<324x64xbf16>
    %c0_14 = arith.constant 0 : index
    %c0_15 = arith.constant 0 : index
    %c0_16 = arith.constant 0 : index
    %13 = vector.load %arg4[%c0_14, %c0_15, %c0_16] : memref<9x64x64xbf16, #tpu.memory_space<vmem>>, vector<1x64x64xbf16>
    %14 = vector.shape_cast %13 : vector<1x64x64xbf16> to vector<64x64xbf16>
    %cst_17 = arith.constant dense<0.000000e+00> : vector<324x64xf32>
    %15 = tpu.matmul %12, %14, %cst_17 {dimension_numbers = #tpu.dot_dimension_numbers<[1], [0], [0], [1], [0, 0, 1, 1], [], []>} : vector<324x64xbf16>, vector<64x64xbf16>, vector<324x64xf32> -> vector<324x64xf32>
    %16 = arith.addf %9, %15 : vector<324x64xf32>
    %c0_18 = arith.constant 0 : index
    %c6 = arith.constant 6 : index
    %c0_19 = arith.constant 0 : index
    %17 = vector.load %arg1[%c0_18, %c6, %c0_19] : memref<1x372x64xf32, #tpu.memory_space<vmem>>, vector<1x324x64xf32>
    %18 = vector.shape_cast %17 : vector<1x324x64xf32> to vector<324x64xf32>
    %19 = arith.truncf %18 : vector<324x64xf32> to vector<324x64xbf16>
    %c1 = arith.constant 1 : index
    %c0_20 = arith.constant 0 : index
    %c0_21 = arith.constant 0 : index
    %20 = vector.load %arg4[%c1, %c0_20, %c0_21] : memref<9x64x64xbf16, #tpu.memory_space<vmem>>, vector<1x64x64xbf16>
    %21 = vector.shape_cast %20 : vector<1x64x64xbf16> to vector<64x64xbf16>
    %cst_22 = arith.constant dense<0.000000e+00> : vector<324x64xf32>
    %22 = tpu.matmul %19, %21, %cst_22 {dimension_numbers = #tpu.dot_dimension_numbers<[1], [0], [0], [1], [0, 0, 1, 1], [], []>} : vector<324x64xbf16>, vector<64x64xbf16>, vector<324x64xf32> -> vector<324x64xf32>
    %23 = arith.addf %16, %22 : vector<324x64xf32>
    %c0_23 = arith.constant 0 : index
    %c7 = arith.constant 7 : index
    %c0_24 = arith.constant 0 : index
    %24 = vector.load %arg1[%c0_23, %c7, %c0_24] : memref<1x372x64xf32, #tpu.memory_space<vmem>>, vector<1x324x64xf32>
    %25 = vector.shape_cast %24 : vector<1x324x64xf32> to vector<324x64xf32>
    %26 = arith.truncf %25 : vector<324x64xf32> to vector<324x64xbf16>
    %c2 = arith.constant 2 : index
    %c0_25 = arith.constant 0 : index
    %c0_26 = arith.constant 0 : index
    %27 = vector.load %arg4[%c2, %c0_25, %c0_26] : memref<9x64x64xbf16, #tpu.memory_space<vmem>>, vector<1x64x64xbf16>
    %28 = vector.shape_cast %27 : vector<1x64x64xbf16> to vector<64x64xbf16>
    %cst_27 = arith.constant dense<0.000000e+00> : vector<324x64xf32>
    %29 = tpu.matmul %26, %28, %cst_27 {dimension_numbers = #tpu.dot_dimension_numbers<[1], [0], [0], [1], [0, 0, 1, 1], [], []>} : vector<324x64xbf16>, vector<64x64xbf16>, vector<324x64xf32> -> vector<324x64xf32>
    %30 = arith.addf %23, %29 : vector<324x64xf32>
    %c0_28 = arith.constant 0 : index
    %c23 = arith.constant 23 : index
    %c0_29 = arith.constant 0 : index
    %31 = vector.load %arg1[%c0_28, %c23, %c0_29] : memref<1x372x64xf32, #tpu.memory_space<vmem>>, vector<1x324x64xf32>
    %32 = vector.shape_cast %31 : vector<1x324x64xf32> to vector<324x64xf32>
    %33 = arith.truncf %32 : vector<324x64xf32> to vector<324x64xbf16>
    %c3 = arith.constant 3 : index
    %c0_30 = arith.constant 0 : index
    %c0_31 = arith.constant 0 : index
    %34 = vector.load %arg4[%c3, %c0_30, %c0_31] : memref<9x64x64xbf16, #tpu.memory_space<vmem>>, vector<1x64x64xbf16>
    %35 = vector.shape_cast %34 : vector<1x64x64xbf16> to vector<64x64xbf16>
    %cst_32 = arith.constant dense<0.000000e+00> : vector<324x64xf32>
    %36 = tpu.matmul %33, %35, %cst_32 {dimension_numbers = #tpu.dot_dimension_numbers<[1], [0], [0], [1], [0, 0, 1, 1], [], []>} : vector<324x64xbf16>, vector<64x64xbf16>, vector<324x64xf32> -> vector<324x64xf32>
    %37 = arith.addf %30, %36 : vector<324x64xf32>
    %c0_33 = arith.constant 0 : index
    %c24 = arith.constant 24 : index
    %c0_34 = arith.constant 0 : index
    %38 = vector.load %arg1[%c0_33, %c24, %c0_34] : memref<1x372x64xf32, #tpu.memory_space<vmem>>, vector<1x324x64xf32>
    %39 = vector.shape_cast %38 : vector<1x324x64xf32> to vector<324x64xf32>
    %40 = arith.truncf %39 : vector<324x64xf32> to vector<324x64xbf16>
    %c4 = arith.constant 4 : index
    %c0_35 = arith.constant 0 : index
    %c0_36 = arith.constant 0 : index
    %41 = vector.load %arg4[%c4, %c0_35, %c0_36] : memref<9x64x64xbf16, #tpu.memory_space<vmem>>, vector<1x64x64xbf16>
    %42 = vector.shape_cast %41 : vector<1x64x64xbf16> to vector<64x64xbf16>
    %cst_37 = arith.constant dense<0.000000e+00> : vector<324x64xf32>
    %43 = tpu.matmul %40, %42, %cst_37 {dimension_numbers = #tpu.dot_dimension_numbers<[1], [0], [0], [1], [0, 0, 1, 1], [], []>} : vector<324x64xbf16>, vector<64x64xbf16>, vector<324x64xf32> -> vector<324x64xf32>
    %44 = arith.addf %37, %43 : vector<324x64xf32>
    %c0_38 = arith.constant 0 : index
    %c25 = arith.constant 25 : index
    %c0_39 = arith.constant 0 : index
    %45 = vector.load %arg1[%c0_38, %c25, %c0_39] : memref<1x372x64xf32, #tpu.memory_space<vmem>>, vector<1x324x64xf32>
    %46 = vector.shape_cast %45 : vector<1x324x64xf32> to vector<324x64xf32>
    %47 = arith.truncf %46 : vector<324x64xf32> to vector<324x64xbf16>
    %c5_40 = arith.constant 5 : index
    %c0_41 = arith.constant 0 : index
    %c0_42 = arith.constant 0 : index
    %48 = vector.load %arg4[%c5_40, %c0_41, %c0_42] : memref<9x64x64xbf16, #tpu.memory_space<vmem>>, vector<1x64x64xbf16>
    %49 = vector.shape_cast %48 : vector<1x64x64xbf16> to vector<64x64xbf16>
    %cst_43 = arith.constant dense<0.000000e+00> : vector<324x64xf32>
    %50 = tpu.matmul %47, %49, %cst_43 {dimension_numbers = #tpu.dot_dimension_numbers<[1], [0], [0], [1], [0, 0, 1, 1], [], []>} : vector<324x64xbf16>, vector<64x64xbf16>, vector<324x64xf32> -> vector<324x64xf32>
    %51 = arith.addf %44, %50 : vector<324x64xf32>
    %c0_44 = arith.constant 0 : index
    %c41 = arith.constant 41 : index
    %c0_45 = arith.constant 0 : index
    %52 = vector.load %arg1[%c0_44, %c41, %c0_45] : memref<1x372x64xf32, #tpu.memory_space<vmem>>, vector<1x324x64xf32>
    %53 = vector.shape_cast %52 : vector<1x324x64xf32> to vector<324x64xf32>
    %54 = arith.truncf %53 : vector<324x64xf32> to vector<324x64xbf16>
    %c6_46 = arith.constant 6 : index
    %c0_47 = arith.constant 0 : index
    %c0_48 = arith.constant 0 : index
    %55 = vector.load %arg4[%c6_46, %c0_47, %c0_48] : memref<9x64x64xbf16, #tpu.memory_space<vmem>>, vector<1x64x64xbf16>
    %56 = vector.shape_cast %55 : vector<1x64x64xbf16> to vector<64x64xbf16>
    %cst_49 = arith.constant dense<0.000000e+00> : vector<324x64xf32>
    %57 = tpu.matmul %54, %56, %cst_49 {dimension_numbers = #tpu.dot_dimension_numbers<[1], [0], [0], [1], [0, 0, 1, 1], [], []>} : vector<324x64xbf16>, vector<64x64xbf16>, vector<324x64xf32> -> vector<324x64xf32>
    %58 = arith.addf %51, %57 : vector<324x64xf32>
    %c0_50 = arith.constant 0 : index
    %c42 = arith.constant 42 : index
    %c0_51 = arith.constant 0 : index
    %59 = vector.load %arg1[%c0_50, %c42, %c0_51] : memref<1x372x64xf32, #tpu.memory_space<vmem>>, vector<1x324x64xf32>
    %60 = vector.shape_cast %59 : vector<1x324x64xf32> to vector<324x64xf32>
    %61 = arith.truncf %60 : vector<324x64xf32> to vector<324x64xbf16>
    %c7_52 = arith.constant 7 : index
    %c0_53 = arith.constant 0 : index
    %c0_54 = arith.constant 0 : index
    %62 = vector.load %arg4[%c7_52, %c0_53, %c0_54] : memref<9x64x64xbf16, #tpu.memory_space<vmem>>, vector<1x64x64xbf16>
    %63 = vector.shape_cast %62 : vector<1x64x64xbf16> to vector<64x64xbf16>
    %cst_55 = arith.constant dense<0.000000e+00> : vector<324x64xf32>
    %64 = tpu.matmul %61, %63, %cst_55 {dimension_numbers = #tpu.dot_dimension_numbers<[1], [0], [0], [1], [0, 0, 1, 1], [], []>} : vector<324x64xbf16>, vector<64x64xbf16>, vector<324x64xf32> -> vector<324x64xf32>
    %65 = arith.addf %58, %64 : vector<324x64xf32>
    %c0_56 = arith.constant 0 : index
    %c43 = arith.constant 43 : index
    %c0_57 = arith.constant 0 : index
    %66 = vector.load %arg1[%c0_56, %c43, %c0_57] : memref<1x372x64xf32, #tpu.memory_space<vmem>>, vector<1x324x64xf32>
    %67 = vector.shape_cast %66 : vector<1x324x64xf32> to vector<324x64xf32>
    %68 = arith.truncf %67 : vector<324x64xf32> to vector<324x64xbf16>
    %c8 = arith.constant 8 : index
    %c0_58 = arith.constant 0 : index
    %c0_59 = arith.constant 0 : index
    %69 = vector.load %arg4[%c8, %c0_58, %c0_59] : memref<9x64x64xbf16, #tpu.memory_space<vmem>>, vector<1x64x64xbf16>
    %70 = vector.shape_cast %69 : vector<1x64x64xbf16> to vector<64x64xbf16>
    %cst_60 = arith.constant dense<0.000000e+00> : vector<324x64xf32>
    %71 = tpu.matmul %68, %70, %cst_60 {dimension_numbers = #tpu.dot_dimension_numbers<[1], [0], [0], [1], [0, 0, 1, 1], [], []>} : vector<324x64xbf16>, vector<64x64xbf16>, vector<324x64xf32> -> vector<324x64xf32>
    %72 = arith.addf %65, %71 : vector<324x64xf32>
    %cst_61 = arith.constant 0.000000e+00 : f32
    %73 = vector.broadcast %cst_61 : f32 to vector<324x64xf32>
    %74 = arith.maximumf %72, %73 : vector<324x64xf32>
    %75 = vector.broadcast %0 : vector<324x1xf32> to vector<324x64xf32>
    %76 = arith.mulf %74, %75 : vector<324x64xf32>
    %c24_62 = arith.constant 24 : index
    %c0_63 = arith.constant 0 : index
    %77 = vector.load %arg10[%c24_62, %c0_63] : memref<372x64xf32, #tpu.memory_space<vmem>>, vector<324x64xf32>
    tpu.vector_store %arg10[%c24_62, %c0_63], %76 {strides = array<i32>} : memref<372x64xf32, #tpu.memory_space<vmem>>, vector<324x64xf32>,
    %cst_64 = arith.constant 0.000000e+00 : f32
    %78 = vector.broadcast %cst_64 : f32 to vector<324x2xf32>
    %c5_65 = arith.constant 5 : index
    %c0_66 = arith.constant 0 : index
    %79 = vector.load %arg10[%c5_65, %c0_66] : memref<372x64xf32, #tpu.memory_space<vmem>>, vector<324x64xf32>
    %80 = arith.truncf %79 : vector<324x64xf32> to vector<324x64xbf16>
    %c0_67 = arith.constant 0 : index
    %c0_68 = arith.constant 0 : index
    %c0_69 = arith.constant 0 : index
    %81 = vector.load %arg5[%c0_67, %c0_68, %c0_69] : memref<9x64x2xbf16, #tpu.memory_space<vmem>>, vector<1x64x2xbf16>
    %82 = vector.shape_cast %81 : vector<1x64x2xbf16> to vector<64x2xbf16>
    %cst_70 = arith.constant dense<0.000000e+00> : vector<324x2xf32>
    %83 = tpu.matmul %80, %82, %cst_70 {dimension_numbers = #tpu.dot_dimension_numbers<[1], [0], [0], [1], [0, 0, 1, 1], [], []>} : vector<324x64xbf16>, vector<64x2xbf16>, vector<324x2xf32> -> vector<324x2xf32>
    %84 = arith.addf %78, %83 : vector<324x2xf32>
    %c6_71 = arith.constant 6 : index
    %c0_72 = arith.constant 0 : index
    %85 = vector.load %arg10[%c6_71, %c0_72] : memref<372x64xf32, #tpu.memory_space<vmem>>, vector<324x64xf32>
    %86 = arith.truncf %85 : vector<324x64xf32> to vector<324x64xbf16>
    %c1_73 = arith.constant 1 : index
    %c0_74 = arith.constant 0 : index
    %c0_75 = arith.constant 0 : index
    %87 = vector.load %arg5[%c1_73, %c0_74, %c0_75] : memref<9x64x2xbf16, #tpu.memory_space<vmem>>, vector<1x64x2xbf16>
    %88 = vector.shape_cast %87 : vector<1x64x2xbf16> to vector<64x2xbf16>
    %cst_76 = arith.constant dense<0.000000e+00> : vector<324x2xf32>
    %89 = tpu.matmul %86, %88, %cst_76 {dimension_numbers = #tpu.dot_dimension_numbers<[1], [0], [0], [1], [0, 0, 1, 1], [], []>} : vector<324x64xbf16>, vector<64x2xbf16>, vector<324x2xf32> -> vector<324x2xf32>
    %90 = arith.addf %84, %89 : vector<324x2xf32>
    %c7_77 = arith.constant 7 : index
    %c0_78 = arith.constant 0 : index
    %91 = vector.load %arg10[%c7_77, %c0_78] : memref<372x64xf32, #tpu.memory_space<vmem>>, vector<324x64xf32>
    %92 = arith.truncf %91 : vector<324x64xf32> to vector<324x64xbf16>
    %c2_79 = arith.constant 2 : index
    %c0_80 = arith.constant 0 : index
    %c0_81 = arith.constant 0 : index
    %93 = vector.load %arg5[%c2_79, %c0_80, %c0_81] : memref<9x64x2xbf16, #tpu.memory_space<vmem>>, vector<1x64x2xbf16>
    %94 = vector.shape_cast %93 : vector<1x64x2xbf16> to vector<64x2xbf16>
    %cst_82 = arith.constant dense<0.000000e+00> : vector<324x2xf32>
    %95 = tpu.matmul %92, %94, %cst_82 {dimension_numbers = #tpu.dot_dimension_numbers<[1], [0], [0], [1], [0, 0, 1, 1], [], []>} : vector<324x64xbf16>, vector<64x2xbf16>, vector<324x2xf32> -> vector<324x2xf32>
    %96 = arith.addf %90, %95 : vector<324x2xf32>
    %c23_83 = arith.constant 23 : index
    %c0_84 = arith.constant 0 : index
    %97 = vector.load %arg10[%c23_83, %c0_84] : memref<372x64xf32, #tpu.memory_space<vmem>>, vector<324x64xf32>
    %98 = arith.truncf %97 : vector<324x64xf32> to vector<324x64xbf16>
    %c3_85 = arith.constant 3 : index
    %c0_86 = arith.constant 0 : index
    %c0_87 = arith.constant 0 : index
    %99 = vector.load %arg5[%c3_85, %c0_86, %c0_87] : memref<9x64x2xbf16, #tpu.memory_space<vmem>>, vector<1x64x2xbf16>
    %100 = vector.shape_cast %99 : vector<1x64x2xbf16> to vector<64x2xbf16>
    %cst_88 = arith.constant dense<0.000000e+00> : vector<324x2xf32>
    %101 = tpu.matmul %98, %100, %cst_88 {dimension_numbers = #tpu.dot_dimension_numbers<[1], [0], [0], [1], [0, 0, 1, 1], [], []>} : vector<324x64xbf16>, vector<64x2xbf16>, vector<324x2xf32> -> vector<324x2xf32>
    %102 = arith.addf %96, %101 : vector<324x2xf32>
    %c24_89 = arith.constant 24 : index
    %c0_90 = arith.constant 0 : index
    %103 = vector.load %arg10[%c24_89, %c0_90] : memref<372x64xf32, #tpu.memory_space<vmem>>, vector<324x64xf32>
    %104 = arith.truncf %103 : vector<324x64xf32> to vector<324x64xbf16>
    %c4_91 = arith.constant 4 : index
    %c0_92 = arith.constant 0 : index
    %c0_93 = arith.constant 0 : index
    %105 = vector.load %arg5[%c4_91, %c0_92, %c0_93] : memref<9x64x2xbf16, #tpu.memory_space<vmem>>, vector<1x64x2xbf16>
    %106 = vector.shape_cast %105 : vector<1x64x2xbf16> to vector<64x2xbf16>
    %cst_94 = arith.constant dense<0.000000e+00> : vector<324x2xf32>
    %107 = tpu.matmul %104, %106, %cst_94 {dimension_numbers = #tpu.dot_dimension_numbers<[1], [0], [0], [1], [0, 0, 1, 1], [], []>} : vector<324x64xbf16>, vector<64x2xbf16>, vector<324x2xf32> -> vector<324x2xf32>
    %108 = arith.addf %102, %107 : vector<324x2xf32>
    %c25_95 = arith.constant 25 : index
    %c0_96 = arith.constant 0 : index
    %109 = vector.load %arg10[%c25_95, %c0_96] : memref<372x64xf32, #tpu.memory_space<vmem>>, vector<324x64xf32>
    %110 = arith.truncf %109 : vector<324x64xf32> to vector<324x64xbf16>
    %c5_97 = arith.constant 5 : index
    %c0_98 = arith.constant 0 : index
    %c0_99 = arith.constant 0 : index
    %111 = vector.load %arg5[%c5_97, %c0_98, %c0_99] : memref<9x64x2xbf16, #tpu.memory_space<vmem>>, vector<1x64x2xbf16>
    %112 = vector.shape_cast %111 : vector<1x64x2xbf16> to vector<64x2xbf16>
    %cst_100 = arith.constant dense<0.000000e+00> : vector<324x2xf32>
    %113 = tpu.matmul %110, %112, %cst_100 {dimension_numbers = #tpu.dot_dimension_numbers<[1], [0], [0], [1], [0, 0, 1, 1], [], []>} : vector<324x64xbf16>, vector<64x2xbf16>, vector<324x2xf32> -> vector<324x2xf32>
    %114 = arith.addf %108, %113 : vector<324x2xf32>
    %c41_101 = arith.constant 41 : index
    %c0_102 = arith.constant 0 : index
    %115 = vector.load %arg10[%c41_101, %c0_102] : memref<372x64xf32, #tpu.memory_space<vmem>>, vector<324x64xf32>
    %116 = arith.truncf %115 : vector<324x64xf32> to vector<324x64xbf16>
    %c6_103 = arith.constant 6 : index
    %c0_104 = arith.constant 0 : index
    %c0_105 = arith.constant 0 : index
    %117 = vector.load %arg5[%c6_103, %c0_104, %c0_105] : memref<9x64x2xbf16, #tpu.memory_space<vmem>>, vector<1x64x2xbf16>
    %118 = vector.shape_cast %117 : vector<1x64x2xbf16> to vector<64x2xbf16>
    %cst_106 = arith.constant dense<0.000000e+00> : vector<324x2xf32>
    %119 = tpu.matmul %116, %118, %cst_106 {dimension_numbers = #tpu.dot_dimension_numbers<[1], [0], [0], [1], [0, 0, 1, 1], [], []>} : vector<324x64xbf16>, vector<64x2xbf16>, vector<324x2xf32> -> vector<324x2xf32>
    %120 = arith.addf %114, %119 : vector<324x2xf32>
    %c42_107 = arith.constant 42 : index
    %c0_108 = arith.constant 0 : index
    %121 = vector.load %arg10[%c42_107, %c0_108] : memref<372x64xf32, #tpu.memory_space<vmem>>, vector<324x64xf32>
    %122 = arith.truncf %121 : vector<324x64xf32> to vector<324x64xbf16>
    %c7_109 = arith.constant 7 : index
    %c0_110 = arith.constant 0 : index
    %c0_111 = arith.constant 0 : index
    %123 = vector.load %arg5[%c7_109, %c0_110, %c0_111] : memref<9x64x2xbf16, #tpu.memory_space<vmem>>, vector<1x64x2xbf16>
    %124 = vector.shape_cast %123 : vector<1x64x2xbf16> to vector<64x2xbf16>
    %cst_112 = arith.constant dense<0.000000e+00> : vector<324x2xf32>
    %125 = tpu.matmul %122, %124, %cst_112 {dimension_numbers = #tpu.dot_dimension_numbers<[1], [0], [0], [1], [0, 0, 1, 1], [], []>} : vector<324x64xbf16>, vector<64x2xbf16>, vector<324x2xf32> -> vector<324x2xf32>
    %126 = arith.addf %120, %125 : vector<324x2xf32>
    %c43_113 = arith.constant 43 : index
    %c0_114 = arith.constant 0 : index
    %127 = vector.load %arg10[%c43_113, %c0_114] : memref<372x64xf32, #tpu.memory_space<vmem>>, vector<324x64xf32>
    %128 = arith.truncf %127 : vector<324x64xf32> to vector<324x64xbf16>
    %c8_115 = arith.constant 8 : index
    %c0_116 = arith.constant 0 : index
    %c0_117 = arith.constant 0 : index
    %129 = vector.load %arg5[%c8_115, %c0_116, %c0_117] : memref<9x64x2xbf16, #tpu.memory_space<vmem>>, vector<1x64x2xbf16>
    %130 = vector.shape_cast %129 : vector<1x64x2xbf16> to vector<64x2xbf16>
    %cst_118 = arith.constant dense<0.000000e+00> : vector<324x2xf32>
    %131 = tpu.matmul %128, %130, %cst_118 {dimension_numbers = #tpu.dot_dimension_numbers<[1], [0], [0], [1], [0, 0, 1, 1], [], []>} : vector<324x64xbf16>, vector<64x2xbf16>, vector<324x2xf32> -> vector<324x2xf32>
    %132 = arith.addf %126, %131 : vector<324x2xf32>
    %133 = arith.negf %132 : vector<324x2xf32>
    %134 = math.exp %133 : vector<324x2xf32>
    %cst_119 = arith.constant 1.000000e+00 : f32
    %135 = vector.broadcast %cst_119 : f32 to vector<324x2xf32>
    %136 = arith.addf %135, %134 : vector<324x2xf32>
    %137 = arith.divf %135, %136 : vector<324x2xf32>
    %138 = vector.broadcast %0 : vector<324x1xf32> to vector<324x2xf32>
    %139 = arith.mulf %137, %138 : vector<324x2xf32>
    %c24_120 = arith.constant 24 : index
    %c0_121 = arith.constant 0 : index
    %140 = vector.load %arg11[%c24_120, %c0_121] : memref<372x2xf32, #tpu.memory_space<vmem>>, vector<324x2xf32>
    tpu.vector_store %arg11[%c24_120, %c0_121], %139 {strides = array<i32>} : memref<372x2xf32, #tpu.memory_space<vmem>>, vector<324x2xf32>,
    %cst_122 = arith.constant 0.000000e+00 : f32
    %141 = vector.broadcast %cst_122 : f32 to vector<324x2xf32>
    %c5_123 = arith.constant 5 : index
    %c0_124 = arith.constant 0 : index
    %142 = vector.load %arg11[%c5_123, %c0_124] : memref<372x2xf32, #tpu.memory_space<vmem>>, vector<324x2xf32>
    %c0_125 = arith.constant 0 : index
    %c0_126 = arith.constant 0 : index
    %c0_127 = arith.constant 0 : index
    %143 = vector.load %arg6[%c0_125, %c0_126, %c0_127] : memref<9x1x2xf32, #tpu.memory_space<vmem>>, vector<1x1x2xf32>
    %144 = vector.shape_cast %143 : vector<1x1x2xf32> to vector<1x2xf32>
    %145 = vector.broadcast %144 : vector<1x2xf32> to vector<324x2xf32>
    %146 = arith.mulf %142, %145 : vector<324x2xf32>
    %147 = arith.addf %141, %146 : vector<324x2xf32>
    %c6_128 = arith.constant 6 : index
    %c0_129 = arith.constant 0 : index
    %148 = vector.load %arg11[%c6_128, %c0_129] : memref<372x2xf32, #tpu.memory_space<vmem>>, vector<324x2xf32>
    %c1_130 = arith.constant 1 : index
    %c0_131 = arith.constant 0 : index
    %c0_132 = arith.constant 0 : index
    %149 = vector.load %arg6[%c1_130, %c0_131, %c0_132] : memref<9x1x2xf32, #tpu.memory_space<vmem>>, vector<1x1x2xf32>
    %150 = vector.shape_cast %149 : vector<1x1x2xf32> to vector<1x2xf32>
    %151 = vector.broadcast %150 : vector<1x2xf32> to vector<324x2xf32>
    %152 = arith.mulf %148, %151 : vector<324x2xf32>
    %153 = arith.addf %147, %152 : vector<324x2xf32>
    %c7_133 = arith.constant 7 : index
    %c0_134 = arith.constant 0 : index
    %154 = vector.load %arg11[%c7_133, %c0_134] : memref<372x2xf32, #tpu.memory_space<vmem>>, vector<324x2xf32>
    %c2_135 = arith.constant 2 : index
    %c0_136 = arith.constant 0 : index
    %c0_137 = arith.constant 0 : index
    %155 = vector.load %arg6[%c2_135, %c0_136, %c0_137] : memref<9x1x2xf32, #tpu.memory_space<vmem>>, vector<1x1x2xf32>
    %156 = vector.shape_cast %155 : vector<1x1x2xf32> to vector<1x2xf32>
    %157 = vector.broadcast %156 : vector<1x2xf32> to vector<324x2xf32>
    %158 = arith.mulf %154, %157 : vector<324x2xf32>
    %159 = arith.addf %153, %158 : vector<324x2xf32>
    %c23_138 = arith.constant 23 : index
    %c0_139 = arith.constant 0 : index
    %160 = vector.load %arg11[%c23_138, %c0_139] : memref<372x2xf32, #tpu.memory_space<vmem>>, vector<324x2xf32>
    %c3_140 = arith.constant 3 : index
    %c0_141 = arith.constant 0 : index
    %c0_142 = arith.constant 0 : index
    %161 = vector.load %arg6[%c3_140, %c0_141, %c0_142] : memref<9x1x2xf32, #tpu.memory_space<vmem>>, vector<1x1x2xf32>
    %162 = vector.shape_cast %161 : vector<1x1x2xf32> to vector<1x2xf32>
    %163 = vector.broadcast %162 : vector<1x2xf32> to vector<324x2xf32>
    %164 = arith.mulf %160, %163 : vector<324x2xf32>
    %165 = arith.addf %159, %164 : vector<324x2xf32>
    %c24_143 = arith.constant 24 : index
    %c0_144 = arith.constant 0 : index
    %166 = vector.load %arg11[%c24_143, %c0_144] : memref<372x2xf32, #tpu.memory_space<vmem>>, vector<324x2xf32>
    %c4_145 = arith.constant 4 : index
    %c0_146 = arith.constant 0 : index
    %c0_147 = arith.constant 0 : index
    %167 = vector.load %arg6[%c4_145, %c0_146, %c0_147] : memref<9x1x2xf32, #tpu.memory_space<vmem>>, vector<1x1x2xf32>
    %168 = vector.shape_cast %167 : vector<1x1x2xf32> to vector<1x2xf32>
    %169 = vector.broadcast %168 : vector<1x2xf32> to vector<324x2xf32>
    %170 = arith.mulf %166, %169 : vector<324x2xf32>
    %171 = arith.addf %165, %170 : vector<324x2xf32>
    %c25_148 = arith.constant 25 : index
    %c0_149 = arith.constant 0 : index
    %172 = vector.load %arg11[%c25_148, %c0_149] : memref<372x2xf32, #tpu.memory_space<vmem>>, vector<324x2xf32>
    %c5_150 = arith.constant 5 : index
    %c0_151 = arith.constant 0 : index
    %c0_152 = arith.constant 0 : index
    %173 = vector.load %arg6[%c5_150, %c0_151, %c0_152] : memref<9x1x2xf32, #tpu.memory_space<vmem>>, vector<1x1x2xf32>
    %174 = vector.shape_cast %173 : vector<1x1x2xf32> to vector<1x2xf32>
    %175 = vector.broadcast %174 : vector<1x2xf32> to vector<324x2xf32>
    %176 = arith.mulf %172, %175 : vector<324x2xf32>
    %177 = arith.addf %171, %176 : vector<324x2xf32>
    %c41_153 = arith.constant 41 : index
    %c0_154 = arith.constant 0 : index
    %178 = vector.load %arg11[%c41_153, %c0_154] : memref<372x2xf32, #tpu.memory_space<vmem>>, vector<324x2xf32>
    %c6_155 = arith.constant 6 : index
    %c0_156 = arith.constant 0 : index
    %c0_157 = arith.constant 0 : index
    %179 = vector.load %arg6[%c6_155, %c0_156, %c0_157] : memref<9x1x2xf32, #tpu.memory_space<vmem>>, vector<1x1x2xf32>
    %180 = vector.shape_cast %179 : vector<1x1x2xf32> to vector<1x2xf32>
    %181 = vector.broadcast %180 : vector<1x2xf32> to vector<324x2xf32>
    %182 = arith.mulf %178, %181 : vector<324x2xf32>
    %183 = arith.addf %177, %182 : vector<324x2xf32>
    %c42_158 = arith.constant 42 : index
    %c0_159 = arith.constant 0 : index
    %184 = vector.load %arg11[%c42_158, %c0_159] : memref<372x2xf32, #tpu.memory_space<vmem>>, vector<324x2xf32>
    %c7_160 = arith.constant 7 : index
    %c0_161 = arith.constant 0 : index
    %c0_162 = arith.constant 0 : index
    %185 = vector.load %arg6[%c7_160, %c0_161, %c0_162] : memref<9x1x2xf32, #tpu.memory_space<vmem>>, vector<1x1x2xf32>
    %186 = vector.shape_cast %185 : vector<1x1x2xf32> to vector<1x2xf32>
    %187 = vector.broadcast %186 : vector<1x2xf32> to vector<324x2xf32>
    %188 = arith.mulf %184, %187 : vector<324x2xf32>
    %189 = arith.addf %183, %188 : vector<324x2xf32>
    %c43_163 = arith.constant 43 : index
    %c0_164 = arith.constant 0 : index
    %190 = vector.load %arg11[%c43_163, %c0_164] : memref<372x2xf32, #tpu.memory_space<vmem>>, vector<324x2xf32>
    %c8_165 = arith.constant 8 : index
    %c0_166 = arith.constant 0 : index
    %c0_167 = arith.constant 0 : index
    %191 = vector.load %arg6[%c8_165, %c0_166, %c0_167] : memref<9x1x2xf32, #tpu.memory_space<vmem>>, vector<1x1x2xf32>
    %192 = vector.shape_cast %191 : vector<1x1x2xf32> to vector<1x2xf32>
    %193 = vector.broadcast %192 : vector<1x2xf32> to vector<324x2xf32>
    %194 = arith.mulf %190, %193 : vector<324x2xf32>
    %195 = arith.addf %189, %194 : vector<324x2xf32>
    %cst_168 = arith.constant dense<0.000000e+00> : vector<324xf32>
    %196 = vector.multi_reduction <add>, %195, %cst_168 [1] : vector<324x2xf32> to vector<324xf32>
    %197 = vector.shape_cast %196 : vector<324xf32> to vector<324x1xf32>
    %198 = arith.negf %197 : vector<324x1xf32>
    %199 = math.exp %198 : vector<324x1xf32>
    %cst_169 = arith.constant 1.000000e+00 : f32
    %200 = vector.broadcast %cst_169 : f32 to vector<324x1xf32>
    %201 = arith.addf %200, %199 : vector<324x1xf32>
    %202 = arith.divf %200, %201 : vector<324x1xf32>
    %203 = arith.mulf %202, %0 : vector<324x1xf32>
    %c0_170 = arith.constant 0 : index
    %c0_171 = arith.constant 0 : index
    %c0_172 = arith.constant 0 : index
    %204 = vector.load %arg2[%c0_170, %c0_171, %c0_172] : memref<1x324x32xf32, #tpu.memory_space<vmem>>, vector<1x324x32xf32>
    %205 = vector.shape_cast %204 : vector<1x324x32xf32> to vector<324x32xf32>
    %cst_173 = arith.constant dense<0.000000e+00> : vector<32xf32>
    %206 = vector.multi_reduction <add>, %205, %cst_173 [0] : vector<324x32xf32> to vector<32xf32>
    %207 = vector.shape_cast %206 : vector<32xf32> to vector<1x32xf32>
    %cst_174 = arith.constant 3.906250e-03 : f32
    %208 = vector.broadcast %cst_174 : f32 to vector<1x32xf32>
    %209 = arith.mulf %207, %208 : vector<1x32xf32>
    %c0_175 = arith.constant 0 : index
    %c0_176 = arith.constant 0 : index
    %210 = vector.load %arg7[%c0_175, %c0_176] : memref<32x2xf32, #tpu.memory_space<vmem>>, vector<32x2xf32>
    %cst_177 = arith.constant dense<0.000000e+00> : vector<1x2xf32>
    %211 = tpu.matmul %209, %210, %cst_177 {dimension_numbers = #tpu.dot_dimension_numbers<[1], [0], [0], [1], [0, 0, 1, 1], [], []>} : vector<1x32xf32>, vector<32x2xf32>, vector<1x2xf32> -> vector<1x2xf32>
    %cst_178 = arith.constant 0.000000e+00 : f32
    %212 = vector.broadcast %cst_178 : f32 to vector<1x2xf32>
    %213 = arith.maximumf %211, %212 : vector<1x2xf32>
    %c0_179 = arith.constant 0 : index
    %c0_180 = arith.constant 0 : index
    %214 = vector.load %arg8[%c0_179, %c0_180] : memref<2x32xf32, #tpu.memory_space<vmem>>, vector<2x32xf32>
    %cst_181 = arith.constant dense<0.000000e+00> : vector<1x32xf32>
    %215 = tpu.matmul %213, %214, %cst_181 {dimension_numbers = #tpu.dot_dimension_numbers<[1], [0], [0], [1], [0, 0, 1, 1], [], []>} : vector<1x2xf32>, vector<2x32xf32>, vector<1x32xf32> -> vector<1x32xf32>
    %216 = arith.negf %215 : vector<1x32xf32>
    %217 = math.exp %216 : vector<1x32xf32>
    %cst_182 = arith.constant 1.000000e+00 : f32
    %218 = vector.broadcast %cst_182 : f32 to vector<1x32xf32>
    %219 = arith.addf %218, %217 : vector<1x32xf32>
    %220 = arith.divf %218, %219 : vector<1x32xf32>
    %221 = vector.broadcast %220 : vector<1x32xf32> to vector<324x32xf32>
    %222 = arith.mulf %205, %221 : vector<324x32xf32>
    %223 = vector.broadcast %203 : vector<324x1xf32> to vector<324x32xf32>
    %224 = arith.mulf %222, %223 : vector<324x32xf32>
    %c0_183 = arith.constant 0 : index
    %c0_184 = arith.constant 0 : index
    %c0_185 = arith.constant 0 : index
    %225 = vector.load %arg9[%c0_183, %c0_184, %c0_185] : memref<1x324x32xf32, #tpu.memory_space<vmem>>, vector<1x324x32xf32>
    %226 = vector.shape_cast %225 : vector<1x324x32xf32> to vector<324x32xf32>
    %227 = vector.shape_cast %224 : vector<324x32xf32> to vector<1x324x32xf32>
    tpu.vector_store %arg9[%c0_183, %c0_184, %c0_185], %227 {strides = array<i32>} : memref<1x324x32xf32, #tpu.memory_space<vmem>>, vector<1x324x32xf32>,
    return
  }
  func.func @transform_0(%arg0: i32) -> (i32, i32, i32) {
    %c0_i32 = arith.constant 0 : i32
    %c0_i32_0 = arith.constant 0 : i32
    %c0_i32_1 = arith.constant 0 : i32
    return %arg0, %c0_i32, %c0_i32_0 : i32, i32, i32
  }
  func.func @transform_1(%arg0: i32) -> (i32, i32, i32) {
    %c0_i32 = arith.constant 0 : i32
    %c0_i32_0 = arith.constant 0 : i32
    %c0_i32_1 = arith.constant 0 : i32
    return %arg0, %c0_i32, %c0_i32_0 : i32, i32, i32
  }
  func.func @transform_2(%arg0: i32) -> (i32, i32) {
    %c0_i32 = arith.constant 0 : i32
    %c0_i32_0 = arith.constant 0 : i32
    %c0_i32_1 = arith.constant 0 : i32
    return %c0_i32, %c0_i32_0 : i32, i32
  }
  func.func @transform_3(%arg0: i32) -> (i32, i32, i32) {
    %c0_i32 = arith.constant 0 : i32
    %c0_i32_0 = arith.constant 0 : i32
    %c0_i32_1 = arith.constant 0 : i32
    %c0_i32_2 = arith.constant 0 : i32
    return %c0_i32, %c0_i32_0, %c0_i32_1 : i32, i32, i32
  }
  func.func @transform_4(%arg0: i32) -> (i32, i32, i32) {
    %c0_i32 = arith.constant 0 : i32
    %c0_i32_0 = arith.constant 0 : i32
    %c0_i32_1 = arith.constant 0 : i32
    %c0_i32_2 = arith.constant 0 : i32
    return %c0_i32, %c0_i32_0, %c0_i32_1 : i32, i32, i32
  }
  func.func @transform_5(%arg0: i32) -> (i32, i32, i32) {
    %c0_i32 = arith.constant 0 : i32
    %c0_i32_0 = arith.constant 0 : i32
    %c0_i32_1 = arith.constant 0 : i32
    %c0_i32_2 = arith.constant 0 : i32
    return %c0_i32, %c0_i32_0, %c0_i32_1 : i32, i32, i32
  }
  func.func @transform_6(%arg0: i32) -> (i32, i32) {
    %c0_i32 = arith.constant 0 : i32
    %c0_i32_0 = arith.constant 0 : i32
    %c0_i32_1 = arith.constant 0 : i32
    return %c0_i32, %c0_i32_0 : i32, i32
  }
  func.func @transform_7(%arg0: i32) -> (i32, i32) {
    %c0_i32 = arith.constant 0 : i32
    %c0_i32_0 = arith.constant 0 : i32
    %c0_i32_1 = arith.constant 0 : i32
    return %c0_i32, %c0_i32_0 : i32, i32
  }
  func.func @transform_8(%arg0: i32) -> (i32, i32, i32) {
    %c0_i32 = arith.constant 0 : i32
    %c0_i32_0 = arith.constant 0 : i32
    %c0_i32_1 = arith.constant 0 : i32
    return %arg0, %c0_i32, %c0_i32_0 : i32, i32, i32
  }
}

</mosaic_0001>

<llo_original>
// kernel: three_head_attention.2
$region0: #{three_head_attention.2}
  #allocation0 [shape = 'u32[]', space=smem, size = 0x4, offset = 0x4, fixed_abs, tag = 'smem constant byte address 0x4 - core index']
  #allocation1 [shape = 'u32[144,128]{1,0:T(1,128)}', space=vmem, size = 0x12000, scoped, tag = 'internal scratch']
  %s0 = inlined_call_operand.vmem [shape: f32[128,64], index: 0, kind: input, shape index: {}]
  %s1 = inlined_call_operand.vmem [shape: f32[64,128], index: 1, kind: input, shape index: {}]
  %s2 = inlined_call_operand.vmem [shape: bf16[128,128], index: 2, kind: output, shape index: {}]
  %s3 = sld [smem:[#allocation0]]
  $region18: #{three_head_attention.2} parent=0
    _
  %s5 = ssub.s32 1, %s3
  %s6 = scalar_select 0, %s5, %s3
  // Predicated region
  $region2: #{three_head_attention.2} parent=0 // pred_check
    _
  $region3: #{three_head_attention.2} parent=0 // pred_check_branch
    %8 = sbr.rel (0) target = $region5
  $region4: #{three_head_attention.2} parent=0 // pred_region
    _
  $region5: #{three_head_attention.2} parent=0 // pred_fallthru
    _
  // Predicated region
  $region6: #{three_head_attention.2} parent=0 // pred_check
    _
  $region7: #{three_head_attention.2} parent=0 // pred_check_branch
    %10 = sbr.rel (0) target = $region9
  $region8: #{three_head_attention.2} parent=0 // pred_region
    _
  $region9: #{three_head_attention.2} parent=0 // pred_fallthru
    _
  %v12 = vld [vmem:[%s0] sm:$0xff]
  %v13 = vld [vmem:[%s0 + $0x8] sm:$0xff]
  %v14 = vld [vmem:[%s0 + $0x10] sm:$0xff]
  %v15 = vld [vmem:[%s0 + $0x18] sm:$0xff]
  %v16 = vld [vmem:[%s0 + $0x20] sm:$0xff]
  %v17 = vld [vmem:[%s0 + $0x28] sm:$0xff]
  %v18 = vld [vmem:[%s0 + $0x30] sm:$0xff]
  %v19 = vld [vmem:[%s0 + $0x38] sm:$0xff]
  %v20 = vld [vmem:[%s0 + $0x40] sm:$0xff]
  %v21 = vld [vmem:[%s0 + $0x48] sm:$0xff]
  %v22 = vld [vmem:[%s0 + $0x50] sm:$0xff]
  %v23 = vld [vmem:[%s0 + $0x58] sm:$0xff]
  %v24 = vld [vmem:[%s0 + $0x60] sm:$0xff]
  %v25 = vld [vmem:[%s0 + $0x68] sm:$0xff]
  %v26 = vld [vmem:[%s0 + $0x70] sm:$0xff]
  %v27 = vld [vmem:[%s0 + $0x78] sm:$0xff]
  %v28 = vpack.c.bf16 %v13, %v12
  %v29 = vpack.c.bf16 %v15, %v14
  %v30 = vpack.c.bf16 %v17, %v16
  %v31 = vpack.c.bf16 %v19, %v18
  %v32 = vpack.c.bf16 %v21, %v20
  %v33 = vpack.c.bf16 %v23, %v22
  %v34 = vpack.c.bf16 %v25, %v24
  %v35 = vpack.c.bf16 %v27, %v26
  %v36 = vld [vmem:[%s1] sm:$0xff]
  %v37 = vld [vmem:[%s1 + $0x8] sm:$0xff]
  %v38 = vld [vmem:[%s1 + $0x10] sm:$0xff]
  %v39 = vld [vmem:[%s1 + $0x18] sm:$0xff]
  %v40 = vld [vmem:[%s1 + $0x20] sm:$0xff]
  %v41 = vld [vmem:[%s1 + $0x28] sm:$0xff]
  %v42 = vld [vmem:[%s1 + $0x30] sm:$0xff]
  %v43 = vld [vmem:[%s1 + $0x38] sm:$0xff]
  %v44 = vpack.c.bf16 %v37, %v36
  %v45 = vpack.c.bf16 %v39, %v38
  %v46 = vpack.c.bf16 %v41, %v40
  %v47 = vpack.c.bf16 %v43, %v42
  %vm48 = vcmask 523264
  %v50 = vsel %vm48, %v28, 0
  %v53 = vsel %vm48, %v29, 0
  %v56 = vsel %vm48, %v30, 0
  %v59 = vsel %vm48, %v31, 0
  %v62 = vsel %vm48, %v32, 0
  %v65 = vsel %vm48, %v33, 0
  %v68 = vsel %vm48, %v34, 0
  %v71 = vsel %vm48, %v35, 0
  %73 = vmatprep.subr.bf16.mxu0 0
  %74 = vmatpush1.bf16.msra.mxu0 0
  %75 = vmatprep.subr.bf16.mxu0 0
  %76 = vmatpush1.bf16.msra.mxu0 0
  %77 = vmatprep.subr.bf16.mxu0 0
  %78 = vmatpush1.bf16.msra.mxu0 0
  %79 = vmatprep.subr.bf16.mxu0 0
  %80 = vmatpush1.bf16.msra.mxu0 0
  %81 = vmatprep.subr.bf16.mxu0 0
  %82 = vmatpush1.bf16.msra.mxu0 %v47
  %83 = vmatprep.subr.bf16.mxu0 0
  %84 = vmatpush1.bf16.msra.mxu0 %v46
  %85 = vmatprep.subr.bf16.mxu0 0
  %86 = vmatpush1.bf16.msra.mxu0 %v45
  %87 = vmatprep.subr.bf16.mxu0 0
  %88 = vmatpush1.bf16.msra.mxu0 %v44
  %89 = vmatprep.subr.bf16.mxu0 0
  %90 = vmatpush2.bf16.msra.mxu0 0
  %91 = vmatprep.subr.bf16.mxu0 0
  %92 = vmatpush2.bf16.msra.mxu0 0
  %93 = vmatprep.subr.bf16.mxu0 0
  %94 = vmatpush2.bf16.msra.mxu0 0
  %95 = vmatprep.subr.bf16.mxu0 0
  %96 = vmatpush2.bf16.msra.mxu0 0
  %97 = vmatprep.subr.bf16.mxu0 0
  %98 = vmatpush2.bf16.msra.mxu0 0
  %99 = vmatprep.subr.bf16.mxu0 0
  %100 = vmatpush2.bf16.msra.mxu0 0
  %101 = vmatprep.subr.bf16.mxu0 0
  %102 = vmatpush2.bf16.msra.mxu0 0
  %103 = vmatprep.subr.bf16.mxu0 0
  %104 = vmatpush2.bf16.msra.mxu0 0
  %105 = vmatprep.mubr.bf16.mxu0 0
  %106 = vmatmul.mubr.bf16.gmra.mxu0 %v50
  %v107 = vpop.f32.mrf.mxu0
  %v108 = vadd.f32 0.0, %v107
  %v109 = vpop.f32.mrf.mxu0
  %v110 = vpop.f32.mrf.mxu0
  %v111 = vadd.f32 0.0, %v110
  %v112 = vpop.f32.mrf.mxu0
  %113 = vmatprep.mubr.bf16.mxu0 0
  %114 = vmatmul.mubr.bf16.gmra.mxu0 %v53
  %v115 = vpop.f32.mrf.mxu0
  %v116 = vadd.f32 0.0, %v115
  %v117 = vpop.f32.mrf.mxu0
  %v118 = vpop.f32.mrf.mxu0
  %v119 = vadd.f32 0.0, %v118
  %v120 = vpop.f32.mrf.mxu0
  %121 = vmatprep.mubr.bf16.mxu0 0
  %122 = vmatmul.mubr.bf16.gmra.mxu0 %v56
  %v123 = vpop.f32.mrf.mxu0
  %v124 = vadd.f32 0.0, %v123
  %v125 = vpop.f32.mrf.mxu0
  %v126 = vpop.f32.mrf.mxu0
  %v127 = vadd.f32 0.0, %v126
  %v128 = vpop.f32.mrf.mxu0
  %129 = vmatprep.mubr.bf16.mxu0 0
  %130 = vmatmul.mubr.bf16.gmra.mxu0 %v59
  %v131 = vpop.f32.mrf.mxu0
  %v132 = vadd.f32 0.0, %v131
  %v133 = vpop.f32.mrf.mxu0
  %v134 = vpop.f32.mrf.mxu0
  %v135 = vadd.f32 0.0, %v134
  %v136 = vpop.f32.mrf.mxu0
  %137 = vmatprep.mubr.bf16.mxu0 0
  %138 = vmatmul.mubr.bf16.gmra.mxu0 %v62
  %v139 = vpop.f32.mrf.mxu0
  %v140 = vadd.f32 0.0, %v139
  %v141 = vpop.f32.mrf.mxu0
  %v142 = vpop.f32.mrf.mxu0
  %v143 = vadd.f32 0.0, %v142
  %v144 = vpop.f32.mrf.mxu0
  %145 = vmatprep.mubr.bf16.mxu0 0
  %146 = vmatmul.mubr.bf16.gmra.mxu0 %v65
  %v147 = vpop.f32.mrf.mxu0
  %v148 = vadd.f32 0.0, %v147
  %v149 = vpop.f32.mrf.mxu0
  %v150 = vpop.f32.mrf.mxu0
  %v151 = vadd.f32 0.0, %v150
  %v152 = vpop.f32.mrf.mxu0
  %153 = vmatprep.mubr.bf16.mxu0 0
  %154 = vmatmul.mubr.bf16.gmra.mxu0 %v68
  %v155 = vpop.f32.mrf.mxu0
  %v156 = vadd.f32 0.0, %v155
  %v157 = vpop.f32.mrf.mxu0
  %v158 = vpop.f32.mrf.mxu0
  %v159 = vadd.f32 0.0, %v158
  %v160 = vpop.f32.mrf.mxu0
  %161 = vmatprep.mubr.bf16.mxu0 0
  %162 = vmatmul.mubr.bf16.gmra.mxu0 %v71
  %v163 = vpop.f32.mrf.mxu0
  %v164 = vadd.f32 0.0, %v163
  %v165 = vpop.f32.mrf.mxu0
  %v166 = vpop.f32.mrf.mxu0
  %v167 = vadd.f32 0.0, %v166
  %v168 = vpop.f32.mrf.mxu0
  %169 = vdwg.mxu0
  %v170 = vpack.c.bf16 %v111, %v108
  %v171 = vpack.c.bf16 %v119, %v116
  %v172 = vpack.c.bf16 %v127, %v124
  %v173 = vpack.c.bf16 %v135, %v132
  %v174 = vpack.c.bf16 %v143, %v140
  %v175 = vpack.c.bf16 %v151, %v148
  %v176 = vpack.c.bf16 %v159, %v156
  %v177 = vpack.c.bf16 %v167, %v164
  %v186 = vunpack.c.l.b16 %v170
  %v187 = vunpack.c.h.b16 %v170
  %v188 = vunpack.c.l.b16 %v171
  %v189 = vunpack.c.h.b16 %v171
  %v190 = vunpack.c.l.b16 %v172
  %v191 = vunpack.c.h.b16 %v172
  %v192 = vunpack.c.l.b16 %v173
  %v193 = vunpack.c.h.b16 %v173
  %v194 = vunpack.c.l.b16 %v174
  %v195 = vunpack.c.h.b16 %v174
  %v196 = vunpack.c.l.b16 %v175
  %v197 = vunpack.c.h.b16 %v175
  %v198 = vunpack.c.l.b16 %v176
  %v199 = vunpack.c.h.b16 %v176
  %v200 = vunpack.c.l.b16 %v177
  %v201 = vunpack.c.h.b16 %v177
  %v202 = vpack.c.b16 %v186, %v186
  %v203 = vpack.c.b16 %v187, %v187
  %v204 = vpack.c.b16 %v188, %v188
  %v205 = vpack.c.b16 %v189, %v189
  %v206 = vpack.c.b16 %v190, %v190
  %v207 = vpack.c.b16 %v191, %v191
  %v208 = vpack.c.b16 %v192, %v192
  %v209 = vpack.c.b16 %v193, %v193
  %v210 = vpack.c.b16 %v194, %v194
  %v211 = vpack.c.b16 %v195, %v195
  %v212 = vpack.c.b16 %v196, %v196
  %v213 = vpack.c.b16 %v197, %v197
  %v214 = vpack.c.b16 %v198, %v198
  %v215 = vpack.c.b16 %v199, %v199
  %v216 = vpack.c.b16 %v200, %v200
  %v217 = vpack.c.b16 %v201, %v201
  %234 = vst [vmem:[%s2] sm:$0xf] %v202
  %235 = vst [vmem:[%s2 + $0x4] sm:$0xf] %v203
  %236 = vst [vmem:[%s2 + $0x8] sm:$0xf] %v204
  %237 = vst [vmem:[%s2 + $0xc] sm:$0xf] %v205
  %238 = vst [vmem:[%s2 + $0x10] sm:$0xf] %v206
  %239 = vst [vmem:[%s2 + $0x14] sm:$0xf] %v207
  %240 = vst [vmem:[%s2 + $0x18] sm:$0xf] %v208
  %241 = vst [vmem:[%s2 + $0x1c] sm:$0xf] %v209
  %242 = vst [vmem:[%s2 + $0x20] sm:$0xf] %v210
  %243 = vst [vmem:[%s2 + $0x24] sm:$0xf] %v211
  %244 = vst [vmem:[%s2 + $0x28] sm:$0xf] %v212
  %245 = vst [vmem:[%s2 + $0x2c] sm:$0xf] %v213
  %246 = vst [vmem:[%s2 + $0x30] sm:$0xf] %v214
  %247 = vst [vmem:[%s2 + $0x34] sm:$0xf] %v215
  %248 = vst [vmem:[%s2 + $0x38] sm:$0xf] %v216
  %249 = vst [vmem:[%s2 + $0x3c] sm:$0xf] %v217
  // Predicated region
  $region10: #{three_head_attention.2} parent=0 // pred_check
    _
  $region11: #{three_head_attention.2} parent=0 // pred_check_branch
    %251 = sbr.rel (0) target = $region13
  $region12: #{three_head_attention.2} parent=0 // pred_region
    _
  $region13: #{three_head_attention.2} parent=0 // pred_fallthru
    _
  // Predicated region
  $region14: #{three_head_attention.2} parent=0 // pred_check
    _
  $region15: #{three_head_attention.2} parent=0 // pred_check_branch
    %253 = sbr.rel (0) target = $region17
  $region16: #{three_head_attention.2} parent=0 // pred_region
    _
  $region17: #{three_head_attention.2} parent=0 // pred_fallthru
    _

// kernel: three_head_attention.3
$region0: #{three_head_attention.3}
  #allocation0 [shape = 'u32[]', space=smem, size = 0x4, offset = 0x4, fixed_abs, tag = 'smem constant byte address 0x4 - core index']
  #allocation1 [shape = 'u32[144,128]{1,0:T(1,128)}', space=vmem, size = 0x12000, scoped, tag = 'internal scratch']
  #allocation2 [shape = 'f32[372,64]{1,0:T(8,128)}', space=vmem, size = 0x2f000, scoped, tag = 'scratch operand']
  #allocation3 [shape = 'f32[372,2]{1,0:T(8,128)}', space=vmem, size = 0x2f000, scoped, tag = 'scratch operand']
  %s0 = inlined_call_operand.vmem [shape: f32[2,372,64], index: 0, kind: input, shape index: {}]
  %s1 = inlined_call_operand.vmem [shape: f32[2,324,32], index: 1, kind: input, shape index: {}]
  %s2 = inlined_call_operand.vmem [shape: f32[324,1], index: 2, kind: input, shape index: {}]
  %s3 = inlined_call_operand.vmem [shape: bf16[9,64,64], index: 3, kind: input, shape index: {}]
  %s4 = inlined_call_operand.vmem [shape: bf16[9,64,2], index: 4, kind: input, shape index: {}]
  %s5 = inlined_call_operand.vmem [shape: f32[9,1,2], index: 5, kind: input, shape index: {}]
  %s6 = inlined_call_operand.vmem [shape: f32[32,2], index: 6, kind: input, shape index: {}]
  %s7 = inlined_call_operand.vmem [shape: f32[2,32], index: 7, kind: input, shape index: {}]
  %s8 = inlined_call_operand.vmem [shape: f32[2,324,32], index: 8, kind: output, shape index: {}]
  %s9 = sld [smem:[#allocation0]]
  $region65: #{three_head_attention.3} parent=0
    _
  %s11 = ssub.s32 1, %s9
  %s12 = scalar_select 0, %s11, %s9
  loop: start=0, step=1, limit=4
  $region2: #{three_head_attention.3} parent=0 // loop_pre_header
    _
  $region3: #{three_head_attention.3} parent=0 // loop_header
    %s14 = sphi 0, %s18
    %p15 = scmp.ge.s32.totalorder %s14, 4
    %s24 = sphi 0, %s26
    %s27 = sphi 0, %s24
    %s28 = sphi 0, %s27
    %s44 = sphi 0, %s28
    %s50 = sphi 0, %s52
    %s53 = sphi 0, %s50
    %s54 = sphi 0, %s53
    %s70 = sphi 0, %s54
    %s74 = sphi 0, %s74
    %s76 = sphi 0, %s74
    %s77 = sphi 0, %s76
    %s91 = sphi 0, %s77
    %s95 = sphi 0, %s95
    %s97 = sphi 0, %s95
    %s98 = sphi 0, %s97
    %s112 = sphi 0, %s98
    %s116 = sphi 0, %s116
    %s118 = sphi 0, %s116
    %s119 = sphi 0, %s118
    %s133 = sphi 0, %s119
    %s137 = sphi 0, %s137
    %s139 = sphi 0, %s137
    %s140 = sphi 0, %s139
    %s154 = sphi 0, %s140
    %s158 = sphi 0, %s158
    %s160 = sphi 0, %s158
    %s161 = sphi 0, %s160
    %s175 = sphi 0, %s161
    %s179 = sphi 0, %s179
    %s181 = sphi 0, %s179
    %s182 = sphi 0, %s181
    %s196 = sphi 0, %s182
    %s202 = sphi 0, %s204
    %s205 = sphi 0, %s202
    %s206 = sphi 0, %s205
    %s222 = sphi 0, %s206
  $region4: #{three_head_attention.3} parent=0 // loop_header_branch
    %17 = sbr.rel (%p15) target = $region8
  $region5: #{three_head_attention.3} parent=0 // loop_body
    %s19 = ssub.s32 %s14, 1
    %s20 = ssub.s32 %s14, 2
    %s21 = sadd.s32 %s14, 1
    %s22 = ssub.s32 %s14, %s21
    %p23 = scmp.eq.s32.totalorder %s22, 0
    %s25 = sadd.s32 %s24, 1
    %s26 = scalar_select %p23, %s24, %s25
    %p29 = pneg %p23
    %p30 = scmp.eq.s32.totalorder %s14, 1
    %p31 = por %p29, %p30
    %p32 = scmp.ne.s32.totalorder %s24, %s27
    %p33 = scmp.eq.s32.totalorder %s14, 0
    %p34 = por %p32, %p33
    %p35 = scmp.ne.s32.totalorder %s24, %s27
    %p36 = scmp.eq.s32.totalorder %s19, 1
    %p37 = por %p35, %p36
    %p38 = scmp.ne.s32.totalorder %s27, %s28
    %p39 = scmp.eq.s32.totalorder %s19, 0
    %p40 = por %p38, %p39
    %p41 = scmp.ne.s32.totalorder %s27, %s28
    %p42 = scmp.eq.s32.totalorder %s20, 1
    %p43 = por %p41, %p42
    %p45 = scmp.ne.s32.totalorder %s28, %s44
    %p46 = scmp.eq.s32.totalorder %s20, 0
    %p47 = por %p45, %p46
    %s48 = ssub.s32 %s14, %s21
    %p49 = scmp.eq.s32.totalorder %s48, 0
    %s51 = sadd.s32 %s50, 1
    %s52 = scalar_select %p49, %s50, %s51
    %p55 = pneg %p49
    %p56 = scmp.eq.s32.totalorder %s14, 1
    %p57 = por %p55, %p56
    %p58 = scmp.ne.s32.totalorder %s50, %s53
    %p59 = scmp.eq.s32.totalorder %s14, 0
    %p60 = por %p58, %p59
    %p61 = scmp.ne.s32.totalorder %s50, %s53
    %p62 = scmp.eq.s32.totalorder %s19, 1
    %p63 = por %p61, %p62
    %p64 = scmp.ne.s32.totalorder %s53, %s54
    %p65 = scmp.eq.s32.totalorder %s19, 0
    %p66 = por %p64, %p65
    %p67 = scmp.ne.s32.totalorder %s53, %s54
    %p68 = scmp.eq.s32.totalorder %s20, 1
    %p69 = por %p67, %p68
    %p71 = scmp.ne.s32.totalorder %s54, %s70
    %p72 = scmp.eq.s32.totalorder %s20, 0
    %p73 = por %p71, %p72
    %s75 = sadd.s32 %s74, 1
    %p78 = scmp.eq.s32.totalorder %s14, 1
    %p79 = scmp.ne.s32.totalorder %s74, %s76
    %p80 = scmp.eq.s32.totalorder %s14, 0
    %p81 = por %p79, %p80
    %p82 = scmp.ne.s32.totalorder %s74, %s76
    %p83 = scmp.eq.s32.totalorder %s19, 1
    %p84 = por %p82, %p83
    %p85 = scmp.ne.s32.totalorder %s76, %s77
    %p86 = scmp.eq.s32.totalorder %s19, 0
    %p87 = por %p85, %p86
    %p88 = scmp.ne.s32.totalorder %s76, %s77
    %p89 = scmp.eq.s32.totalorder %s20, 1
    %p90 = por %p88, %p89
    %p92 = scmp.ne.s32.totalorder %s77, %s91
    %p93 = scmp.eq.s32.totalorder %s20, 0
    %p94 = por %p92, %p93
    %s96 = sadd.s32 %s95, 1
    %p99 = scmp.eq.s32.totalorder %s14, 1
    %p100 = scmp.ne.s32.totalorder %s95, %s97
    %p101 = scmp.eq.s32.totalorder %s14, 0
    %p102 = por %p100, %p101
    %p103 = scmp.ne.s32.totalorder %s95, %s97
    %p104 = scmp.eq.s32.totalorder %s19, 1
    %p105 = por %p103, %p104
    %p106 = scmp.ne.s32.totalorder %s97, %s98
    %p107 = scmp.eq.s32.totalorder %s19, 0
    %p108 = por %p106, %p107
    %p109 = scmp.ne.s32.totalorder %s97, %s98
    %p110 = scmp.eq.s32.totalorder %s20, 1
    %p111 = por %p109, %p110
    %p113 = scmp.ne.s32.totalorder %s98, %s112
    %p114 = scmp.eq.s32.totalorder %s20, 0
    %p115 = por %p113, %p114
    %s117 = sadd.s32 %s116, 1
    %p120 = scmp.eq.s32.totalorder %s14, 1
    %p121 = scmp.ne.s32.totalorder %s116, %s118
    %p122 = scmp.eq.s32.totalorder %s14, 0
    %p123 = por %p121, %p122
    %p124 = scmp.ne.s32.totalorder %s116, %s118
    %p125 = scmp.eq.s32.totalorder %s19, 1
    %p126 = por %p124, %p125
    %p127 = scmp.ne.s32.totalorder %s118, %s119
    %p128 = scmp.eq.s32.totalorder %s19, 0
    %p129 = por %p127, %p128
    %p130 = scmp.ne.s32.totalorder %s118, %s119
    %p131 = scmp.eq.s32.totalorder %s20, 1
    %p132 = por %p130, %p131
    %p134 = scmp.ne.s32.totalorder %s119, %s133
    %p135 = scmp.eq.s32.totalorder %s20, 0
    %p136 = por %p134, %p135
    %s138 = sadd.s32 %s137, 1
    %p141 = scmp.eq.s32.totalorder %s14, 1
    %p142 = scmp.ne.s32.totalorder %s137, %s139
    %p143 = scmp.eq.s32.totalorder %s14, 0
    %p144 = por %p142, %p143
    %p145 = scmp.ne.s32.totalorder %s137, %s139
    %p146 = scmp.eq.s32.totalorder %s19, 1
    %p147 = por %p145, %p146
    %p148 = scmp.ne.s32.totalorder %s139, %s140
    %p149 = scmp.eq.s32.totalorder %s19, 0
    %p150 = por %p148, %p149
    %p151 = scmp.ne.s32.totalorder %s139, %s140
    %p152 = scmp.eq.s32.totalorder %s20, 1
    %p153 = por %p151, %p152
    %p155 = scmp.ne.s32.totalorder %s140, %s154
    %p156 = scmp.eq.s32.totalorder %s20, 0
    %p157 = por %p155, %p156
    %s159 = sadd.s32 %s158, 1
    %p162 = scmp.eq.s32.totalorder %s14, 1
    %p163 = scmp.ne.s32.totalorder %s158, %s160
    %p164 = scmp.eq.s32.totalorder %s14, 0
    %p165 = por %p163, %p164
    %p166 = scmp.ne.s32.totalorder %s158, %s160
    %p167 = scmp.eq.s32.totalorder %s19, 1
    %p168 = por %p166, %p167
    %p169 = scmp.ne.s32.totalorder %s160, %s161
    %p170 = scmp.eq.s32.totalorder %s19, 0
    %p171 = por %p169, %p170
    %p172 = scmp.ne.s32.totalorder %s160, %s161
    %p173 = scmp.eq.s32.totalorder %s20, 1
    %p174 = por %p172, %p173
    %p176 = scmp.ne.s32.totalorder %s161, %s175
    %p177 = scmp.eq.s32.totalorder %s20, 0
    %p178 = por %p176, %p177
    %s180 = sadd.s32 %s179, 1
    %p183 = scmp.eq.s32.totalorder %s14, 1
    %p184 = scmp.ne.s32.totalorder %s179, %s181
    %p185 = scmp.eq.s32.totalorder %s14, 0
    %p186 = por %p184, %p185
    %p187 = scmp.ne.s32.totalorder %s179, %s181
    %p188 = scmp.eq.s32.totalorder %s19, 1
    %p189 = por %p187, %p188
    %p190 = scmp.ne.s32.totalorder %s181, %s182
    %p191 = scmp.eq.s32.totalorder %s19, 0
    %p192 = por %p190, %p191
    %p193 = scmp.ne.s32.totalorder %s181, %s182
    %p194 = scmp.eq.s32.totalorder %s20, 1
    %p195 = por %p193, %p194
    %p197 = scmp.ne.s32.totalorder %s182, %s196
    %p198 = scmp.eq.s32.totalorder %s20, 0
    %p199 = por %p197, %p198
    %s200 = ssub.s32 %s14, %s21
    %p201 = scmp.eq.s32.totalorder %s200, 0
    %s203 = sadd.s32 %s202, 1
    %s204 = scalar_select %p201, %s202, %s203
    %p207 = pneg %p201
    %p208 = scmp.eq.s32.totalorder %s14, 1
    %p209 = por %p207, %p208
    %p210 = scmp.ne.s32.totalorder %s202, %s205
    %p211 = scmp.eq.s32.totalorder %s14, 0
    %p212 = por %p210, %p211
    %p213 = scmp.ne.s32.totalorder %s202, %s205
    %p214 = scmp.eq.s32.totalorder %s19, 1
    %p215 = por %p213, %p214
    %p216 = scmp.ne.s32.totalorder %s205, %s206
    %p217 = scmp.eq.s32.totalorder %s19, 0
    %p218 = por %p216, %p217
    %p219 = scmp.ne.s32.totalorder %s205, %s206
    %p220 = scmp.eq.s32.totalorder %s20, 1
    %p221 = por %p219, %p220
    %p223 = scmp.ne.s32.totalorder %s206, %s222
    %p224 = scmp.eq.s32.totalorder %s20, 0
    %p225 = por %p223, %p224
    %p226 = scmp.le.s32.totalorder 1, %s14
    %p227 = scmp.lt.s32.totalorder %s14, 3
    %p228 = pnand %p226, %p227
    %p229 = pneg %p228
    // Predicated region
    $region9: #{three_head_attention.3} parent=5 // pred_check
      _
    $region10: #{three_head_attention.3} parent=5 // pred_check_branch
      %231 = sbr.rel (%p228) target = $region12
    $region11: #{three_head_attention.3} parent=5 // pred_region
      %s232 = ssub.s32 %s14, 1
      // Predicated region
      $region13: #{three_head_attention.3} parent=11 // pred_check
        %p233 = pneg %p87
      $region14: #{three_head_attention.3} parent=11 // pred_check_branch
        %235 = sbr.rel (%p233) target = $region16
      $region15: #{three_head_attention.3} parent=11 // pred_region
        _
      $region16: #{three_head_attention.3} parent=11 // pred_fallthru
        _
      // Predicated region
      $region17: #{three_head_attention.3} parent=11 // pred_check
        %p236 = pneg %p108
      $region18: #{three_head_attention.3} parent=11 // pred_check_branch
        %238 = sbr.rel (%p236) target = $region20
      $region19: #{three_head_attention.3} parent=11 // pred_region
        _
      $region20: #{three_head_attention.3} parent=11 // pred_fallthru
        _
      // Predicated region
      $region21: #{three_head_attention.3} parent=11 // pred_check
        %p239 = pneg %p129
      $region22: #{three_head_attention.3} parent=11 // pred_check_branch
        %241 = sbr.rel (%p239) target = $region24
      $region23: #{three_head_attention.3} parent=11 // pred_region
        _
      $region24: #{three_head_attention.3} parent=11 // pred_fallthru
        _
      // Predicated region
      $region25: #{three_head_attention.3} parent=11 // pred_check
        %p242 = pneg %p150
      $region26: #{three_head_attention.3} parent=11 // pred_check_branch
        %244 = sbr.rel (%p242) target = $region28
      $region27: #{three_head_attention.3} parent=11 // pred_region
        _
      $region28: #{three_head_attention.3} parent=11 // pred_fallthru
        _
      // Predicated region
      $region29: #{three_head_attention.3} parent=11 // pred_check
        %p245 = pneg %p171
      $region30: #{three_head_attention.3} parent=11 // pred_check_branch
        %247 = sbr.rel (%p245) target = $region32
      $region31: #{three_head_attention.3} parent=11 // pred_region
        _
      $region32: #{three_head_attention.3} parent=11 // pred_fallthru
        _
      // Predicated region
      $region33: #{three_head_attention.3} parent=11 // pred_check
        %p248 = pneg %p192
      $region34: #{three_head_attention.3} parent=11 // pred_check_branch
        %250 = sbr.rel (%p248) target = $region36
      $region35: #{three_head_attention.3} parent=11 // pred_region
        _
      $region36: #{three_head_attention.3} parent=11 // pred_fallthru
        _
    $region12: #{three_head_attention.3} parent=5 // pred_fallthru
      _
    %p251 = scmp.lt.s32.totalorder %s14, 2
    // Predicated region
    $region37: #{three_head_attention.3} parent=5 // pred_check
      %p252 = pneg %p251
    $region38: #{three_head_attention.3} parent=5 // pred_check_branch
      %254 = sbr.rel (%p252) target = $region40
    $region39: #{three_head_attention.3} parent=5 // pred_region
      // Predicated region
      $region41: #{three_head_attention.3} parent=39 // pred_check
        %p255 = pneg %p34
      $region42: #{three_head_attention.3} parent=39 // pred_check_branch
        %257 = sbr.rel (%p255) target = $region44
      $region43: #{three_head_attention.3} parent=39 // pred_region
        %p258 = scmp.lt.s32.totalorder %s14, 1
        %s259 = scalar_select %p258, %s14, 1
        %s260 = smul.addr %s259, 47
        %s261 = smul.addr %s260, 8
        %s262 = scalar_lea.vmem %s0, %s261
      $region44: #{three_head_attention.3} parent=39 // pred_fallthru
        _
      // Predicated region
      $region45: #{three_head_attention.3} parent=39 // pred_check
        %p263 = pneg %p60
      $region46: #{three_head_attention.3} parent=39 // pred_check_branch
        %265 = sbr.rel (%p263) target = $region48
      $region47: #{three_head_attention.3} parent=39 // pred_region
        %p266 = scmp.lt.s32.totalorder %s14, 1
        %s267 = scalar_select %p266, %s14, 1
        %s268 = smul.addr %s267, 41
        %s269 = smul.addr %s268, 8
        %s270 = scalar_lea.vmem %s1, %s269
      $region48: #{three_head_attention.3} parent=39 // pred_fallthru
        _
    $region40: #{three_head_attention.3} parent=5 // pred_fallthru
      _
    %p271 = scmp.le.s32.totalorder 1, %s14
    %p272 = scmp.lt.s32.totalorder %s14, 3
    %p273 = pnand %p271, %p272
    %p274 = pneg %p273
    // Predicated region
    $region49: #{three_head_attention.3} parent=5 // pred_check
      _
    $region50: #{three_head_attention.3} parent=5 // pred_check_branch
      %276 = sbr.rel (%p273) target = $region52
    $region51: #{three_head_attention.3} parent=5 // pred_region
      %s277 = ssub.s32 %s14, 1
      %p278 = scmp.lt.s32.totalorder %s19, 1
      %s279 = scalar_select %p278, %s19, 1
      %s280 = smul.addr %s279, 47
      %s281 = smul.addr %s280, 8
      %s282 = scalar_lea.vmem %s0, %s281
      %p283 = pneg %p40
      %p284 = pneg %p37
      %p285 = scmp.lt.s32.totalorder %s19, 1
      %s286 = scalar_select %p285, %s19, 1
      %s287 = smul.addr %s286, 41
      %s288 = smul.addr %s287, 8
      %s289 = scalar_lea.vmem %s1, %s288
      %p290 = pneg %p66
      %p291 = pneg %p63
      %p292 = pneg %p87
      %p293 = pneg %p84
      %p294 = pneg %p108
      %p295 = pneg %p105
      %p296 = pneg %p129
      %p297 = pneg %p126
      %p298 = pneg %p150
      %p299 = pneg %p147
      %p300 = pneg %p171
      %p301 = pneg %p168
      %p302 = pneg %p192
      %p303 = pneg %p189
      %p304 = pneg %p218
      %p305 = pneg %p215
      %p306 = scmp.lt.s32.totalorder %s19, 1
      %s307 = scalar_select %p306, %s19, 1
      %s308 = smul.addr %s307, 41
      %s309 = smul.addr %s308, 8
      %s310 = scalar_lea.vmem %s8, %s309
      %p311 = scmp.lt.s32.totalorder %s19, 1
      %s312 = scalar_select %p311, %s19, 1
      %s313 = smul.addr %s312, 47
      %s314 = smul.addr %s313, 8
      %s315 = scalar_lea.vmem %s0, %s314
      %p316 = scmp.lt.s32.totalorder %s19, 1
      %s317 = scalar_select %p316, %s19, 1
      %s318 = smul.addr %s317, 41
      %s319 = smul.addr %s318, 8
      %s320 = scalar_lea.vmem %s1, %s319
      %p321 = scmp.lt.s32.totalorder %s19, 1
      %s322 = scalar_select %p321, %s19, 1
      %s323 = smul.addr %s322, 41
      %s324 = smul.addr %s323, 8
      %s325 = scalar_lea.vmem %s8, %s324
      %v327 = vld [vmem:[%s2] sm:$0xff]
      %v328 = vld [vmem:[%s2 + $0x8] sm:$0xff]
      %v329 = vld [vmem:[%s2 + $0x10] sm:$0xff]
      %v330 = vld [vmem:[%s2 + $0x18] sm:$0xff]
      %v331 = vld [vmem:[%s2 + $0x20] sm:$0xff]
      %v332 = vld [vmem:[%s2 + $0x28] sm:$0xff]
      %v333 = vld [vmem:[%s2 + $0x30] sm:$0xff]
      %v334 = vld [vmem:[%s2 + $0x38] sm:$0xff]
      %v335 = vld [vmem:[%s2 + $0x40] sm:$0xff]
      %v336 = vld [vmem:[%s2 + $0x48] sm:$0xff]
      %v337 = vld [vmem:[%s2 + $0x50] sm:$0xff]
      %v338 = vld [vmem:[%s2 + $0x58] sm:$0xff]
      %v339 = vld [vmem:[%s2 + $0x60] sm:$0xff]
      %v340 = vld [vmem:[%s2 + $0x68] sm:$0xff]
      %v341 = vld [vmem:[%s2 + $0x70] sm:$0xff]
      %v342 = vld [vmem:[%s2 + $0x78] sm:$0xff]
      %v343 = vld [vmem:[%s2 + $0x80] sm:$0xff]
      %v344 = vld [vmem:[%s2 + $0x88] sm:$0xff]
      %v345 = vld [vmem:[%s2 + $0x90] sm:$0xff]
      %v346 = vld [vmem:[%s2 + $0x98] sm:$0xff]
      %v347 = vld [vmem:[%s2 + $0xa0] sm:$0xff]
      %v348 = vld [vmem:[%s2 + $0xa8] sm:$0xff]
      %v349 = vld [vmem:[%s2 + $0xb0] sm:$0xff]
      %v350 = vld [vmem:[%s2 + $0xb8] sm:$0xff]
      %v351 = vld [vmem:[%s2 + $0xc0] sm:$0xff]
      %v352 = vld [vmem:[%s2 + $0xc8] sm:$0xff]
      %v353 = vld [vmem:[%s2 + $0xd0] sm:$0xff]
      %v354 = vld [vmem:[%s2 + $0xd8] sm:$0xff]
      %v355 = vld [vmem:[%s2 + $0xe0] sm:$0xff]
      %v356 = vld [vmem:[%s2 + $0xe8] sm:$0xff]
      %v357 = vld [vmem:[%s2 + $0xf0] sm:$0xff]
      %v358 = vld [vmem:[%s2 + $0xf8] sm:$0xff]
      %v359 = vld [vmem:[%s2 + $0x100] sm:$0xff]
      %v360 = vld [vmem:[%s2 + $0x108] sm:$0xff]
      %v361 = vld [vmem:[%s2 + $0x110] sm:$0xff]
      %v362 = vld [vmem:[%s2 + $0x118] sm:$0xff]
      %v363 = vld [vmem:[%s2 + $0x120] sm:$0xff]
      %v364 = vld [vmem:[%s2 + $0x128] sm:$0xff]
      %v365 = vld [vmem:[%s2 + $0x130] sm:$0xff]
      %v366 = vld [vmem:[%s2 + $0x138] sm:$0xff]
      %v367 = vld [vmem:[%s2 + $0x140] sm:$0xf]
      %vm368 = vcmask 523264
      %369 = vst.msk [vmem:[#allocation2] sm:$0xff] %vm368, 0.0
      %370 = vst.msk [vmem:[#allocation2 + $0x8] sm:$0xff] %vm368, 0.0
      %371 = vst.msk [vmem:[#allocation2 + $0x10] sm:$0xff] %vm368, 0.0
      %372 = vst.msk [vmem:[#allocation2 + $0x15c] sm:$0xff] %vm368, 0.0
      %373 = vst.msk [vmem:[#allocation2 + $0x164] sm:$0xff] %vm368, 0.0
      %374 = vst.msk [vmem:[#allocation2 + $0x16c] sm:$0xff] %vm368, 0.0
      %vm375 = vcmask 15360
      %376 = vst.msk [vmem:[#allocation3] sm:$0xff] %vm375, 0.0
      %377 = vst.msk [vmem:[#allocation3 + $0x8] sm:$0xff] %vm375, 0.0
      %378 = vst.msk [vmem:[#allocation3 + $0x10] sm:$0xff] %vm375, 0.0
      %379 = vst.msk [vmem:[#allocation3 + $0x15c] sm:$0xff] %vm375, 0.0
      %380 = vst.msk [vmem:[#allocation3 + $0x164] sm:$0xff] %vm375, 0.0
      %381 = vst.msk [vmem:[#allocation3 + $0x16c] sm:$0xff] %vm375, 0.0
      %v382 = vld [vmem:[%s315 + $0x5] sm:$0xff]
      %v383 = vld [vmem:[%s315 + $0xd] sm:$0xff]
      %v384 = vld [vmem:[%s315 + $0x15] sm:$0xff]
      %v385 = vld [vmem:[%s315 + $0x1d] sm:$0xff]
      %v386 = vld [vmem:[%s315 + $0x25] sm:$0xff]
      %v387 = vld [vmem:[%s315 + $0x2d] sm:$0xff]
      %v388 = vld [vmem:[%s315 + $0x35] sm:$0xff]
      %v389 = vld [vmem:[%s315 + $0x3d] sm:$0xff]
      %v390 = vld [vmem:[%s315 + $0x45] sm:$0xff]
      %v391 = vld [vmem:[%s315 + $0x4d] sm:$0xff]
      %v392 = vld [vmem:[%s315 + $0x55] sm:$0xff]
      %v393 = vld [vmem:[%s315 + $0x5d] sm:$0xff]
      %v394 = vld [vmem:[%s315 + $0x65] sm:$0xff]
      %v395 = vld [vmem:[%s315 + $0x6d] sm:$0xff]
      %v396 = vld [vmem:[%s315 + $0x75] sm:$0xff]
      %v397 = vld [vmem:[%s315 + $0x7d] sm:$0xff]
      %v398 = vld [vmem:[%s315 + $0x85] sm:$0xff]
      %v399 = vld [vmem:[%s315 + $0x8d] sm:$0xff]
      %v400 = vld [vmem:[%s315 + $0x95] sm:$0xff]
      %v401 = vld [vmem:[%s315 + $0x9d] sm:$0xff]
      %v402 = vld [vmem:[%s315 + $0xa5] sm:$0xff]
      %v403 = vld [vmem:[%s315 + $0xad] sm:$0xff]
      %v404 = vld [vmem:[%s315 + $0xb5] sm:$0xff]
      %v405 = vld [vmem:[%s315 + $0xbd] sm:$0xff]
      %v406 = vld [vmem:[%s315 + $0xc5] sm:$0xff]
      %v407 = vld [vmem:[%s315 + $0xcd] sm:$0xff]
      %v408 = vld [vmem:[%s315 + $0xd5] sm:$0xff]
      %v409 = vld [vmem:[%s315 + $0xdd] sm:$0xff]
      %v410 = vld [vmem:[%s315 + $0xe5] sm:$0xff]
      %v411 = vld [vmem:[%s315 + $0xed] sm:$0xff]
      %v412 = vld [vmem:[%s315 + $0xf5] sm:$0xff]
      %v413 = vld [vmem:[%s315 + $0xfd] sm:$0xff]
      %v414 = vld [vmem:[%s315 + $0x105] sm:$0xff]
      %v415 = vld [vmem:[%s315 + $0x10d] sm:$0xff]
      %v416 = vld [vmem:[%s315 + $0x115] sm:$0xff]
      %v417 = vld [vmem:[%s315 + $0x11d] sm:$0xff]
      %v418 = vld [vmem:[%s315 + $0x125] sm:$0xff]
      %v419 = vld [vmem:[%s315 + $0x12d] sm:$0xff]
      %v420 = vld [vmem:[%s315 + $0x135] sm:$0xff]
      %v421 = vld [vmem:[%s315 + $0x13d] sm:$0xff]
      %v422 = vld [vmem:[%s315 + $0x145] sm:$0xf]
      %v423 = vpack.c.bf16 %v383, %v382
      %v424 = vpack.c.bf16 %v385, %v384
      %v425 = vpack.c.bf16 %v387, %v386
      %v426 = vpack.c.bf16 %v389, %v388
      %v427 = vpack.c.bf16 %v391, %v390
      %v428 = vpack.c.bf16 %v393, %v392
      %v429 = vpack.c.bf16 %v395, %v394
      %v430 = vpack.c.bf16 %v397, %v396
      %v431 = vpack.c.bf16 %v399, %v398
      %v432 = vpack.c.bf16 %v401, %v400
      %v433 = vpack.c.bf16 %v403, %v402
      %v434 = vpack.c.bf16 %v405, %v404
      %v435 = vpack.c.bf16 %v407, %v406
      %v436 = vpack.c.bf16 %v409, %v408
      %v437 = vpack.c.bf16 %v411, %v410
      %v438 = vpack.c.bf16 %v413, %v412
      %v439 = vpack.c.bf16 %v415, %v414
      %v440 = vpack.c.bf16 %v417, %v416
      %v441 = vpack.c.bf16 %v419, %v418
      %v442 = vpack.c.bf16 %v421, %v420
      %v443 = vpack.c.bf16 %v422, %v422
      %v444 = vld [vmem:[%s3] sm:$0xf]
      %v445 = vld [vmem:[%s3 + $0x4] sm:$0xf]
      %v446 = vld [vmem:[%s3 + $0x8] sm:$0xf]
      %v447 = vld [vmem:[%s3 + $0xc] sm:$0xf]
      %v448 = vld [vmem:[%s3 + $0x10] sm:$0xf]
      %v449 = vld [vmem:[%s3 + $0x14] sm:$0xf]
      %v450 = vld [vmem:[%s3 + $0x18] sm:$0xf]
      %v451 = vld [vmem:[%s3 + $0x1c] sm:$0xf]
      %v452 = vld [vmem:[%s315 + $0x6] sm:$0xff]
      %v453 = vld [vmem:[%s315 + $0xe] sm:$0xff]
      %v454 = vld [vmem:[%s315 + $0x16] sm:$0xff]
      %v455 = vld [vmem:[%s315 + $0x1e] sm:$0xff]
      %v456 = vld [vmem:[%s315 + $0x26] sm:$0xff]
      %v457 = vld [vmem:[%s315 + $0x2e] sm:$0xff]
      %v458 = vld [vmem:[%s315 + $0x36] sm:$0xff]
      %v459 = vld [vmem:[%s315 + $0x3e] sm:$0xff]
      %v460 = vld [vmem:[%s315 + $0x46] sm:$0xff]
      %v461 = vld [vmem:[%s315 + $0x4e] sm:$0xff]
      %v462 = vld [vmem:[%s315 + $0x56] sm:$0xff]
      %v463 = vld [vmem:[%s315 + $0x5e] sm:$0xff]
      %v464 = vld [vmem:[%s315 + $0x66] sm:$0xff]
      %v465 = vld [vmem:[%s315 + $0x6e] sm:$0xff]
      %v466 = vld [vmem:[%s315 + $0x76] sm:$0xff]
      %v467 = vld [vmem:[%s315 + $0x7e] sm:$0xff]
      %v468 = vld [vmem:[%s315 + $0x86] sm:$0xff]
      %v469 = vld [vmem:[%s315 + $0x8e] sm:$0xff]
      %v470 = vld [vmem:[%s315 + $0x96] sm:$0xff]
      %v471 = vld [vmem:[%s315 + $0x9e] sm:$0xff]
      %v472 = vld [vmem:[%s315 + $0xa6] sm:$0xff]
      %v473 = vld [vmem:[%s315 + $0xae] sm:$0xff]
      %v474 = vld [vmem:[%s315 + $0xb6] sm:$0xff]
      %v475 = vld [vmem:[%s315 + $0xbe] sm:$0xff]
      %v476 = vld [vmem:[%s315 + $0xc6] sm:$0xff]
      %v477 = vld [vmem:[%s315 + $0xce] sm:$0xff]
      %v478 = vld [vmem:[%s315 + $0xd6] sm:$0xff]
      %v479 = vld [vmem:[%s315 + $0xde] sm:$0xff]
      %v480 = vld [vmem:[%s315 + $0xe6] sm:$0xff]
      %v481 = vld [vmem:[%s315 + $0xee] sm:$0xff]
      %v482 = vld [vmem:[%s315 + $0xf6] sm:$0xff]
      %v483 = vld [vmem:[%s315 + $0xfe] sm:$0xff]
      %v484 = vld [vmem:[%s315 + $0x106] sm:$0xff]
      %v485 = vld [vmem:[%s315 + $0x10e] sm:$0xff]
      %v486 = vld [vmem:[%s315 + $0x116] sm:$0xff]
      %v487 = vld [vmem:[%s315 + $0x11e] sm:$0xff]
      %v488 = vld [vmem:[%s315 + $0x126] sm:$0xff]
      %v489 = vld [vmem:[%s315 + $0x12e] sm:$0xff]
      %v490 = vld [vmem:[%s315 + $0x136] sm:$0xff]
      %v491 = vld [vmem:[%s315 + $0x13e] sm:$0xff]
      %v492 = vld [vmem:[%s315 + $0x146] sm:$0xf]
      %v493 = vpack.c.bf16 %v453, %v452
      %v494 = vpack.c.bf16 %v455, %v454
      %v495 = vpack.c.bf16 %v457, %v456
      %v496 = vpack.c.bf16 %v459, %v458
      %v497 = vpack.c.bf16 %v461, %v460
      %v498 = vpack.c.bf16 %v463, %v462
      %v499 = vpack.c.bf16 %v465, %v464
      %v500 = vpack.c.bf16 %v467, %v466
      %v501 = vpack.c.bf16 %v469, %v468
      %v502 = vpack.c.bf16 %v471, %v470
      %v503 = vpack.c.bf16 %v473, %v472
      %v504 = vpack.c.bf16 %v475, %v474
      %v505 = vpack.c.bf16 %v477, %v476
      %v506 = vpack.c.bf16 %v479, %v478
      %v507 = vpack.c.bf16 %v481, %v480
      %v508 = vpack.c.bf16 %v483, %v482
      %v509 = vpack.c.bf16 %v485, %v484
      %v510 = vpack.c.bf16 %v487, %v486
      %v511 = vpack.c.bf16 %v489, %v488
      %v512 = vpack.c.bf16 %v491, %v490
      %v513 = vpack.c.bf16 %v492, %v492
      %s514 = scalar_lea.vmem %s3, 32
      %v515 = vld [vmem:[%s514] sm:$0xf]
      %v516 = vld [vmem:[%s514 + $0x4] sm:$0xf]
      %v517 = vld [vmem:[%s514 + $0x8] sm:$0xf]
      %v518 = vld [vmem:[%s514 + $0xc] sm:$0xf]
      %v519 = vld [vmem:[%s514 + $0x10] sm:$0xf]
      %v520 = vld [vmem:[%s514 + $0x14] sm:$0xf]
      %v521 = vld [vmem:[%s514 + $0x18] sm:$0xf]
      %v522 = vld [vmem:[%s514 + $0x1c] sm:$0xf]
      %v531 = vunpack.c.l.b16 %v515
      %v532 = vunpack.c.l.b16 %v516
      %v533 = vunpack.c.l.b16 %v517
      %v534 = vunpack.c.l.b16 %v518
      %v535 = vunpack.c.l.b16 %v519
      %v536 = vunpack.c.l.b16 %v520
      %v537 = vunpack.c.l.b16 %v521
      %v538 = vunpack.c.l.b16 %v522
      %v539 = vpack.c.b16 %v532, %v531
      %v540 = vpack.c.b16 %v534, %v533
      %v541 = vpack.c.b16 %v536, %v535
      %v542 = vpack.c.b16 %v538, %v537
      %v548 = vsel %vm368, %v493, 0
      %v551 = vsel %vm368, %v494, 0
      %v554 = vsel %vm368, %v495, 0
      %v557 = vsel %vm368, %v496, 0
      %v560 = vsel %vm368, %v497, 0
      %v563 = vsel %vm368, %v498, 0
      %v566 = vsel %vm368, %v499, 0
      %v569 = vsel %vm368, %v500, 0
      %v572 = vsel %vm368, %v501, 0
      %v575 = vsel %vm368, %v502, 0
      %v578 = vsel %vm368, %v503, 0
      %v581 = vsel %vm368, %v504, 0
      %v584 = vsel %vm368, %v505, 0
      %v587 = vsel %vm368, %v506, 0
      %v590 = vsel %vm368, %v507, 0
      %v593 = vsel %vm368, %v508, 0
      %v596 = vsel %vm368, %v509, 0
      %v599 = vsel %vm368, %v510, 0
      %v602 = vsel %vm368, %v511, 0
      %v605 = vsel %vm368, %v512, 0
      %v608 = vsel %vm368, %v513, 0
      %610 = vmatprep.subr.bf16.mxu0 0
      %611 = vmatpush1.bf16.msra.mxu0 0
      %612 = vmatprep.subr.bf16.mxu0 0
      %613 = vmatpush1.bf16.msra.mxu0 0
      %614 = vmatprep.subr.bf16.mxu0 0
      %615 = vmatpush1.bf16.msra.mxu0 0
      %616 = vmatprep.subr.bf16.mxu0 0
      %617 = vmatpush1.bf16.msra.mxu0 0
      %618 = vmatprep.subr.bf16.mxu0 0
      %619 = vmatpush1.bf16.msra.mxu0 %v542
      %620 = vmatprep.subr.bf16.mxu0 0
      %621 = vmatpush1.bf16.msra.mxu0 %v541
      %622 = vmatprep.subr.bf16.mxu0 0
      %623 = vmatpush1.bf16.msra.mxu0 %v540
      %624 = vmatprep.subr.bf16.mxu0 0
      %625 = vmatpush1.bf16.msra.mxu0 %v539
      %626 = vmatprep.subr.bf16.mxu0 0
      %627 = vmatpush2.bf16.msra.mxu0 0
      %628 = vmatprep.subr.bf16.mxu0 0
      %629 = vmatpush2.bf16.msra.mxu0 0
      %630 = vmatprep.subr.bf16.mxu0 0
      %631 = vmatpush2.bf16.msra.mxu0 0
      %632 = vmatprep.subr.bf16.mxu0 0
      %633 = vmatpush2.bf16.msra.mxu0 0
      %634 = vmatprep.subr.bf16.mxu0 0
      %635 = vmatpush2.bf16.msra.mxu0 0
      %636 = vmatprep.subr.bf16.mxu0 0
      %637 = vmatpush2.bf16.msra.mxu0 0
      %638 = vmatprep.subr.bf16.mxu0 0
      %639 = vmatpush2.bf16.msra.mxu0 0
      %640 = vmatprep.subr.bf16.mxu0 0
      %641 = vmatpush2.bf16.msra.mxu0 0
      %642 = vmatprep.mubr.bf16.mxu0 0
      %643 = vmatmul.mubr.bf16.gmra.mxu0 %v548
      %v644 = vpop.f32.mrf.mxu0
      %v645 = vadd.f32 0.0, %v644
      %v646 = vpop.f32.mrf.mxu0
      %v647 = vpop.f32.mrf.mxu0
      %v648 = vadd.f32 0.0, %v647
      %v649 = vpop.f32.mrf.mxu0
      %650 = vmatprep.mubr.bf16.mxu0 0
      %651 = vmatmul.mubr.bf16.gmra.mxu0 %v551
      %v652 = vpop.f32.mrf.mxu0
      %v653 = vadd.f32 0.0, %v652
      %v654 = vpop.f32.mrf.mxu0
      %v655 = vpop.f32.mrf.mxu0
      %v656 = vadd.f32 0.0, %v655
      %v657 = vpop.f32.mrf.mxu0
      %658 = vmatprep.mubr.bf16.mxu0 0
      %659 = vmatmul.mubr.bf16.gmra.mxu0 %v554
      %v660 = vpop.f32.mrf.mxu0
      %v661 = vadd.f32 0.0, %v660
      %v662 = vpop.f32.mrf.mxu0
      %v663 = vpop.f32.mrf.mxu0
      %v664 = vadd.f32 0.0, %v663
      %v665 = vpop.f32.mrf.mxu0
      %666 = vmatprep.mubr.bf16.mxu0 0
      %667 = vmatmul.mubr.bf16.gmra.mxu0 %v557
      %v668 = vpop.f32.mrf.mxu0
      %v669 = vadd.f32 0.0, %v668
      %v670 = vpop.f32.mrf.mxu0
      %v671 = vpop.f32.mrf.mxu0
      %v672 = vadd.f32 0.0, %v671
      %v673 = vpop.f32.mrf.mxu0
      %674 = vmatprep.mubr.bf16.mxu0 0
      %675 = vmatmul.mubr.bf16.gmra.mxu0 %v560
      %v676 = vpop.f32.mrf.mxu0
      %v677 = vadd.f32 0.0, %v676
      %v678 = vpop.f32.mrf.mxu0
      %v679 = vpop.f32.mrf.mxu0
      %v680 = vadd.f32 0.0, %v679
      %v681 = vpop.f32.mrf.mxu0
      %682 = vmatprep.mubr.bf16.mxu0 0
      %683 = vmatmul.mubr.bf16.gmra.mxu0 %v563
      %v684 = vpop.f32.mrf.mxu0
      %v685 = vadd.f32 0.0, %v684
      %v686 = vpop.f32.mrf.mxu0
      %v687 = vpop.f32.mrf.mxu0
      %v688 = vadd.f32 0.0, %v687
      %v689 = vpop.f32.mrf.mxu0
      %690 = vmatprep.mubr.bf16.mxu0 0
      %691 = vmatmul.mubr.bf16.gmra.mxu0 %v566
      %v692 = vpop.f32.mrf.mxu0
      %v693 = vadd.f32 0.0, %v692
      %v694 = vpop.f32.mrf.mxu0
      %v695 = vpop.f32.mrf.mxu0
      %v696 = vadd.f32 0.0, %v695
      %v697 = vpop.f32.mrf.mxu0
      %698 = vmatprep.mubr.bf16.mxu0 0
      %699 = vmatmul.mubr.bf16.gmra.mxu0 %v569
      %v700 = vpop.f32.mrf.mxu0
      %v701 = vadd.f32 0.0, %v700
      %v702 = vpop.f32.mrf.mxu0
      %v703 = vpop.f32.mrf.mxu0
      %v704 = vadd.f32 0.0, %v703
      %v705 = vpop.f32.mrf.mxu0
      %706 = vmatprep.mubr.bf16.mxu0 0
      %707 = vmatmul.mubr.bf16.gmra.mxu0 %v572
      %v708 = vpop.f32.mrf.mxu0
      %v709 = vadd.f32 0.0, %v708
      %v710 = vpop.f32.mrf.mxu0
      %v711 = vpop.f32.mrf.mxu0
      %v712 = vadd.f32 0.0, %v711
      %v713 = vpop.f32.mrf.mxu0
      %714 = vmatprep.mubr.bf16.mxu0 0
      %715 = vmatmul.mubr.bf16.gmra.mxu0 %v575
      %v716 = vpop.f32.mrf.mxu0
      %v717 = vadd.f32 0.0, %v716
      %v718 = vpop.f32.mrf.mxu0
      %v719 = vpop.f32.mrf.mxu0
      %v720 = vadd.f32 0.0, %v719
      %v721 = vpop.f32.mrf.mxu0
      %722 = vmatprep.mubr.bf16.mxu0 0
      %723 = vmatmul.mubr.bf16.gmra.mxu0 %v578
      %v724 = vpop.f32.mrf.mxu0
      %v725 = vadd.f32 0.0, %v724
      %v726 = vpop.f32.mrf.mxu0
      %v727 = vpop.f32.mrf.mxu0
      %v728 = vadd.f32 0.0, %v727
      %v729 = vpop.f32.mrf.mxu0
      %730 = vmatprep.mubr.bf16.mxu0 0
      %731 = vmatmul.mubr.bf16.gmra.mxu0 %v581
      %v732 = vpop.f32.mrf.mxu0
      %v733 = vadd.f32 0.0, %v732
      %v734 = vpop.f32.mrf.mxu0
      %v735 = vpop.f32.mrf.mxu0
      %v736 = vadd.f32 0.0, %v735
      %v737 = vpop.f32.mrf.mxu0
      %738 = vmatprep.mubr.bf16.mxu0 0
      %739 = vmatmul.mubr.bf16.gmra.mxu0 %v584
      %v740 = vpop.f32.mrf.mxu0
      %v741 = vadd.f32 0.0, %v740
      %v742 = vpop.f32.mrf.mxu0
      %v743 = vpop.f32.mrf.mxu0
      %v744 = vadd.f32 0.0, %v743
      %v745 = vpop.f32.mrf.mxu0
      %746 = vmatprep.mubr.bf16.mxu0 0
      %747 = vmatmul.mubr.bf16.gmra.mxu0 %v587
      %v748 = vpop.f32.mrf.mxu0
      %v749 = vadd.f32 0.0, %v748
      %v750 = vpop.f32.mrf.mxu0
      %v751 = vpop.f32.mrf.mxu0
      %v752 = vadd.f32 0.0, %v751
      %v753 = vpop.f32.mrf.mxu0
      %754 = vmatprep.mubr.bf16.mxu0 0
      %755 = vmatmul.mubr.bf16.gmra.mxu0 %v590
      %v756 = vpop.f32.mrf.mxu0
      %v757 = vadd.f32 0.0, %v756
      %v758 = vpop.f32.mrf.mxu0
      %v759 = vpop.f32.mrf.mxu0
      %v760 = vadd.f32 0.0, %v759
      %v761 = vpop.f32.mrf.mxu0
      %762 = vmatprep.mubr.bf16.mxu0 0
      %763 = vmatmul.mubr.bf16.gmra.mxu0 %v593
      %v764 = vpop.f32.mrf.mxu0
      %v765 = vadd.f32 0.0, %v764
      %v766 = vpop.f32.mrf.mxu0
      %v767 = vpop.f32.mrf.mxu0
      %v768 = vadd.f32 0.0, %v767
      %v769 = vpop.f32.mrf.mxu0
      %770 = vmatprep.mubr.bf16.mxu0 0
      %771 = vmatmul.mubr.bf16.gmra.mxu0 %v596
      %v772 = vpop.f32.mrf.mxu0
      %v773 = vadd.f32 0.0, %v772
      %v774 = vpop.f32.mrf.mxu0
      %v775 = vpop.f32.mrf.mxu0
      %v776 = vadd.f32 0.0, %v775
      %v777 = vpop.f32.mrf.mxu0
      %778 = vmatprep.mubr.bf16.mxu0 0
      %779 = vmatmul.mubr.bf16.gmra.mxu0 %v599
      %v780 = vpop.f32.mrf.mxu0
      %v781 = vadd.f32 0.0, %v780
      %v782 = vpop.f32.mrf.mxu0
      %v783 = vpop.f32.mrf.mxu0
      %v784 = vadd.f32 0.0, %v783
      %v785 = vpop.f32.mrf.mxu0
      %786 = vmatprep.mubr.bf16.mxu0 0
      %787 = vmatmul.mubr.bf16.gmra.mxu0 %v602
      %v788 = vpop.f32.mrf.mxu0
      %v789 = vadd.f32 0.0, %v788
      %v790 = vpop.f32.mrf.mxu0
      %v791 = vpop.f32.mrf.mxu0
      %v792 = vadd.f32 0.0, %v791
      %v793 = vpop.f32.mrf.mxu0
      %794 = vmatprep.mubr.bf16.mxu0 0
      %795 = vmatmul.mubr.bf16.gmra.mxu0 %v605
      %v796 = vpop.f32.mrf.mxu0
      %v797 = vadd.f32 0.0, %v796
      %v798 = vpop.f32.mrf.mxu0
      %v799 = vpop.f32.mrf.mxu0
      %v800 = vadd.f32 0.0, %v799
      %v801 = vpop.f32.mrf.mxu0
      %802 = vmatprep.mubr.bf16.mxu0 0
      %803 = vmatmul.mubr.bf16.gmra.mxu0 %v608
      %v804 = vpop.f32.mrf.mxu0
      %v805 = vadd.f32 0.0, %v804
      %v806 = vpop.f32.mrf.mxu0
      %v807 = vpop.f32.mrf.mxu0
      %v808 = vpop.f32.mrf.mxu0
      %809 = vdwg.mxu0
      %v818 = vunpack.c.l.b16 %v444
      %v819 = vunpack.c.l.b16 %v445
      %v820 = vunpack.c.l.b16 %v446
      %v821 = vunpack.c.l.b16 %v447
      %v822 = vunpack.c.l.b16 %v448
      %v823 = vunpack.c.l.b16 %v449
      %v824 = vunpack.c.l.b16 %v450
      %v825 = vunpack.c.l.b16 %v451
      %v826 = vpack.c.b16 %v819, %v818
      %v827 = vpack.c.b16 %v821, %v820
      %v828 = vpack.c.b16 %v823, %v822
      %v829 = vpack.c.b16 %v825, %v824
      %v835 = vsel %vm368, %v423, 0
      %v838 = vsel %vm368, %v424, 0
      %v841 = vsel %vm368, %v425, 0
      %v844 = vsel %vm368, %v426, 0
      %v847 = vsel %vm368, %v427, 0
      %v850 = vsel %vm368, %v428, 0
      %v853 = vsel %vm368, %v429, 0
      %v856 = vsel %vm368, %v430, 0
      %v859 = vsel %vm368, %v431, 0
      %v862 = vsel %vm368, %v432, 0
      %v865 = vsel %vm368, %v433, 0
      %v868 = vsel %vm368, %v434, 0
      %v871 = vsel %vm368, %v435, 0
      %v874 = vsel %vm368, %v436, 0
      %v877 = vsel %vm368, %v437, 0
      %v880 = vsel %vm368, %v438, 0
      %v883 = vsel %vm368, %v439, 0
      %v886 = vsel %vm368, %v440, 0
      %v889 = vsel %vm368, %v441, 0
      %v892 = vsel %vm368, %v442, 0
      %v895 = vsel %vm368, %v443, 0
      %897 = vmatprep.subr.bf16.mxu0 0
      %898 = vmatpush1.bf16.msra.mxu0 0
      %899 = vmatprep.subr.bf16.mxu0 0
      %900 = vmatpush1.bf16.msra.mxu0 0
      %901 = vmatprep.subr.bf16.mxu0 0
      %902 = vmatpush1.bf16.msra.mxu0 0
      %903 = vmatprep.subr.bf16.mxu0 0
      %904 = vmatpush1.bf16.msra.mxu0 0
      %905 = vmatprep.subr.bf16.mxu0 0
      %906 = vmatpush1.bf16.msra.mxu0 %v829
      %907 = vmatprep.subr.bf16.mxu0 0
      %908 = vmatpush1.bf16.msra.mxu0 %v828
      %909 = vmatprep.subr.bf16.mxu0 0
      %910 = vmatpush1.bf16.msra.mxu0 %v827
      %911 = vmatprep.subr.bf16.mxu0 0
      %912 = vmatpush1.bf16.msra.mxu0 %v826
      %913 = vmatprep.subr.bf16.mxu0 0
      %914 = vmatpush2.bf16.msra.mxu0 0
      %915 = vmatprep.subr.bf16.mxu0 0
      %916 = vmatpush2.bf16.msra.mxu0 0
      %917 = vmatprep.subr.bf16.mxu0 0
      %918 = vmatpush2.bf16.msra.mxu0 0
      %919 = vmatprep.subr.bf16.mxu0 0
      %920 = vmatpush2.bf16.msra.mxu0 0
      %921 = vmatprep.subr.bf16.mxu0 0
      %922 = vmatpush2.bf16.msra.mxu0 0
      %923 = vmatprep.subr.bf16.mxu0 0
      %924 = vmatpush2.bf16.msra.mxu0 0
      %925 = vmatprep.subr.bf16.mxu0 0
      %926 = vmatpush2.bf16.msra.mxu0 0
      %927 = vmatprep.subr.bf16.mxu0 0
      %928 = vmatpush2.bf16.msra.mxu0 0
      %929 = vmatprep.mubr.bf16.mxu0 0
      %930 = vmatmul.mubr.bf16.gmra.mxu0 %v835
      %v931 = vpop.f32.mrf.mxu0
      %v932 = vadd.f32 %v645, %v931
      %v933 = vpop.f32.mrf.mxu0
      %v934 = vpop.f32.mrf.mxu0
      %v935 = vadd.f32 %v648, %v934
      %v936 = vpop.f32.mrf.mxu0
      %937 = vmatprep.mubr.bf16.mxu0 0
      %938 = vmatmul.mubr.bf16.gmra.mxu0 %v838
      %v939 = vpop.f32.mrf.mxu0
      %v940 = vadd.f32 %v653, %v939
      %v941 = vpop.f32.mrf.mxu0
      %v942 = vpop.f32.mrf.mxu0
      %v943 = vadd.f32 %v656, %v942
      %v944 = vpop.f32.mrf.mxu0
      %945 = vmatprep.mubr.bf16.mxu0 0
      %946 = vmatmul.mubr.bf16.gmra.mxu0 %v841
      %v947 = vpop.f32.mrf.mxu0
      %v948 = vadd.f32 %v661, %v947
      %v949 = vpop.f32.mrf.mxu0
      %v950 = vpop.f32.mrf.mxu0
      %v951 = vadd.f32 %v664, %v950
      %v952 = vpop.f32.mrf.mxu0
      %953 = vmatprep.mubr.bf16.mxu0 0
      %954 = vmatmul.mubr.bf16.gmra.mxu0 %v844
      %v955 = vpop.f32.mrf.mxu0
      %v956 = vadd.f32 %v669, %v955
      %v957 = vpop.f32.mrf.mxu0
      %v958 = vpop.f32.mrf.mxu0
      %v959 = vadd.f32 %v672, %v958
      %v960 = vpop.f32.mrf.mxu0
      %961 = vmatprep.mubr.bf16.mxu0 0
      %962 = vmatmul.mubr.bf16.gmra.mxu0 %v847
      %v963 = vpop.f32.mrf.mxu0
      %v964 = vadd.f32 %v677, %v963
      %v965 = vpop.f32.mrf.mxu0
      %v966 = vpop.f32.mrf.mxu0
      %v967 = vadd.f32 %v680, %v966
      %v968 = vpop.f32.mrf.mxu0
      %969 = vmatprep.mubr.bf16.mxu0 0
      %970 = vmatmul.mubr.bf16.gmra.mxu0 %v850
      %v971 = vpop.f32.mrf.mxu0
      %v972 = vadd.f32 %v685, %v971
      %v973 = vpop.f32.mrf.mxu0
      %v974 = vpop.f32.mrf.mxu0
      %v975 = vadd.f32 %v688, %v974
      %v976 = vpop.f32.mrf.mxu0
      %977 = vmatprep.mubr.bf16.mxu0 0
      %978 = vmatmul.mubr.bf16.gmra.mxu0 %v853
      %v979 = vpop.f32.mrf.mxu0
      %v980 = vadd.f32 %v693, %v979
      %v981 = vpop.f32.mrf.mxu0
      %v982 = vpop.f32.mrf.mxu0
      %v983 = vadd.f32 %v696, %v982
      %v984 = vpop.f32.mrf.mxu0
      %985 = vmatprep.mubr.bf16.mxu0 0
      %986 = vmatmul.mubr.bf16.gmra.mxu0 %v856
      %v987 = vpop.f32.mrf.mxu0
      %v988 = vadd.f32 %v701, %v987
      %v989 = vpop.f32.mrf.mxu0
      %v990 = vpop.f32.mrf.mxu0
      %v991 = vadd.f32 %v704, %v990
      %v992 = vpop.f32.mrf.mxu0
      %993 = vmatprep.mubr.bf16.mxu0 0
      %994 = vmatmul.mubr.bf16.gmra.mxu0 %v859
      %v995 = vpop.f32.mrf.mxu0
      %v996 = vadd.f32 %v709, %v995
      %v997 = vpop.f32.mrf.mxu0
      %v998 = vpop.f32.mrf.mxu0
      %v999 = vadd.f32 %v712, %v998
      %v1000 = vpop.f32.mrf.mxu0
      %1001 = vmatprep.mubr.bf16.mxu0 0
      %1002 = vmatmul.mubr.bf16.gmra.mxu0 %v862
      %v1003 = vpop.f32.mrf.mxu0
      %v1004 = vadd.f32 %v717, %v1003
      %v1005 = vpop.f32.mrf.mxu0
      %v1006 = vpop.f32.mrf.mxu0
      %v1007 = vadd.f32 %v720, %v1006
      %v1008 = vpop.f32.mrf.mxu0
      %1009 = vmatprep.mubr.bf16.mxu0 0
      %1010 = vmatmul.mubr.bf16.gmra.mxu0 %v865
      %v1011 = vpop.f32.mrf.mxu0
      %v1012 = vadd.f32 %v725, %v1011
      %v1013 = vpop.f32.mrf.mxu0
      %v1014 = vpop.f32.mrf.mxu0
      %v1015 = vadd.f32 %v728, %v1014
      %v1016 = vpop.f32.mrf.mxu0
      %1017 = vmatprep.mubr.bf16.mxu0 0
      %1018 = vmatmul.mubr.bf16.gmra.mxu0 %v868
      %v1019 = vpop.f32.mrf.mxu0
      %v1020 = vadd.f32 %v733, %v1019
      %v1021 = vpop.f32.mrf.mxu0
      %v1022 = vpop.f32.mrf.mxu0
      %v1023 = vadd.f32 %v736, %v1022
      %v1024 = vpop.f32.mrf.mxu0
      %1025 = vmatprep.mubr.bf16.mxu0 0
      %1026 = vmatmul.mubr.bf16.gmra.mxu0 %v871
      %v1027 = vpop.f32.mrf.mxu0
      %v1028 = vadd.f32 %v741, %v1027
      %v1029 = vpop.f32.mrf.mxu0
      %v1030 = vpop.f32.mrf.mxu0
      %v1031 = vadd.f32 %v744, %v1030
      %v1032 = vpop.f32.mrf.mxu0
      %1033 = vmatprep.mubr.bf16.mxu0 0
      %1034 = vmatmul.mubr.bf16.gmra.mxu0 %v874
      %v1035 = vpop.f32.mrf.mxu0
      %v1036 = vadd.f32 %v749, %v1035
      %v1037 = vpop.f32.mrf.mxu0
      %v1038 = vpop.f32.mrf.mxu0
      %v1039 = vadd.f32 %v752, %v1038
      %v1040 = vpop.f32.mrf.mxu0
      %1041 = vmatprep.mubr.bf16.mxu0 0
      %1042 = vmatmul.mubr.bf16.gmra.mxu0 %v877
      %v1043 = vpop.f32.mrf.mxu0
      %v1044 = vadd.f32 %v757, %v1043
      %v1045 = vpop.f32.mrf.mxu0
      %v1046 = vpop.f32.mrf.mxu0
      %v1047 = vadd.f32 %v760, %v1046
      %v1048 = vpop.f32.mrf.mxu0
      %1049 = vmatprep.mubr.bf16.mxu0 0
      %1050 = vmatmul.mubr.bf16.gmra.mxu0 %v880
      %v1051 = vpop.f32.mrf.mxu0
      %v1052 = vadd.f32 %v765, %v1051
      %v1053 = vpop.f32.mrf.mxu0
      %v1054 = vpop.f32.mrf.mxu0
      %v1055 = vadd.f32 %v768, %v1054
      %v1056 = vpop.f32.mrf.mxu0
      %1057 = vmatprep.mubr.bf16.mxu0 0
      %1058 = vmatmul.mubr.bf16.gmra.mxu0 %v883
      %v1059 = vpop.f32.mrf.mxu0
      %v1060 = vadd.f32 %v773, %v1059
      %v1061 = vpop.f32.mrf.mxu0
      %v1062 = vpop.f32.mrf.mxu0
      %v1063 = vadd.f32 %v776, %v1062
      %v1064 = vpop.f32.mrf.mxu0
      %1065 = vmatprep.mubr.bf16.mxu0 0
      %1066 = vmatmul.mubr.bf16.gmra.mxu0 %v886
      %v1067 = vpop.f32.mrf.mxu0
      %v1068 = vadd.f32 %v781, %v1067
      %v1069 = vpop.f32.mrf.mxu0
      %v1070 = vpop.f32.mrf.mxu0
      %v1071 = vadd.f32 %v784, %v1070
      %v1072 = vpop.f32.mrf.mxu0
      %1073 = vmatprep.mubr.bf16.mxu0 0
      %1074 = vmatmul.mubr.bf16.gmra.mxu0 %v889
      %v1075 = vpop.f32.mrf.mxu0
      %v1076 = vadd.f32 %v789, %v1075
      %v1077 = vpop.f32.mrf.mxu0
      %v1078 = vpop.f32.mrf.mxu0
      %v1079 = vadd.f32 %v792, %v1078
      %v1080 = vpop.f32.mrf.mxu0
      %1081 = vmatprep.mubr.bf16.mxu0 0
      %1082 = vmatmul.mubr.bf16.gmra.mxu0 %v892
      %v1083 = vpop.f32.mrf.mxu0
      %v1084 = vadd.f32 %v797, %v1083
      %v1085 = vpop.f32.mrf.mxu0
      %v1086 = vpop.f32.mrf.mxu0
      %v1087 = vadd.f32 %v800, %v1086
      %v1088 = vpop.f32.mrf.mxu0
      %1089 = vmatprep.mubr.bf16.mxu0 0
      %1090 = vmatmul.mubr.bf16.gmra.mxu0 %v895
      %v1091 = vpop.f32.mrf.mxu0
      %v1092 = vadd.f32 %v805, %v1091
      %v1093 = vpop.f32.mrf.mxu0
      %v1094 = vpop.f32.mrf.mxu0
      %v1095 = vpop.f32.mrf.mxu0
      %1096 = vdwg.mxu0
      %v1097 = vld [vmem:[%s315 + $0x7] sm:$0xff]
      %v1098 = vld [vmem:[%s315 + $0xf] sm:$0xff]
      %v1099 = vld [vmem:[%s315 + $0x17] sm:$0xff]
      %v1100 = vld [vmem:[%s315 + $0x1f] sm:$0xff]
      %v1101 = vld [vmem:[%s315 + $0x27] sm:$0xff]
      %v1102 = vld [vmem:[%s315 + $0x2f] sm:$0xff]
      %v1103 = vld [vmem:[%s315 + $0x37] sm:$0xff]
      %v1104 = vld [vmem:[%s315 + $0x3f] sm:$0xff]
      %v1105 = vld [vmem:[%s315 + $0x47] sm:$0xff]
      %v1106 = vld [vmem:[%s315 + $0x4f] sm:$0xff]
      %v1107 = vld [vmem:[%s315 + $0x57] sm:$0xff]
      %v1108 = vld [vmem:[%s315 + $0x5f] sm:$0xff]
      %v1109 = vld [vmem:[%s315 + $0x67] sm:$0xff]
      %v1110 = vld [vmem:[%s315 + $0x6f] sm:$0xff]
      %v1111 = vld [vmem:[%s315 + $0x77] sm:$0xff]
      %v1112 = vld [vmem:[%s315 + $0x7f] sm:$0xff]
      %v1113 = vld [vmem:[%s315 + $0x87] sm:$0xff]
      %v1114 = vld [vmem:[%s315 + $0x8f] sm:$0xff]
      %v1115 = vld [vmem:[%s315 + $0x97] sm:$0xff]
      %v1116 = vld [vmem:[%s315 + $0x9f] sm:$0xff]
      %v1117 = vld [vmem:[%s315 + $0xa7] sm:$0xff]
      %v1118 = vld [vmem:[%s315 + $0xaf] sm:$0xff]
      %v1119 = vld [vmem:[%s315 + $0xb7] sm:$0xff]
      %v1120 = vld [vmem:[%s315 + $0xbf] sm:$0xff]
      %v1121 = vld [vmem:[%s315 + $0xc7] sm:$0xff]
      %v1122 = vld [vmem:[%s315 + $0xcf] sm:$0xff]
      %v1123 = vld [vmem:[%s315 + $0xd7] sm:$0xff]
      %v1124 = vld [vmem:[%s315 + $0xdf] sm:$0xff]
      %v1125 = vld [vmem:[%s315 + $0xe7] sm:$0xff]
      %v1126 = vld [vmem:[%s315 + $0xef] sm:$0xff]
      %v1127 = vld [vmem:[%s315 + $0xf7] sm:$0xff]
      %v1128 = vld [vmem:[%s315 + $0xff] sm:$0xff]
      %v1129 = vld [vmem:[%s315 + $0x107] sm:$0xff]
      %v1130 = vld [vmem:[%s315 + $0x10f] sm:$0xff]
      %v1131 = vld [vmem:[%s315 + $0x117] sm:$0xff]
      %v1132 = vld [vmem:[%s315 + $0x11f] sm:$0xff]
      %v1133 = vld [vmem:[%s315 + $0x127] sm:$0xff]
      %v1134 = vld [vmem:[%s315 + $0x12f] sm:$0xff]
      %v1135 = vld [vmem:[%s315 + $0x137] sm:$0xff]
      %v1136 = vld [vmem:[%s315 + $0x13f] sm:$0xff]
      %v1137 = vld [vmem:[%s315 + $0x147] sm:$0xf]
      %v1138 = vpack.c.bf16 %v1098, %v1097
      %v1139 = vpack.c.bf16 %v1100, %v1099
      %v1140 = vpack.c.bf16 %v1102, %v1101
      %v1141 = vpack.c.bf16 %v1104, %v1103
      %v1142 = vpack.c.bf16 %v1106, %v1105
      %v1143 = vpack.c.bf16 %v1108, %v1107
      %v1144 = vpack.c.bf16 %v1110, %v1109
      %v1145 = vpack.c.bf16 %v1112, %v1111
      %v1146 = vpack.c.bf16 %v1114, %v1113
      %v1147 = vpack.c.bf16 %v1116, %v1115
      %v1148 = vpack.c.bf16 %v1118, %v1117
      %v1149 = vpack.c.bf16 %v1120, %v1119
      %v1150 = vpack.c.bf16 %v1122, %v1121
      %v1151 = vpack.c.bf16 %v1124, %v1123
      %v1152 = vpack.c.bf16 %v1126, %v1125
      %v1153 = vpack.c.bf16 %v1128, %v1127
      %v1154 = vpack.c.bf16 %v1130, %v1129
      %v1155 = vpack.c.bf16 %v1132, %v1131
      %v1156 = vpack.c.bf16 %v1134, %v1133
      %v1157 = vpack.c.bf16 %v1136, %v1135
      %v1158 = vpack.c.bf16 %v1137, %v1137
      %s1159 = scalar_lea.vmem %s3, 64
      %v1160 = vld [vmem:[%s1159] sm:$0xf]
      %v1161 = vld [vmem:[%s1159 + $0x4] sm:$0xf]
      %v1162 = vld [vmem:[%s1159 + $0x8] sm:$0xf]
      %v1163 = vld [vmem:[%s1159 + $0xc] sm:$0xf]
      %v1164 = vld [vmem:[%s1159 + $0x10] sm:$0xf]
      %v1165 = vld [vmem:[%s1159 + $0x14] sm:$0xf]
      %v1166 = vld [vmem:[%s1159 + $0x18] sm:$0xf]
      %v1167 = vld [vmem:[%s1159 + $0x1c] sm:$0xf]
      %v1176 = vunpack.c.l.b16 %v1160
      %v1177 = vunpack.c.l.b16 %v1161
      %v1178 = vunpack.c.l.b16 %v1162
      %v1179 = vunpack.c.l.b16 %v1163
      %v1180 = vunpack.c.l.b16 %v1164
      %v1181 = vunpack.c.l.b16 %v1165
      %v1182 = vunpack.c.l.b16 %v1166
      %v1183 = vunpack.c.l.b16 %v1167
      %v1184 = vpack.c.b16 %v1177, %v1176
      %v1185 = vpack.c.b16 %v1179, %v1178
      %v1186 = vpack.c.b16 %v1181, %v1180
      %v1187 = vpack.c.b16 %v1183, %v1182
      %v1193 = vsel %vm368, %v1138, 0
      %v1196 = vsel %vm368, %v1139, 0
      %v1199 = vsel %vm368, %v1140, 0
      %v1202 = vsel %vm368, %v1141, 0
      %v1205 = vsel %vm368, %v1142, 0
      %v1208 = vsel %vm368, %v1143, 0
      %v1211 = vsel %vm368, %v1144, 0
      %v1214 = vsel %vm368, %v1145, 0
      %v1217 = vsel %vm368, %v1146, 0
      %v1220 = vsel %vm368, %v1147, 0
      %v1223 = vsel %vm368, %v1148, 0
      %v1226 = vsel %vm368, %v1149, 0
      %v1229 = vsel %vm368, %v1150, 0
      %v1232 = vsel %vm368, %v1151, 0
      %v1235 = vsel %vm368, %v1152, 0
      %v1238 = vsel %vm368, %v1153, 0
      %v1241 = vsel %vm368, %v1154, 0
      %v1244 = vsel %vm368, %v1155, 0
      %v1247 = vsel %vm368, %v1156, 0
      %v1250 = vsel %vm368, %v1157, 0
      %v1253 = vsel %vm368, %v1158, 0
      %1255 = vmatprep.subr.bf16.mxu0 0
      %1256 = vmatpush1.bf16.msra.mxu0 0
      %1257 = vmatprep.subr.bf16.mxu0 0
      %1258 = vmatpush1.bf16.msra.mxu0 0
      %1259 = vmatprep.subr.bf16.mxu0 0
      %1260 = vmatpush1.bf16.msra.mxu0 0
      %1261 = vmatprep.subr.bf16.mxu0 0
      %1262 = vmatpush1.bf16.msra.mxu0 0
      %1263 = vmatprep.subr.bf16.mxu0 0
      %1264 = vmatpush1.bf16.msra.mxu0 %v1187
      %1265 = vmatprep.subr.bf16.mxu0 0
      %1266 = vmatpush1.bf16.msra.mxu0 %v1186
      %1267 = vmatprep.subr.bf16.mxu0 0
      %1268 = vmatpush1.bf16.msra.mxu0 %v1185
      %1269 = vmatprep.subr.bf16.mxu0 0
      %1270 = vmatpush1.bf16.msra.mxu0 %v1184
      %1271 = vmatprep.subr.bf16.mxu0 0
      %1272 = vmatpush2.bf16.msra.mxu0 0
      %1273 = vmatprep.subr.bf16.mxu0 0
      %1274 = vmatpush2.bf16.msra.mxu0 0
      %1275 = vmatprep.subr.bf16.mxu0 0
      %1276 = vmatpush2.bf16.msra.mxu0 0
      %1277 = vmatprep.subr.bf16.mxu0 0
      %1278 = vmatpush2.bf16.msra.mxu0 0
      %1279 = vmatprep.subr.bf16.mxu0 0
      %1280 = vmatpush2.bf16.msra.mxu0 0
      %1281 = vmatprep.subr.bf16.mxu0 0
      %1282 = vmatpush2.bf16.msra.mxu0 0
      %1283 = vmatprep.subr.bf16.mxu0 0
      %1284 = vmatpush2.bf16.msra.mxu0 0
      %1285 = vmatprep.subr.bf16.mxu0 0
      %1286 = vmatpush2.bf16.msra.mxu0 0
      %1287 = vmatprep.mubr.bf16.mxu0 0
      %1288 = vmatmul.mubr.bf16.gmra.mxu0 %v1193
      %v1289 = vpop.f32.mrf.mxu0
      %v1290 = vadd.f32 0.0, %v1289
      %v1291 = vpop.f32.mrf.mxu0
      %v1292 = vpop.f32.mrf.mxu0
      %v1293 = vadd.f32 0.0, %v1292
      %v1294 = vpop.f32.mrf.mxu0
      %1295 = vmatprep.mubr.bf16.mxu0 0
      %1296 = vmatmul.mubr.bf16.gmra.mxu0 %v1196
      %v1297 = vpop.f32.mrf.mxu0
      %v1298 = vadd.f32 0.0, %v1297
      %v1299 = vpop.f32.mrf.mxu0
      %v1300 = vpop.f32.mrf.mxu0
      %v1301 = vadd.f32 0.0, %v1300
      %v1302 = vpop.f32.mrf.mxu0
      %1303 = vmatprep.mubr.bf16.mxu0 0
      %1304 = vmatmul.mubr.bf16.gmra.mxu0 %v1199
      %v1305 = vpop.f32.mrf.mxu0
      %v1306 = vadd.f32 0.0, %v1305
      %v1307 = vpop.f32.mrf.mxu0
      %v1308 = vpop.f32.mrf.mxu0
      %v1309 = vadd.f32 0.0, %v1308
      %v1310 = vpop.f32.mrf.mxu0
      %1311 = vmatprep.mubr.bf16.mxu0 0
      %1312 = vmatmul.mubr.bf16.gmra.mxu0 %v1202
      %v1313 = vpop.f32.mrf.mxu0
      %v1314 = vadd.f32 0.0, %v1313
      %v1315 = vpop.f32.mrf.mxu0
      %v1316 = vpop.f32.mrf.mxu0
      %v1317 = vadd.f32 0.0, %v1316
      %v1318 = vpop.f32.mrf.mxu0
      %1319 = vmatprep.mubr.bf16.mxu0 0
      %1320 = vmatmul.mubr.bf16.gmra.mxu0 %v1205
      %v1321 = vpop.f32.mrf.mxu0
      %v1322 = vadd.f32 0.0, %v1321
      %v1323 = vpop.f32.mrf.mxu0
      %v1324 = vpop.f32.mrf.mxu0
      %v1325 = vadd.f32 0.0, %v1324
      %v1326 = vpop.f32.mrf.mxu0
      %1327 = vmatprep.mubr.bf16.mxu0 0
      %1328 = vmatmul.mubr.bf16.gmra.mxu0 %v1208
      %v1329 = vpop.f32.mrf.mxu0
      %v1330 = vadd.f32 0.0, %v1329
      %v1331 = vpop.f32.mrf.mxu0
      %v1332 = vpop.f32.mrf.mxu0
      %v1333 = vadd.f32 0.0, %v1332
      %v1334 = vpop.f32.mrf.mxu0
      %1335 = vmatprep.mubr.bf16.mxu0 0
      %1336 = vmatmul.mubr.bf16.gmra.mxu0 %v1211
      %v1337 = vpop.f32.mrf.mxu0
      %v1338 = vadd.f32 0.0, %v1337
      %v1339 = vpop.f32.mrf.mxu0
      %v1340 = vpop.f32.mrf.mxu0
      %v1341 = vadd.f32 0.0, %v1340
      %v1342 = vpop.f32.mrf.mxu0
      %1343 = vmatprep.mubr.bf16.mxu0 0
      %1344 = vmatmul.mubr.bf16.gmra.mxu0 %v1214
      %v1345 = vpop.f32.mrf.mxu0
      %v1346 = vadd.f32 0.0, %v1345
      %v1347 = vpop.f32.mrf.mxu0
      %v1348 = vpop.f32.mrf.mxu0
      %v1349 = vadd.f32 0.0, %v1348
      %v1350 = vpop.f32.mrf.mxu0
      %1351 = vmatprep.mubr.bf16.mxu0 0
      %1352 = vmatmul.mubr.bf16.gmra.mxu0 %v1217
      %v1353 = vpop.f32.mrf.mxu0
      %v1354 = vadd.f32 0.0, %v1353
      %v1355 = vpop.f32.mrf.mxu0
      %v1356 = vpop.f32.mrf.mxu0
      %v1357 = vadd.f32 0.0, %v1356
      %v1358 = vpop.f32.mrf.mxu0
      %1359 = vmatprep.mubr.bf16.mxu0 0
      %1360 = vmatmul.mubr.bf16.gmra.mxu0 %v1220
      %v1361 = vpop.f32.mrf.mxu0
      %v1362 = vadd.f32 0.0, %v1361
      %v1363 = vpop.f32.mrf.mxu0
      %v1364 = vpop.f32.mrf.mxu0
      %v1365 = vadd.f32 0.0, %v1364
      %v1366 = vpop.f32.mrf.mxu0
      %1367 = vmatprep.mubr.bf16.mxu0 0
      %1368 = vmatmul.mubr.bf16.gmra.mxu0 %v1223
      %v1369 = vpop.f32.mrf.mxu0
      %v1370 = vadd.f32 0.0, %v1369
      %v1371 = vpop.f32.mrf.mxu0
      %v1372 = vpop.f32.mrf.mxu0
      %v1373 = vadd.f32 0.0, %v1372
      %v1374 = vpop.f32.mrf.mxu0
      %1375 = vmatprep.mubr.bf16.mxu0 0
      %1376 = vmatmul.mubr.bf16.gmra.mxu0 %v1226
      %v1377 = vpop.f32.mrf.mxu0
      %v1378 = vadd.f32 0.0, %v1377
      %v1379 = vpop.f32.mrf.mxu0
      %v1380 = vpop.f32.mrf.mxu0
      %v1381 = vadd.f32 0.0, %v1380
      %v1382 = vpop.f32.mrf.mxu0
      %1383 = vmatprep.mubr.bf16.mxu0 0
      %1384 = vmatmul.mubr.bf16.gmra.mxu0 %v1229
      %v1385 = vpop.f32.mrf.mxu0
      %v1386 = vadd.f32 0.0, %v1385
      %v1387 = vpop.f32.mrf.mxu0
      %v1388 = vpop.f32.mrf.mxu0
      %v1389 = vadd.f32 0.0, %v1388
      %v1390 = vpop.f32.mrf.mxu0
      %1391 = vmatprep.mubr.bf16.mxu0 0
      %1392 = vmatmul.mubr.bf16.gmra.mxu0 %v1232
      %v1393 = vpop.f32.mrf.mxu0
      %v1394 = vadd.f32 0.0, %v1393
      %v1395 = vpop.f32.mrf.mxu0
      %v1396 = vpop.f32.mrf.mxu0
      %v1397 = vadd.f32 0.0, %v1396
      %v1398 = vpop.f32.mrf.mxu0
      %1399 = vmatprep.mubr.bf16.mxu0 0
      %1400 = vmatmul.mubr.bf16.gmra.mxu0 %v1235
      %v1401 = vpop.f32.mrf.mxu0
      %v1402 = vadd.f32 0.0, %v1401
      %v1403 = vpop.f32.mrf.mxu0
      %v1404 = vpop.f32.mrf.mxu0
      %v1405 = vadd.f32 0.0, %v1404
      %v1406 = vpop.f32.mrf.mxu0
      %1407 = vmatprep.mubr.bf16.mxu0 0
      %1408 = vmatmul.mubr.bf16.gmra.mxu0 %v1238
      %v1409 = vpop.f32.mrf.mxu0
      %v1410 = vadd.f32 0.0, %v1409
      %v1411 = vpop.f32.mrf.mxu0
      %v1412 = vpop.f32.mrf.mxu0
      %v1413 = vadd.f32 0.0, %v1412
      %v1414 = vpop.f32.mrf.mxu0
      %1415 = vmatprep.mubr.bf16.mxu0 0
      %1416 = vmatmul.mubr.bf16.gmra.mxu0 %v1241
      %v1417 = vpop.f32.mrf.mxu0
      %v1418 = vadd.f32 0.0, %v1417
      %v1419 = vpop.f32.mrf.mxu0
      %v1420 = vpop.f32.mrf.mxu0
      %v1421 = vadd.f32 0.0, %v1420
      %v1422 = vpop.f32.mrf.mxu0
      %1423 = vmatprep.mubr.bf16.mxu0 0
      %1424 = vmatmul.mubr.bf16.gmra.mxu0 %v1244
      %v1425 = vpop.f32.mrf.mxu0
      %v1426 = vadd.f32 0.0, %v1425
      %v1427 = vpop.f32.mrf.mxu0
      %v1428 = vpop.f32.mrf.mxu0
      %v1429 = vadd.f32 0.0, %v1428
      %v1430 = vpop.f32.mrf.mxu0
      %1431 = vmatprep.mubr.bf16.mxu0 0
      %1432 = vmatmul.mubr.bf16.gmra.mxu0 %v1247
      %v1433 = vpop.f32.mrf.mxu0
      %v1434 = vadd.f32 0.0, %v1433
      %v1435 = vpop.f32.mrf.mxu0
      %v1436 = vpop.f32.mrf.mxu0
      %v1437 = vadd.f32 0.0, %v1436
      %v1438 = vpop.f32.mrf.mxu0
      %1439 = vmatprep.mubr.bf16.mxu0 0
      %1440 = vmatmul.mubr.bf16.gmra.mxu0 %v1250
      %v1441 = vpop.f32.mrf.mxu0
      %v1442 = vadd.f32 0.0, %v1441
      %v1443 = vpop.f32.mrf.mxu0
      %v1444 = vpop.f32.mrf.mxu0
      %v1445 = vadd.f32 0.0, %v1444
      %v1446 = vpop.f32.mrf.mxu0
      %1447 = vmatprep.mubr.bf16.mxu0 0
      %1448 = vmatmul.mubr.bf16.gmra.mxu0 %v1253
      %v1449 = vpop.f32.mrf.mxu0
      %v1450 = vadd.f32 0.0, %v1449
      %v1451 = vpop.f32.mrf.mxu0
      %v1452 = vpop.f32.mrf.mxu0
      %v1453 = vpop.f32.mrf.mxu0
      %1454 = vdwg.mxu0
      %v1455 = vadd.f32 %v932, %v1290
      %v1456 = vadd.f32 %v935, %v1293
      %v1457 = vadd.f32 %v940, %v1298
      %v1458 = vadd.f32 %v943, %v1301
      %v1459 = vadd.f32 %v948, %v1306
      %v1460 = vadd.f32 %v951, %v1309
      %v1461 = vadd.f32 %v956, %v1314
      %v1462 = vadd.f32 %v959, %v1317
      %v1463 = vadd.f32 %v964, %v1322
      %v1464 = vadd.f32 %v967, %v1325
      %v1465 = vadd.f32 %v972, %v1330
      %v1466 = vadd.f32 %v975, %v1333
      %v1467 = vadd.f32 %v980, %v1338
      %v1468 = vadd.f32 %v983, %v1341
      %v1469 = vadd.f32 %v988, %v1346
      %v1470 = vadd.f32 %v991, %v1349
      %v1471 = vadd.f32 %v996, %v1354
      %v1472 = vadd.f32 %v999, %v1357
      %v1473 = vadd.f32 %v1004, %v1362
      %v1474 = vadd.f32 %v1007, %v1365
      %v1475 = vadd.f32 %v1012, %v1370
      %v1476 = vadd.f32 %v1015, %v1373
      %v1477 = vadd.f32 %v1020, %v1378
      %v1478 = vadd.f32 %v1023, %v1381
      %v1479 = vadd.f32 %v1028, %v1386
      %v1480 = vadd.f32 %v1031, %v1389
      %v1481 = vadd.f32 %v1036, %v1394
      %v1482 = vadd.f32 %v1039, %v1397
      %v1483 = vadd.f32 %v1044, %v1402
      %v1484 = vadd.f32 %v1047, %v1405
      %v1485 = vadd.f32 %v1052, %v1410
      %v1486 = vadd.f32 %v1055, %v1413
      %v1487 = vadd.f32 %v1060, %v1418
      %v1488 = vadd.f32 %v1063, %v1421
      %v1489 = vadd.f32 %v1068, %v1426
      %v1490 = vadd.f32 %v1071, %v1429
      %v1491 = vadd.f32 %v1076, %v1434
      %v1492 = vadd.f32 %v1079, %v1437
      %v1493 = vadd.f32 %v1084, %v1442
      %v1494 = vadd.f32 %v1087, %v1445
      %v1495 = vadd.f32 %v1092, %v1450
      %v1496 = vld [vmem:[%s315 + $0x17] sm:$0xff]
      %v1497 = vld [vmem:[%s315 + $0x1f] sm:$0xff]
      %v1498 = vld [vmem:[%s315 + $0x27] sm:$0xff]
      %v1499 = vld [vmem:[%s315 + $0x2f] sm:$0xff]
      %v1500 = vld [vmem:[%s315 + $0x37] sm:$0xff]
      %v1501 = vld [vmem:[%s315 + $0x3f] sm:$0xff]
      %v1502 = vld [vmem:[%s315 + $0x47] sm:$0xff]
      %v1503 = vld [vmem:[%s315 + $0x4f] sm:$0xff]
      %v1504 = vld [vmem:[%s315 + $0x57] sm:$0xff]
      %v1505 = vld [vmem:[%s315 + $0x5f] sm:$0xff]
      %v1506 = vld [vmem:[%s315 + $0x67] sm:$0xff]
      %v1507 = vld [vmem:[%s315 + $0x6f] sm:$0xff]
      %v1508 = vld [vmem:[%s315 + $0x77] sm:$0xff]
      %v1509 = vld [vmem:[%s315 + $0x7f] sm:$0xff]
      %v1510 = vld [vmem:[%s315 + $0x87] sm:$0xff]
      %v1511 = vld [vmem:[%s315 + $0x8f] sm:$0xff]
      %v1512 = vld [vmem:[%s315 + $0x97] sm:$0xff]
      %v1513 = vld [vmem:[%s315 + $0x9f] sm:$0xff]
      %v1514 = vld [vmem:[%s315 + $0xa7] sm:$0xff]
      %v1515 = vld [vmem:[%s315 + $0xaf] sm:$0xff]
      %v1516 = vld [vmem:[%s315 + $0xb7] sm:$0xff]
      %v1517 = vld [vmem:[%s315 + $0xbf] sm:$0xff]
      %v1518 = vld [vmem:[%s315 + $0xc7] sm:$0xff]
      %v1519 = vld [vmem:[%s315 + $0xcf] sm:$0xff]
      %v1520 = vld [vmem:[%s315 + $0xd7] sm:$0xff]
      %v1521 = vld [vmem:[%s315 + $0xdf] sm:$0xff]
      %v1522 = vld [vmem:[%s315 + $0xe7] sm:$0xff]
      %v1523 = vld [vmem:[%s315 + $0xef] sm:$0xff]
      %v1524 = vld [vmem:[%s315 + $0xf7] sm:$0xff]
      %v1525 = vld [vmem:[%s315 + $0xff] sm:$0xff]
      %v1526 = vld [vmem:[%s315 + $0x107] sm:$0xff]
      %v1527 = vld [vmem:[%s315 + $0x10f] sm:$0xff]
      %v1528 = vld [vmem:[%s315 + $0x117] sm:$0xff]
      %v1529 = vld [vmem:[%s315 + $0x11f] sm:$0xff]
      %v1530 = vld [vmem:[%s315 + $0x127] sm:$0xff]
      %v1531 = vld [vmem:[%s315 + $0x12f] sm:$0xff]
      %v1532 = vld [vmem:[%s315 + $0x137] sm:$0xff]
      %v1533 = vld [vmem:[%s315 + $0x13f] sm:$0xff]
      %v1534 = vld [vmem:[%s315 + $0x147] sm:$0xff]
      %v1535 = vld [vmem:[%s315 + $0x14f] sm:$0xff]
      %v1536 = vld [vmem:[%s315 + $0x157] sm:$0xf]
      %v1537 = vpack.c.bf16 %v1497, %v1496
      %v1538 = vpack.c.bf16 %v1499, %v1498
      %v1539 = vpack.c.bf16 %v1501, %v1500
      %v1540 = vpack.c.bf16 %v1503, %v1502
      %v1541 = vpack.c.bf16 %v1505, %v1504
      %v1542 = vpack.c.bf16 %v1507, %v1506
      %v1543 = vpack.c.bf16 %v1509, %v1508
      %v1544 = vpack.c.bf16 %v1511, %v1510
      %v1545 = vpack.c.bf16 %v1513, %v1512
      %v1546 = vpack.c.bf16 %v1515, %v1514
      %v1547 = vpack.c.bf16 %v1517, %v1516
      %v1548 = vpack.c.bf16 %v1519, %v1518
      %v1549 = vpack.c.bf16 %v1521, %v1520
      %v1550 = vpack.c.bf16 %v1523, %v1522
      %v1551 = vpack.c.bf16 %v1525, %v1524
      %v1552 = vpack.c.bf16 %v1527, %v1526
      %v1553 = vpack.c.bf16 %v1529, %v1528
      %v1554 = vpack.c.bf16 %v1531, %v1530
      %v1555 = vpack.c.bf16 %v1533, %v1532
      %v1556 = vpack.c.bf16 %v1535, %v1534
      %v1557 = vpack.c.bf16 %v1536, %v1536
      %s1558 = scalar_lea.vmem %s3, 96
      %v1559 = vld [vmem:[%s1558] sm:$0xf]
      %v1560 = vld [vmem:[%s1558 + $0x4] sm:$0xf]
      %v1561 = vld [vmem:[%s1558 + $0x8] sm:$0xf]
      %v1562 = vld [vmem:[%s1558 + $0xc] sm:$0xf]
      %v1563 = vld [vmem:[%s1558 + $0x10] sm:$0xf]
      %v1564 = vld [vmem:[%s1558 + $0x14] sm:$0xf]
      %v1565 = vld [vmem:[%s1558 + $0x18] sm:$0xf]
      %v1566 = vld [vmem:[%s1558 + $0x1c] sm:$0xf]
      %v1575 = vunpack.c.l.b16 %v1559
      %v1576 = vunpack.c.l.b16 %v1560
      %v1577 = vunpack.c.l.b16 %v1561
      %v1578 = vunpack.c.l.b16 %v1562
      %v1579 = vunpack.c.l.b16 %v1563
      %v1580 = vunpack.c.l.b16 %v1564
      %v1581 = vunpack.c.l.b16 %v1565
      %v1582 = vunpack.c.l.b16 %v1566
      %v1583 = vpack.c.b16 %v1576, %v1575
      %v1584 = vpack.c.b16 %v1578, %v1577
      %v1585 = vpack.c.b16 %v1580, %v1579
      %v1586 = vpack.c.b16 %v1582, %v1581
      %v1592 = vsel %vm368, %v1537, 0
      %v1595 = vsel %vm368, %v1538, 0
      %v1598 = vsel %vm368, %v1539, 0
      %v1601 = vsel %vm368, %v1540, 0
      %v1604 = vsel %vm368, %v1541, 0
      %v1607 = vsel %vm368, %v1542, 0
      %v1610 = vsel %vm368, %v1543, 0
      %v1613 = vsel %vm368, %v1544, 0
      %v1616 = vsel %vm368, %v1545, 0
      %v1619 = vsel %vm368, %v1546, 0
      %v1622 = vsel %vm368, %v1547, 0
      %v1625 = vsel %vm368, %v1548, 0
      %v1628 = vsel %vm368, %v1549, 0
      %v1631 = vsel %vm368, %v1550, 0
      %v1634 = vsel %vm368, %v1551, 0
      %v1637 = vsel %vm368, %v1552, 0
      %v1640 = vsel %vm368, %v1553, 0
      %v1643 = vsel %vm368, %v1554, 0
      %v1646 = vsel %vm368, %v1555, 0
      %v1649 = vsel %vm368, %v1556, 0
      %v1652 = vsel %vm368, %v1557, 0
      %1654 = vmatprep.subr.bf16.mxu0 0
      %1655 = vmatpush1.bf16.msra.mxu0 0
      %1656 = vmatprep.subr.bf16.mxu0 0
      %1657 = vmatpush1.bf16.msra.mxu0 0
      %1658 = vmatprep.subr.bf16.mxu0 0
      %1659 = vmatpush1.bf16.msra.mxu0 0
      %1660 = vmatprep.subr.bf16.mxu0 0
      %1661 = vmatpush1.bf16.msra.mxu0 0
      %1662 = vmatprep.subr.bf16.mxu0 0
      %1663 = vmatpush1.bf16.msra.mxu0 %v1586
      %1664 = vmatprep.subr.bf16.mxu0 0
      %1665 = vmatpush1.bf16.msra.mxu0 %v1585
      %1666 = vmatprep.subr.bf16.mxu0 0
      %1667 = vmatpush1.bf16.msra.mxu0 %v1584
      %1668 = vmatprep.subr.bf16.mxu0 0
      %1669 = vmatpush1.bf16.msra.mxu0 %v1583
      %1670 = vmatprep.subr.bf16.mxu0 0
      %1671 = vmatpush2.bf16.msra.mxu0 0
      %1672 = vmatprep.subr.bf16.mxu0 0
      %1673 = vmatpush2.bf16.msra.mxu0 0
      %1674 = vmatprep.subr.bf16.mxu0 0
      %1675 = vmatpush2.bf16.msra.mxu0 0
      %1676 = vmatprep.subr.bf16.mxu0 0
      %1677 = vmatpush2.bf16.msra.mxu0 0
      %1678 = vmatprep.subr.bf16.mxu0 0
      %1679 = vmatpush2.bf16.msra.mxu0 0
      %1680 = vmatprep.subr.bf16.mxu0 0
      %1681 = vmatpush2.bf16.msra.mxu0 0
      %1682 = vmatprep.subr.bf16.mxu0 0
      %1683 = vmatpush2.bf16.msra.mxu0 0
      %1684 = vmatprep.subr.bf16.mxu0 0
      %1685 = vmatpush2.bf16.msra.mxu0 0
      %1686 = vmatprep.mubr.bf16.mxu0 0
      %1687 = vmatmul.mubr.bf16.gmra.mxu0 %v1592
      %v1688 = vpop.f32.mrf.mxu0
      %v1689 = vadd.f32 0.0, %v1688
      %v1690 = vpop.f32.mrf.mxu0
      %v1691 = vpop.f32.mrf.mxu0
      %v1692 = vadd.f32 0.0, %v1691
      %v1693 = vpop.f32.mrf.mxu0
      %1694 = vmatprep.mubr.bf16.mxu0 0
      %1695 = vmatmul.mubr.bf16.gmra.mxu0 %v1595
      %v1696 = vpop.f32.mrf.mxu0
      %v1697 = vadd.f32 0.0, %v1696
      %v1698 = vpop.f32.mrf.mxu0
      %v1699 = vpop.f32.mrf.mxu0
      %v1700 = vadd.f32 0.0, %v1699
      %v1701 = vpop.f32.mrf.mxu0
      %1702 = vmatprep.mubr.bf16.mxu0 0
      %1703 = vmatmul.mubr.bf16.gmra.mxu0 %v1598
      %v1704 = vpop.f32.mrf.mxu0
      %v1705 = vadd.f32 0.0, %v1704
      %v1706 = vpop.f32.mrf.mxu0
      %v1707 = vpop.f32.mrf.mxu0
      %v1708 = vadd.f32 0.0, %v1707
      %v1709 = vpop.f32.mrf.mxu0
      %1710 = vmatprep.mubr.bf16.mxu0 0
      %1711 = vmatmul.mubr.bf16.gmra.mxu0 %v1601
      %v1712 = vpop.f32.mrf.mxu0
      %v1713 = vadd.f32 0.0, %v1712
      %v1714 = vpop.f32.mrf.mxu0
      %v1715 = vpop.f32.mrf.mxu0
      %v1716 = vadd.f32 0.0, %v1715
      %v1717 = vpop.f32.mrf.mxu0
      %1718 = vmatprep.mubr.bf16.mxu0 0
      %1719 = vmatmul.mubr.bf16.gmra.mxu0 %v1604
      %v1720 = vpop.f32.mrf.mxu0
      %v1721 = vadd.f32 0.0, %v1720
      %v1722 = vpop.f32.mrf.mxu0
      %v1723 = vpop.f32.mrf.mxu0
      %v1724 = vadd.f32 0.0, %v1723
      %v1725 = vpop.f32.mrf.mxu0
      %1726 = vmatprep.mubr.bf16.mxu0 0
      %1727 = vmatmul.mubr.bf16.gmra.mxu0 %v1607
      %v1728 = vpop.f32.mrf.mxu0
      %v1729 = vadd.f32 0.0, %v1728
      %v1730 = vpop.f32.mrf.mxu0
      %v1731 = vpop.f32.mrf.mxu0
      %v1732 = vadd.f32 0.0, %v1731
      %v1733 = vpop.f32.mrf.mxu0
      %1734 = vmatprep.mubr.bf16.mxu0 0
      %1735 = vmatmul.mubr.bf16.gmra.mxu0 %v1610
      %v1736 = vpop.f32.mrf.mxu0
      %v1737 = vadd.f32 0.0, %v1736
      %v1738 = vpop.f32.mrf.mxu0
      %v1739 = vpop.f32.mrf.mxu0
      %v1740 = vadd.f32 0.0, %v1739
      %v1741 = vpop.f32.mrf.mxu0
      %1742 = vmatprep.mubr.bf16.mxu0 0
      %1743 = vmatmul.mubr.bf16.gmra.mxu0 %v1613
      %v1744 = vpop.f32.mrf.mxu0
      %v1745 = vadd.f32 0.0, %v1744
      %v1746 = vpop.f32.mrf.mxu0
      %v1747 = vpop.f32.mrf.mxu0
      %v1748 = vadd.f32 0.0, %v1747
      %v1749 = vpop.f32.mrf.mxu0
      %1750 = vmatprep.mubr.bf16.mxu0 0
      %1751 = vmatmul.mubr.bf16.gmra.mxu0 %v1616
      %v1752 = vpop.f32.mrf.mxu0
      %v1753 = vadd.f32 0.0, %v1752
      %v1754 = vpop.f32.mrf.mxu0
      %v1755 = vpop.f32.mrf.mxu0
      %v1756 = vadd.f32 0.0, %v1755
      %v1757 = vpop.f32.mrf.mxu0
      %1758 = vmatprep.mubr.bf16.mxu0 0
      %1759 = vmatmul.mubr.bf16.gmra.mxu0 %v1619
      %v1760 = vpop.f32.mrf.mxu0
      %v1761 = vadd.f32 0.0, %v1760
      %v1762 = vpop.f32.mrf.mxu0
      %v1763 = vpop.f32.mrf.mxu0
      %v1764 = vadd.f32 0.0, %v1763
      %v1765 = vpop.f32.mrf.mxu0
      %1766 = vmatprep.mubr.bf16.mxu0 0
      %1767 = vmatmul.mubr.bf16.gmra.mxu0 %v1622
      %v1768 = vpop.f32.mrf.mxu0
      %v1769 = vadd.f32 0.0, %v1768
      %v1770 = vpop.f32.mrf.mxu0
      %v1771 = vpop.f32.mrf.mxu0
      %v1772 = vadd.f32 0.0, %v1771
      %v1773 = vpop.f32.mrf.mxu0
      %1774 = vmatprep.mubr.bf16.mxu0 0
      %1775 = vmatmul.mubr.bf16.gmra.mxu0 %v1625
      %v1776 = vpop.f32.mrf.mxu0
      %v1777 = vadd.f32 0.0, %v1776
      %v1778 = vpop.f32.mrf.mxu0
      %v1779 = vpop.f32.mrf.mxu0
      %v1780 = vadd.f32 0.0, %v1779
      %v1781 = vpop.f32.mrf.mxu0
      %1782 = vmatprep.mubr.bf16.mxu0 0
      %1783 = vmatmul.mubr.bf16.gmra.mxu0 %v1628
      %v1784 = vpop.f32.mrf.mxu0
      %v1785 = vadd.f32 0.0, %v1784
      %v1786 = vpop.f32.mrf.mxu0
      %v1787 = vpop.f32.mrf.mxu0
      %v1788 = vadd.f32 0.0, %v1787
      %v1789 = vpop.f32.mrf.mxu0
      %1790 = vmatprep.mubr.bf16.mxu0 0
      %1791 = vmatmul.mubr.bf16.gmra.mxu0 %v1631
      %v1792 = vpop.f32.mrf.mxu0
      %v1793 = vadd.f32 0.0, %v1792
      %v1794 = vpop.f32.mrf.mxu0
      %v1795 = vpop.f32.mrf.mxu0
      %v1796 = vadd.f32 0.0, %v1795
      %v1797 = vpop.f32.mrf.mxu0
      %1798 = vmatprep.mubr.bf16.mxu0 0
      %1799 = vmatmul.mubr.bf16.gmra.mxu0 %v1634
      %v1800 = vpop.f32.mrf.mxu0
      %v1801 = vadd.f32 0.0, %v1800
      %v1802 = vpop.f32.mrf.mxu0
      %v1803 = vpop.f32.mrf.mxu0
      %v1804 = vadd.f32 0.0, %v1803
      %v1805 = vpop.f32.mrf.mxu0
      %1806 = vmatprep.mubr.bf16.mxu0 0
      %1807 = vmatmul.mubr.bf16.gmra.mxu0 %v1637
      %v1808 = vpop.f32.mrf.mxu0
      %v1809 = vadd.f32 0.0, %v1808
      %v1810 = vpop.f32.mrf.mxu0
      %v1811 = vpop.f32.mrf.mxu0
      %v1812 = vadd.f32 0.0, %v1811
      %v1813 = vpop.f32.mrf.mxu0
      %1814 = vmatprep.mubr.bf16.mxu0 0
      %1815 = vmatmul.mubr.bf16.gmra.mxu0 %v1640
      %v1816 = vpop.f32.mrf.mxu0
      %v1817 = vadd.f32 0.0, %v1816
      %v1818 = vpop.f32.mrf.mxu0
      %v1819 = vpop.f32.mrf.mxu0
      %v1820 = vadd.f32 0.0, %v1819
      %v1821 = vpop.f32.mrf.mxu0
      %1822 = vmatprep.mubr.bf16.mxu0 0
      %1823 = vmatmul.mubr.bf16.gmra.mxu0 %v1643
      %v1824 = vpop.f32.mrf.mxu0
      %v1825 = vadd.f32 0.0, %v1824
      %v1826 = vpop.f32.mrf.mxu0
      %v1827 = vpop.f32.mrf.mxu0
      %v1828 = vadd.f32 0.0, %v1827
      %v1829 = vpop.f32.mrf.mxu0
      %1830 = vmatprep.mubr.bf16.mxu0 0
      %1831 = vmatmul.mubr.bf16.gmra.mxu0 %v1646
      %v1832 = vpop.f32.mrf.mxu0
      %v1833 = vadd.f32 0.0, %v1832
      %v1834 = vpop.f32.mrf.mxu0
      %v1835 = vpop.f32.mrf.mxu0
      %v1836 = vadd.f32 0.0, %v1835
      %v1837 = vpop.f32.mrf.mxu0
      %1838 = vmatprep.mubr.bf16.mxu0 0
      %1839 = vmatmul.mubr.bf16.gmra.mxu0 %v1649
      %v1840 = vpop.f32.mrf.mxu0
      %v1841 = vadd.f32 0.0, %v1840
      %v1842 = vpop.f32.mrf.mxu0
      %v1843 = vpop.f32.mrf.mxu0
      %v1844 = vadd.f32 0.0, %v1843
      %v1845 = vpop.f32.mrf.mxu0
      %1846 = vmatprep.mubr.bf16.mxu0 0
      %1847 = vmatmul.mubr.bf16.gmra.mxu0 %v1652
      %v1848 = vpop.f32.mrf.mxu0
      %v1849 = vadd.f32 0.0, %v1848
      %v1850 = vpop.f32.mrf.mxu0
      %v1851 = vpop.f32.mrf.mxu0
      %v1852 = vpop.f32.mrf.mxu0
      %1853 = vdwg.mxu0
      %v1854 = vadd.f32 %v1455, %v1689
      %v1855 = vadd.f32 %v1456, %v1692
      %v1856 = vadd.f32 %v1457, %v1697
      %v1857 = vadd.f32 %v1458, %v1700
      %v1858 = vadd.f32 %v1459, %v1705
      %v1859 = vadd.f32 %v1460, %v1708
      %v1860 = vadd.f32 %v1461, %v1713
      %v1861 = vadd.f32 %v1462, %v1716
      %v1862 = vadd.f32 %v1463, %v1721
      %v1863 = vadd.f32 %v1464, %v1724
      %v1864 = vadd.f32 %v1465, %v1729
      %v1865 = vadd.f32 %v1466, %v1732
      %v1866 = vadd.f32 %v1467, %v1737
      %v1867 = vadd.f32 %v1468, %v1740
      %v1868 = vadd.f32 %v1469, %v1745
      %v1869 = vadd.f32 %v1470, %v1748
      %v1870 = vadd.f32 %v1471, %v1753
      %v1871 = vadd.f32 %v1472, %v1756
      %v1872 = vadd.f32 %v1473, %v1761
      %v1873 = vadd.f32 %v1474, %v1764
      %v1874 = vadd.f32 %v1475, %v1769
      %v1875 = vadd.f32 %v1476, %v1772
      %v1876 = vadd.f32 %v1477, %v1777
      %v1877 = vadd.f32 %v1478, %v1780
      %v1878 = vadd.f32 %v1479, %v1785
      %v1879 = vadd.f32 %v1480, %v1788
      %v1880 = vadd.f32 %v1481, %v1793
      %v1881 = vadd.f32 %v1482, %v1796
      %v1882 = vadd.f32 %v1483, %v1801
      %v1883 = vadd.f32 %v1484, %v1804
      %v1884 = vadd.f32 %v1485, %v1809
      %v1885 = vadd.f32 %v1486, %v1812
      %v1886 = vadd.f32 %v1487, %v1817
      %v1887 = vadd.f32 %v1488, %v1820
      %v1888 = vadd.f32 %v1489, %v1825
      %v1889 = vadd.f32 %v1490, %v1828
      %v1890 = vadd.f32 %v1491, %v1833
      %v1891 = vadd.f32 %v1492, %v1836
      %v1892 = vadd.f32 %v1493, %v1841
      %v1893 = vadd.f32 %v1494, %v1844
      %v1894 = vadd.f32 %v1495, %v1849
      %v1895 = vld [vmem:[%s315 + $0x18] sm:$0xff]
      %v1896 = vld [vmem:[%s315 + $0x20] sm:$0xff]
      %v1897 = vld [vmem:[%s315 + $0x28] sm:$0xff]
      %v1898 = vld [vmem:[%s315 + $0x30] sm:$0xff]
      %v1899 = vld [vmem:[%s315 + $0x38] sm:$0xff]
      %v1900 = vld [vmem:[%s315 + $0x40] sm:$0xff]
      %v1901 = vld [vmem:[%s315 + $0x48] sm:$0xff]
      %v1902 = vld [vmem:[%s315 + $0x50] sm:$0xff]
      %v1903 = vld [vmem:[%s315 + $0x58] sm:$0xff]
      %v1904 = vld [vmem:[%s315 + $0x60] sm:$0xff]
      %v1905 = vld [vmem:[%s315 + $0x68] sm:$0xff]
      %v1906 = vld [vmem:[%s315 + $0x70] sm:$0xff]
      %v1907 = vld [vmem:[%s315 + $0x78] sm:$0xff]
      %v1908 = vld [vmem:[%s315 + $0x80] sm:$0xff]
      %v1909 = vld [vmem:[%s315 + $0x88] sm:$0xff]
      %v1910 = vld [vmem:[%s315 + $0x90] sm:$0xff]
      %v1911 = vld [vmem:[%s315 + $0x98] sm:$0xff]
      %v1912 = vld [vmem:[%s315 + $0xa0] sm:$0xff]
      %v1913 = vld [vmem:[%s315 + $0xa8] sm:$0xff]
      %v1914 = vld [vmem:[%s315 + $0xb0] sm:$0xff]
      %v1915 = vld [vmem:[%s315 + $0xb8] sm:$0xff]
      %v1916 = vld [vmem:[%s315 + $0xc0] sm:$0xff]
      %v1917 = vld [vmem:[%s315 + $0xc8] sm:$0xff]
      %v1918 = vld [vmem:[%s315 + $0xd0] sm:$0xff]
      %v1919 = vld [vmem:[%s315 + $0xd8] sm:$0xff]
      %v1920 = vld [vmem:[%s315 + $0xe0] sm:$0xff]
      %v1921 = vld [vmem:[%s315 + $0xe8] sm:$0xff]
      %v1922 = vld [vmem:[%s315 + $0xf0] sm:$0xff]
      %v1923 = vld [vmem:[%s315 + $0xf8] sm:$0xff]
      %v1924 = vld [vmem:[%s315 + $0x100] sm:$0xff]
      %v1925 = vld [vmem:[%s315 + $0x108] sm:$0xff]
      %v1926 = vld [vmem:[%s315 + $0x110] sm:$0xff]
      %v1927 = vld [vmem:[%s315 + $0x118] sm:$0xff]
      %v1928 = vld [vmem:[%s315 + $0x120] sm:$0xff]
      %v1929 = vld [vmem:[%s315 + $0x128] sm:$0xff]
      %v1930 = vld [vmem:[%s315 + $0x130] sm:$0xff]
      %v1931 = vld [vmem:[%s315 + $0x138] sm:$0xff]
      %v1932 = vld [vmem:[%s315 + $0x140] sm:$0xff]
      %v1933 = vld [vmem:[%s315 + $0x148] sm:$0xff]
      %v1934 = vld [vmem:[%s315 + $0x150] sm:$0xff]
      %v1935 = vld [vmem:[%s315 + $0x158] sm:$0xf]
      %v1936 = vpack.c.bf16 %v1896, %v1895
      %v1937 = vpack.c.bf16 %v1898, %v1897
      %v1938 = vpack.c.bf16 %v1900, %v1899
      %v1939 = vpack.c.bf16 %v1902, %v1901
      %v1940 = vpack.c.bf16 %v1904, %v1903
      %v1941 = vpack.c.bf16 %v1906, %v1905
      %v1942 = vpack.c.bf16 %v1908, %v1907
      %v1943 = vpack.c.bf16 %v1910, %v1909
      %v1944 = vpack.c.bf16 %v1912, %v1911
      %v1945 = vpack.c.bf16 %v1914, %v1913
      %v1946 = vpack.c.bf16 %v1916, %v1915
      %v1947 = vpack.c.bf16 %v1918, %v1917
      %v1948 = vpack.c.bf16 %v1920, %v1919
      %v1949 = vpack.c.bf16 %v1922, %v1921
      %v1950 = vpack.c.bf16 %v1924, %v1923
      %v1951 = vpack.c.bf16 %v1926, %v1925
      %v1952 = vpack.c.bf16 %v1928, %v1927
      %v1953 = vpack.c.bf16 %v1930, %v1929
      %v1954 = vpack.c.bf16 %v1932, %v1931
      %v1955 = vpack.c.bf16 %v1934, %v1933
      %v1956 = vpack.c.bf16 %v1935, %v1935
      %s1957 = scalar_lea.vmem %s3, 128
      %v1958 = vld [vmem:[%s1957] sm:$0xf]
      %v1959 = vld [vmem:[%s1957 + $0x4] sm:$0xf]
      %v1960 = vld [vmem:[%s1957 + $0x8] sm:$0xf]
      %v1961 = vld [vmem:[%s1957 + $0xc] sm:$0xf]
      %v1962 = vld [vmem:[%s1957 + $0x10] sm:$0xf]
      %v1963 = vld [vmem:[%s1957 + $0x14] sm:$0xf]
      %v1964 = vld [vmem:[%s1957 + $0x18] sm:$0xf]
      %v1965 = vld [vmem:[%s1957 + $0x1c] sm:$0xf]
      %v1974 = vunpack.c.l.b16 %v1958
      %v1975 = vunpack.c.l.b16 %v1959
      %v1976 = vunpack.c.l.b16 %v1960
      %v1977 = vunpack.c.l.b16 %v1961
      %v1978 = vunpack.c.l.b16 %v1962
      %v1979 = vunpack.c.l.b16 %v1963
      %v1980 = vunpack.c.l.b16 %v1964
      %v1981 = vunpack.c.l.b16 %v1965
      %v1982 = vpack.c.b16 %v1975, %v1974
      %v1983 = vpack.c.b16 %v1977, %v1976
      %v1984 = vpack.c.b16 %v1979, %v1978
      %v1985 = vpack.c.b16 %v1981, %v1980
      %v1991 = vsel %vm368, %v1936, 0
      %v1994 = vsel %vm368, %v1937, 0
      %v1997 = vsel %vm368, %v1938, 0
      %v2000 = vsel %vm368, %v1939, 0
      %v2003 = vsel %vm368, %v1940, 0
      %v2006 = vsel %vm368, %v1941, 0
      %v2009 = vsel %vm368, %v1942, 0
      %v2012 = vsel %vm368, %v1943, 0
      %v2015 = vsel %vm368, %v1944, 0
      %v2018 = vsel %vm368, %v1945, 0
      %v2021 = vsel %vm368, %v1946, 0
      %v2024 = vsel %vm368, %v1947, 0
      %v2027 = vsel %vm368, %v1948, 0
      %v2030 = vsel %vm368, %v1949, 0
      %v2033 = vsel %vm368, %v1950, 0
      %v2036 = vsel %vm368, %v1951, 0
      %v2039 = vsel %vm368, %v1952, 0
      %v2042 = vsel %vm368, %v1953, 0
      %v2045 = vsel %vm368, %v1954, 0
      %v2048 = vsel %vm368, %v1955, 0
      %v2051 = vsel %vm368, %v1956, 0
      %2053 = vmatprep.subr.bf16.mxu0 0
      %2054 = vmatpush1.bf16.msra.mxu0 0
      %2055 = vmatprep.subr.bf16.mxu0 0
      %2056 = vmatpush1.bf16.msra.mxu0 0
      %2057 = vmatprep.subr.bf16.mxu0 0
      %2058 = vmatpush1.bf16.msra.mxu0 0
      %2059 = vmatprep.subr.bf16.mxu0 0
      %2060 = vmatpush1.bf16.msra.mxu0 0
      %2061 = vmatprep.subr.bf16.mxu0 0
      %2062 = vmatpush1.bf16.msra.mxu0 %v1985
      %2063 = vmatprep.subr.bf16.mxu0 0
      %2064 = vmatpush1.bf16.msra.mxu0 %v1984
      %2065 = vmatprep.subr.bf16.mxu0 0
      %2066 = vmatpush1.bf16.msra.mxu0 %v1983
      %2067 = vmatprep.subr.bf16.mxu0 0
      %2068 = vmatpush1.bf16.msra.mxu0 %v1982
      %2069 = vmatprep.subr.bf16.mxu0 0
      %2070 = vmatpush2.bf16.msra.mxu0 0
      %2071 = vmatprep.subr.bf16.mxu0 0
      %2072 = vmatpush2.bf16.msra.mxu0 0
      %2073 = vmatprep.subr.bf16.mxu0 0
      %2074 = vmatpush2.bf16.msra.mxu0 0
      %2075 = vmatprep.subr.bf16.mxu0 0
      %2076 = vmatpush2.bf16.msra.mxu0 0
      %2077 = vmatprep.subr.bf16.mxu0 0
      %2078 = vmatpush2.bf16.msra.mxu0 0
      %2079 = vmatprep.subr.bf16.mxu0 0
      %2080 = vmatpush2.bf16.msra.mxu0 0
      %2081 = vmatprep.subr.bf16.mxu0 0
      %2082 = vmatpush2.bf16.msra.mxu0 0
      %2083 = vmatprep.subr.bf16.mxu0 0
      %2084 = vmatpush2.bf16.msra.mxu0 0
      %2085 = vmatprep.mubr.bf16.mxu0 0
      %2086 = vmatmul.mubr.bf16.gmra.mxu0 %v1991
      %v2087 = vpop.f32.mrf.mxu0
      %v2088 = vadd.f32 0.0, %v2087
      %v2089 = vpop.f32.mrf.mxu0
      %v2090 = vpop.f32.mrf.mxu0
      %v2091 = vadd.f32 0.0, %v2090
      %v2092 = vpop.f32.mrf.mxu0
      %2093 = vmatprep.mubr.bf16.mxu0 0
      %2094 = vmatmul.mubr.bf16.gmra.mxu0 %v1994
      %v2095 = vpop.f32.mrf.mxu0
      %v2096 = vadd.f32 0.0, %v2095
      %v2097 = vpop.f32.mrf.mxu0
      %v2098 = vpop.f32.mrf.mxu0
      %v2099 = vadd.f32 0.0, %v2098
      %v2100 = vpop.f32.mrf.mxu0
      %2101 = vmatprep.mubr.bf16.mxu0 0
      %2102 = vmatmul.mubr.bf16.gmra.mxu0 %v1997
      %v2103 = vpop.f32.mrf.mxu0
      %v2104 = vadd.f32 0.0, %v2103
      %v2105 = vpop.f32.mrf.mxu0
      %v2106 = vpop.f32.mrf.mxu0
      %v2107 = vadd.f32 0.0, %v2106
      %v2108 = vpop.f32.mrf.mxu0
      %2109 = vmatprep.mubr.bf16.mxu0 0
      %2110 = vmatmul.mubr.bf16.gmra.mxu0 %v2000
      %v2111 = vpop.f32.mrf.mxu0
      %v2112 = vadd.f32 0.0, %v2111
      %v2113 = vpop.f32.mrf.mxu0
      %v2114 = vpop.f32.mrf.mxu0
      %v2115 = vadd.f32 0.0, %v2114
      %v2116 = vpop.f32.mrf.mxu0
      %2117 = vmatprep.mubr.bf16.mxu0 0
      %2118 = vmatmul.mubr.bf16.gmra.mxu0 %v2003
      %v2119 = vpop.f32.mrf.mxu0
      %v2120 = vadd.f32 0.0, %v2119
      %v2121 = vpop.f32.mrf.mxu0
      %v2122 = vpop.f32.mrf.mxu0
      %v2123 = vadd.f32 0.0, %v2122
      %v2124 = vpop.f32.mrf.mxu0
      %2125 = vmatprep.mubr.bf16.mxu0 0
      %2126 = vmatmul.mubr.bf16.gmra.mxu0 %v2006
      %v2127 = vpop.f32.mrf.mxu0
      %v2128 = vadd.f32 0.0, %v2127
      %v2129 = vpop.f32.mrf.mxu0
      %v2130 = vpop.f32.mrf.mxu0
      %v2131 = vadd.f32 0.0, %v2130
      %v2132 = vpop.f32.mrf.mxu0
      %2133 = vmatprep.mubr.bf16.mxu0 0
      %2134 = vmatmul.mubr.bf16.gmra.mxu0 %v2009
      %v2135 = vpop.f32.mrf.mxu0
      %v2136 = vadd.f32 0.0, %v2135
      %v2137 = vpop.f32.mrf.mxu0
      %v2138 = vpop.f32.mrf.mxu0
      %v2139 = vadd.f32 0.0, %v2138
      %v2140 = vpop.f32.mrf.mxu0
      %2141 = vmatprep.mubr.bf16.mxu0 0
      %2142 = vmatmul.mubr.bf16.gmra.mxu0 %v2012
      %v2143 = vpop.f32.mrf.mxu0
      %v2144 = vadd.f32 0.0, %v2143
      %v2145 = vpop.f32.mrf.mxu0
      %v2146 = vpop.f32.mrf.mxu0
      %v2147 = vadd.f32 0.0, %v2146
      %v2148 = vpop.f32.mrf.mxu0
      %2149 = vmatprep.mubr.bf16.mxu0 0
      %2150 = vmatmul.mubr.bf16.gmra.mxu0 %v2015
      %v2151 = vpop.f32.mrf.mxu0
      %v2152 = vadd.f32 0.0, %v2151
      %v2153 = vpop.f32.mrf.mxu0
      %v2154 = vpop.f32.mrf.mxu0
      %v2155 = vadd.f32 0.0, %v2154
      %v2156 = vpop.f32.mrf.mxu0
      %2157 = vmatprep.mubr.bf16.mxu0 0
      %2158 = vmatmul.mubr.bf16.gmra.mxu0 %v2018
      %v2159 = vpop.f32.mrf.mxu0
      %v2160 = vadd.f32 0.0, %v2159
      %v2161 = vpop.f32.mrf.mxu0
      %v2162 = vpop.f32.mrf.mxu0
      %v2163 = vadd.f32 0.0, %v2162
      %v2164 = vpop.f32.mrf.mxu0
      %2165 = vmatprep.mubr.bf16.mxu0 0
      %2166 = vmatmul.mubr.bf16.gmra.mxu0 %v2021
      %v2167 = vpop.f32.mrf.mxu0
      %v2168 = vadd.f32 0.0, %v2167
      %v2169 = vpop.f32.mrf.mxu0
      %v2170 = vpop.f32.mrf.mxu0
      %v2171 = vadd.f32 0.0, %v2170
      %v2172 = vpop.f32.mrf.mxu0
      %2173 = vmatprep.mubr.bf16.mxu0 0
      %2174 = vmatmul.mubr.bf16.gmra.mxu0 %v2024
      %v2175 = vpop.f32.mrf.mxu0
      %v2176 = vadd.f32 0.0, %v2175
      %v2177 = vpop.f32.mrf.mxu0
      %v2178 = vpop.f32.mrf.mxu0
      %v2179 = vadd.f32 0.0, %v2178
      %v2180 = vpop.f32.mrf.mxu0
      %2181 = vmatprep.mubr.bf16.mxu0 0
      %2182 = vmatmul.mubr.bf16.gmra.mxu0 %v2027
      %v2183 = vpop.f32.mrf.mxu0
      %v2184 = vadd.f32 0.0, %v2183
      %v2185 = vpop.f32.mrf.mxu0
      %v2186 = vpop.f32.mrf.mxu0
      %v2187 = vadd.f32 0.0, %v2186
      %v2188 = vpop.f32.mrf.mxu0
      %2189 = vmatprep.mubr.bf16.mxu0 0
      %2190 = vmatmul.mubr.bf16.gmra.mxu0 %v2030
      %v2191 = vpop.f32.mrf.mxu0
      %v2192 = vadd.f32 0.0, %v2191
      %v2193 = vpop.f32.mrf.mxu0
      %v2194 = vpop.f32.mrf.mxu0
      %v2195 = vadd.f32 0.0, %v2194
      %v2196 = vpop.f32.mrf.mxu0
      %2197 = vmatprep.mubr.bf16.mxu0 0
      %2198 = vmatmul.mubr.bf16.gmra.mxu0 %v2033
      %v2199 = vpop.f32.mrf.mxu0
      %v2200 = vadd.f32 0.0, %v2199
      %v2201 = vpop.f32.mrf.mxu0
      %v2202 = vpop.f32.mrf.mxu0
      %v2203 = vadd.f32 0.0, %v2202
      %v2204 = vpop.f32.mrf.mxu0
      %2205 = vmatprep.mubr.bf16.mxu0 0
      %2206 = vmatmul.mubr.bf16.gmra.mxu0 %v2036
      %v2207 = vpop.f32.mrf.mxu0
      %v2208 = vadd.f32 0.0, %v2207
      %v2209 = vpop.f32.mrf.mxu0
      %v2210 = vpop.f32.mrf.mxu0
      %v2211 = vadd.f32 0.0, %v2210
      %v2212 = vpop.f32.mrf.mxu0
      %2213 = vmatprep.mubr.bf16.mxu0 0
      %2214 = vmatmul.mubr.bf16.gmra.mxu0 %v2039
      %v2215 = vpop.f32.mrf.mxu0
      %v2216 = vadd.f32 0.0, %v2215
      %v2217 = vpop.f32.mrf.mxu0
      %v2218 = vpop.f32.mrf.mxu0
      %v2219 = vadd.f32 0.0, %v2218
      %v2220 = vpop.f32.mrf.mxu0
      %2221 = vmatprep.mubr.bf16.mxu0 0
      %2222 = vmatmul.mubr.bf16.gmra.mxu0 %v2042
      %v2223 = vpop.f32.mrf.mxu0
      %v2224 = vadd.f32 0.0, %v2223
      %v2225 = vpop.f32.mrf.mxu0
      %v2226 = vpop.f32.mrf.mxu0
      %v2227 = vadd.f32 0.0, %v2226
      %v2228 = vpop.f32.mrf.mxu0
      %2229 = vmatprep.mubr.bf16.mxu0 0
      %2230 = vmatmul.mubr.bf16.gmra.mxu0 %v2045
      %v2231 = vpop.f32.mrf.mxu0
      %v2232 = vadd.f32 0.0, %v2231
      %v2233 = vpop.f32.mrf.mxu0
      %v2234 = vpop.f32.mrf.mxu0
      %v2235 = vadd.f32 0.0, %v2234
      %v2236 = vpop.f32.mrf.mxu0
      %2237 = vmatprep.mubr.bf16.mxu0 0
      %2238 = vmatmul.mubr.bf16.gmra.mxu0 %v2048
      %v2239 = vpop.f32.mrf.mxu0
      %v2240 = vadd.f32 0.0, %v2239
      %v2241 = vpop.f32.mrf.mxu0
      %v2242 = vpop.f32.mrf.mxu0
      %v2243 = vadd.f32 0.0, %v2242
      %v2244 = vpop.f32.mrf.mxu0
      %2245 = vmatprep.mubr.bf16.mxu0 0
      %2246 = vmatmul.mubr.bf16.gmra.mxu0 %v2051
      %v2247 = vpop.f32.mrf.mxu0
      %v2248 = vadd.f32 0.0, %v2247
      %v2249 = vpop.f32.mrf.mxu0
      %v2250 = vpop.f32.mrf.mxu0
      %v2251 = vpop.f32.mrf.mxu0
      %2252 = vdwg.mxu0
      %v2253 = vadd.f32 %v1854, %v2088
      %v2254 = vadd.f32 %v1855, %v2091
      %v2255 = vadd.f32 %v1856, %v2096
      %v2256 = vadd.f32 %v1857, %v2099
      %v2257 = vadd.f32 %v1858, %v2104
      %v2258 = vadd.f32 %v1859, %v2107
      %v2259 = vadd.f32 %v1860, %v2112
      %v2260 = vadd.f32 %v1861, %v2115
      %v2261 = vadd.f32 %v1862, %v2120
      %v2262 = vadd.f32 %v1863, %v2123
      %v2263 = vadd.f32 %v1864, %v2128
      %v2264 = vadd.f32 %v1865, %v2131
      %v2265 = vadd.f32 %v1866, %v2136
      %v2266 = vadd.f32 %v1867, %v2139
      %v2267 = vadd.f32 %v1868, %v2144
      %v2268 = vadd.f32 %v1869, %v2147
      %v2269 = vadd.f32 %v1870, %v2152
      %v2270 = vadd.f32 %v1871, %v2155
      %v2271 = vadd.f32 %v1872, %v2160
      %v2272 = vadd.f32 %v1873, %v2163
      %v2273 = vadd.f32 %v1874, %v2168
      %v2274 = vadd.f32 %v1875, %v2171
      %v2275 = vadd.f32 %v1876, %v2176
      %v2276 = vadd.f32 %v1877, %v2179
      %v2277 = vadd.f32 %v1878, %v2184
      %v2278 = vadd.f32 %v1879, %v2187
      %v2279 = vadd.f32 %v1880, %v2192
      %v2280 = vadd.f32 %v1881, %v2195
      %v2281 = vadd.f32 %v1882, %v2200
      %v2282 = vadd.f32 %v1883, %v2203
      %v2283 = vadd.f32 %v1884, %v2208
      %v2284 = vadd.f32 %v1885, %v2211
      %v2285 = vadd.f32 %v1886, %v2216
      %v2286 = vadd.f32 %v1887, %v2219
      %v2287 = vadd.f32 %v1888, %v2224
      %v2288 = vadd.f32 %v1889, %v2227
      %v2289 = vadd.f32 %v1890, %v2232
      %v2290 = vadd.f32 %v1891, %v2235
      %v2291 = vadd.f32 %v1892, %v2240
      %v2292 = vadd.f32 %v1893, %v2243
      %v2293 = vadd.f32 %v1894, %v2248
      %v2294 = vld [vmem:[%s315 + $0x19] sm:$0xff]
      %v2295 = vld [vmem:[%s315 + $0x21] sm:$0xff]
      %v2296 = vld [vmem:[%s315 + $0x29] sm:$0xff]
      %v2297 = vld [vmem:[%s315 + $0x31] sm:$0xff]
      %v2298 = vld [vmem:[%s315 + $0x39] sm:$0xff]
      %v2299 = vld [vmem:[%s315 + $0x41] sm:$0xff]
      %v2300 = vld [vmem:[%s315 + $0x49] sm:$0xff]
      %v2301 = vld [vmem:[%s315 + $0x51] sm:$0xff]
      %v2302 = vld [vmem:[%s315 + $0x59] sm:$0xff]
      %v2303 = vld [vmem:[%s315 + $0x61] sm:$0xff]
      %v2304 = vld [vmem:[%s315 + $0x69] sm:$0xff]
      %v2305 = vld [vmem:[%s315 + $0x71] sm:$0xff]
      %v2306 = vld [vmem:[%s315 + $0x79] sm:$0xff]
      %v2307 = vld [vmem:[%s315 + $0x81] sm:$0xff]
      %v2308 = vld [vmem:[%s315 + $0x89] sm:$0xff]
      %v2309 = vld [vmem:[%s315 + $0x91] sm:$0xff]
      %v2310 = vld [vmem:[%s315 + $0x99] sm:$0xff]
      %v2311 = vld [vmem:[%s315 + $0xa1] sm:$0xff]
      %v2312 = vld [vmem:[%s315 + $0xa9] sm:$0xff]
      %v2313 = vld [vmem:[%s315 + $0xb1] sm:$0xff]
      %v2314 = vld [vmem:[%s315 + $0xb9] sm:$0xff]
      %v2315 = vld [vmem:[%s315 + $0xc1] sm:$0xff]
      %v2316 = vld [vmem:[%s315 + $0xc9] sm:$0xff]
      %v2317 = vld [vmem:[%s315 + $0xd1] sm:$0xff]
      %v2318 = vld [vmem:[%s315 + $0xd9] sm:$0xff]
      %v2319 = vld [vmem:[%s315 + $0xe1] sm:$0xff]
      %v2320 = vld [vmem:[%s315 + $0xe9] sm:$0xff]
      %v2321 = vld [vmem:[%s315 + $0xf1] sm:$0xff]
      %v2322 = vld [vmem:[%s315 + $0xf9] sm:$0xff]
      %v2323 = vld [vmem:[%s315 + $0x101] sm:$0xff]
      %v2324 = vld [vmem:[%s315 + $0x109] sm:$0xff]
      %v2325 = vld [vmem:[%s315 + $0x111] sm:$0xff]
      %v2326 = vld [vmem:[%s315 + $0x119] sm:$0xff]
      %v2327 = vld [vmem:[%s315 + $0x121] sm:$0xff]
      %v2328 = vld [vmem:[%s315 + $0x129] sm:$0xff]
      %v2329 = vld [vmem:[%s315 + $0x131] sm:$0xff]
      %v2330 = vld [vmem:[%s315 + $0x139] sm:$0xff]
      %v2331 = vld [vmem:[%s315 + $0x141] sm:$0xff]
      %v2332 = vld [vmem:[%s315 + $0x149] sm:$0xff]
      %v2333 = vld [vmem:[%s315 + $0x151] sm:$0xff]
      %v2334 = vld [vmem:[%s315 + $0x159] sm:$0xf]
      %v2335 = vpack.c.bf16 %v2295, %v2294
      %v2336 = vpack.c.bf16 %v2297, %v2296
      %v2337 = vpack.c.bf16 %v2299, %v2298
      %v2338 = vpack.c.bf16 %v2301, %v2300
      %v2339 = vpack.c.bf16 %v2303, %v2302
      %v2340 = vpack.c.bf16 %v2305, %v2304
      %v2341 = vpack.c.bf16 %v2307, %v2306
      %v2342 = vpack.c.bf16 %v2309, %v2308
      %v2343 = vpack.c.bf16 %v2311, %v2310
      %v2344 = vpack.c.bf16 %v2313, %v2312
      %v2345 = vpack.c.bf16 %v2315, %v2314
      %v2346 = vpack.c.bf16 %v2317, %v2316
      %v2347 = vpack.c.bf16 %v2319, %v2318
      %v2348 = vpack.c.bf16 %v2321, %v2320
      %v2349 = vpack.c.bf16 %v2323, %v2322
      %v2350 = vpack.c.bf16 %v2325, %v2324
      %v2351 = vpack.c.bf16 %v2327, %v2326
      %v2352 = vpack.c.bf16 %v2329, %v2328
      %v2353 = vpack.c.bf16 %v2331, %v2330
      %v2354 = vpack.c.bf16 %v2333, %v2332
      %v2355 = vpack.c.bf16 %v2334, %v2334
      %s2356 = scalar_lea.vmem %s3, 160
      %v2357 = vld [vmem:[%s2356] sm:$0xf]
      %v2358 = vld [vmem:[%s2356 + $0x4] sm:$0xf]
      %v2359 = vld [vmem:[%s2356 + $0x8] sm:$0xf]
      %v2360 = vld [vmem:[%s2356 + $0xc] sm:$0xf]
      %v2361 = vld [vmem:[%s2356 + $0x10] sm:$0xf]
      %v2362 = vld [vmem:[%s2356 + $0x14] sm:$0xf]
      %v2363 = vld [vmem:[%s2356 + $0x18] sm:$0xf]
      %v2364 = vld [vmem:[%s2356 + $0x1c] sm:$0xf]
      %v2373 = vunpack.c.l.b16 %v2357
      %v2374 = vunpack.c.l.b16 %v2358
      %v2375 = vunpack.c.l.b16 %v2359
      %v2376 = vunpack.c.l.b16 %v2360
      %v2377 = vunpack.c.l.b16 %v2361
      %v2378 = vunpack.c.l.b16 %v2362
      %v2379 = vunpack.c.l.b16 %v2363
      %v2380 = vunpack.c.l.b16 %v2364
      %v2381 = vpack.c.b16 %v2374, %v2373
      %v2382 = vpack.c.b16 %v2376, %v2375
      %v2383 = vpack.c.b16 %v2378, %v2377
      %v2384 = vpack.c.b16 %v2380, %v2379
      %v2390 = vsel %vm368, %v2335, 0
      %v2393 = vsel %vm368, %v2336, 0
      %v2396 = vsel %vm368, %v2337, 0
      %v2399 = vsel %vm368, %v2338, 0
      %v2402 = vsel %vm368, %v2339, 0
      %v2405 = vsel %vm368, %v2340, 0
      %v2408 = vsel %vm368, %v2341, 0
      %v2411 = vsel %vm368, %v2342, 0
      %v2414 = vsel %vm368, %v2343, 0
      %v2417 = vsel %vm368, %v2344, 0
      %v2420 = vsel %vm368, %v2345, 0
      %v2423 = vsel %vm368, %v2346, 0
      %v2426 = vsel %vm368, %v2347, 0
      %v2429 = vsel %vm368, %v2348, 0
      %v2432 = vsel %vm368, %v2349, 0
      %v2435 = vsel %vm368, %v2350, 0
      %v2438 = vsel %vm368, %v2351, 0
      %v2441 = vsel %vm368, %v2352, 0
      %v2444 = vsel %vm368, %v2353, 0
      %v2447 = vsel %vm368, %v2354, 0
      %v2450 = vsel %vm368, %v2355, 0
      %2452 = vmatprep.subr.bf16.mxu0 0
      %2453 = vmatpush1.bf16.msra.mxu0 0
      %2454 = vmatprep.subr.bf16.mxu0 0
      %2455 = vmatpush1.bf16.msra.mxu0 0
      %2456 = vmatprep.subr.bf16.mxu0 0
      %2457 = vmatpush1.bf16.msra.mxu0 0
      %2458 = vmatprep.subr.bf16.mxu0 0
      %2459 = vmatpush1.bf16.msra.mxu0 0
      %2460 = vmatprep.subr.bf16.mxu0 0
      %2461 = vmatpush1.bf16.msra.mxu0 %v2384
      %2462 = vmatprep.subr.bf16.mxu0 0
      %2463 = vmatpush1.bf16.msra.mxu0 %v2383
      %2464 = vmatprep.subr.bf16.mxu0 0
      %2465 = vmatpush1.bf16.msra.mxu0 %v2382
      %2466 = vmatprep.subr.bf16.mxu0 0
      %2467 = vmatpush1.bf16.msra.mxu0 %v2381
      %2468 = vmatprep.subr.bf16.mxu0 0
      %2469 = vmatpush2.bf16.msra.mxu0 0
      %2470 = vmatprep.subr.bf16.mxu0 0
      %2471 = vmatpush2.bf16.msra.mxu0 0
      %2472 = vmatprep.subr.bf16.mxu0 0
      %2473 = vmatpush2.bf16.msra.mxu0 0
      %2474 = vmatprep.subr.bf16.mxu0 0
      %2475 = vmatpush2.bf16.msra.mxu0 0
      %2476 = vmatprep.subr.bf16.mxu0 0
      %2477 = vmatpush2.bf16.msra.mxu0 0
      %2478 = vmatprep.subr.bf16.mxu0 0
      %2479 = vmatpush2.bf16.msra.mxu0 0
      %2480 = vmatprep.subr.bf16.mxu0 0
      %2481 = vmatpush2.bf16.msra.mxu0 0
      %2482 = vmatprep.subr.bf16.mxu0 0
      %2483 = vmatpush2.bf16.msra.mxu0 0
      %2484 = vmatprep.mubr.bf16.mxu0 0
      %2485 = vmatmul.mubr.bf16.gmra.mxu0 %v2390
      %v2486 = vpop.f32.mrf.mxu0
      %v2487 = vadd.f32 0.0, %v2486
      %v2488 = vpop.f32.mrf.mxu0
      %v2489 = vpop.f32.mrf.mxu0
      %v2490 = vadd.f32 0.0, %v2489
      %v2491 = vpop.f32.mrf.mxu0
      %2492 = vmatprep.mubr.bf16.mxu0 0
      %2493 = vmatmul.mubr.bf16.gmra.mxu0 %v2393
      %v2494 = vpop.f32.mrf.mxu0
      %v2495 = vadd.f32 0.0, %v2494
      %v2496 = vpop.f32.mrf.mxu0
      %v2497 = vpop.f32.mrf.mxu0
      %v2498 = vadd.f32 0.0, %v2497
      %v2499 = vpop.f32.mrf.mxu0
      %2500 = vmatprep.mubr.bf16.mxu0 0
      %2501 = vmatmul.mubr.bf16.gmra.mxu0 %v2396
      %v2502 = vpop.f32.mrf.mxu0
      %v2503 = vadd.f32 0.0, %v2502
      %v2504 = vpop.f32.mrf.mxu0
      %v2505 = vpop.f32.mrf.mxu0
      %v2506 = vadd.f32 0.0, %v2505
      %v2507 = vpop.f32.mrf.mxu0
      %2508 = vmatprep.mubr.bf16.mxu0 0
      %2509 = vmatmul.mubr.bf16.gmra.mxu0 %v2399
      %v2510 = vpop.f32.mrf.mxu0
      %v2511 = vadd.f32 0.0, %v2510
      %v2512 = vpop.f32.mrf.mxu0
      %v2513 = vpop.f32.mrf.mxu0
      %v2514 = vadd.f32 0.0, %v2513
      %v2515 = vpop.f32.mrf.mxu0
      %2516 = vmatprep.mubr.bf16.mxu0 0
      %2517 = vmatmul.mubr.bf16.gmra.mxu0 %v2402
      %v2518 = vpop.f32.mrf.mxu0
      %v2519 = vadd.f32 0.0, %v2518
      %v2520 = vpop.f32.mrf.mxu0
      %v2521 = vpop.f32.mrf.mxu0
      %v2522 = vadd.f32 0.0, %v2521
      %v2523 = vpop.f32.mrf.mxu0
      %2524 = vmatprep.mubr.bf16.mxu0 0
      %2525 = vmatmul.mubr.bf16.gmra.mxu0 %v2405
      %v2526 = vpop.f32.mrf.mxu0
      %v2527 = vadd.f32 0.0, %v2526
      %v2528 = vpop.f32.mrf.mxu0
      %v2529 = vpop.f32.mrf.mxu0
      %v2530 = vadd.f32 0.0, %v2529
      %v2531 = vpop.f32.mrf.mxu0
      %2532 = vmatprep.mubr.bf16.mxu0 0
      %2533 = vmatmul.mubr.bf16.gmra.mxu0 %v2408
      %v2534 = vpop.f32.mrf.mxu0
      %v2535 = vadd.f32 0.0, %v2534
      %v2536 = vpop.f32.mrf.mxu0
      %v2537 = vpop.f32.mrf.mxu0
      %v2538 = vadd.f32 0.0, %v2537
      %v2539 = vpop.f32.mrf.mxu0
      %2540 = vmatprep.mubr.bf16.mxu0 0
      %2541 = vmatmul.mubr.bf16.gmra.mxu0 %v2411
      %v2542 = vpop.f32.mrf.mxu0
      %v2543 = vadd.f32 0.0, %v2542
      %v2544 = vpop.f32.mrf.mxu0
      %v2545 = vpop.f32.mrf.mxu0
      %v2546 = vadd.f32 0.0, %v2545
      %v2547 = vpop.f32.mrf.mxu0
      %2548 = vmatprep.mubr.bf16.mxu0 0
      %2549 = vmatmul.mubr.bf16.gmra.mxu0 %v2414
      %v2550 = vpop.f32.mrf.mxu0
      %v2551 = vadd.f32 0.0, %v2550
      %v2552 = vpop.f32.mrf.mxu0
      %v2553 = vpop.f32.mrf.mxu0
      %v2554 = vadd.f32 0.0, %v2553
      %v2555 = vpop.f32.mrf.mxu0
      %2556 = vmatprep.mubr.bf16.mxu0 0
      %2557 = vmatmul.mubr.bf16.gmra.mxu0 %v2417
      %v2558 = vpop.f32.mrf.mxu0
      %v2559 = vadd.f32 0.0, %v2558
      %v2560 = vpop.f32.mrf.mxu0
      %v2561 = vpop.f32.mrf.mxu0
      %v2562 = vadd.f32 0.0, %v2561
      %v2563 = vpop.f32.mrf.mxu0
      %2564 = vmatprep.mubr.bf16.mxu0 0
      %2565 = vmatmul.mubr.bf16.gmra.mxu0 %v2420
      %v2566 = vpop.f32.mrf.mxu0
      %v2567 = vadd.f32 0.0, %v2566
      %v2568 = vpop.f32.mrf.mxu0
      %v2569 = vpop.f32.mrf.mxu0
      %v2570 = vadd.f32 0.0, %v2569
      %v2571 = vpop.f32.mrf.mxu0
      %2572 = vmatprep.mubr.bf16.mxu0 0
      %2573 = vmatmul.mubr.bf16.gmra.mxu0 %v2423
      %v2574 = vpop.f32.mrf.mxu0
      %v2575 = vadd.f32 0.0, %v2574
      %v2576 = vpop.f32.mrf.mxu0
      %v2577 = vpop.f32.mrf.mxu0
      %v2578 = vadd.f32 0.0, %v2577
      %v2579 = vpop.f32.mrf.mxu0
      %2580 = vmatprep.mubr.bf16.mxu0 0
      %2581 = vmatmul.mubr.bf16.gmra.mxu0 %v2426
      %v2582 = vpop.f32.mrf.mxu0
      %v2583 = vadd.f32 0.0, %v2582
      %v2584 = vpop.f32.mrf.mxu0
      %v2585 = vpop.f32.mrf.mxu0
      %v2586 = vadd.f32 0.0, %v2585
      %v2587 = vpop.f32.mrf.mxu0
      %2588 = vmatprep.mubr.bf16.mxu0 0
      %2589 = vmatmul.mubr.bf16.gmra.mxu0 %v2429
      %v2590 = vpop.f32.mrf.mxu0
      %v2591 = vadd.f32 0.0, %v2590
      %v2592 = vpop.f32.mrf.mxu0
      %v2593 = vpop.f32.mrf.mxu0
      %v2594 = vadd.f32 0.0, %v2593
      %v2595 = vpop.f32.mrf.mxu0
      %2596 = vmatprep.mubr.bf16.mxu0 0
      %2597 = vmatmul.mubr.bf16.gmra.mxu0 %v2432
      %v2598 = vpop.f32.mrf.mxu0
      %v2599 = vadd.f32 0.0, %v2598
      %v2600 = vpop.f32.mrf.mxu0
      %v2601 = vpop.f32.mrf.mxu0
      %v2602 = vadd.f32 0.0, %v2601
      %v2603 = vpop.f32.mrf.mxu0
      %2604 = vmatprep.mubr.bf16.mxu0 0
      %2605 = vmatmul.mubr.bf16.gmra.mxu0 %v2435
      %v2606 = vpop.f32.mrf.mxu0
      %v2607 = vadd.f32 0.0, %v2606
      %v2608 = vpop.f32.mrf.mxu0
      %v2609 = vpop.f32.mrf.mxu0
      %v2610 = vadd.f32 0.0, %v2609
      %v2611 = vpop.f32.mrf.mxu0
      %2612 = vmatprep.mubr.bf16.mxu0 0
      %2613 = vmatmul.mubr.bf16.gmra.mxu0 %v2438
      %v2614 = vpop.f32.mrf.mxu0
      %v2615 = vadd.f32 0.0, %v2614
      %v2616 = vpop.f32.mrf.mxu0
      %v2617 = vpop.f32.mrf.mxu0
      %v2618 = vadd.f32 0.0, %v2617
      %v2619 = vpop.f32.mrf.mxu0
      %2620 = vmatprep.mubr.bf16.mxu0 0
      %2621 = vmatmul.mubr.bf16.gmra.mxu0 %v2441
      %v2622 = vpop.f32.mrf.mxu0
      %v2623 = vadd.f32 0.0, %v2622
      %v2624 = vpop.f32.mrf.mxu0
      %v2625 = vpop.f32.mrf.mxu0
      %v2626 = vadd.f32 0.0, %v2625
      %v2627 = vpop.f32.mrf.mxu0
      %2628 = vmatprep.mubr.bf16.mxu0 0
      %2629 = vmatmul.mubr.bf16.gmra.mxu0 %v2444
      %v2630 = vpop.f32.mrf.mxu0
      %v2631 = vadd.f32 0.0, %v2630
      %v2632 = vpop.f32.mrf.mxu0
      %v2633 = vpop.f32.mrf.mxu0
      %v2634 = vadd.f32 0.0, %v2633
      %v2635 = vpop.f32.mrf.mxu0
      %2636 = vmatprep.mubr.bf16.mxu0 0
      %2637 = vmatmul.mubr.bf16.gmra.mxu0 %v2447
      %v2638 = vpop.f32.mrf.mxu0
      %v2639 = vadd.f32 0.0, %v2638
      %v2640 = vpop.f32.mrf.mxu0
      %v2641 = vpop.f32.mrf.mxu0
      %v2642 = vadd.f32 0.0, %v2641
      %v2643 = vpop.f32.mrf.mxu0
      %2644 = vmatprep.mubr.bf16.mxu0 0
      %2645 = vmatmul.mubr.bf16.gmra.mxu0 %v2450
      %v2646 = vpop.f32.mrf.mxu0
      %v2647 = vadd.f32 0.0, %v2646
      %v2648 = vpop.f32.mrf.mxu0
      %v2649 = vpop.f32.mrf.mxu0
      %v2650 = vpop.f32.mrf.mxu0
      %2651 = vdwg.mxu0
      %v2652 = vadd.f32 %v2253, %v2487
      %v2653 = vadd.f32 %v2254, %v2490
      %v2654 = vadd.f32 %v2255, %v2495
      %v2655 = vadd.f32 %v2256, %v2498
      %v2656 = vadd.f32 %v2257, %v2503
      %v2657 = vadd.f32 %v2258, %v2506
      %v2658 = vadd.f32 %v2259, %v2511
      %v2659 = vadd.f32 %v2260, %v2514
      %v2660 = vadd.f32 %v2261, %v2519
      %v2661 = vadd.f32 %v2262, %v2522
      %v2662 = vadd.f32 %v2263, %v2527
      %v2663 = vadd.f32 %v2264, %v2530
      %v2664 = vadd.f32 %v2265, %v2535
      %v2665 = vadd.f32 %v2266, %v2538
      %v2666 = vadd.f32 %v2267, %v2543
      %v2667 = vadd.f32 %v2268, %v2546
      %v2668 = vadd.f32 %v2269, %v2551
      %v2669 = vadd.f32 %v2270, %v2554
      %v2670 = vadd.f32 %v2271, %v2559
      %v2671 = vadd.f32 %v2272, %v2562
      %v2672 = vadd.f32 %v2273, %v2567
      %v2673 = vadd.f32 %v2274, %v2570
      %v2674 = vadd.f32 %v2275, %v2575
      %v2675 = vadd.f32 %v2276, %v2578
      %v2676 = vadd.f32 %v2277, %v2583
      %v2677 = vadd.f32 %v2278, %v2586
      %v2678 = vadd.f32 %v2279, %v2591
      %v2679 = vadd.f32 %v2280, %v2594
      %v2680 = vadd.f32 %v2281, %v2599
      %v2681 = vadd.f32 %v2282, %v2602
      %v2682 = vadd.f32 %v2283, %v2607
      %v2683 = vadd.f32 %v2284, %v2610
      %v2684 = vadd.f32 %v2285, %v2615
      %v2685 = vadd.f32 %v2286, %v2618
      %v2686 = vadd.f32 %v2287, %v2623
      %v2687 = vadd.f32 %v2288, %v2626
      %v2688 = vadd.f32 %v2289, %v2631
      %v2689 = vadd.f32 %v2290, %v2634
      %v2690 = vadd.f32 %v2291, %v2639
      %v2691 = vadd.f32 %v2292, %v2642
      %v2692 = vadd.f32 %v2293, %v2647
      %v2693 = vld [vmem:[%s315 + $0x29] sm:$0xff]
      %v2694 = vld [vmem:[%s315 + $0x31] sm:$0xff]
      %v2695 = vld [vmem:[%s315 + $0x39] sm:$0xff]
      %v2696 = vld [vmem:[%s315 + $0x41] sm:$0xff]
      %v2697 = vld [vmem:[%s315 + $0x49] sm:$0xff]
      %v2698 = vld [vmem:[%s315 + $0x51] sm:$0xff]
      %v2699 = vld [vmem:[%s315 + $0x59] sm:$0xff]
      %v2700 = vld [vmem:[%s315 + $0x61] sm:$0xff]
      %v2701 = vld [vmem:[%s315 + $0x69] sm:$0xff]
      %v2702 = vld [vmem:[%s315 + $0x71] sm:$0xff]
      %v2703 = vld [vmem:[%s315 + $0x79] sm:$0xff]
      %v2704 = vld [vmem:[%s315 + $0x81] sm:$0xff]
      %v2705 = vld [vmem:[%s315 + $0x89] sm:$0xff]
      %v2706 = vld [vmem:[%s315 + $0x91] sm:$0xff]
      %v2707 = vld [vmem:[%s315 + $0x99] sm:$0xff]
      %v2708 = vld [vmem:[%s315 + $0xa1] sm:$0xff]
      %v2709 = vld [vmem:[%s315 + $0xa9] sm:$0xff]
      %v2710 = vld [vmem:[%s315 + $0xb1] sm:$0xff]
      %v2711 = vld [vmem:[%s315 + $0xb9] sm:$0xff]
      %v2712 = vld [vmem:[%s315 + $0xc1] sm:$0xff]
      %v2713 = vld [vmem:[%s315 + $0xc9] sm:$0xff]
      %v2714 = vld [vmem:[%s315 + $0xd1] sm:$0xff]
      %v2715 = vld [vmem:[%s315 + $0xd9] sm:$0xff]
      %v2716 = vld [vmem:[%s315 + $0xe1] sm:$0xff]
      %v2717 = vld [vmem:[%s315 + $0xe9] sm:$0xff]
      %v2718 = vld [vmem:[%s315 + $0xf1] sm:$0xff]
      %v2719 = vld [vmem:[%s315 + $0xf9] sm:$0xff]
      %v2720 = vld [vmem:[%s315 + $0x101] sm:$0xff]
      %v2721 = vld [vmem:[%s315 + $0x109] sm:$0xff]
      %v2722 = vld [vmem:[%s315 + $0x111] sm:$0xff]
      %v2723 = vld [vmem:[%s315 + $0x119] sm:$0xff]
      %v2724 = vld [vmem:[%s315 + $0x121] sm:$0xff]
      %v2725 = vld [vmem:[%s315 + $0x129] sm:$0xff]
      %v2726 = vld [vmem:[%s315 + $0x131] sm:$0xff]
      %v2727 = vld [vmem:[%s315 + $0x139] sm:$0xff]
      %v2728 = vld [vmem:[%s315 + $0x141] sm:$0xff]
      %v2729 = vld [vmem:[%s315 + $0x149] sm:$0xff]
      %v2730 = vld [vmem:[%s315 + $0x151] sm:$0xff]
      %v2731 = vld [vmem:[%s315 + $0x159] sm:$0xff]
      %v2732 = vld [vmem:[%s315 + $0x161] sm:$0xff]
      %v2733 = vld [vmem:[%s315 + $0x169] sm:$0xf]
      %v2734 = vpack.c.bf16 %v2694, %v2693
      %v2735 = vpack.c.bf16 %v2696, %v2695
      %v2736 = vpack.c.bf16 %v2698, %v2697
      %v2737 = vpack.c.bf16 %v2700, %v2699
      %v2738 = vpack.c.bf16 %v2702, %v2701
      %v2739 = vpack.c.bf16 %v2704, %v2703
      %v2740 = vpack.c.bf16 %v2706, %v2705
      %v2741 = vpack.c.bf16 %v2708, %v2707
      %v2742 = vpack.c.bf16 %v2710, %v2709
      %v2743 = vpack.c.bf16 %v2712, %v2711
      %v2744 = vpack.c.bf16 %v2714, %v2713
      %v2745 = vpack.c.bf16 %v2716, %v2715
      %v2746 = vpack.c.bf16 %v2718, %v2717
      %v2747 = vpack.c.bf16 %v2720, %v2719
      %v2748 = vpack.c.bf16 %v2722, %v2721
      %v2749 = vpack.c.bf16 %v2724, %v2723
      %v2750 = vpack.c.bf16 %v2726, %v2725
      %v2751 = vpack.c.bf16 %v2728, %v2727
      %v2752 = vpack.c.bf16 %v2730, %v2729
      %v2753 = vpack.c.bf16 %v2732, %v2731
      %v2754 = vpack.c.bf16 %v2733, %v2733
      %s2755 = scalar_lea.vmem %s3, 192
      %v2756 = vld [vmem:[%s2755] sm:$0xf]
      %v2757 = vld [vmem:[%s2755 + $0x4] sm:$0xf]
      %v2758 = vld [vmem:[%s2755 + $0x8] sm:$0xf]
      %v2759 = vld [vmem:[%s2755 + $0xc] sm:$0xf]
      %v2760 = vld [vmem:[%s2755 + $0x10] sm:$0xf]
      %v2761 = vld [vmem:[%s2755 + $0x14] sm:$0xf]
      %v2762 = vld [vmem:[%s2755 + $0x18] sm:$0xf]
      %v2763 = vld [vmem:[%s2755 + $0x1c] sm:$0xf]
      %v2772 = vunpack.c.l.b16 %v2756
      %v2773 = vunpack.c.l.b16 %v2757
      %v2774 = vunpack.c.l.b16 %v2758
      %v2775 = vunpack.c.l.b16 %v2759
      %v2776 = vunpack.c.l.b16 %v2760
      %v2777 = vunpack.c.l.b16 %v2761
      %v2778 = vunpack.c.l.b16 %v2762
      %v2779 = vunpack.c.l.b16 %v2763
      %v2780 = vpack.c.b16 %v2773, %v2772
      %v2781 = vpack.c.b16 %v2775, %v2774
      %v2782 = vpack.c.b16 %v2777, %v2776
      %v2783 = vpack.c.b16 %v2779, %v2778
      %v2789 = vsel %vm368, %v2734, 0
      %v2792 = vsel %vm368, %v2735, 0
      %v2795 = vsel %vm368, %v2736, 0
      %v2798 = vsel %vm368, %v2737, 0
      %v2801 = vsel %vm368, %v2738, 0
      %v2804 = vsel %vm368, %v2739, 0
      %v2807 = vsel %vm368, %v2740, 0
      %v2810 = vsel %vm368, %v2741, 0
      %v2813 = vsel %vm368, %v2742, 0
      %v2816 = vsel %vm368, %v2743, 0
      %v2819 = vsel %vm368, %v2744, 0
      %v2822 = vsel %vm368, %v2745, 0
      %v2825 = vsel %vm368, %v2746, 0
      %v2828 = vsel %vm368, %v2747, 0
      %v2831 = vsel %vm368, %v2748, 0
      %v2834 = vsel %vm368, %v2749, 0
      %v2837 = vsel %vm368, %v2750, 0
      %v2840 = vsel %vm368, %v2751, 0
      %v2843 = vsel %vm368, %v2752, 0
      %v2846 = vsel %vm368, %v2753, 0
      %v2849 = vsel %vm368, %v2754, 0
      %2851 = vmatprep.subr.bf16.mxu0 0
      %2852 = vmatpush1.bf16.msra.mxu0 0
      %2853 = vmatprep.subr.bf16.mxu0 0
      %2854 = vmatpush1.bf16.msra.mxu0 0
      %2855 = vmatprep.subr.bf16.mxu0 0
      %2856 = vmatpush1.bf16.msra.mxu0 0
      %2857 = vmatprep.subr.bf16.mxu0 0
      %2858 = vmatpush1.bf16.msra.mxu0 0
      %2859 = vmatprep.subr.bf16.mxu0 0
      %2860 = vmatpush1.bf16.msra.mxu0 %v2783
      %2861 = vmatprep.subr.bf16.mxu0 0
      %2862 = vmatpush1.bf16.msra.mxu0 %v2782
      %2863 = vmatprep.subr.bf16.mxu0 0
      %2864 = vmatpush1.bf16.msra.mxu0 %v2781
      %2865 = vmatprep.subr.bf16.mxu0 0
      %2866 = vmatpush1.bf16.msra.mxu0 %v2780
      %2867 = vmatprep.subr.bf16.mxu0 0
      %2868 = vmatpush2.bf16.msra.mxu0 0
      %2869 = vmatprep.subr.bf16.mxu0 0
      %2870 = vmatpush2.bf16.msra.mxu0 0
      %2871 = vmatprep.subr.bf16.mxu0 0
      %2872 = vmatpush2.bf16.msra.mxu0 0
      %2873 = vmatprep.subr.bf16.mxu0 0
      %2874 = vmatpush2.bf16.msra.mxu0 0
      %2875 = vmatprep.subr.bf16.mxu0 0
      %2876 = vmatpush2.bf16.msra.mxu0 0
      %2877 = vmatprep.subr.bf16.mxu0 0
      %2878 = vmatpush2.bf16.msra.mxu0 0
      %2879 = vmatprep.subr.bf16.mxu0 0
      %2880 = vmatpush2.bf16.msra.mxu0 0
      %2881 = vmatprep.subr.bf16.mxu0 0
      %2882 = vmatpush2.bf16.msra.mxu0 0
      %2883 = vmatprep.mubr.bf16.mxu0 0
      %2884 = vmatmul.mubr.bf16.gmra.mxu0 %v2789
      %v2885 = vpop.f32.mrf.mxu0
      %v2886 = vadd.f32 0.0, %v2885
      %v2887 = vpop.f32.mrf.mxu0
      %v2888 = vpop.f32.mrf.mxu0
      %v2889 = vadd.f32 0.0, %v2888
      %v2890 = vpop.f32.mrf.mxu0
      %2891 = vmatprep.mubr.bf16.mxu0 0
      %2892 = vmatmul.mubr.bf16.gmra.mxu0 %v2792
      %v2893 = vpop.f32.mrf.mxu0
      %v2894 = vadd.f32 0.0, %v2893
      %v2895 = vpop.f32.mrf.mxu0
      %v2896 = vpop.f32.mrf.mxu0
      %v2897 = vadd.f32 0.0, %v2896
      %v2898 = vpop.f32.mrf.mxu0
      %2899 = vmatprep.mubr.bf16.mxu0 0
      %2900 = vmatmul.mubr.bf16.gmra.mxu0 %v2795
      %v2901 = vpop.f32.mrf.mxu0
      %v2902 = vadd.f32 0.0, %v2901
      %v2903 = vpop.f32.mrf.mxu0
      %v2904 = vpop.f32.mrf.mxu0
      %v2905 = vadd.f32 0.0, %v2904
      %v2906 = vpop.f32.mrf.mxu0
      %2907 = vmatprep.mubr.bf16.mxu0 0
      %2908 = vmatmul.mubr.bf16.gmra.mxu0 %v2798
      %v2909 = vpop.f32.mrf.mxu0
      %v2910 = vadd.f32 0.0, %v2909
      %v2911 = vpop.f32.mrf.mxu0
      %v2912 = vpop.f32.mrf.mxu0
      %v2913 = vadd.f32 0.0, %v2912
      %v2914 = vpop.f32.mrf.mxu0
      %2915 = vmatprep.mubr.bf16.mxu0 0
      %2916 = vmatmul.mubr.bf16.gmra.mxu0 %v2801
      %v2917 = vpop.f32.mrf.mxu0
      %v2918 = vadd.f32 0.0, %v2917
      %v2919 = vpop.f32.mrf.mxu0
      %v2920 = vpop.f32.mrf.mxu0
      %v2921 = vadd.f32 0.0, %v2920
      %v2922 = vpop.f32.mrf.mxu0
      %2923 = vmatprep.mubr.bf16.mxu0 0
      %2924 = vmatmul.mubr.bf16.gmra.mxu0 %v2804
      %v2925 = vpop.f32.mrf.mxu0
      %v2926 = vadd.f32 0.0, %v2925
      %v2927 = vpop.f32.mrf.mxu0
      %v2928 = vpop.f32.mrf.mxu0
      %v2929 = vadd.f32 0.0, %v2928
      %v2930 = vpop.f32.mrf.mxu0
      %2931 = vmatprep.mubr.bf16.mxu0 0
      %2932 = vmatmul.mubr.bf16.gmra.mxu0 %v2807
      %v2933 = vpop.f32.mrf.mxu0
      %v2934 = vadd.f32 0.0, %v2933
      %v2935 = vpop.f32.mrf.mxu0
      %v2936 = vpop.f32.mrf.mxu0
      %v2937 = vadd.f32 0.0, %v2936
      %v2938 = vpop.f32.mrf.mxu0
      %2939 = vmatprep.mubr.bf16.mxu0 0
      %2940 = vmatmul.mubr.bf16.gmra.mxu0 %v2810
      %v2941 = vpop.f32.mrf.mxu0
      %v2942 = vadd.f32 0.0, %v2941
      %v2943 = vpop.f32.mrf.mxu0
      %v2944 = vpop.f32.mrf.mxu0
      %v2945 = vadd.f32 0.0, %v2944
      %v2946 = vpop.f32.mrf.mxu0
      %2947 = vmatprep.mubr.bf16.mxu0 0
      %2948 = vmatmul.mubr.bf16.gmra.mxu0 %v2813
      %v2949 = vpop.f32.mrf.mxu0
      %v2950 = vadd.f32 0.0, %v2949
      %v2951 = vpop.f32.mrf.mxu0
      %v2952 = vpop.f32.mrf.mxu0
      %v2953 = vadd.f32 0.0, %v2952
      %v2954 = vpop.f32.mrf.mxu0
      %2955 = vmatprep.mubr.bf16.mxu0 0
      %2956 = vmatmul.mubr.bf16.gmra.mxu0 %v2816
      %v2957 = vpop.f32.mrf.mxu0
      %v2958 = vadd.f32 0.0, %v2957
      %v2959 = vpop.f32.mrf.mxu0
      %v2960 = vpop.f32.mrf.mxu0
      %v2961 = vadd.f32 0.0, %v2960
      %v2962 = vpop.f32.mrf.mxu0
      %2963 = vmatprep.mubr.bf16.mxu0 0
      %2964 = vmatmul.mubr.bf16.gmra.mxu0 %v2819
      %v2965 = vpop.f32.mrf.mxu0
      %v2966 = vadd.f32 0.0, %v2965
      %v2967 = vpop.f32.mrf.mxu0
      %v2968 = vpop.f32.mrf.mxu0
      %v2969 = vadd.f32 0.0, %v2968
      %v2970 = vpop.f32.mrf.mxu0
      %2971 = vmatprep.mubr.bf16.mxu0 0
      %2972 = vmatmul.mubr.bf16.gmra.mxu0 %v2822
      %v2973 = vpop.f32.mrf.mxu0
      %v2974 = vadd.f32 0.0, %v2973
      %v2975 = vpop.f32.mrf.mxu0
      %v2976 = vpop.f32.mrf.mxu0
      %v2977 = vadd.f32 0.0, %v2976
      %v2978 = vpop.f32.mrf.mxu0
      %2979 = vmatprep.mubr.bf16.mxu0 0
      %2980 = vmatmul.mubr.bf16.gmra.mxu0 %v2825
      %v2981 = vpop.f32.mrf.mxu0
      %v2982 = vadd.f32 0.0, %v2981
      %v2983 = vpop.f32.mrf.mxu0
      %v2984 = vpop.f32.mrf.mxu0
      %v2985 = vadd.f32 0.0, %v2984
      %v2986 = vpop.f32.mrf.mxu0
      %2987 = vmatprep.mubr.bf16.mxu0 0
      %2988 = vmatmul.mubr.bf16.gmra.mxu0 %v2828
      %v2989 = vpop.f32.mrf.mxu0
      %v2990 = vadd.f32 0.0, %v2989
      %v2991 = vpop.f32.mrf.mxu0
      %v2992 = vpop.f32.mrf.mxu0
      %v2993 = vadd.f32 0.0, %v2992
      %v2994 = vpop.f32.mrf.mxu0
      %2995 = vmatprep.mubr.bf16.mxu0 0
      %2996 = vmatmul.mubr.bf16.gmra.mxu0 %v2831
      %v2997 = vpop.f32.mrf.mxu0
      %v2998 = vadd.f32 0.0, %v2997
      %v2999 = vpop.f32.mrf.mxu0
      %v3000 = vpop.f32.mrf.mxu0
      %v3001 = vadd.f32 0.0, %v3000
      %v3002 = vpop.f32.mrf.mxu0
      %3003 = vmatprep.mubr.bf16.mxu0 0
      %3004 = vmatmul.mubr.bf16.gmra.mxu0 %v2834
      %v3005 = vpop.f32.mrf.mxu0
      %v3006 = vadd.f32 0.0, %v3005
      %v3007 = vpop.f32.mrf.mxu0
      %v3008 = vpop.f32.mrf.mxu0
      %v3009 = vadd.f32 0.0, %v3008
      %v3010 = vpop.f32.mrf.mxu0
      %3011 = vmatprep.mubr.bf16.mxu0 0
      %3012 = vmatmul.mubr.bf16.gmra.mxu0 %v2837
      %v3013 = vpop.f32.mrf.mxu0
      %v3014 = vadd.f32 0.0, %v3013
      %v3015 = vpop.f32.mrf.mxu0
      %v3016 = vpop.f32.mrf.mxu0
      %v3017 = vadd.f32 0.0, %v3016
      %v3018 = vpop.f32.mrf.mxu0
      %3019 = vmatprep.mubr.bf16.mxu0 0
      %3020 = vmatmul.mubr.bf16.gmra.mxu0 %v2840
      %v3021 = vpop.f32.mrf.mxu0
      %v3022 = vadd.f32 0.0, %v3021
      %v3023 = vpop.f32.mrf.mxu0
      %v3024 = vpop.f32.mrf.mxu0
      %v3025 = vadd.f32 0.0, %v3024
      %v3026 = vpop.f32.mrf.mxu0
      %3027 = vmatprep.mubr.bf16.mxu0 0
      %3028 = vmatmul.mubr.bf16.gmra.mxu0 %v2843
      %v3029 = vpop.f32.mrf.mxu0
      %v3030 = vadd.f32 0.0, %v3029
      %v3031 = vpop.f32.mrf.mxu0
      %v3032 = vpop.f32.mrf.mxu0
      %v3033 = vadd.f32 0.0, %v3032
      %v3034 = vpop.f32.mrf.mxu0
      %3035 = vmatprep.mubr.bf16.mxu0 0
      %3036 = vmatmul.mubr.bf16.gmra.mxu0 %v2846
      %v3037 = vpop.f32.mrf.mxu0
      %v3038 = vadd.f32 0.0, %v3037
      %v3039 = vpop.f32.mrf.mxu0
      %v3040 = vpop.f32.mrf.mxu0
      %v3041 = vadd.f32 0.0, %v3040
      %v3042 = vpop.f32.mrf.mxu0
      %3043 = vmatprep.mubr.bf16.mxu0 0
      %3044 = vmatmul.mubr.bf16.gmra.mxu0 %v2849
      %v3045 = vpop.f32.mrf.mxu0
      %v3046 = vadd.f32 0.0, %v3045
      %v3047 = vpop.f32.mrf.mxu0
      %v3048 = vpop.f32.mrf.mxu0
      %v3049 = vpop.f32.mrf.mxu0
      %3050 = vdwg.mxu0
      %v3051 = vadd.f32 %v2652, %v2886
      %v3052 = vadd.f32 %v2653, %v2889
      %v3053 = vadd.f32 %v2654, %v2894
      %v3054 = vadd.f32 %v2655, %v2897
      %v3055 = vadd.f32 %v2656, %v2902
      %v3056 = vadd.f32 %v2657, %v2905
      %v3057 = vadd.f32 %v2658, %v2910
      %v3058 = vadd.f32 %v2659, %v2913
      %v3059 = vadd.f32 %v2660, %v2918
      %v3060 = vadd.f32 %v2661, %v2921
      %v3061 = vadd.f32 %v2662, %v2926
      %v3062 = vadd.f32 %v2663, %v2929
      %v3063 = vadd.f32 %v2664, %v2934
      %v3064 = vadd.f32 %v2665, %v2937
      %v3065 = vadd.f32 %v2666, %v2942
      %v3066 = vadd.f32 %v2667, %v2945
      %v3067 = vadd.f32 %v2668, %v2950
      %v3068 = vadd.f32 %v2669, %v2953
      %v3069 = vadd.f32 %v2670, %v2958
      %v3070 = vadd.f32 %v2671, %v2961
      %v3071 = vadd.f32 %v2672, %v2966
      %v3072 = vadd.f32 %v2673, %v2969
      %v3073 = vadd.f32 %v2674, %v2974
      %v3074 = vadd.f32 %v2675, %v2977
      %v3075 = vadd.f32 %v2676, %v2982
      %v3076 = vadd.f32 %v2677, %v2985
      %v3077 = vadd.f32 %v2678, %v2990
      %v3078 = vadd.f32 %v2679, %v2993
      %v3079 = vadd.f32 %v2680, %v2998
      %v3080 = vadd.f32 %v2681, %v3001
      %v3081 = vadd.f32 %v2682, %v3006
      %v3082 = vadd.f32 %v2683, %v3009
      %v3083 = vadd.f32 %v2684, %v3014
      %v3084 = vadd.f32 %v2685, %v3017
      %v3085 = vadd.f32 %v2686, %v3022
      %v3086 = vadd.f32 %v2687, %v3025
      %v3087 = vadd.f32 %v2688, %v3030
      %v3088 = vadd.f32 %v2689, %v3033
      %v3089 = vadd.f32 %v2690, %v3038
      %v3090 = vadd.f32 %v2691, %v3041
      %v3091 = vadd.f32 %v2692, %v3046
      %v3092 = vld [vmem:[%s315 + $0x2a] sm:$0xff]
      %v3093 = vld [vmem:[%s315 + $0x32] sm:$0xff]
      %v3094 = vld [vmem:[%s315 + $0x3a] sm:$0xff]
      %v3095 = vld [vmem:[%s315 + $0x42] sm:$0xff]
      %v3096 = vld [vmem:[%s315 + $0x4a] sm:$0xff]
      %v3097 = vld [vmem:[%s315 + $0x52] sm:$0xff]
      %v3098 = vld [vmem:[%s315 + $0x5a] sm:$0xff]
      %v3099 = vld [vmem:[%s315 + $0x62] sm:$0xff]
      %v3100 = vld [vmem:[%s315 + $0x6a] sm:$0xff]
      %v3101 = vld [vmem:[%s315 + $0x72] sm:$0xff]
      %v3102 = vld [vmem:[%s315 + $0x7a] sm:$0xff]
      %v3103 = vld [vmem:[%s315 + $0x82] sm:$0xff]
      %v3104 = vld [vmem:[%s315 + $0x8a] sm:$0xff]
      %v3105 = vld [vmem:[%s315 + $0x92] sm:$0xff]
      %v3106 = vld [vmem:[%s315 + $0x9a] sm:$0xff]
      %v3107 = vld [vmem:[%s315 + $0xa2] sm:$0xff]
      %v3108 = vld [vmem:[%s315 + $0xaa] sm:$0xff]
      %v3109 = vld [vmem:[%s315 + $0xb2] sm:$0xff]
      %v3110 = vld [vmem:[%s315 + $0xba] sm:$0xff]
      %v3111 = vld [vmem:[%s315 + $0xc2] sm:$0xff]
      %v3112 = vld [vmem:[%s315 + $0xca] sm:$0xff]
      %v3113 = vld [vmem:[%s315 + $0xd2] sm:$0xff]
      %v3114 = vld [vmem:[%s315 + $0xda] sm:$0xff]
      %v3115 = vld [vmem:[%s315 + $0xe2] sm:$0xff]
      %v3116 = vld [vmem:[%s315 + $0xea] sm:$0xff]
      %v3117 = vld [vmem:[%s315 + $0xf2] sm:$0xff]
      %v3118 = vld [vmem:[%s315 + $0xfa] sm:$0xff]
      %v3119 = vld [vmem:[%s315 + $0x102] sm:$0xff]
      %v3120 = vld [vmem:[%s315 + $0x10a] sm:$0xff]
      %v3121 = vld [vmem:[%s315 + $0x112] sm:$0xff]
      %v3122 = vld [vmem:[%s315 + $0x11a] sm:$0xff]
      %v3123 = vld [vmem:[%s315 + $0x122] sm:$0xff]
      %v3124 = vld [vmem:[%s315 + $0x12a] sm:$0xff]
      %v3125 = vld [vmem:[%s315 + $0x132] sm:$0xff]
      %v3126 = vld [vmem:[%s315 + $0x13a] sm:$0xff]
      %v3127 = vld [vmem:[%s315 + $0x142] sm:$0xff]
      %v3128 = vld [vmem:[%s315 + $0x14a] sm:$0xff]
      %v3129 = vld [vmem:[%s315 + $0x152] sm:$0xff]
      %v3130 = vld [vmem:[%s315 + $0x15a] sm:$0xff]
      %v3131 = vld [vmem:[%s315 + $0x162] sm:$0xff]
      %v3132 = vld [vmem:[%s315 + $0x16a] sm:$0xf]
      %v3133 = vpack.c.bf16 %v3093, %v3092
      %v3134 = vpack.c.bf16 %v3095, %v3094
      %v3135 = vpack.c.bf16 %v3097, %v3096
      %v3136 = vpack.c.bf16 %v3099, %v3098
      %v3137 = vpack.c.bf16 %v3101, %v3100
      %v3138 = vpack.c.bf16 %v3103, %v3102
      %v3139 = vpack.c.bf16 %v3105, %v3104
      %v3140 = vpack.c.bf16 %v3107, %v3106
      %v3141 = vpack.c.bf16 %v3109, %v3108
      %v3142 = vpack.c.bf16 %v3111, %v3110
      %v3143 = vpack.c.bf16 %v3113, %v3112
      %v3144 = vpack.c.bf16 %v3115, %v3114
      %v3145 = vpack.c.bf16 %v3117, %v3116
      %v3146 = vpack.c.bf16 %v3119, %v3118
      %v3147 = vpack.c.bf16 %v3121, %v3120
      %v3148 = vpack.c.bf16 %v3123, %v3122
      %v3149 = vpack.c.bf16 %v3125, %v3124
      %v3150 = vpack.c.bf16 %v3127, %v3126
      %v3151 = vpack.c.bf16 %v3129, %v3128
      %v3152 = vpack.c.bf16 %v3131, %v3130
      %v3153 = vpack.c.bf16 %v3132, %v3132
      %s3154 = scalar_lea.vmem %s3, 224
      %v3155 = vld [vmem:[%s3154] sm:$0xf]
      %v3156 = vld [vmem:[%s3154 + $0x4] sm:$0xf]
      %v3157 = vld [vmem:[%s3154 + $0x8] sm:$0xf]
      %v3158 = vld [vmem:[%s3154 + $0xc] sm:$0xf]
      %v3159 = vld [vmem:[%s3154 + $0x10] sm:$0xf]
      %v3160 = vld [vmem:[%s3154 + $0x14] sm:$0xf]
      %v3161 = vld [vmem:[%s3154 + $0x18] sm:$0xf]
      %v3162 = vld [vmem:[%s3154 + $0x1c] sm:$0xf]
      %v3171 = vunpack.c.l.b16 %v3155
      %v3172 = vunpack.c.l.b16 %v3156
      %v3173 = vunpack.c.l.b16 %v3157
      %v3174 = vunpack.c.l.b16 %v3158
      %v3175 = vunpack.c.l.b16 %v3159
      %v3176 = vunpack.c.l.b16 %v3160
      %v3177 = vunpack.c.l.b16 %v3161
      %v3178 = vunpack.c.l.b16 %v3162
      %v3179 = vpack.c.b16 %v3172, %v3171
      %v3180 = vpack.c.b16 %v3174, %v3173
      %v3181 = vpack.c.b16 %v3176, %v3175
      %v3182 = vpack.c.b16 %v3178, %v3177
      %v3188 = vsel %vm368, %v3133, 0
      %v3191 = vsel %vm368, %v3134, 0
      %v3194 = vsel %vm368, %v3135, 0
      %v3197 = vsel %vm368, %v3136, 0
      %v3200 = vsel %vm368, %v3137, 0
      %v3203 = vsel %vm368, %v3138, 0
      %v3206 = vsel %vm368, %v3139, 0
      %v3209 = vsel %vm368, %v3140, 0
      %v3212 = vsel %vm368, %v3141, 0
      %v3215 = vsel %vm368, %v3142, 0
      %v3218 = vsel %vm368, %v3143, 0
      %v3221 = vsel %vm368, %v3144, 0
      %v3224 = vsel %vm368, %v3145, 0
      %v3227 = vsel %vm368, %v3146, 0
      %v3230 = vsel %vm368, %v3147, 0
      %v3233 = vsel %vm368, %v3148, 0
      %v3236 = vsel %vm368, %v3149, 0
      %v3239 = vsel %vm368, %v3150, 0
      %v3242 = vsel %vm368, %v3151, 0
      %v3245 = vsel %vm368, %v3152, 0
      %v3248 = vsel %vm368, %v3153, 0
      %3250 = vmatprep.subr.bf16.mxu0 0
      %3251 = vmatpush1.bf16.msra.mxu0 0
      %3252 = vmatprep.subr.bf16.mxu0 0
      %3253 = vmatpush1.bf16.msra.mxu0 0
      %3254 = vmatprep.subr.bf16.mxu0 0
      %3255 = vmatpush1.bf16.msra.mxu0 0
      %3256 = vmatprep.subr.bf16.mxu0 0
      %3257 = vmatpush1.bf16.msra.mxu0 0
      %3258 = vmatprep.subr.bf16.mxu0 0
      %3259 = vmatpush1.bf16.msra.mxu0 %v3182
      %3260 = vmatprep.subr.bf16.mxu0 0
      %3261 = vmatpush1.bf16.msra.mxu0 %v3181
      %3262 = vmatprep.subr.bf16.mxu0 0
      %3263 = vmatpush1.bf16.msra.mxu0 %v3180
      %3264 = vmatprep.subr.bf16.mxu0 0
      %3265 = vmatpush1.bf16.msra.mxu0 %v3179
      %3266 = vmatprep.subr.bf16.mxu0 0
      %3267 = vmatpush2.bf16.msra.mxu0 0
      %3268 = vmatprep.subr.bf16.mxu0 0
      %3269 = vmatpush2.bf16.msra.mxu0 0
      %3270 = vmatprep.subr.bf16.mxu0 0
      %3271 = vmatpush2.bf16.msra.mxu0 0
      %3272 = vmatprep.subr.bf16.mxu0 0
      %3273 = vmatpush2.bf16.msra.mxu0 0
      %3274 = vmatprep.subr.bf16.mxu0 0
      %3275 = vmatpush2.bf16.msra.mxu0 0
      %3276 = vmatprep.subr.bf16.mxu0 0
      %3277 = vmatpush2.bf16.msra.mxu0 0
      %3278 = vmatprep.subr.bf16.mxu0 0
      %3279 = vmatpush2.bf16.msra.mxu0 0
      %3280 = vmatprep.subr.bf16.mxu0 0
      %3281 = vmatpush2.bf16.msra.mxu0 0
      %3282 = vmatprep.mubr.bf16.mxu0 0
      %3283 = vmatmul.mubr.bf16.gmra.mxu0 %v3188
      %v3284 = vpop.f32.mrf.mxu0
      %v3285 = vadd.f32 0.0, %v3284
      %v3286 = vpop.f32.mrf.mxu0
      %v3287 = vpop.f32.mrf.mxu0
      %v3288 = vadd.f32 0.0, %v3287
      %v3289 = vpop.f32.mrf.mxu0
      %3290 = vmatprep.mubr.bf16.mxu0 0
      %3291 = vmatmul.mubr.bf16.gmra.mxu0 %v3191
      %v3292 = vpop.f32.mrf.mxu0
      %v3293 = vadd.f32 0.0, %v3292
      %v3294 = vpop.f32.mrf.mxu0
      %v3295 = vpop.f32.mrf.mxu0
      %v3296 = vadd.f32 0.0, %v3295
      %v3297 = vpop.f32.mrf.mxu0
      %3298 = vmatprep.mubr.bf16.mxu0 0
      %3299 = vmatmul.mubr.bf16.gmra.mxu0 %v3194
      %v3300 = vpop.f32.mrf.mxu0
      %v3301 = vadd.f32 0.0, %v3300
      %v3302 = vpop.f32.mrf.mxu0
      %v3303 = vpop.f32.mrf.mxu0
      %v3304 = vadd.f32 0.0, %v3303
      %v3305 = vpop.f32.mrf.mxu0
      %3306 = vmatprep.mubr.bf16.mxu0 0
      %3307 = vmatmul.mubr.bf16.gmra.mxu0 %v3197
      %v3308 = vpop.f32.mrf.mxu0
      %v3309 = vadd.f32 0.0, %v3308
      %v3310 = vpop.f32.mrf.mxu0
      %v3311 = vpop.f32.mrf.mxu0
      %v3312 = vadd.f32 0.0, %v3311
      %v3313 = vpop.f32.mrf.mxu0
      %3314 = vmatprep.mubr.bf16.mxu0 0
      %3315 = vmatmul.mubr.bf16.gmra.mxu0 %v3200
      %v3316 = vpop.f32.mrf.mxu0
      %v3317 = vadd.f32 0.0, %v3316
      %v3318 = vpop.f32.mrf.mxu0
      %v3319 = vpop.f32.mrf.mxu0
      %v3320 = vadd.f32 0.0, %v3319
      %v3321 = vpop.f32.mrf.mxu0
      %3322 = vmatprep.mubr.bf16.mxu0 0
      %3323 = vmatmul.mubr.bf16.gmra.mxu0 %v3203
      %v3324 = vpop.f32.mrf.mxu0
      %v3325 = vadd.f32 0.0, %v3324
      %v3326 = vpop.f32.mrf.mxu0
      %v3327 = vpop.f32.mrf.mxu0
      %v3328 = vadd.f32 0.0, %v3327
      %v3329 = vpop.f32.mrf.mxu0
      %3330 = vmatprep.mubr.bf16.mxu0 0
      %3331 = vmatmul.mubr.bf16.gmra.mxu0 %v3206
      %v3332 = vpop.f32.mrf.mxu0
      %v3333 = vadd.f32 0.0, %v3332
      %v3334 = vpop.f32.mrf.mxu0
      %v3335 = vpop.f32.mrf.mxu0
      %v3336 = vadd.f32 0.0, %v3335
      %v3337 = vpop.f32.mrf.mxu0
      %3338 = vmatprep.mubr.bf16.mxu0 0
      %3339 = vmatmul.mubr.bf16.gmra.mxu0 %v3209
      %v3340 = vpop.f32.mrf.mxu0
      %v3341 = vadd.f32 0.0, %v3340
      %v3342 = vpop.f32.mrf.mxu0
      %v3343 = vpop.f32.mrf.mxu0
      %v3344 = vadd.f32 0.0, %v3343
      %v3345 = vpop.f32.mrf.mxu0
      %3346 = vmatprep.mubr.bf16.mxu0 0
      %3347 = vmatmul.mubr.bf16.gmra.mxu0 %v3212
      %v3348 = vpop.f32.mrf.mxu0
      %v3349 = vadd.f32 0.0, %v3348
      %v3350 = vpop.f32.mrf.mxu0
      %v3351 = vpop.f32.mrf.mxu0
      %v3352 = vadd.f32 0.0, %v3351
      %v3353 = vpop.f32.mrf.mxu0
      %3354 = vmatprep.mubr.bf16.mxu0 0
      %3355 = vmatmul.mubr.bf16.gmra.mxu0 %v3215
      %v3356 = vpop.f32.mrf.mxu0
      %v3357 = vadd.f32 0.0, %v3356
      %v3358 = vpop.f32.mrf.mxu0
      %v3359 = vpop.f32.mrf.mxu0
      %v3360 = vadd.f32 0.0, %v3359
      %v3361 = vpop.f32.mrf.mxu0
      %3362 = vmatprep.mubr.bf16.mxu0 0
      %3363 = vmatmul.mubr.bf16.gmra.mxu0 %v3218
      %v3364 = vpop.f32.mrf.mxu0
      %v3365 = vadd.f32 0.0, %v3364
      %v3366 = vpop.f32.mrf.mxu0
      %v3367 = vpop.f32.mrf.mxu0
      %v3368 = vadd.f32 0.0, %v3367
      %v3369 = vpop.f32.mrf.mxu0
      %3370 = vmatprep.mubr.bf16.mxu0 0
      %3371 = vmatmul.mubr.bf16.gmra.mxu0 %v3221
      %v3372 = vpop.f32.mrf.mxu0
      %v3373 = vadd.f32 0.0, %v3372
      %v3374 = vpop.f32.mrf.mxu0
      %v3375 = vpop.f32.mrf.mxu0
      %v3376 = vadd.f32 0.0, %v3375
      %v3377 = vpop.f32.mrf.mxu0
      %3378 = vmatprep.mubr.bf16.mxu0 0
      %3379 = vmatmul.mubr.bf16.gmra.mxu0 %v3224
      %v3380 = vpop.f32.mrf.mxu0
      %v3381 = vadd.f32 0.0, %v3380
      %v3382 = vpop.f32.mrf.mxu0
      %v3383 = vpop.f32.mrf.mxu0
      %v3384 = vadd.f32 0.0, %v3383
      %v3385 = vpop.f32.mrf.mxu0
      %3386 = vmatprep.mubr.bf16.mxu0 0
      %3387 = vmatmul.mubr.bf16.gmra.mxu0 %v3227
      %v3388 = vpop.f32.mrf.mxu0
      %v3389 = vadd.f32 0.0, %v3388
      %v3390 = vpop.f32.mrf.mxu0
      %v3391 = vpop.f32.mrf.mxu0
      %v3392 = vadd.f32 0.0, %v3391
      %v3393 = vpop.f32.mrf.mxu0
      %3394 = vmatprep.mubr.bf16.mxu0 0
      %3395 = vmatmul.mubr.bf16.gmra.mxu0 %v3230
      %v3396 = vpop.f32.mrf.mxu0
      %v3397 = vadd.f32 0.0, %v3396
      %v3398 = vpop.f32.mrf.mxu0
      %v3399 = vpop.f32.mrf.mxu0
      %v3400 = vadd.f32 0.0, %v3399
      %v3401 = vpop.f32.mrf.mxu0
      %3402 = vmatprep.mubr.bf16.mxu0 0
      %3403 = vmatmul.mubr.bf16.gmra.mxu0 %v3233
      %v3404 = vpop.f32.mrf.mxu0
      %v3405 = vadd.f32 0.0, %v3404
      %v3406 = vpop.f32.mrf.mxu0
      %v3407 = vpop.f32.mrf.mxu0
      %v3408 = vadd.f32 0.0, %v3407
      %v3409 = vpop.f32.mrf.mxu0
      %3410 = vmatprep.mubr.bf16.mxu0 0
      %3411 = vmatmul.mubr.bf16.gmra.mxu0 %v3236
      %v3412 = vpop.f32.mrf.mxu0
      %v3413 = vadd.f32 0.0, %v3412
      %v3414 = vpop.f32.mrf.mxu0
      %v3415 = vpop.f32.mrf.mxu0
      %v3416 = vadd.f32 0.0, %v3415
      %v3417 = vpop.f32.mrf.mxu0
      %3418 = vmatprep.mubr.bf16.mxu0 0
      %3419 = vmatmul.mubr.bf16.gmra.mxu0 %v3239
      %v3420 = vpop.f32.mrf.mxu0
      %v3421 = vadd.f32 0.0, %v3420
      %v3422 = vpop.f32.mrf.mxu0
      %v3423 = vpop.f32.mrf.mxu0
      %v3424 = vadd.f32 0.0, %v3423
      %v3425 = vpop.f32.mrf.mxu0
      %3426 = vmatprep.mubr.bf16.mxu0 0
      %3427 = vmatmul.mubr.bf16.gmra.mxu0 %v3242
      %v3428 = vpop.f32.mrf.mxu0
      %v3429 = vadd.f32 0.0, %v3428
      %v3430 = vpop.f32.mrf.mxu0
      %v3431 = vpop.f32.mrf.mxu0
      %v3432 = vadd.f32 0.0, %v3431
      %v3433 = vpop.f32.mrf.mxu0
      %3434 = vmatprep.mubr.bf16.mxu0 0
      %3435 = vmatmul.mubr.bf16.gmra.mxu0 %v3245
      %v3436 = vpop.f32.mrf.mxu0
      %v3437 = vadd.f32 0.0, %v3436
      %v3438 = vpop.f32.mrf.mxu0
      %v3439 = vpop.f32.mrf.mxu0
      %v3440 = vadd.f32 0.0, %v3439
      %v3441 = vpop.f32.mrf.mxu0
      %3442 = vmatprep.mubr.bf16.mxu0 0
      %3443 = vmatmul.mubr.bf16.gmra.mxu0 %v3248
      %v3444 = vpop.f32.mrf.mxu0
      %v3445 = vadd.f32 0.0, %v3444
      %v3446 = vpop.f32.mrf.mxu0
      %v3447 = vpop.f32.mrf.mxu0
      %v3448 = vpop.f32.mrf.mxu0
      %3449 = vdwg.mxu0
      %v3450 = vadd.f32 %v3051, %v3285
      %v3451 = vadd.f32 %v3052, %v3288
      %v3452 = vadd.f32 %v3053, %v3293
      %v3453 = vadd.f32 %v3054, %v3296
      %v3454 = vadd.f32 %v3055, %v3301
      %v3455 = vadd.f32 %v3056, %v3304
      %v3456 = vadd.f32 %v3057, %v3309
      %v3457 = vadd.f32 %v3058, %v3312
      %v3458 = vadd.f32 %v3059, %v3317
      %v3459 = vadd.f32 %v3060, %v3320
      %v3460 = vadd.f32 %v3061, %v3325
      %v3461 = vadd.f32 %v3062, %v3328
      %v3462 = vadd.f32 %v3063, %v3333
      %v3463 = vadd.f32 %v3064, %v3336
      %v3464 = vadd.f32 %v3065, %v3341
      %v3465 = vadd.f32 %v3066, %v3344
      %v3466 = vadd.f32 %v3067, %v3349
      %v3467 = vadd.f32 %v3068, %v3352
      %v3468 = vadd.f32 %v3069, %v3357
      %v3469 = vadd.f32 %v3070, %v3360
      %v3470 = vadd.f32 %v3071, %v3365
      %v3471 = vadd.f32 %v3072, %v3368
      %v3472 = vadd.f32 %v3073, %v3373
      %v3473 = vadd.f32 %v3074, %v3376
      %v3474 = vadd.f32 %v3075, %v3381
      %v3475 = vadd.f32 %v3076, %v3384
      %v3476 = vadd.f32 %v3077, %v3389
      %v3477 = vadd.f32 %v3078, %v3392
      %v3478 = vadd.f32 %v3079, %v3397
      %v3479 = vadd.f32 %v3080, %v3400
      %v3480 = vadd.f32 %v3081, %v3405
      %v3481 = vadd.f32 %v3082, %v3408
      %v3482 = vadd.f32 %v3083, %v3413
      %v3483 = vadd.f32 %v3084, %v3416
      %v3484 = vadd.f32 %v3085, %v3421
      %v3485 = vadd.f32 %v3086, %v3424
      %v3486 = vadd.f32 %v3087, %v3429
      %v3487 = vadd.f32 %v3088, %v3432
      %v3488 = vadd.f32 %v3089, %v3437
      %v3489 = vadd.f32 %v3090, %v3440
      %v3490 = vadd.f32 %v3091, %v3445
      %v3491 = vld [vmem:[%s315 + $0x2b] sm:$0xff]
      %v3492 = vld [vmem:[%s315 + $0x33] sm:$0xff]
      %v3493 = vld [vmem:[%s315 + $0x3b] sm:$0xff]
      %v3494 = vld [vmem:[%s315 + $0x43] sm:$0xff]
      %v3495 = vld [vmem:[%s315 + $0x4b] sm:$0xff]
      %v3496 = vld [vmem:[%s315 + $0x53] sm:$0xff]
      %v3497 = vld [vmem:[%s315 + $0x5b] sm:$0xff]
      %v3498 = vld [vmem:[%s315 + $0x63] sm:$0xff]
      %v3499 = vld [vmem:[%s315 + $0x6b] sm:$0xff]
      %v3500 = vld [vmem:[%s315 + $0x73] sm:$0xff]
      %v3501 = vld [vmem:[%s315 + $0x7b] sm:$0xff]
      %v3502 = vld [vmem:[%s315 + $0x83] sm:$0xff]
      %v3503 = vld [vmem:[%s315 + $0x8b] sm:$0xff]
      %v3504 = vld [vmem:[%s315 + $0x93] sm:$0xff]
      %v3505 = vld [vmem:[%s315 + $0x9b] sm:$0xff]
      %v3506 = vld [vmem:[%s315 + $0xa3] sm:$0xff]
      %v3507 = vld [vmem:[%s315 + $0xab] sm:$0xff]
      %v3508 = vld [vmem:[%s315 + $0xb3] sm:$0xff]
      %v3509 = vld [vmem:[%s315 + $0xbb] sm:$0xff]
      %v3510 = vld [vmem:[%s315 + $0xc3] sm:$0xff]
      %v3511 = vld [vmem:[%s315 + $0xcb] sm:$0xff]
      %v3512 = vld [vmem:[%s315 + $0xd3] sm:$0xff]
      %v3513 = vld [vmem:[%s315 + $0xdb] sm:$0xff]
      %v3514 = vld [vmem:[%s315 + $0xe3] sm:$0xff]
      %v3515 = vld [vmem:[%s315 + $0xeb] sm:$0xff]
      %v3516 = vld [vmem:[%s315 + $0xf3] sm:$0xff]
      %v3517 = vld [vmem:[%s315 + $0xfb] sm:$0xff]
      %v3518 = vld [vmem:[%s315 + $0x103] sm:$0xff]
      %v3519 = vld [vmem:[%s315 + $0x10b] sm:$0xff]
      %v3520 = vld [vmem:[%s315 + $0x113] sm:$0xff]
      %v3521 = vld [vmem:[%s315 + $0x11b] sm:$0xff]
      %v3522 = vld [vmem:[%s315 + $0x123] sm:$0xff]
      %v3523 = vld [vmem:[%s315 + $0x12b] sm:$0xff]
      %v3524 = vld [vmem:[%s315 + $0x133] sm:$0xff]
      %v3525 = vld [vmem:[%s315 + $0x13b] sm:$0xff]
      %v3526 = vld [vmem:[%s315 + $0x143] sm:$0xff]
      %v3527 = vld [vmem:[%s315 + $0x14b] sm:$0xff]
      %v3528 = vld [vmem:[%s315 + $0x153] sm:$0xff]
      %v3529 = vld [vmem:[%s315 + $0x15b] sm:$0xff]
      %v3530 = vld [vmem:[%s315 + $0x163] sm:$0xff]
      %v3531 = vld [vmem:[%s315 + $0x16b] sm:$0xf]
      %v3532 = vpack.c.bf16 %v3492, %v3491
      %v3533 = vpack.c.bf16 %v3494, %v3493
      %v3534 = vpack.c.bf16 %v3496, %v3495
      %v3535 = vpack.c.bf16 %v3498, %v3497
      %v3536 = vpack.c.bf16 %v3500, %v3499
      %v3537 = vpack.c.bf16 %v3502, %v3501
      %v3538 = vpack.c.bf16 %v3504, %v3503
      %v3539 = vpack.c.bf16 %v3506, %v3505
      %v3540 = vpack.c.bf16 %v3508, %v3507
      %v3541 = vpack.c.bf16 %v3510, %v3509
      %v3542 = vpack.c.bf16 %v3512, %v3511
      %v3543 = vpack.c.bf16 %v3514, %v3513
      %v3544 = vpack.c.bf16 %v3516, %v3515
      %v3545 = vpack.c.bf16 %v3518, %v3517
      %v3546 = vpack.c.bf16 %v3520, %v3519
      %v3547 = vpack.c.bf16 %v3522, %v3521
      %v3548 = vpack.c.bf16 %v3524, %v3523
      %v3549 = vpack.c.bf16 %v3526, %v3525
      %v3550 = vpack.c.bf16 %v3528, %v3527
      %v3551 = vpack.c.bf16 %v3530, %v3529
      %v3552 = vpack.c.bf16 %v3531, %v3531
      %s3553 = scalar_lea.vmem %s3, 256
      %v3554 = vld [vmem:[%s3553] sm:$0xf]
      %v3555 = vld [vmem:[%s3553 + $0x4] sm:$0xf]
      %v3556 = vld [vmem:[%s3553 + $0x8] sm:$0xf]
      %v3557 = vld [vmem:[%s3553 + $0xc] sm:$0xf]
      %v3558 = vld [vmem:[%s3553 + $0x10] sm:$0xf]
      %v3559 = vld [vmem:[%s3553 + $0x14] sm:$0xf]
      %v3560 = vld [vmem:[%s3553 + $0x18] sm:$0xf]
      %v3561 = vld [vmem:[%s3553 + $0x1c] sm:$0xf]
      %v3570 = vunpack.c.l.b16 %v3554
      %v3571 = vunpack.c.l.b16 %v3555
      %v3572 = vunpack.c.l.b16 %v3556
      %v3573 = vunpack.c.l.b16 %v3557
      %v3574 = vunpack.c.l.b16 %v3558
      %v3575 = vunpack.c.l.b16 %v3559
      %v3576 = vunpack.c.l.b16 %v3560
      %v3577 = vunpack.c.l.b16 %v3561
      %v3578 = vpack.c.b16 %v3571, %v3570
      %v3579 = vpack.c.b16 %v3573, %v3572
      %v3580 = vpack.c.b16 %v3575, %v3574
      %v3581 = vpack.c.b16 %v3577, %v3576
      %v3587 = vsel %vm368, %v3532, 0
      %v3590 = vsel %vm368, %v3533, 0
      %v3593 = vsel %vm368, %v3534, 0
      %v3596 = vsel %vm368, %v3535, 0
      %v3599 = vsel %vm368, %v3536, 0
      %v3602 = vsel %vm368, %v3537, 0
      %v3605 = vsel %vm368, %v3538, 0
      %v3608 = vsel %vm368, %v3539, 0
      %v3611 = vsel %vm368, %v3540, 0
      %v3614 = vsel %vm368, %v3541, 0
      %v3617 = vsel %vm368, %v3542, 0
      %v3620 = vsel %vm368, %v3543, 0
      %v3623 = vsel %vm368, %v3544, 0
      %v3626 = vsel %vm368, %v3545, 0
      %v3629 = vsel %vm368, %v3546, 0
      %v3632 = vsel %vm368, %v3547, 0
      %v3635 = vsel %vm368, %v3548, 0
      %v3638 = vsel %vm368, %v3549, 0
      %v3641 = vsel %vm368, %v3550, 0
      %v3644 = vsel %vm368, %v3551, 0
      %v3647 = vsel %vm368, %v3552, 0
      %3649 = vmatprep.subr.bf16.mxu0 0
      %3650 = vmatpush1.bf16.msra.mxu0 0
      %3651 = vmatprep.subr.bf16.mxu0 0
      %3652 = vmatpush1.bf16.msra.mxu0 0
      %3653 = vmatprep.subr.bf16.mxu0 0
      %3654 = vmatpush1.bf16.msra.mxu0 0
      %3655 = vmatprep.subr.bf16.mxu0 0
      %3656 = vmatpush1.bf16.msra.mxu0 0
      %3657 = vmatprep.subr.bf16.mxu0 0
      %3658 = vmatpush1.bf16.msra.mxu0 %v3581
      %3659 = vmatprep.subr.bf16.mxu0 0
      %3660 = vmatpush1.bf16.msra.mxu0 %v3580
      %3661 = vmatprep.subr.bf16.mxu0 0
      %3662 = vmatpush1.bf16.msra.mxu0 %v3579
      %3663 = vmatprep.subr.bf16.mxu0 0
      %3664 = vmatpush1.bf16.msra.mxu0 %v3578
      %3665 = vmatprep.subr.bf16.mxu0 0
      %3666 = vmatpush2.bf16.msra.mxu0 0
      %3667 = vmatprep.subr.bf16.mxu0 0
      %3668 = vmatpush2.bf16.msra.mxu0 0
      %3669 = vmatprep.subr.bf16.mxu0 0
      %3670 = vmatpush2.bf16.msra.mxu0 0
      %3671 = vmatprep.subr.bf16.mxu0 0
      %3672 = vmatpush2.bf16.msra.mxu0 0
      %3673 = vmatprep.subr.bf16.mxu0 0
      %3674 = vmatpush2.bf16.msra.mxu0 0
      %3675 = vmatprep.subr.bf16.mxu0 0
      %3676 = vmatpush2.bf16.msra.mxu0 0
      %3677 = vmatprep.subr.bf16.mxu0 0
      %3678 = vmatpush2.bf16.msra.mxu0 0
      %3679 = vmatprep.subr.bf16.mxu0 0
      %3680 = vmatpush2.bf16.msra.mxu0 0
      %3681 = vmatprep.mubr.bf16.mxu0 0
      %3682 = vmatmul.mubr.bf16.gmra.mxu0 %v3587
      %v3683 = vpop.f32.mrf.mxu0
      %v3684 = vadd.f32 0.0, %v3683
      %v3685 = vpop.f32.mrf.mxu0
      %v3686 = vpop.f32.mrf.mxu0
      %v3687 = vadd.f32 0.0, %v3686
      %v3688 = vpop.f32.mrf.mxu0
      %3689 = vmatprep.mubr.bf16.mxu0 0
      %3690 = vmatmul.mubr.bf16.gmra.mxu0 %v3590
      %v3691 = vpop.f32.mrf.mxu0
      %v3692 = vadd.f32 0.0, %v3691
      %v3693 = vpop.f32.mrf.mxu0
      %v3694 = vpop.f32.mrf.mxu0
      %v3695 = vadd.f32 0.0, %v3694
      %v3696 = vpop.f32.mrf.mxu0
      %3697 = vmatprep.mubr.bf16.mxu0 0
      %3698 = vmatmul.mubr.bf16.gmra.mxu0 %v3593
      %v3699 = vpop.f32.mrf.mxu0
      %v3700 = vadd.f32 0.0, %v3699
      %v3701 = vpop.f32.mrf.mxu0
      %v3702 = vpop.f32.mrf.mxu0
      %v3703 = vadd.f32 0.0, %v3702
      %v3704 = vpop.f32.mrf.mxu0
      %3705 = vmatprep.mubr.bf16.mxu0 0
      %3706 = vmatmul.mubr.bf16.gmra.mxu0 %v3596
      %v3707 = vpop.f32.mrf.mxu0
      %v3708 = vadd.f32 0.0, %v3707
      %v3709 = vpop.f32.mrf.mxu0
      %v3710 = vpop.f32.mrf.mxu0
      %v3711 = vadd.f32 0.0, %v3710
      %v3712 = vpop.f32.mrf.mxu0
      %3713 = vmatprep.mubr.bf16.mxu0 0
      %3714 = vmatmul.mubr.bf16.gmra.mxu0 %v3599
      %v3715 = vpop.f32.mrf.mxu0
      %v3716 = vadd.f32 0.0, %v3715
      %v3717 = vpop.f32.mrf.mxu0
      %v3718 = vpop.f32.mrf.mxu0
      %v3719 = vadd.f32 0.0, %v3718
      %v3720 = vpop.f32.mrf.mxu0
      %3721 = vmatprep.mubr.bf16.mxu0 0
      %3722 = vmatmul.mubr.bf16.gmra.mxu0 %v3602
      %v3723 = vpop.f32.mrf.mxu0
      %v3724 = vadd.f32 0.0, %v3723
      %v3725 = vpop.f32.mrf.mxu0
      %v3726 = vpop.f32.mrf.mxu0
      %v3727 = vadd.f32 0.0, %v3726
      %v3728 = vpop.f32.mrf.mxu0
      %3729 = vmatprep.mubr.bf16.mxu0 0
      %3730 = vmatmul.mubr.bf16.gmra.mxu0 %v3605
      %v3731 = vpop.f32.mrf.mxu0
      %v3732 = vadd.f32 0.0, %v3731
      %v3733 = vpop.f32.mrf.mxu0
      %v3734 = vpop.f32.mrf.mxu0
      %v3735 = vadd.f32 0.0, %v3734
      %v3736 = vpop.f32.mrf.mxu0
      %3737 = vmatprep.mubr.bf16.mxu0 0
      %3738 = vmatmul.mubr.bf16.gmra.mxu0 %v3608
      %v3739 = vpop.f32.mrf.mxu0
      %v3740 = vadd.f32 0.0, %v3739
      %v3741 = vpop.f32.mrf.mxu0
      %v3742 = vpop.f32.mrf.mxu0
      %v3743 = vadd.f32 0.0, %v3742
      %v3744 = vpop.f32.mrf.mxu0
      %3745 = vmatprep.mubr.bf16.mxu0 0
      %3746 = vmatmul.mubr.bf16.gmra.mxu0 %v3611
      %v3747 = vpop.f32.mrf.mxu0
      %v3748 = vadd.f32 0.0, %v3747
      %v3749 = vpop.f32.mrf.mxu0
      %v3750 = vpop.f32.mrf.mxu0
      %v3751 = vadd.f32 0.0, %v3750
      %v3752 = vpop.f32.mrf.mxu0
      %3753 = vmatprep.mubr.bf16.mxu0 0
      %3754 = vmatmul.mubr.bf16.gmra.mxu0 %v3614
      %v3755 = vpop.f32.mrf.mxu0
      %v3756 = vadd.f32 0.0, %v3755
      %v3757 = vpop.f32.mrf.mxu0
      %v3758 = vpop.f32.mrf.mxu0
      %v3759 = vadd.f32 0.0, %v3758
      %v3760 = vpop.f32.mrf.mxu0
      %3761 = vmatprep.mubr.bf16.mxu0 0
      %3762 = vmatmul.mubr.bf16.gmra.mxu0 %v3617
      %v3763 = vpop.f32.mrf.mxu0
      %v3764 = vadd.f32 0.0, %v3763
      %v3765 = vpop.f32.mrf.mxu0
      %v3766 = vpop.f32.mrf.mxu0
      %v3767 = vadd.f32 0.0, %v3766
      %v3768 = vpop.f32.mrf.mxu0
      %3769 = vmatprep.mubr.bf16.mxu0 0
      %3770 = vmatmul.mubr.bf16.gmra.mxu0 %v3620
      %v3771 = vpop.f32.mrf.mxu0
      %v3772 = vadd.f32 0.0, %v3771
      %v3773 = vpop.f32.mrf.mxu0
      %v3774 = vpop.f32.mrf.mxu0
      %v3775 = vadd.f32 0.0, %v3774
      %v3776 = vpop.f32.mrf.mxu0
      %3777 = vmatprep.mubr.bf16.mxu0 0
      %3778 = vmatmul.mubr.bf16.gmra.mxu0 %v3623
      %v3779 = vpop.f32.mrf.mxu0
      %v3780 = vadd.f32 0.0, %v3779
      %v3781 = vpop.f32.mrf.mxu0
      %v3782 = vpop.f32.mrf.mxu0
      %v3783 = vadd.f32 0.0, %v3782
      %v3784 = vpop.f32.mrf.mxu0
      %3785 = vmatprep.mubr.bf16.mxu0 0
      %3786 = vmatmul.mubr.bf16.gmra.mxu0 %v3626
      %v3787 = vpop.f32.mrf.mxu0
      %v3788 = vadd.f32 0.0, %v3787
      %v3789 = vpop.f32.mrf.mxu0
      %v3790 = vpop.f32.mrf.mxu0
      %v3791 = vadd.f32 0.0, %v3790
      %v3792 = vpop.f32.mrf.mxu0
      %3793 = vmatprep.mubr.bf16.mxu0 0
      %3794 = vmatmul.mubr.bf16.gmra.mxu0 %v3629
      %v3795 = vpop.f32.mrf.mxu0
      %v3796 = vadd.f32 0.0, %v3795
      %v3797 = vpop.f32.mrf.mxu0
      %v3798 = vpop.f32.mrf.mxu0
      %v3799 = vadd.f32 0.0, %v3798
      %v3800 = vpop.f32.mrf.mxu0
      %3801 = vmatprep.mubr.bf16.mxu0 0
      %3802 = vmatmul.mubr.bf16.gmra.mxu0 %v3632
      %v3803 = vpop.f32.mrf.mxu0
      %v3804 = vadd.f32 0.0, %v3803
      %v3805 = vpop.f32.mrf.mxu0
      %v3806 = vpop.f32.mrf.mxu0
      %v3807 = vadd.f32 0.0, %v3806
      %v3808 = vpop.f32.mrf.mxu0
      %3809 = vmatprep.mubr.bf16.mxu0 0
      %3810 = vmatmul.mubr.bf16.gmra.mxu0 %v3635
      %v3811 = vpop.f32.mrf.mxu0
      %v3812 = vadd.f32 0.0, %v3811
      %v3813 = vpop.f32.mrf.mxu0
      %v3814 = vpop.f32.mrf.mxu0
      %v3815 = vadd.f32 0.0, %v3814
      %v3816 = vpop.f32.mrf.mxu0
      %3817 = vmatprep.mubr.bf16.mxu0 0
      %3818 = vmatmul.mubr.bf16.gmra.mxu0 %v3638
      %v3819 = vpop.f32.mrf.mxu0
      %v3820 = vadd.f32 0.0, %v3819
      %v3821 = vpop.f32.mrf.mxu0
      %v3822 = vpop.f32.mrf.mxu0
      %v3823 = vadd.f32 0.0, %v3822
      %v3824 = vpop.f32.mrf.mxu0
      %3825 = vmatprep.mubr.bf16.mxu0 0
      %3826 = vmatmul.mubr.bf16.gmra.mxu0 %v3641
      %v3827 = vpop.f32.mrf.mxu0
      %v3828 = vadd.f32 0.0, %v3827
      %v3829 = vpop.f32.mrf.mxu0
      %v3830 = vpop.f32.mrf.mxu0
      %v3831 = vadd.f32 0.0, %v3830
      %v3832 = vpop.f32.mrf.mxu0
      %3833 = vmatprep.mubr.bf16.mxu0 0
      %3834 = vmatmul.mubr.bf16.gmra.mxu0 %v3644
      %v3835 = vpop.f32.mrf.mxu0
      %v3836 = vadd.f32 0.0, %v3835
      %v3837 = vpop.f32.mrf.mxu0
      %v3838 = vpop.f32.mrf.mxu0
      %v3839 = vadd.f32 0.0, %v3838
      %v3840 = vpop.f32.mrf.mxu0
      %3841 = vmatprep.mubr.bf16.mxu0 0
      %3842 = vmatmul.mubr.bf16.gmra.mxu0 %v3647
      %v3843 = vpop.f32.mrf.mxu0
      %v3844 = vadd.f32 0.0, %v3843
      %v3845 = vpop.f32.mrf.mxu0
      %v3846 = vpop.f32.mrf.mxu0
      %v3847 = vpop.f32.mrf.mxu0
      %3848 = vdwg.mxu0
      %v3849 = vadd.f32 %v3450, %v3684
      %v3850 = vadd.f32 %v3451, %v3687
      %v3851 = vadd.f32 %v3452, %v3692
      %v3852 = vadd.f32 %v3453, %v3695
      %v3853 = vadd.f32 %v3454, %v3700
      %v3854 = vadd.f32 %v3455, %v3703
      %v3855 = vadd.f32 %v3456, %v3708
      %v3856 = vadd.f32 %v3457, %v3711
      %v3857 = vadd.f32 %v3458, %v3716
      %v3858 = vadd.f32 %v3459, %v3719
      %v3859 = vadd.f32 %v3460, %v3724
      %v3860 = vadd.f32 %v3461, %v3727
      %v3861 = vadd.f32 %v3462, %v3732
      %v3862 = vadd.f32 %v3463, %v3735
      %v3863 = vadd.f32 %v3464, %v3740
      %v3864 = vadd.f32 %v3465, %v3743
      %v3865 = vadd.f32 %v3466, %v3748
      %v3866 = vadd.f32 %v3467, %v3751
      %v3867 = vadd.f32 %v3468, %v3756
      %v3868 = vadd.f32 %v3469, %v3759
      %v3869 = vadd.f32 %v3470, %v3764
      %v3870 = vadd.f32 %v3471, %v3767
      %v3871 = vadd.f32 %v3472, %v3772
      %v3872 = vadd.f32 %v3473, %v3775
      %v3873 = vadd.f32 %v3474, %v3780
      %v3874 = vadd.f32 %v3475, %v3783
      %v3875 = vadd.f32 %v3476, %v3788
      %v3876 = vadd.f32 %v3477, %v3791
      %v3877 = vadd.f32 %v3478, %v3796
      %v3878 = vadd.f32 %v3479, %v3799
      %v3879 = vadd.f32 %v3480, %v3804
      %v3880 = vadd.f32 %v3481, %v3807
      %v3881 = vadd.f32 %v3482, %v3812
      %v3882 = vadd.f32 %v3483, %v3815
      %v3883 = vadd.f32 %v3484, %v3820
      %v3884 = vadd.f32 %v3485, %v3823
      %v3885 = vadd.f32 %v3486, %v3828
      %v3886 = vadd.f32 %v3487, %v3831
      %v3887 = vadd.f32 %v3488, %v3836
      %v3888 = vadd.f32 %v3489, %v3839
      %v3889 = vadd.f32 %v3490, %v3844
      %v3890 = vmax.f32 %v3849, 0.0
      %v3891 = vmax.f32 %v3850, 0.0
      %v3892 = vmax.f32 %v3851, 0.0
      %v3893 = vmax.f32 %v3852, 0.0
      %v3894 = vmax.f32 %v3853, 0.0
      %v3895 = vmax.f32 %v3854, 0.0
      %v3896 = vmax.f32 %v3855, 0.0
      %v3897 = vmax.f32 %v3856, 0.0
      %v3898 = vmax.f32 %v3857, 0.0
      %v3899 = vmax.f32 %v3858, 0.0
      %v3900 = vmax.f32 %v3859, 0.0
      %v3901 = vmax.f32 %v3860, 0.0
      %v3902 = vmax.f32 %v3861, 0.0
      %v3903 = vmax.f32 %v3862, 0.0
      %v3904 = vmax.f32 %v3863, 0.0
      %v3905 = vmax.f32 %v3864, 0.0
      %v3906 = vmax.f32 %v3865, 0.0
      %v3907 = vmax.f32 %v3866, 0.0
      %v3908 = vmax.f32 %v3867, 0.0
      %v3909 = vmax.f32 %v3868, 0.0
      %v3910 = vmax.f32 %v3869, 0.0
      %v3911 = vmax.f32 %v3870, 0.0
      %v3912 = vmax.f32 %v3871, 0.0
      %v3913 = vmax.f32 %v3872, 0.0
      %v3914 = vmax.f32 %v3873, 0.0
      %v3915 = vmax.f32 %v3874, 0.0
      %v3916 = vmax.f32 %v3875, 0.0
      %v3917 = vmax.f32 %v3876, 0.0
      %v3918 = vmax.f32 %v3877, 0.0
      %v3919 = vmax.f32 %v3878, 0.0
      %v3920 = vmax.f32 %v3879, 0.0
      %v3921 = vmax.f32 %v3880, 0.0
      %v3922 = vmax.f32 %v3881, 0.0
      %v3923 = vmax.f32 %v3882, 0.0
      %v3924 = vmax.f32 %v3883, 0.0
      %v3925 = vmax.f32 %v3884, 0.0
      %v3926 = vmax.f32 %v3885, 0.0
      %v3927 = vmax.f32 %v3886, 0.0
      %v3928 = vmax.f32 %v3887, 0.0
      %v3929 = vmax.f32 %v3888, 0.0
      %v3930 = vmax.f32 %v3889, 0.0
      %3932 = vset.pattern.permute.xlu0 0
      %3933 = vperm.xlu0 %3932, %v327
      %v3934 = vpop.permute.xlu0 %3933
      %3937 = vset.pattern.permute.xlu0 0
      %3938 = vperm.xlu0 %3937, %v328
      %v3939 = vpop.permute.xlu0 %3938
      %3942 = vset.pattern.permute.xlu0 0
      %3943 = vperm.xlu0 %3942, %v329
      %v3944 = vpop.permute.xlu0 %3943
      %3947 = vset.pattern.permute.xlu0 0
      %3948 = vperm.xlu0 %3947, %v330
      %v3949 = vpop.permute.xlu0 %3948
      %3952 = vset.pattern.permute.xlu0 0
      %3953 = vperm.xlu0 %3952, %v331
      %v3954 = vpop.permute.xlu0 %3953
      %3957 = vset.pattern.permute.xlu0 0
      %3958 = vperm.xlu0 %3957, %v332
      %v3959 = vpop.permute.xlu0 %3958
      %3962 = vset.pattern.permute.xlu0 0
      %3963 = vperm.xlu0 %3962, %v333
      %v3964 = vpop.permute.xlu0 %3963
      %3967 = vset.pattern.permute.xlu0 0
      %3968 = vperm.xlu0 %3967, %v334
      %v3969 = vpop.permute.xlu0 %3968
      %3972 = vset.pattern.permute.xlu0 0
      %3973 = vperm.xlu0 %3972, %v335
      %v3974 = vpop.permute.xlu0 %3973
      %3977 = vset.pattern.permute.xlu0 0
      %3978 = vperm.xlu0 %3977, %v336
      %v3979 = vpop.permute.xlu0 %3978
      %3982 = vset.pattern.permute.xlu0 0
      %3983 = vperm.xlu0 %3982, %v337
      %v3984 = vpop.permute.xlu0 %3983
      %3987 = vset.pattern.permute.xlu0 0
      %3988 = vperm.xlu0 %3987, %v338
      %v3989 = vpop.permute.xlu0 %3988
      %3992 = vset.pattern.permute.xlu0 0
      %3993 = vperm.xlu0 %3992, %v339
      %v3994 = vpop.permute.xlu0 %3993
      %3997 = vset.pattern.permute.xlu0 0
      %3998 = vperm.xlu0 %3997, %v340
      %v3999 = vpop.permute.xlu0 %3998
      %4002 = vset.pattern.permute.xlu0 0
      %4003 = vperm.xlu0 %4002, %v341
      %v4004 = vpop.permute.xlu0 %4003
      %4007 = vset.pattern.permute.xlu0 0
      %4008 = vperm.xlu0 %4007, %v342
      %v4009 = vpop.permute.xlu0 %4008
      %4012 = vset.pattern.permute.xlu0 0
      %4013 = vperm.xlu0 %4012, %v343
      %v4014 = vpop.permute.xlu0 %4013
      %4017 = vset.pattern.permute.xlu0 0
      %4018 = vperm.xlu0 %4017, %v344
      %v4019 = vpop.permute.xlu0 %4018
      %4022 = vset.pattern.permute.xlu0 0
      %4023 = vperm.xlu0 %4022, %v345
      %v4024 = vpop.permute.xlu0 %4023
      %4027 = vset.pattern.permute.xlu0 0
      %4028 = vperm.xlu0 %4027, %v346
      %v4029 = vpop.permute.xlu0 %4028
      %4032 = vset.pattern.permute.xlu0 0
      %4033 = vperm.xlu0 %4032, %v347
      %v4034 = vpop.permute.xlu0 %4033
      %4037 = vset.pattern.permute.xlu0 0
      %4038 = vperm.xlu0 %4037, %v348
      %v4039 = vpop.permute.xlu0 %4038
      %4042 = vset.pattern.permute.xlu0 0
      %4043 = vperm.xlu0 %4042, %v349
      %v4044 = vpop.permute.xlu0 %4043
      %4047 = vset.pattern.permute.xlu0 0
      %4048 = vperm.xlu0 %4047, %v350
      %v4049 = vpop.permute.xlu0 %4048
      %4052 = vset.pattern.permute.xlu0 0
      %4053 = vperm.xlu0 %4052, %v351
      %v4054 = vpop.permute.xlu0 %4053
      %4057 = vset.pattern.permute.xlu0 0
      %4058 = vperm.xlu0 %4057, %v352
      %v4059 = vpop.permute.xlu0 %4058
      %4062 = vset.pattern.permute.xlu0 0
      %4063 = vperm.xlu0 %4062, %v353
      %v4064 = vpop.permute.xlu0 %4063
      %4067 = vset.pattern.permute.xlu0 0
      %4068 = vperm.xlu0 %4067, %v354
      %v4069 = vpop.permute.xlu0 %4068
      %4072 = vset.pattern.permute.xlu0 0
      %4073 = vperm.xlu0 %4072, %v355
      %v4074 = vpop.permute.xlu0 %4073
      %4077 = vset.pattern.permute.xlu0 0
      %4078 = vperm.xlu0 %4077, %v356
      %v4079 = vpop.permute.xlu0 %4078
      %4082 = vset.pattern.permute.xlu0 0
      %4083 = vperm.xlu0 %4082, %v357
      %v4084 = vpop.permute.xlu0 %4083
      %4087 = vset.pattern.permute.xlu0 0
      %4088 = vperm.xlu0 %4087, %v358
      %v4089 = vpop.permute.xlu0 %4088
      %4092 = vset.pattern.permute.xlu0 0
      %4093 = vperm.xlu0 %4092, %v359
      %v4094 = vpop.permute.xlu0 %4093
      %4097 = vset.pattern.permute.xlu0 0
      %4098 = vperm.xlu0 %4097, %v360
      %v4099 = vpop.permute.xlu0 %4098
      %4102 = vset.pattern.permute.xlu0 0
      %4103 = vperm.xlu0 %4102, %v361
      %v4104 = vpop.permute.xlu0 %4103
      %4107 = vset.pattern.permute.xlu0 0
      %4108 = vperm.xlu0 %4107, %v362
      %v4109 = vpop.permute.xlu0 %4108
      %4112 = vset.pattern.permute.xlu0 0
      %4113 = vperm.xlu0 %4112, %v363
      %v4114 = vpop.permute.xlu0 %4113
      %4117 = vset.pattern.permute.xlu0 0
      %4118 = vperm.xlu0 %4117, %v364
      %v4119 = vpop.permute.xlu0 %4118
      %4122 = vset.pattern.permute.xlu0 0
      %4123 = vperm.xlu0 %4122, %v365
      %v4124 = vpop.permute.xlu0 %4123
      %4127 = vset.pattern.permute.xlu0 0
      %4128 = vperm.xlu0 %4127, %v366
      %v4129 = vpop.permute.xlu0 %4128
      %4132 = vset.pattern.permute.xlu0 0
      %4133 = vperm.xlu0 %4132, %v367
      %v4134 = vpop.permute.xlu0 %4133
      %v4136 = vmul.f32 %v3890, %v3934
      %v4137 = vmul.f32 %v3891, %v3939
      %v4138 = vmul.f32 %v3892, %v3944
      %v4139 = vmul.f32 %v3893, %v3949
      %v4140 = vmul.f32 %v3894, %v3954
      %v4141 = vmul.f32 %v3895, %v3959
      %v4142 = vmul.f32 %v3896, %v3964
      %v4143 = vmul.f32 %v3897, %v3969
      %v4144 = vmul.f32 %v3898, %v3974
      %v4145 = vmul.f32 %v3899, %v3979
      %v4146 = vmul.f32 %v3900, %v3984
      %v4147 = vmul.f32 %v3901, %v3989
      %v4148 = vmul.f32 %v3902, %v3994
      %v4149 = vmul.f32 %v3903, %v3999
      %v4150 = vmul.f32 %v3904, %v4004
      %v4151 = vmul.f32 %v3905, %v4009
      %v4152 = vmul.f32 %v3906, %v4014
      %v4153 = vmul.f32 %v3907, %v4019
      %v4154 = vmul.f32 %v3908, %v4024
      %v4155 = vmul.f32 %v3909, %v4029
      %v4156 = vmul.f32 %v3910, %v4034
      %v4157 = vmul.f32 %v3911, %v4039
      %v4158 = vmul.f32 %v3912, %v4044
      %v4159 = vmul.f32 %v3913, %v4049
      %v4160 = vmul.f32 %v3914, %v4054
      %v4161 = vmul.f32 %v3915, %v4059
      %v4162 = vmul.f32 %v3916, %v4064
      %v4163 = vmul.f32 %v3917, %v4069
      %v4164 = vmul.f32 %v3918, %v4074
      %v4165 = vmul.f32 %v3919, %v4079
      %v4166 = vmul.f32 %v3920, %v4084
      %v4167 = vmul.f32 %v3921, %v4089
      %v4168 = vmul.f32 %v3922, %v4094
      %v4169 = vmul.f32 %v3923, %v4099
      %v4170 = vmul.f32 %v3924, %v4104
      %v4171 = vmul.f32 %v3925, %v4109
      %v4172 = vmul.f32 %v3926, %v4114
      %v4173 = vmul.f32 %v3927, %v4119
      %v4174 = vmul.f32 %v3928, %v4124
      %v4175 = vmul.f32 %v3929, %v4129
      %v4176 = vmul.f32 %v3930, %v4134
      %4177 = vst.msk [vmem:[#allocation2 + $0x18] sm:$0xff] %vm368, %v4136
      %4178 = vst.msk [vmem:[#allocation2 + $0x20] sm:$0xff] %vm368, %v4137
      %4179 = vst.msk [vmem:[#allocation2 + $0x28] sm:$0xff] %vm368, %v4138
      %4180 = vst.msk [vmem:[#allocation2 + $0x30] sm:$0xff] %vm368, %v4139
      %4181 = vst.msk [vmem:[#allocation2 + $0x38] sm:$0xff] %vm368, %v4140
      %4182 = vst.msk [vmem:[#allocation2 + $0x40] sm:$0xff] %vm368, %v4141
      %4183 = vst.msk [vmem:[#allocation2 + $0x48] sm:$0xff] %vm368, %v4142
      %4184 = vst.msk [vmem:[#allocation2 + $0x50] sm:$0xff] %vm368, %v4143
      %4185 = vst.msk [vmem:[#allocation2 + $0x58] sm:$0xff] %vm368, %v4144
      %4186 = vst.msk [vmem:[#allocation2 + $0x60] sm:$0xff] %vm368, %v4145
      %4187 = vst.msk [vmem:[#allocation2 + $0x68] sm:$0xff] %vm368, %v4146
      %4188 = vst.msk [vmem:[#allocation2 + $0x70] sm:$0xff] %vm368, %v4147
      %4189 = vst.msk [vmem:[#allocation2 + $0x78] sm:$0xff] %vm368, %v4148
      %4190 = vst.msk [vmem:[#allocation2 + $0x80] sm:$0xff] %vm368, %v4149
      %4191 = vst.msk [vmem:[#allocation2 + $0x88] sm:$0xff] %vm368, %v4150
      %4192 = vst.msk [vmem:[#allocation2 + $0x90] sm:$0xff] %vm368, %v4151
      %4193 = vst.msk [vmem:[#allocation2 + $0x98] sm:$0xff] %vm368, %v4152
      %4194 = vst.msk [vmem:[#allocation2 + $0xa0] sm:$0xff] %vm368, %v4153
      %4195 = vst.msk [vmem:[#allocation2 + $0xa8] sm:$0xff] %vm368, %v4154
      %4196 = vst.msk [vmem:[#allocation2 + $0xb0] sm:$0xff] %vm368, %v4155
      %4197 = vst.msk [vmem:[#allocation2 + $0xb8] sm:$0xff] %vm368, %v4156
      %4198 = vst.msk [vmem:[#allocation2 + $0xc0] sm:$0xff] %vm368, %v4157
      %4199 = vst.msk [vmem:[#allocation2 + $0xc8] sm:$0xff] %vm368, %v4158
      %4200 = vst.msk [vmem:[#allocation2 + $0xd0] sm:$0xff] %vm368, %v4159
      %4201 = vst.msk [vmem:[#allocation2 + $0xd8] sm:$0xff] %vm368, %v4160
      %4202 = vst.msk [vmem:[#allocation2 + $0xe0] sm:$0xff] %vm368, %v4161
      %4203 = vst.msk [vmem:[#allocation2 + $0xe8] sm:$0xff] %vm368, %v4162
      %4204 = vst.msk [vmem:[#allocation2 + $0xf0] sm:$0xff] %vm368, %v4163
      %4205 = vst.msk [vmem:[#allocation2 + $0xf8] sm:$0xff] %vm368, %v4164
      %4206 = vst.msk [vmem:[#allocation2 + $0x100] sm:$0xff] %vm368, %v4165
      %4207 = vst.msk [vmem:[#allocation2 + $0x108] sm:$0xff] %vm368, %v4166
      %4208 = vst.msk [vmem:[#allocation2 + $0x110] sm:$0xff] %vm368, %v4167
      %4209 = vst.msk [vmem:[#allocation2 + $0x118] sm:$0xff] %vm368, %v4168
      %4210 = vst.msk [vmem:[#allocation2 + $0x120] sm:$0xff] %vm368, %v4169
      %4211 = vst.msk [vmem:[#allocation2 + $0x128] sm:$0xff] %vm368, %v4170
      %4212 = vst.msk [vmem:[#allocation2 + $0x130] sm:$0xff] %vm368, %v4171
      %4213 = vst.msk [vmem:[#allocation2 + $0x138] sm:$0xff] %vm368, %v4172
      %4214 = vst.msk [vmem:[#allocation2 + $0x140] sm:$0xff] %vm368, %v4173
      %4215 = vst.msk [vmem:[#allocation2 + $0x148] sm:$0xff] %vm368, %v4174
      %4216 = vst.msk [vmem:[#allocation2 + $0x150] sm:$0xff] %vm368, %v4175
      %vm4217 = vcmask 519168
      %4218 = vst.msk [vmem:[#allocation2 + $0x158] sm:$0xf] %vm4217, %v4176
      %v4219 = vld [vmem:[#allocation2 + $0x5] sm:$0xff]
      %v4220 = vld [vmem:[#allocation2 + $0xd] sm:$0xff]
      %v4221 = vld [vmem:[#allocation2 + $0x15] sm:$0xff]
      %v4222 = vld [vmem:[#allocation2 + $0x1d] sm:$0xff]
      %v4223 = vld [vmem:[#allocation2 + $0x25] sm:$0xff]
      %v4224 = vld [vmem:[#allocation2 + $0x2d] sm:$0xff]
      %v4225 = vld [vmem:[#allocation2 + $0x35] sm:$0xff]
      %v4226 = vld [vmem:[#allocation2 + $0x3d] sm:$0xff]
      %v4227 = vld [vmem:[#allocation2 + $0x45] sm:$0xff]
      %v4228 = vld [vmem:[#allocation2 + $0x4d] sm:$0xff]
      %v4229 = vld [vmem:[#allocation2 + $0x55] sm:$0xff]
      %v4230 = vld [vmem:[#allocation2 + $0x5d] sm:$0xff]
      %v4231 = vld [vmem:[#allocation2 + $0x65] sm:$0xff]
      %v4232 = vld [vmem:[#allocation2 + $0x6d] sm:$0xff]
      %v4233 = vld [vmem:[#allocation2 + $0x75] sm:$0xff]
      %v4234 = vld [vmem:[#allocation2 + $0x7d] sm:$0xff]
      %v4235 = vld [vmem:[#allocation2 + $0x85] sm:$0xff]
      %v4236 = vld [vmem:[#allocation2 + $0x8d] sm:$0xff]
      %v4237 = vld [vmem:[#allocation2 + $0x95] sm:$0xff]
      %v4238 = vld [vmem:[#allocation2 + $0x9d] sm:$0xff]
      %v4239 = vld [vmem:[#allocation2 + $0xa5] sm:$0xff]
      %v4240 = vld [vmem:[#allocation2 + $0xad] sm:$0xff]
      %v4241 = vld [vmem:[#allocation2 + $0xb5] sm:$0xff]
      %v4242 = vld [vmem:[#allocation2 + $0xbd] sm:$0xff]
      %v4243 = vld [vmem:[#allocation2 + $0xc5] sm:$0xff]
      %v4244 = vld [vmem:[#allocation2 + $0xcd] sm:$0xff]
      %v4245 = vld [vmem:[#allocation2 + $0xd5] sm:$0xff]
      %v4246 = vld [vmem:[#allocation2 + $0xdd] sm:$0xff]
      %v4247 = vld [vmem:[#allocation2 + $0xe5] sm:$0xff]
      %v4248 = vld [vmem:[#allocation2 + $0xed] sm:$0xff]
      %v4249 = vld [vmem:[#allocation2 + $0xf5] sm:$0xff]
      %v4250 = vld [vmem:[#allocation2 + $0xfd] sm:$0xff]
      %v4251 = vld [vmem:[#allocation2 + $0x105] sm:$0xff]
      %v4252 = vld [vmem:[#allocation2 + $0x10d] sm:$0xff]
      %v4253 = vld [vmem:[#allocation2 + $0x115] sm:$0xff]
      %v4254 = vld [vmem:[#allocation2 + $0x11d] sm:$0xff]
      %v4255 = vld [vmem:[#allocation2 + $0x125] sm:$0xff]
      %v4256 = vld [vmem:[#allocation2 + $0x12d] sm:$0xff]
      %v4257 = vld [vmem:[#allocation2 + $0x135] sm:$0xff]
      %v4258 = vld [vmem:[#allocation2 + $0x13d] sm:$0xff]
      %v4259 = vld [vmem:[#allocation2 + $0x145] sm:$0xf]
      %v4260 = vpack.c.bf16 %v4220, %v4219
      %v4261 = vpack.c.bf16 %v4222, %v4221
      %v4262 = vpack.c.bf16 %v4224, %v4223
      %v4263 = vpack.c.bf16 %v4226, %v4225
      %v4264 = vpack.c.bf16 %v4228, %v4227
      %v4265 = vpack.c.bf16 %v4230, %v4229
      %v4266 = vpack.c.bf16 %v4232, %v4231
      %v4267 = vpack.c.bf16 %v4234, %v4233
      %v4268 = vpack.c.bf16 %v4236, %v4235
      %v4269 = vpack.c.bf16 %v4238, %v4237
      %v4270 = vpack.c.bf16 %v4240, %v4239
      %v4271 = vpack.c.bf16 %v4242, %v4241
      %v4272 = vpack.c.bf16 %v4244, %v4243
      %v4273 = vpack.c.bf16 %v4246, %v4245
      %v4274 = vpack.c.bf16 %v4248, %v4247
      %v4275 = vpack.c.bf16 %v4250, %v4249
      %v4276 = vpack.c.bf16 %v4252, %v4251
      %v4277 = vpack.c.bf16 %v4254, %v4253
      %v4278 = vpack.c.bf16 %v4256, %v4255
      %v4279 = vpack.c.bf16 %v4258, %v4257
      %v4280 = vpack.c.bf16 %v4259, %v4259
      %v4281 = vld [vmem:[%s4] sm:$0xf]
      %v4282 = vld [vmem:[%s4 + $0x4] sm:$0xf]
      %v4283 = vld [vmem:[%s4 + $0x8] sm:$0xf]
      %v4284 = vld [vmem:[%s4 + $0xc] sm:$0xf]
      %v4285 = vld [vmem:[%s4 + $0x10] sm:$0xf]
      %v4286 = vld [vmem:[%s4 + $0x14] sm:$0xf]
      %v4287 = vld [vmem:[%s4 + $0x18] sm:$0xf]
      %v4288 = vld [vmem:[%s4 + $0x1c] sm:$0xf]
      %v4289 = vld [vmem:[#allocation2 + $0x6] sm:$0xff]
      %v4290 = vld [vmem:[#allocation2 + $0xe] sm:$0xff]
      %v4291 = vld [vmem:[#allocation2 + $0x16] sm:$0xff]
      %v4292 = vld [vmem:[#allocation2 + $0x1e] sm:$0xff]
      %v4293 = vld [vmem:[#allocation2 + $0x26] sm:$0xff]
      %v4294 = vld [vmem:[#allocation2 + $0x2e] sm:$0xff]
      %v4295 = vld [vmem:[#allocation2 + $0x36] sm:$0xff]
      %v4296 = vld [vmem:[#allocation2 + $0x3e] sm:$0xff]
      %v4297 = vld [vmem:[#allocation2 + $0x46] sm:$0xff]
      %v4298 = vld [vmem:[#allocation2 + $0x4e] sm:$0xff]
      %v4299 = vld [vmem:[#allocation2 + $0x56] sm:$0xff]
      %v4300 = vld [vmem:[#allocation2 + $0x5e] sm:$0xff]
      %v4301 = vld [vmem:[#allocation2 + $0x66] sm:$0xff]
      %v4302 = vld [vmem:[#allocation2 + $0x6e] sm:$0xff]
      %v4303 = vld [vmem:[#allocation2 + $0x76] sm:$0xff]
      %v4304 = vld [vmem:[#allocation2 + $0x7e] sm:$0xff]
      %v4305 = vld [vmem:[#allocation2 + $0x86] sm:$0xff]
      %v4306 = vld [vmem:[#allocation2 + $0x8e] sm:$0xff]
      %v4307 = vld [vmem:[#allocation2 + $0x96] sm:$0xff]
      %v4308 = vld [vmem:[#allocation2 + $0x9e] sm:$0xff]
      %v4309 = vld [vmem:[#allocation2 + $0xa6] sm:$0xff]
      %v4310 = vld [vmem:[#allocation2 + $0xae] sm:$0xff]
      %v4311 = vld [vmem:[#allocation2 + $0xb6] sm:$0xff]
      %v4312 = vld [vmem:[#allocation2 + $0xbe] sm:$0xff]
      %v4313 = vld [vmem:[#allocation2 + $0xc6] sm:$0xff]
      %v4314 = vld [vmem:[#allocation2 + $0xce] sm:$0xff]
      %v4315 = vld [vmem:[#allocation2 + $0xd6] sm:$0xff]
      %v4316 = vld [vmem:[#allocation2 + $0xde] sm:$0xff]
      %v4317 = vld [vmem:[#allocation2 + $0xe6] sm:$0xff]
      %v4318 = vld [vmem:[#allocation2 + $0xee] sm:$0xff]
      %v4319 = vld [vmem:[#allocation2 + $0xf6] sm:$0xff]
      %v4320 = vld [vmem:[#allocation2 + $0xfe] sm:$0xff]
      %v4321 = vld [vmem:[#allocation2 + $0x106] sm:$0xff]
      %v4322 = vld [vmem:[#allocation2 + $0x10e] sm:$0xff]
      %v4323 = vld [vmem:[#allocation2 + $0x116] sm:$0xff]
      %v4324 = vld [vmem:[#allocation2 + $0x11e] sm:$0xff]
      %v4325 = vld [vmem:[#allocation2 + $0x126] sm:$0xff]
      %v4326 = vld [vmem:[#allocation2 + $0x12e] sm:$0xff]
      %v4327 = vld [vmem:[#allocation2 + $0x136] sm:$0xff]
      %v4328 = vld [vmem:[#allocation2 + $0x13e] sm:$0xff]
      %v4329 = vld [vmem:[#allocation2 + $0x146] sm:$0xf]
      %v4330 = vpack.c.bf16 %v4290, %v4289
      %v4331 = vpack.c.bf16 %v4292, %v4291
      %v4332 = vpack.c.bf16 %v4294, %v4293
      %v4333 = vpack.c.bf16 %v4296, %v4295
      %v4334 = vpack.c.bf16 %v4298, %v4297
      %v4335 = vpack.c.bf16 %v4300, %v4299
      %v4336 = vpack.c.bf16 %v4302, %v4301
      %v4337 = vpack.c.bf16 %v4304, %v4303
      %v4338 = vpack.c.bf16 %v4306, %v4305
      %v4339 = vpack.c.bf16 %v4308, %v4307
      %v4340 = vpack.c.bf16 %v4310, %v4309
      %v4341 = vpack.c.bf16 %v4312, %v4311
      %v4342 = vpack.c.bf16 %v4314, %v4313
      %v4343 = vpack.c.bf16 %v4316, %v4315
      %v4344 = vpack.c.bf16 %v4318, %v4317
      %v4345 = vpack.c.bf16 %v4320, %v4319
      %v4346 = vpack.c.bf16 %v4322, %v4321
      %v4347 = vpack.c.bf16 %v4324, %v4323
      %v4348 = vpack.c.bf16 %v4326, %v4325
      %v4349 = vpack.c.bf16 %v4328, %v4327
      %v4350 = vpack.c.bf16 %v4329, %v4329
      %s4351 = scalar_lea.vmem %s4, 32
      %v4352 = vld [vmem:[%s4351] sm:$0xf]
      %v4353 = vld [vmem:[%s4351 + $0x4] sm:$0xf]
      %v4354 = vld [vmem:[%s4351 + $0x8] sm:$0xf]
      %v4355 = vld [vmem:[%s4351 + $0xc] sm:$0xf]
      %v4356 = vld [vmem:[%s4351 + $0x10] sm:$0xf]
      %v4357 = vld [vmem:[%s4351 + $0x14] sm:$0xf]
      %v4358 = vld [vmem:[%s4351 + $0x18] sm:$0xf]
      %v4359 = vld [vmem:[%s4351 + $0x1c] sm:$0xf]
      %v4368 = vunpack.c.l.b16 %v4352
      %v4369 = vunpack.c.l.b16 %v4353
      %v4370 = vunpack.c.l.b16 %v4354
      %v4371 = vunpack.c.l.b16 %v4355
      %v4372 = vunpack.c.l.b16 %v4356
      %v4373 = vunpack.c.l.b16 %v4357
      %v4374 = vunpack.c.l.b16 %v4358
      %v4375 = vunpack.c.l.b16 %v4359
      %v4376 = vpack.c.b16 %v4369, %v4368
      %v4377 = vpack.c.b16 %v4371, %v4370
      %v4378 = vpack.c.b16 %v4373, %v4372
      %v4379 = vpack.c.b16 %v4375, %v4374
      %v4385 = vsel %vm368, %v4330, 0
      %v4388 = vsel %vm368, %v4331, 0
      %v4391 = vsel %vm368, %v4332, 0
      %v4394 = vsel %vm368, %v4333, 0
      %v4397 = vsel %vm368, %v4334, 0
      %v4400 = vsel %vm368, %v4335, 0
      %v4403 = vsel %vm368, %v4336, 0
      %v4406 = vsel %vm368, %v4337, 0
      %v4409 = vsel %vm368, %v4338, 0
      %v4412 = vsel %vm368, %v4339, 0
      %v4415 = vsel %vm368, %v4340, 0
      %v4418 = vsel %vm368, %v4341, 0
      %v4421 = vsel %vm368, %v4342, 0
      %v4424 = vsel %vm368, %v4343, 0
      %v4427 = vsel %vm368, %v4344, 0
      %v4430 = vsel %vm368, %v4345, 0
      %v4433 = vsel %vm368, %v4346, 0
      %v4436 = vsel %vm368, %v4347, 0
      %v4439 = vsel %vm368, %v4348, 0
      %v4442 = vsel %vm368, %v4349, 0
      %v4445 = vsel %vm368, %v4350, 0
      %4447 = vmatprep.subr.bf16.mxu0 0
      %4448 = vmatpush1.bf16.msra.mxu0 0
      %4449 = vmatprep.subr.bf16.mxu0 0
      %4450 = vmatpush1.bf16.msra.mxu0 0
      %4451 = vmatprep.subr.bf16.mxu0 0
      %4452 = vmatpush1.bf16.msra.mxu0 0
      %4453 = vmatprep.subr.bf16.mxu0 0
      %4454 = vmatpush1.bf16.msra.mxu0 0
      %4455 = vmatprep.subr.bf16.mxu0 0
      %4456 = vmatpush1.bf16.msra.mxu0 %v4379
      %4457 = vmatprep.subr.bf16.mxu0 0
      %4458 = vmatpush1.bf16.msra.mxu0 %v4378
      %4459 = vmatprep.subr.bf16.mxu0 0
      %4460 = vmatpush1.bf16.msra.mxu0 %v4377
      %4461 = vmatprep.subr.bf16.mxu0 0
      %4462 = vmatpush1.bf16.msra.mxu0 %v4376
      %4463 = vmatprep.subr.bf16.mxu0 0
      %4464 = vmatpush2.bf16.msra.mxu0 0
      %4465 = vmatprep.subr.bf16.mxu0 0
      %4466 = vmatpush2.bf16.msra.mxu0 0
      %4467 = vmatprep.subr.bf16.mxu0 0
      %4468 = vmatpush2.bf16.msra.mxu0 0
      %4469 = vmatprep.subr.bf16.mxu0 0
      %4470 = vmatpush2.bf16.msra.mxu0 0
      %4471 = vmatprep.subr.bf16.mxu0 0
      %4472 = vmatpush2.bf16.msra.mxu0 0
      %4473 = vmatprep.subr.bf16.mxu0 0
      %4474 = vmatpush2.bf16.msra.mxu0 0
      %4475 = vmatprep.subr.bf16.mxu0 0
      %4476 = vmatpush2.bf16.msra.mxu0 0
      %4477 = vmatprep.subr.bf16.mxu0 0
      %4478 = vmatpush2.bf16.msra.mxu0 0
      %4479 = vmatprep.mubr.bf16.mxu0 0
      %4480 = vmatmul.mubr.bf16.gmra.mxu0 %v4385
      %v4481 = vpop.f32.mrf.mxu0
      %v4482 = vadd.f32 0.0, %v4481
      %v4483 = vpop.f32.mrf.mxu0
      %v4484 = vpop.f32.mrf.mxu0
      %v4485 = vadd.f32 0.0, %v4484
      %v4486 = vpop.f32.mrf.mxu0
      %4487 = vmatprep.mubr.bf16.mxu0 0
      %4488 = vmatmul.mubr.bf16.gmra.mxu0 %v4388
      %v4489 = vpop.f32.mrf.mxu0
      %v4490 = vadd.f32 0.0, %v4489
      %v4491 = vpop.f32.mrf.mxu0
      %v4492 = vpop.f32.mrf.mxu0
      %v4493 = vadd.f32 0.0, %v4492
      %v4494 = vpop.f32.mrf.mxu0
      %4495 = vmatprep.mubr.bf16.mxu0 0
      %4496 = vmatmul.mubr.bf16.gmra.mxu0 %v4391
      %v4497 = vpop.f32.mrf.mxu0
      %v4498 = vadd.f32 0.0, %v4497
      %v4499 = vpop.f32.mrf.mxu0
      %v4500 = vpop.f32.mrf.mxu0
      %v4501 = vadd.f32 0.0, %v4500
      %v4502 = vpop.f32.mrf.mxu0
      %4503 = vmatprep.mubr.bf16.mxu0 0
      %4504 = vmatmul.mubr.bf16.gmra.mxu0 %v4394
      %v4505 = vpop.f32.mrf.mxu0
      %v4506 = vadd.f32 0.0, %v4505
      %v4507 = vpop.f32.mrf.mxu0
      %v4508 = vpop.f32.mrf.mxu0
      %v4509 = vadd.f32 0.0, %v4508
      %v4510 = vpop.f32.mrf.mxu0
      %4511 = vmatprep.mubr.bf16.mxu0 0
      %4512 = vmatmul.mubr.bf16.gmra.mxu0 %v4397
      %v4513 = vpop.f32.mrf.mxu0
      %v4514 = vadd.f32 0.0, %v4513
      %v4515 = vpop.f32.mrf.mxu0
      %v4516 = vpop.f32.mrf.mxu0
      %v4517 = vadd.f32 0.0, %v4516
      %v4518 = vpop.f32.mrf.mxu0
      %4519 = vmatprep.mubr.bf16.mxu0 0
      %4520 = vmatmul.mubr.bf16.gmra.mxu0 %v4400
      %v4521 = vpop.f32.mrf.mxu0
      %v4522 = vadd.f32 0.0, %v4521
      %v4523 = vpop.f32.mrf.mxu0
      %v4524 = vpop.f32.mrf.mxu0
      %v4525 = vadd.f32 0.0, %v4524
      %v4526 = vpop.f32.mrf.mxu0
      %4527 = vmatprep.mubr.bf16.mxu0 0
      %4528 = vmatmul.mubr.bf16.gmra.mxu0 %v4403
      %v4529 = vpop.f32.mrf.mxu0
      %v4530 = vadd.f32 0.0, %v4529
      %v4531 = vpop.f32.mrf.mxu0
      %v4532 = vpop.f32.mrf.mxu0
      %v4533 = vadd.f32 0.0, %v4532
      %v4534 = vpop.f32.mrf.mxu0
      %4535 = vmatprep.mubr.bf16.mxu0 0
      %4536 = vmatmul.mubr.bf16.gmra.mxu0 %v4406
      %v4537 = vpop.f32.mrf.mxu0
      %v4538 = vadd.f32 0.0, %v4537
      %v4539 = vpop.f32.mrf.mxu0
      %v4540 = vpop.f32.mrf.mxu0
      %v4541 = vadd.f32 0.0, %v4540
      %v4542 = vpop.f32.mrf.mxu0
      %4543 = vmatprep.mubr.bf16.mxu0 0
      %4544 = vmatmul.mubr.bf16.gmra.mxu0 %v4409
      %v4545 = vpop.f32.mrf.mxu0
      %v4546 = vadd.f32 0.0, %v4545
      %v4547 = vpop.f32.mrf.mxu0
      %v4548 = vpop.f32.mrf.mxu0
      %v4549 = vadd.f32 0.0, %v4548
      %v4550 = vpop.f32.mrf.mxu0
      %4551 = vmatprep.mubr.bf16.mxu0 0
      %4552 = vmatmul.mubr.bf16.gmra.mxu0 %v4412
      %v4553 = vpop.f32.mrf.mxu0
      %v4554 = vadd.f32 0.0, %v4553
      %v4555 = vpop.f32.mrf.mxu0
      %v4556 = vpop.f32.mrf.mxu0
      %v4557 = vadd.f32 0.0, %v4556
      %v4558 = vpop.f32.mrf.mxu0
      %4559 = vmatprep.mubr.bf16.mxu0 0
      %4560 = vmatmul.mubr.bf16.gmra.mxu0 %v4415
      %v4561 = vpop.f32.mrf.mxu0
      %v4562 = vadd.f32 0.0, %v4561
      %v4563 = vpop.f32.mrf.mxu0
      %v4564 = vpop.f32.mrf.mxu0
      %v4565 = vadd.f32 0.0, %v4564
      %v4566 = vpop.f32.mrf.mxu0
      %4567 = vmatprep.mubr.bf16.mxu0 0
      %4568 = vmatmul.mubr.bf16.gmra.mxu0 %v4418
      %v4569 = vpop.f32.mrf.mxu0
      %v4570 = vadd.f32 0.0, %v4569
      %v4571 = vpop.f32.mrf.mxu0
      %v4572 = vpop.f32.mrf.mxu0
      %v4573 = vadd.f32 0.0, %v4572
      %v4574 = vpop.f32.mrf.mxu0
      %4575 = vmatprep.mubr.bf16.mxu0 0
      %4576 = vmatmul.mubr.bf16.gmra.mxu0 %v4421
      %v4577 = vpop.f32.mrf.mxu0
      %v4578 = vadd.f32 0.0, %v4577
      %v4579 = vpop.f32.mrf.mxu0
      %v4580 = vpop.f32.mrf.mxu0
      %v4581 = vadd.f32 0.0, %v4580
      %v4582 = vpop.f32.mrf.mxu0
      %4583 = vmatprep.mubr.bf16.mxu0 0
      %4584 = vmatmul.mubr.bf16.gmra.mxu0 %v4424
      %v4585 = vpop.f32.mrf.mxu0
      %v4586 = vadd.f32 0.0, %v4585
      %v4587 = vpop.f32.mrf.mxu0
      %v4588 = vpop.f32.mrf.mxu0
      %v4589 = vadd.f32 0.0, %v4588
      %v4590 = vpop.f32.mrf.mxu0
      %4591 = vmatprep.mubr.bf16.mxu0 0
      %4592 = vmatmul.mubr.bf16.gmra.mxu0 %v4427
      %v4593 = vpop.f32.mrf.mxu0
      %v4594 = vadd.f32 0.0, %v4593
      %v4595 = vpop.f32.mrf.mxu0
      %v4596 = vpop.f32.mrf.mxu0
      %v4597 = vadd.f32 0.0, %v4596
      %v4598 = vpop.f32.mrf.mxu0
      %4599 = vmatprep.mubr.bf16.mxu0 0
      %4600 = vmatmul.mubr.bf16.gmra.mxu0 %v4430
      %v4601 = vpop.f32.mrf.mxu0
      %v4602 = vadd.f32 0.0, %v4601
      %v4603 = vpop.f32.mrf.mxu0
      %v4604 = vpop.f32.mrf.mxu0
      %v4605 = vadd.f32 0.0, %v4604
      %v4606 = vpop.f32.mrf.mxu0
      %4607 = vmatprep.mubr.bf16.mxu0 0
      %4608 = vmatmul.mubr.bf16.gmra.mxu0 %v4433
      %v4609 = vpop.f32.mrf.mxu0
      %v4610 = vadd.f32 0.0, %v4609
      %v4611 = vpop.f32.mrf.mxu0
      %v4612 = vpop.f32.mrf.mxu0
      %v4613 = vadd.f32 0.0, %v4612
      %v4614 = vpop.f32.mrf.mxu0
      %4615 = vmatprep.mubr.bf16.mxu0 0
      %4616 = vmatmul.mubr.bf16.gmra.mxu0 %v4436
      %v4617 = vpop.f32.mrf.mxu0
      %v4618 = vadd.f32 0.0, %v4617
      %v4619 = vpop.f32.mrf.mxu0
      %v4620 = vpop.f32.mrf.mxu0
      %v4621 = vadd.f32 0.0, %v4620
      %v4622 = vpop.f32.mrf.mxu0
      %4623 = vmatprep.mubr.bf16.mxu0 0
      %4624 = vmatmul.mubr.bf16.gmra.mxu0 %v4439
      %v4625 = vpop.f32.mrf.mxu0
      %v4626 = vadd.f32 0.0, %v4625
      %v4627 = vpop.f32.mrf.mxu0
      %v4628 = vpop.f32.mrf.mxu0
      %v4629 = vadd.f32 0.0, %v4628
      %v4630 = vpop.f32.mrf.mxu0
      %4631 = vmatprep.mubr.bf16.mxu0 0
      %4632 = vmatmul.mubr.bf16.gmra.mxu0 %v4442
      %v4633 = vpop.f32.mrf.mxu0
      %v4634 = vadd.f32 0.0, %v4633
      %v4635 = vpop.f32.mrf.mxu0
      %v4636 = vpop.f32.mrf.mxu0
      %v4637 = vadd.f32 0.0, %v4636
      %v4638 = vpop.f32.mrf.mxu0
      %4639 = vmatprep.mubr.bf16.mxu0 0
      %4640 = vmatmul.mubr.bf16.gmra.mxu0 %v4445
      %v4641 = vpop.f32.mrf.mxu0
      %v4642 = vadd.f32 0.0, %v4641
      %v4643 = vpop.f32.mrf.mxu0
      %v4644 = vpop.f32.mrf.mxu0
      %v4645 = vpop.f32.mrf.mxu0
      %4646 = vdwg.mxu0
      %v4655 = vunpack.c.l.b16 %v4281
      %v4656 = vunpack.c.l.b16 %v4282
      %v4657 = vunpack.c.l.b16 %v4283
      %v4658 = vunpack.c.l.b16 %v4284
      %v4659 = vunpack.c.l.b16 %v4285
      %v4660 = vunpack.c.l.b16 %v4286
      %v4661 = vunpack.c.l.b16 %v4287
      %v4662 = vunpack.c.l.b16 %v4288
      %v4663 = vpack.c.b16 %v4656, %v4655
      %v4664 = vpack.c.b16 %v4658, %v4657
      %v4665 = vpack.c.b16 %v4660, %v4659
      %v4666 = vpack.c.b16 %v4662, %v4661
      %v4672 = vsel %vm368, %v4260, 0
      %v4675 = vsel %vm368, %v4261, 0
      %v4678 = vsel %vm368, %v4262, 0
      %v4681 = vsel %vm368, %v4263, 0
      %v4684 = vsel %vm368, %v4264, 0
      %v4687 = vsel %vm368, %v4265, 0
      %v4690 = vsel %vm368, %v4266, 0
      %v4693 = vsel %vm368, %v4267, 0
      %v4696 = vsel %vm368, %v4268, 0
      %v4699 = vsel %vm368, %v4269, 0
      %v4702 = vsel %vm368, %v4270, 0
      %v4705 = vsel %vm368, %v4271, 0
      %v4708 = vsel %vm368, %v4272, 0
      %v4711 = vsel %vm368, %v4273, 0
      %v4714 = vsel %vm368, %v4274, 0
      %v4717 = vsel %vm368, %v4275, 0
      %v4720 = vsel %vm368, %v4276, 0
      %v4723 = vsel %vm368, %v4277, 0
      %v4726 = vsel %vm368, %v4278, 0
      %v4729 = vsel %vm368, %v4279, 0
      %v4732 = vsel %vm368, %v4280, 0
      %4734 = vmatprep.subr.bf16.mxu0 0
      %4735 = vmatpush1.bf16.msra.mxu0 0
      %4736 = vmatprep.subr.bf16.mxu0 0
      %4737 = vmatpush1.bf16.msra.mxu0 0
      %4738 = vmatprep.subr.bf16.mxu0 0
      %4739 = vmatpush1.bf16.msra.mxu0 0
      %4740 = vmatprep.subr.bf16.mxu0 0
      %4741 = vmatpush1.bf16.msra.mxu0 0
      %4742 = vmatprep.subr.bf16.mxu0 0
      %4743 = vmatpush1.bf16.msra.mxu0 %v4666
      %4744 = vmatprep.subr.bf16.mxu0 0
      %4745 = vmatpush1.bf16.msra.mxu0 %v4665
      %4746 = vmatprep.subr.bf16.mxu0 0
      %4747 = vmatpush1.bf16.msra.mxu0 %v4664
      %4748 = vmatprep.subr.bf16.mxu0 0
      %4749 = vmatpush1.bf16.msra.mxu0 %v4663
      %4750 = vmatprep.subr.bf16.mxu0 0
      %4751 = vmatpush2.bf16.msra.mxu0 0
      %4752 = vmatprep.subr.bf16.mxu0 0
      %4753 = vmatpush2.bf16.msra.mxu0 0
      %4754 = vmatprep.subr.bf16.mxu0 0
      %4755 = vmatpush2.bf16.msra.mxu0 0
      %4756 = vmatprep.subr.bf16.mxu0 0
      %4757 = vmatpush2.bf16.msra.mxu0 0
      %4758 = vmatprep.subr.bf16.mxu0 0
      %4759 = vmatpush2.bf16.msra.mxu0 0
      %4760 = vmatprep.subr.bf16.mxu0 0
      %4761 = vmatpush2.bf16.msra.mxu0 0
      %4762 = vmatprep.subr.bf16.mxu0 0
      %4763 = vmatpush2.bf16.msra.mxu0 0
      %4764 = vmatprep.subr.bf16.mxu0 0
      %4765 = vmatpush2.bf16.msra.mxu0 0
      %4766 = vmatprep.mubr.bf16.mxu0 0
      %4767 = vmatmul.mubr.bf16.gmra.mxu0 %v4672
      %v4768 = vpop.f32.mrf.mxu0
      %v4769 = vadd.f32 %v4482, %v4768
      %v4770 = vpop.f32.mrf.mxu0
      %v4771 = vpop.f32.mrf.mxu0
      %v4772 = vadd.f32 %v4485, %v4771
      %v4773 = vpop.f32.mrf.mxu0
      %4774 = vmatprep.mubr.bf16.mxu0 0
      %4775 = vmatmul.mubr.bf16.gmra.mxu0 %v4675
      %v4776 = vpop.f32.mrf.mxu0
      %v4777 = vadd.f32 %v4490, %v4776
      %v4778 = vpop.f32.mrf.mxu0
      %v4779 = vpop.f32.mrf.mxu0
      %v4780 = vadd.f32 %v4493, %v4779
      %v4781 = vpop.f32.mrf.mxu0
      %4782 = vmatprep.mubr.bf16.mxu0 0
      %4783 = vmatmul.mubr.bf16.gmra.mxu0 %v4678
      %v4784 = vpop.f32.mrf.mxu0
      %v4785 = vadd.f32 %v4498, %v4784
      %v4786 = vpop.f32.mrf.mxu0
      %v4787 = vpop.f32.mrf.mxu0
      %v4788 = vadd.f32 %v4501, %v4787
      %v4789 = vpop.f32.mrf.mxu0
      %4790 = vmatprep.mubr.bf16.mxu0 0
      %4791 = vmatmul.mubr.bf16.gmra.mxu0 %v4681
      %v4792 = vpop.f32.mrf.mxu0
      %v4793 = vadd.f32 %v4506, %v4792
      %v4794 = vpop.f32.mrf.mxu0
      %v4795 = vpop.f32.mrf.mxu0
      %v4796 = vadd.f32 %v4509, %v4795
      %v4797 = vpop.f32.mrf.mxu0
      %4798 = vmatprep.mubr.bf16.mxu0 0
      %4799 = vmatmul.mubr.bf16.gmra.mxu0 %v4684
      %v4800 = vpop.f32.mrf.mxu0
      %v4801 = vadd.f32 %v4514, %v4800
      %v4802 = vpop.f32.mrf.mxu0
      %v4803 = vpop.f32.mrf.mxu0
      %v4804 = vadd.f32 %v4517, %v4803
      %v4805 = vpop.f32.mrf.mxu0
      %4806 = vmatprep.mubr.bf16.mxu0 0
      %4807 = vmatmul.mubr.bf16.gmra.mxu0 %v4687
      %v4808 = vpop.f32.mrf.mxu0
      %v4809 = vadd.f32 %v4522, %v4808
      %v4810 = vpop.f32.mrf.mxu0
      %v4811 = vpop.f32.mrf.mxu0
      %v4812 = vadd.f32 %v4525, %v4811
      %v4813 = vpop.f32.mrf.mxu0
      %4814 = vmatprep.mubr.bf16.mxu0 0
      %4815 = vmatmul.mubr.bf16.gmra.mxu0 %v4690
      %v4816 = vpop.f32.mrf.mxu0
      %v4817 = vadd.f32 %v4530, %v4816
      %v4818 = vpop.f32.mrf.mxu0
      %v4819 = vpop.f32.mrf.mxu0
      %v4820 = vadd.f32 %v4533, %v4819
      %v4821 = vpop.f32.mrf.mxu0
      %4822 = vmatprep.mubr.bf16.mxu0 0
      %4823 = vmatmul.mubr.bf16.gmra.mxu0 %v4693
      %v4824 = vpop.f32.mrf.mxu0
      %v4825 = vadd.f32 %v4538, %v4824
      %v4826 = vpop.f32.mrf.mxu0
      %v4827 = vpop.f32.mrf.mxu0
      %v4828 = vadd.f32 %v4541, %v4827
      %v4829 = vpop.f32.mrf.mxu0
      %4830 = vmatprep.mubr.bf16.mxu0 0
      %4831 = vmatmul.mubr.bf16.gmra.mxu0 %v4696
      %v4832 = vpop.f32.mrf.mxu0
      %v4833 = vadd.f32 %v4546, %v4832
      %v4834 = vpop.f32.mrf.mxu0
      %v4835 = vpop.f32.mrf.mxu0
      %v4836 = vadd.f32 %v4549, %v4835
      %v4837 = vpop.f32.mrf.mxu0
      %4838 = vmatprep.mubr.bf16.mxu0 0
      %4839 = vmatmul.mubr.bf16.gmra.mxu0 %v4699
      %v4840 = vpop.f32.mrf.mxu0
      %v4841 = vadd.f32 %v4554, %v4840
      %v4842 = vpop.f32.mrf.mxu0
      %v4843 = vpop.f32.mrf.mxu0
      %v4844 = vadd.f32 %v4557, %v4843
      %v4845 = vpop.f32.mrf.mxu0
      %4846 = vmatprep.mubr.bf16.mxu0 0
      %4847 = vmatmul.mubr.bf16.gmra.mxu0 %v4702
      %v4848 = vpop.f32.mrf.mxu0
      %v4849 = vadd.f32 %v4562, %v4848
      %v4850 = vpop.f32.mrf.mxu0
      %v4851 = vpop.f32.mrf.mxu0
      %v4852 = vadd.f32 %v4565, %v4851
      %v4853 = vpop.f32.mrf.mxu0
      %4854 = vmatprep.mubr.bf16.mxu0 0
      %4855 = vmatmul.mubr.bf16.gmra.mxu0 %v4705
      %v4856 = vpop.f32.mrf.mxu0
      %v4857 = vadd.f32 %v4570, %v4856
      %v4858 = vpop.f32.mrf.mxu0
      %v4859 = vpop.f32.mrf.mxu0
      %v4860 = vadd.f32 %v4573, %v4859
      %v4861 = vpop.f32.mrf.mxu0
      %4862 = vmatprep.mubr.bf16.mxu0 0
      %4863 = vmatmul.mubr.bf16.gmra.mxu0 %v4708
      %v4864 = vpop.f32.mrf.mxu0
      %v4865 = vadd.f32 %v4578, %v4864
      %v4866 = vpop.f32.mrf.mxu0
      %v4867 = vpop.f32.mrf.mxu0
      %v4868 = vadd.f32 %v4581, %v4867
      %v4869 = vpop.f32.mrf.mxu0
      %4870 = vmatprep.mubr.bf16.mxu0 0
      %4871 = vmatmul.mubr.bf16.gmra.mxu0 %v4711
      %v4872 = vpop.f32.mrf.mxu0
      %v4873 = vadd.f32 %v4586, %v4872
      %v4874 = vpop.f32.mrf.mxu0
      %v4875 = vpop.f32.mrf.mxu0
      %v4876 = vadd.f32 %v4589, %v4875
      %v4877 = vpop.f32.mrf.mxu0
      %4878 = vmatprep.mubr.bf16.mxu0 0
      %4879 = vmatmul.mubr.bf16.gmra.mxu0 %v4714
      %v4880 = vpop.f32.mrf.mxu0
      %v4881 = vadd.f32 %v4594, %v4880
      %v4882 = vpop.f32.mrf.mxu0
      %v4883 = vpop.f32.mrf.mxu0
      %v4884 = vadd.f32 %v4597, %v4883
      %v4885 = vpop.f32.mrf.mxu0
      %4886 = vmatprep.mubr.bf16.mxu0 0
      %4887 = vmatmul.mubr.bf16.gmra.mxu0 %v4717
      %v4888 = vpop.f32.mrf.mxu0
      %v4889 = vadd.f32 %v4602, %v4888
      %v4890 = vpop.f32.mrf.mxu0
      %v4891 = vpop.f32.mrf.mxu0
      %v4892 = vadd.f32 %v4605, %v4891
      %v4893 = vpop.f32.mrf.mxu0
      %4894 = vmatprep.mubr.bf16.mxu0 0
      %4895 = vmatmul.mubr.bf16.gmra.mxu0 %v4720
      %v4896 = vpop.f32.mrf.mxu0
      %v4897 = vadd.f32 %v4610, %v4896
      %v4898 = vpop.f32.mrf.mxu0
      %v4899 = vpop.f32.mrf.mxu0
      %v4900 = vadd.f32 %v4613, %v4899
      %v4901 = vpop.f32.mrf.mxu0
      %4902 = vmatprep.mubr.bf16.mxu0 0
      %4903 = vmatmul.mubr.bf16.gmra.mxu0 %v4723
      %v4904 = vpop.f32.mrf.mxu0
      %v4905 = vadd.f32 %v4618, %v4904
      %v4906 = vpop.f32.mrf.mxu0
      %v4907 = vpop.f32.mrf.mxu0
      %v4908 = vadd.f32 %v4621, %v4907
      %v4909 = vpop.f32.mrf.mxu0
      %4910 = vmatprep.mubr.bf16.mxu0 0
      %4911 = vmatmul.mubr.bf16.gmra.mxu0 %v4726
      %v4912 = vpop.f32.mrf.mxu0
      %v4913 = vadd.f32 %v4626, %v4912
      %v4914 = vpop.f32.mrf.mxu0
      %v4915 = vpop.f32.mrf.mxu0
      %v4916 = vadd.f32 %v4629, %v4915
      %v4917 = vpop.f32.mrf.mxu0
      %4918 = vmatprep.mubr.bf16.mxu0 0
      %4919 = vmatmul.mubr.bf16.gmra.mxu0 %v4729
      %v4920 = vpop.f32.mrf.mxu0
      %v4921 = vadd.f32 %v4634, %v4920
      %v4922 = vpop.f32.mrf.mxu0
      %v4923 = vpop.f32.mrf.mxu0
      %v4924 = vadd.f32 %v4637, %v4923
      %v4925 = vpop.f32.mrf.mxu0
      %4926 = vmatprep.mubr.bf16.mxu0 0
      %4927 = vmatmul.mubr.bf16.gmra.mxu0 %v4732
      %v4928 = vpop.f32.mrf.mxu0
      %v4929 = vadd.f32 %v4642, %v4928
      %v4930 = vpop.f32.mrf.mxu0
      %v4931 = vpop.f32.mrf.mxu0
      %v4932 = vpop.f32.mrf.mxu0
      %4933 = vdwg.mxu0
      %v4934 = vld [vmem:[#allocation2 + $0x7] sm:$0xff]
      %v4935 = vld [vmem:[#allocation2 + $0xf] sm:$0xff]
      %v4936 = vld [vmem:[#allocation2 + $0x17] sm:$0xff]
      %v4937 = vld [vmem:[#allocation2 + $0x1f] sm:$0xff]
      %v4938 = vld [vmem:[#allocation2 + $0x27] sm:$0xff]
      %v4939 = vld [vmem:[#allocation2 + $0x2f] sm:$0xff]
      %v4940 = vld [vmem:[#allocation2 + $0x37] sm:$0xff]
      %v4941 = vld [vmem:[#allocation2 + $0x3f] sm:$0xff]
      %v4942 = vld [vmem:[#allocation2 + $0x47] sm:$0xff]
      %v4943 = vld [vmem:[#allocation2 + $0x4f] sm:$0xff]
      %v4944 = vld [vmem:[#allocation2 + $0x57] sm:$0xff]
      %v4945 = vld [vmem:[#allocation2 + $0x5f] sm:$0xff]
      %v4946 = vld [vmem:[#allocation2 + $0x67] sm:$0xff]
      %v4947 = vld [vmem:[#allocation2 + $0x6f] sm:$0xff]
      %v4948 = vld [vmem:[#allocation2 + $0x77] sm:$0xff]
      %v4949 = vld [vmem:[#allocation2 + $0x7f] sm:$0xff]
      %v4950 = vld [vmem:[#allocation2 + $0x87] sm:$0xff]
      %v4951 = vld [vmem:[#allocation2 + $0x8f] sm:$0xff]
      %v4952 = vld [vmem:[#allocation2 + $0x97] sm:$0xff]
      %v4953 = vld [vmem:[#allocation2 + $0x9f] sm:$0xff]
      %v4954 = vld [vmem:[#allocation2 + $0xa7] sm:$0xff]
      %v4955 = vld [vmem:[#allocation2 + $0xaf] sm:$0xff]
      %v4956 = vld [vmem:[#allocation2 + $0xb7] sm:$0xff]
      %v4957 = vld [vmem:[#allocation2 + $0xbf] sm:$0xff]
      %v4958 = vld [vmem:[#allocation2 + $0xc7] sm:$0xff]
      %v4959 = vld [vmem:[#allocation2 + $0xcf] sm:$0xff]
      %v4960 = vld [vmem:[#allocation2 + $0xd7] sm:$0xff]
      %v4961 = vld [vmem:[#allocation2 + $0xdf] sm:$0xff]
      %v4962 = vld [vmem:[#allocation2 + $0xe7] sm:$0xff]
      %v4963 = vld [vmem:[#allocation2 + $0xef] sm:$0xff]
      %v4964 = vld [vmem:[#allocation2 + $0xf7] sm:$0xff]
      %v4965 = vld [vmem:[#allocation2 + $0xff] sm:$0xff]
      %v4966 = vld [vmem:[#allocation2 + $0x107] sm:$0xff]
      %v4967 = vld [vmem:[#allocation2 + $0x10f] sm:$0xff]
      %v4968 = vld [vmem:[#allocation2 + $0x117] sm:$0xff]
      %v4969 = vld [vmem:[#allocation2 + $0x11f] sm:$0xff]
      %v4970 = vld [vmem:[#allocation2 + $0x127] sm:$0xff]
      %v4971 = vld [vmem:[#allocation2 + $0x12f] sm:$0xff]
      %v4972 = vld [vmem:[#allocation2 + $0x137] sm:$0xff]
      %v4973 = vld [vmem:[#allocation2 + $0x13f] sm:$0xff]
      %v4974 = vld [vmem:[#allocation2 + $0x147] sm:$0xf]
      %v4975 = vpack.c.bf16 %v4935, %v4934
      %v4976 = vpack.c.bf16 %v4937, %v4936
      %v4977 = vpack.c.bf16 %v4939, %v4938
      %v4978 = vpack.c.bf16 %v4941, %v4940
      %v4979 = vpack.c.bf16 %v4943, %v4942
      %v4980 = vpack.c.bf16 %v4945, %v4944
      %v4981 = vpack.c.bf16 %v4947, %v4946
      %v4982 = vpack.c.bf16 %v4949, %v4948
      %v4983 = vpack.c.bf16 %v4951, %v4950
      %v4984 = vpack.c.bf16 %v4953, %v4952
      %v4985 = vpack.c.bf16 %v4955, %v4954
      %v4986 = vpack.c.bf16 %v4957, %v4956
      %v4987 = vpack.c.bf16 %v4959, %v4958
      %v4988 = vpack.c.bf16 %v4961, %v4960
      %v4989 = vpack.c.bf16 %v4963, %v4962
      %v4990 = vpack.c.bf16 %v4965, %v4964
      %v4991 = vpack.c.bf16 %v4967, %v4966
      %v4992 = vpack.c.bf16 %v4969, %v4968
      %v4993 = vpack.c.bf16 %v4971, %v4970
      %v4994 = vpack.c.bf16 %v4973, %v4972
      %v4995 = vpack.c.bf16 %v4974, %v4974
      %s4996 = scalar_lea.vmem %s4, 64
      %v4997 = vld [vmem:[%s4996] sm:$0xf]
      %v4998 = vld [vmem:[%s4996 + $0x4] sm:$0xf]
      %v4999 = vld [vmem:[%s4996 + $0x8] sm:$0xf]
      %v5000 = vld [vmem:[%s4996 + $0xc] sm:$0xf]
      %v5001 = vld [vmem:[%s4996 + $0x10] sm:$0xf]
      %v5002 = vld [vmem:[%s4996 + $0x14] sm:$0xf]
      %v5003 = vld [vmem:[%s4996 + $0x18] sm:$0xf]
      %v5004 = vld [vmem:[%s4996 + $0x1c] sm:$0xf]
      %v5013 = vunpack.c.l.b16 %v4997
      %v5014 = vunpack.c.l.b16 %v4998
      %v5015 = vunpack.c.l.b16 %v4999
      %v5016 = vunpack.c.l.b16 %v5000
      %v5017 = vunpack.c.l.b16 %v5001
      %v5018 = vunpack.c.l.b16 %v5002
      %v5019 = vunpack.c.l.b16 %v5003
      %v5020 = vunpack.c.l.b16 %v5004
      %v5021 = vpack.c.b16 %v5014, %v5013
      %v5022 = vpack.c.b16 %v5016, %v5015
      %v5023 = vpack.c.b16 %v5018, %v5017
      %v5024 = vpack.c.b16 %v5020, %v5019
      %v5030 = vsel %vm368, %v4975, 0
      %v5033 = vsel %vm368, %v4976, 0
      %v5036 = vsel %vm368, %v4977, 0
      %v5039 = vsel %vm368, %v4978, 0
      %v5042 = vsel %vm368, %v4979, 0
      %v5045 = vsel %vm368, %v4980, 0
      %v5048 = vsel %vm368, %v4981, 0
      %v5051 = vsel %vm368, %v4982, 0
      %v5054 = vsel %vm368, %v4983, 0
      %v5057 = vsel %vm368, %v4984, 0
      %v5060 = vsel %vm368, %v4985, 0
      %v5063 = vsel %vm368, %v4986, 0
      %v5066 = vsel %vm368, %v4987, 0
      %v5069 = vsel %vm368, %v4988, 0
      %v5072 = vsel %vm368, %v4989, 0
      %v5075 = vsel %vm368, %v4990, 0
      %v5078 = vsel %vm368, %v4991, 0
      %v5081 = vsel %vm368, %v4992, 0
      %v5084 = vsel %vm368, %v4993, 0
      %v5087 = vsel %vm368, %v4994, 0
      %v5090 = vsel %vm368, %v4995, 0
      %5092 = vmatprep.subr.bf16.mxu0 0
      %5093 = vmatpush1.bf16.msra.mxu0 0
      %5094 = vmatprep.subr.bf16.mxu0 0
      %5095 = vmatpush1.bf16.msra.mxu0 0
      %5096 = vmatprep.subr.bf16.mxu0 0
      %5097 = vmatpush1.bf16.msra.mxu0 0
      %5098 = vmatprep.subr.bf16.mxu0 0
      %5099 = vmatpush1.bf16.msra.mxu0 0
      %5100 = vmatprep.subr.bf16.mxu0 0
      %5101 = vmatpush1.bf16.msra.mxu0 %v5024
      %5102 = vmatprep.subr.bf16.mxu0 0
      %5103 = vmatpush1.bf16.msra.mxu0 %v5023
      %5104 = vmatprep.subr.bf16.mxu0 0
      %5105 = vmatpush1.bf16.msra.mxu0 %v5022
      %5106 = vmatprep.subr.bf16.mxu0 0
      %5107 = vmatpush1.bf16.msra.mxu0 %v5021
      %5108 = vmatprep.subr.bf16.mxu0 0
      %5109 = vmatpush2.bf16.msra.mxu0 0
      %5110 = vmatprep.subr.bf16.mxu0 0
      %5111 = vmatpush2.bf16.msra.mxu0 0
      %5112 = vmatprep.subr.bf16.mxu0 0
      %5113 = vmatpush2.bf16.msra.mxu0 0
      %5114 = vmatprep.subr.bf16.mxu0 0
      %5115 = vmatpush2.bf16.msra.mxu0 0
      %5116 = vmatprep.subr.bf16.mxu0 0
      %5117 = vmatpush2.bf16.msra.mxu0 0
      %5118 = vmatprep.subr.bf16.mxu0 0
      %5119 = vmatpush2.bf16.msra.mxu0 0
      %5120 = vmatprep.subr.bf16.mxu0 0
      %5121 = vmatpush2.bf16.msra.mxu0 0
      %5122 = vmatprep.subr.bf16.mxu0 0
      %5123 = vmatpush2.bf16.msra.mxu0 0
      %5124 = vmatprep.mubr.bf16.mxu0 0
      %5125 = vmatmul.mubr.bf16.gmra.mxu0 %v5030
      %v5126 = vpop.f32.mrf.mxu0
      %v5127 = vadd.f32 0.0, %v5126
      %v5128 = vpop.f32.mrf.mxu0
      %v5129 = vpop.f32.mrf.mxu0
      %v5130 = vadd.f32 0.0, %v5129
      %v5131 = vpop.f32.mrf.mxu0
      %5132 = vmatprep.mubr.bf16.mxu0 0
      %5133 = vmatmul.mubr.bf16.gmra.mxu0 %v5033
      %v5134 = vpop.f32.mrf.mxu0
      %v5135 = vadd.f32 0.0, %v5134
      %v5136 = vpop.f32.mrf.mxu0
      %v5137 = vpop.f32.mrf.mxu0
      %v5138 = vadd.f32 0.0, %v5137
      %v5139 = vpop.f32.mrf.mxu0
      %5140 = vmatprep.mubr.bf16.mxu0 0
      %5141 = vmatmul.mubr.bf16.gmra.mxu0 %v5036
      %v5142 = vpop.f32.mrf.mxu0
      %v5143 = vadd.f32 0.0, %v5142
      %v5144 = vpop.f32.mrf.mxu0
      %v5145 = vpop.f32.mrf.mxu0
      %v5146 = vadd.f32 0.0, %v5145
      %v5147 = vpop.f32.mrf.mxu0
      %5148 = vmatprep.mubr.bf16.mxu0 0
      %5149 = vmatmul.mubr.bf16.gmra.mxu0 %v5039
      %v5150 = vpop.f32.mrf.mxu0
      %v5151 = vadd.f32 0.0, %v5150
      %v5152 = vpop.f32.mrf.mxu0
      %v5153 = vpop.f32.mrf.mxu0
      %v5154 = vadd.f32 0.0, %v5153
      %v5155 = vpop.f32.mrf.mxu0
      %5156 = vmatprep.mubr.bf16.mxu0 0
      %5157 = vmatmul.mubr.bf16.gmra.mxu0 %v5042
      %v5158 = vpop.f32.mrf.mxu0
      %v5159 = vadd.f32 0.0, %v5158
      %v5160 = vpop.f32.mrf.mxu0
      %v5161 = vpop.f32.mrf.mxu0
      %v5162 = vadd.f32 0.0, %v5161
      %v5163 = vpop.f32.mrf.mxu0
      %5164 = vmatprep.mubr.bf16.mxu0 0
      %5165 = vmatmul.mubr.bf16.gmra.mxu0 %v5045
      %v5166 = vpop.f32.mrf.mxu0
      %v5167 = vadd.f32 0.0, %v5166
      %v5168 = vpop.f32.mrf.mxu0
      %v5169 = vpop.f32.mrf.mxu0
      %v5170 = vadd.f32 0.0, %v5169
      %v5171 = vpop.f32.mrf.mxu0
      %5172 = vmatprep.mubr.bf16.mxu0 0
      %5173 = vmatmul.mubr.bf16.gmra.mxu0 %v5048
      %v5174 = vpop.f32.mrf.mxu0
      %v5175 = vadd.f32 0.0, %v5174
      %v5176 = vpop.f32.mrf.mxu0
      %v5177 = vpop.f32.mrf.mxu0
      %v5178 = vadd.f32 0.0, %v5177
      %v5179 = vpop.f32.mrf.mxu0
      %5180 = vmatprep.mubr.bf16.mxu0 0
      %5181 = vmatmul.mubr.bf16.gmra.mxu0 %v5051
      %v5182 = vpop.f32.mrf.mxu0
      %v5183 = vadd.f32 0.0, %v5182
      %v5184 = vpop.f32.mrf.mxu0
      %v5185 = vpop.f32.mrf.mxu0
      %v5186 = vadd.f32 0.0, %v5185
      %v5187 = vpop.f32.mrf.mxu0
      %5188 = vmatprep.mubr.bf16.mxu0 0
      %5189 = vmatmul.mubr.bf16.gmra.mxu0 %v5054
      %v5190 = vpop.f32.mrf.mxu0
      %v5191 = vadd.f32 0.0, %v5190
      %v5192 = vpop.f32.mrf.mxu0
      %v5193 = vpop.f32.mrf.mxu0
      %v5194 = vadd.f32 0.0, %v5193
      %v5195 = vpop.f32.mrf.mxu0
      %5196 = vmatprep.mubr.bf16.mxu0 0
      %5197 = vmatmul.mubr.bf16.gmra.mxu0 %v5057
      %v5198 = vpop.f32.mrf.mxu0
      %v5199 = vadd.f32 0.0, %v5198
      %v5200 = vpop.f32.mrf.mxu0
      %v5201 = vpop.f32.mrf.mxu0
      %v5202 = vadd.f32 0.0, %v5201
      %v5203 = vpop.f32.mrf.mxu0
      %5204 = vmatprep.mubr.bf16.mxu0 0
      %5205 = vmatmul.mubr.bf16.gmra.mxu0 %v5060
      %v5206 = vpop.f32.mrf.mxu0
      %v5207 = vadd.f32 0.0, %v5206
      %v5208 = vpop.f32.mrf.mxu0
      %v5209 = vpop.f32.mrf.mxu0
      %v5210 = vadd.f32 0.0, %v5209
      %v5211 = vpop.f32.mrf.mxu0
      %5212 = vmatprep.mubr.bf16.mxu0 0
      %5213 = vmatmul.mubr.bf16.gmra.mxu0 %v5063
      %v5214 = vpop.f32.mrf.mxu0
      %v5215 = vadd.f32 0.0, %v5214
      %v5216 = vpop.f32.mrf.mxu0
      %v5217 = vpop.f32.mrf.mxu0
      %v5218 = vadd.f32 0.0, %v5217
      %v5219 = vpop.f32.mrf.mxu0
      %5220 = vmatprep.mubr.bf16.mxu0 0
      %5221 = vmatmul.mubr.bf16.gmra.mxu0 %v5066
      %v5222 = vpop.f32.mrf.mxu0
      %v5223 = vadd.f32 0.0, %v5222
      %v5224 = vpop.f32.mrf.mxu0
      %v5225 = vpop.f32.mrf.mxu0
      %v5226 = vadd.f32 0.0, %v5225
      %v5227 = vpop.f32.mrf.mxu0
      %5228 = vmatprep.mubr.bf16.mxu0 0
      %5229 = vmatmul.mubr.bf16.gmra.mxu0 %v5069
      %v5230 = vpop.f32.mrf.mxu0
      %v5231 = vadd.f32 0.0, %v5230
      %v5232 = vpop.f32.mrf.mxu0
      %v5233 = vpop.f32.mrf.mxu0
      %v5234 = vadd.f32 0.0, %v5233
      %v5235 = vpop.f32.mrf.mxu0
      %5236 = vmatprep.mubr.bf16.mxu0 0
      %5237 = vmatmul.mubr.bf16.gmra.mxu0 %v5072
      %v5238 = vpop.f32.mrf.mxu0
      %v5239 = vadd.f32 0.0, %v5238
      %v5240 = vpop.f32.mrf.mxu0
      %v5241 = vpop.f32.mrf.mxu0
      %v5242 = vadd.f32 0.0, %v5241
      %v5243 = vpop.f32.mrf.mxu0
      %5244 = vmatprep.mubr.bf16.mxu0 0
      %5245 = vmatmul.mubr.bf16.gmra.mxu0 %v5075
      %v5246 = vpop.f32.mrf.mxu0
      %v5247 = vadd.f32 0.0, %v5246
      %v5248 = vpop.f32.mrf.mxu0
      %v5249 = vpop.f32.mrf.mxu0
      %v5250 = vadd.f32 0.0, %v5249
      %v5251 = vpop.f32.mrf.mxu0
      %5252 = vmatprep.mubr.bf16.mxu0 0
      %5253 = vmatmul.mubr.bf16.gmra.mxu0 %v5078
      %v5254 = vpop.f32.mrf.mxu0
      %v5255 = vadd.f32 0.0, %v5254
      %v5256 = vpop.f32.mrf.mxu0
      %v5257 = vpop.f32.mrf.mxu0
      %v5258 = vadd.f32 0.0, %v5257
      %v5259 = vpop.f32.mrf.mxu0
      %5260 = vmatprep.mubr.bf16.mxu0 0
      %5261 = vmatmul.mubr.bf16.gmra.mxu0 %v5081
      %v5262 = vpop.f32.mrf.mxu0
      %v5263 = vadd.f32 0.0, %v5262
      %v5264 = vpop.f32.mrf.mxu0
      %v5265 = vpop.f32.mrf.mxu0
      %v5266 = vadd.f32 0.0, %v5265
      %v5267 = vpop.f32.mrf.mxu0
      %5268 = vmatprep.mubr.bf16.mxu0 0
      %5269 = vmatmul.mubr.bf16.gmra.mxu0 %v5084
      %v5270 = vpop.f32.mrf.mxu0
      %v5271 = vadd.f32 0.0, %v5270
      %v5272 = vpop.f32.mrf.mxu0
      %v5273 = vpop.f32.mrf.mxu0
      %v5274 = vadd.f32 0.0, %v5273
      %v5275 = vpop.f32.mrf.mxu0
      %5276 = vmatprep.mubr.bf16.mxu0 0
      %5277 = vmatmul.mubr.bf16.gmra.mxu0 %v5087
      %v5278 = vpop.f32.mrf.mxu0
      %v5279 = vadd.f32 0.0, %v5278
      %v5280 = vpop.f32.mrf.mxu0
      %v5281 = vpop.f32.mrf.mxu0
      %v5282 = vadd.f32 0.0, %v5281
      %v5283 = vpop.f32.mrf.mxu0
      %5284 = vmatprep.mubr.bf16.mxu0 0
      %5285 = vmatmul.mubr.bf16.gmra.mxu0 %v5090
      %v5286 = vpop.f32.mrf.mxu0
      %v5287 = vadd.f32 0.0, %v5286
      %v5288 = vpop.f32.mrf.mxu0
      %v5289 = vpop.f32.mrf.mxu0
      %v5290 = vpop.f32.mrf.mxu0
      %5291 = vdwg.mxu0
      %v5292 = vadd.f32 %v4769, %v5127
      %v5293 = vadd.f32 %v4772, %v5130
      %v5294 = vadd.f32 %v4777, %v5135
      %v5295 = vadd.f32 %v4780, %v5138
      %v5296 = vadd.f32 %v4785, %v5143
      %v5297 = vadd.f32 %v4788, %v5146
      %v5298 = vadd.f32 %v4793, %v5151
      %v5299 = vadd.f32 %v4796, %v5154
      %v5300 = vadd.f32 %v4801, %v5159
      %v5301 = vadd.f32 %v4804, %v5162
      %v5302 = vadd.f32 %v4809, %v5167
      %v5303 = vadd.f32 %v4812, %v5170
      %v5304 = vadd.f32 %v4817, %v5175
      %v5305 = vadd.f32 %v4820, %v5178
      %v5306 = vadd.f32 %v4825, %v5183
      %v5307 = vadd.f32 %v4828, %v5186
      %v5308 = vadd.f32 %v4833, %v5191
      %v5309 = vadd.f32 %v4836, %v5194
      %v5310 = vadd.f32 %v4841, %v5199
      %v5311 = vadd.f32 %v4844, %v5202
      %v5312 = vadd.f32 %v4849, %v5207
      %v5313 = vadd.f32 %v4852, %v5210
      %v5314 = vadd.f32 %v4857, %v5215
      %v5315 = vadd.f32 %v4860, %v5218
      %v5316 = vadd.f32 %v4865, %v5223
      %v5317 = vadd.f32 %v4868, %v5226
      %v5318 = vadd.f32 %v4873, %v5231
      %v5319 = vadd.f32 %v4876, %v5234
      %v5320 = vadd.f32 %v4881, %v5239
      %v5321 = vadd.f32 %v4884, %v5242
      %v5322 = vadd.f32 %v4889, %v5247
      %v5323 = vadd.f32 %v4892, %v5250
      %v5324 = vadd.f32 %v4897, %v5255
      %v5325 = vadd.f32 %v4900, %v5258
      %v5326 = vadd.f32 %v4905, %v5263
      %v5327 = vadd.f32 %v4908, %v5266
      %v5328 = vadd.f32 %v4913, %v5271
      %v5329 = vadd.f32 %v4916, %v5274
      %v5330 = vadd.f32 %v4921, %v5279
      %v5331 = vadd.f32 %v4924, %v5282
      %v5332 = vadd.f32 %v4929, %v5287
      %v5333 = vld [vmem:[#allocation2 + $0x17] sm:$0xff]
      %v5334 = vld [vmem:[#allocation2 + $0x1f] sm:$0xff]
      %v5335 = vld [vmem:[#allocation2 + $0x27] sm:$0xff]
      %v5336 = vld [vmem:[#allocation2 + $0x2f] sm:$0xff]
      %v5337 = vld [vmem:[#allocation2 + $0x37] sm:$0xff]
      %v5338 = vld [vmem:[#allocation2 + $0x3f] sm:$0xff]
      %v5339 = vld [vmem:[#allocation2 + $0x47] sm:$0xff]
      %v5340 = vld [vmem:[#allocation2 + $0x4f] sm:$0xff]
      %v5341 = vld [vmem:[#allocation2 + $0x57] sm:$0xff]
      %v5342 = vld [vmem:[#allocation2 + $0x5f] sm:$0xff]
      %v5343 = vld [vmem:[#allocation2 + $0x67] sm:$0xff]
      %v5344 = vld [vmem:[#allocation2 + $0x6f] sm:$0xff]
      %v5345 = vld [vmem:[#allocation2 + $0x77] sm:$0xff]
      %v5346 = vld [vmem:[#allocation2 + $0x7f] sm:$0xff]
      %v5347 = vld [vmem:[#allocation2 + $0x87] sm:$0xff]
      %v5348 = vld [vmem:[#allocation2 + $0x8f] sm:$0xff]
      %v5349 = vld [vmem:[#allocation2 + $0x97] sm:$0xff]
      %v5350 = vld [vmem:[#allocation2 + $0x9f] sm:$0xff]
      %v5351 = vld [vmem:[#allocation2 + $0xa7] sm:$0xff]
      %v5352 = vld [vmem:[#allocation2 + $0xaf] sm:$0xff]
      %v5353 = vld [vmem:[#allocation2 + $0xb7] sm:$0xff]
      %v5354 = vld [vmem:[#allocation2 + $0xbf] sm:$0xff]
      %v5355 = vld [vmem:[#allocation2 + $0xc7] sm:$0xff]
      %v5356 = vld [vmem:[#allocation2 + $0xcf] sm:$0xff]
      %v5357 = vld [vmem:[#allocation2 + $0xd7] sm:$0xff]
      %v5358 = vld [vmem:[#allocation2 + $0xdf] sm:$0xff]
      %v5359 = vld [vmem:[#allocation2 + $0xe7] sm:$0xff]
      %v5360 = vld [vmem:[#allocation2 + $0xef] sm:$0xff]
      %v5361 = vld [vmem:[#allocation2 + $0xf7] sm:$0xff]
      %v5362 = vld [vmem:[#allocation2 + $0xff] sm:$0xff]
      %v5363 = vld [vmem:[#allocation2 + $0x107] sm:$0xff]
      %v5364 = vld [vmem:[#allocation2 + $0x10f] sm:$0xff]
      %v5365 = vld [vmem:[#allocation2 + $0x117] sm:$0xff]
      %v5366 = vld [vmem:[#allocation2 + $0x11f] sm:$0xff]
      %v5367 = vld [vmem:[#allocation2 + $0x127] sm:$0xff]
      %v5368 = vld [vmem:[#allocation2 + $0x12f] sm:$0xff]
      %v5369 = vld [vmem:[#allocation2 + $0x137] sm:$0xff]
      %v5370 = vld [vmem:[#allocation2 + $0x13f] sm:$0xff]
      %v5371 = vld [vmem:[#allocation2 + $0x147] sm:$0xff]
      %v5372 = vld [vmem:[#allocation2 + $0x14f] sm:$0xff]
      %v5373 = vld [vmem:[#allocation2 + $0x157] sm:$0xf]
      %v5374 = vpack.c.bf16 %v5334, %v5333
      %v5375 = vpack.c.bf16 %v5336, %v5335
      %v5376 = vpack.c.bf16 %v5338, %v5337
      %v5377 = vpack.c.bf16 %v5340, %v5339
      %v5378 = vpack.c.bf16 %v5342, %v5341
      %v5379 = vpack.c.bf16 %v5344, %v5343
      %v5380 = vpack.c.bf16 %v5346, %v5345
      %v5381 = vpack.c.bf16 %v5348, %v5347
      %v5382 = vpack.c.bf16 %v5350, %v5349
      %v5383 = vpack.c.bf16 %v5352, %v5351
      %v5384 = vpack.c.bf16 %v5354, %v5353
      %v5385 = vpack.c.bf16 %v5356, %v5355
      %v5386 = vpack.c.bf16 %v5358, %v5357
      %v5387 = vpack.c.bf16 %v5360, %v5359
      %v5388 = vpack.c.bf16 %v5362, %v5361
      %v5389 = vpack.c.bf16 %v5364, %v5363
      %v5390 = vpack.c.bf16 %v5366, %v5365
      %v5391 = vpack.c.bf16 %v5368, %v5367
      %v5392 = vpack.c.bf16 %v5370, %v5369
      %v5393 = vpack.c.bf16 %v5372, %v5371
      %v5394 = vpack.c.bf16 %v5373, %v5373
      %s5395 = scalar_lea.vmem %s4, 96
      %v5396 = vld [vmem:[%s5395] sm:$0xf]
      %v5397 = vld [vmem:[%s5395 + $0x4] sm:$0xf]
      %v5398 = vld [vmem:[%s5395 + $0x8] sm:$0xf]
      %v5399 = vld [vmem:[%s5395 + $0xc] sm:$0xf]
      %v5400 = vld [vmem:[%s5395 + $0x10] sm:$0xf]
      %v5401 = vld [vmem:[%s5395 + $0x14] sm:$0xf]
      %v5402 = vld [vmem:[%s5395 + $0x18] sm:$0xf]
      %v5403 = vld [vmem:[%s5395 + $0x1c] sm:$0xf]
      %v5412 = vunpack.c.l.b16 %v5396
      %v5413 = vunpack.c.l.b16 %v5397
      %v5414 = vunpack.c.l.b16 %v5398
      %v5415 = vunpack.c.l.b16 %v5399
      %v5416 = vunpack.c.l.b16 %v5400
      %v5417 = vunpack.c.l.b16 %v5401
      %v5418 = vunpack.c.l.b16 %v5402
      %v5419 = vunpack.c.l.b16 %v5403
      %v5420 = vpack.c.b16 %v5413, %v5412
      %v5421 = vpack.c.b16 %v5415, %v5414
      %v5422 = vpack.c.b16 %v5417, %v5416
      %v5423 = vpack.c.b16 %v5419, %v5418
      %v5429 = vsel %vm368, %v5374, 0
      %v5432 = vsel %vm368, %v5375, 0
      %v5435 = vsel %vm368, %v5376, 0
      %v5438 = vsel %vm368, %v5377, 0
      %v5441 = vsel %vm368, %v5378, 0
      %v5444 = vsel %vm368, %v5379, 0
      %v5447 = vsel %vm368, %v5380, 0
      %v5450 = vsel %vm368, %v5381, 0
      %v5453 = vsel %vm368, %v5382, 0
      %v5456 = vsel %vm368, %v5383, 0
      %v5459 = vsel %vm368, %v5384, 0
      %v5462 = vsel %vm368, %v5385, 0
      %v5465 = vsel %vm368, %v5386, 0
      %v5468 = vsel %vm368, %v5387, 0
      %v5471 = vsel %vm368, %v5388, 0
      %v5474 = vsel %vm368, %v5389, 0
      %v5477 = vsel %vm368, %v5390, 0
      %v5480 = vsel %vm368, %v5391, 0
      %v5483 = vsel %vm368, %v5392, 0
      %v5486 = vsel %vm368, %v5393, 0
      %v5489 = vsel %vm368, %v5394, 0
      %5491 = vmatprep.subr.bf16.mxu0 0
      %5492 = vmatpush1.bf16.msra.mxu0 0
      %5493 = vmatprep.subr.bf16.mxu0 0
      %5494 = vmatpush1.bf16.msra.mxu0 0
      %5495 = vmatprep.subr.bf16.mxu0 0
      %5496 = vmatpush1.bf16.msra.mxu0 0
      %5497 = vmatprep.subr.bf16.mxu0 0
      %5498 = vmatpush1.bf16.msra.mxu0 0
      %5499 = vmatprep.subr.bf16.mxu0 0
      %5500 = vmatpush1.bf16.msra.mxu0 %v5423
      %5501 = vmatprep.subr.bf16.mxu0 0
      %5502 = vmatpush1.bf16.msra.mxu0 %v5422
      %5503 = vmatprep.subr.bf16.mxu0 0
      %5504 = vmatpush1.bf16.msra.mxu0 %v5421
      %5505 = vmatprep.subr.bf16.mxu0 0
      %5506 = vmatpush1.bf16.msra.mxu0 %v5420
      %5507 = vmatprep.subr.bf16.mxu0 0
      %5508 = vmatpush2.bf16.msra.mxu0 0
      %5509 = vmatprep.subr.bf16.mxu0 0
      %5510 = vmatpush2.bf16.msra.mxu0 0
      %5511 = vmatprep.subr.bf16.mxu0 0
      %5512 = vmatpush2.bf16.msra.mxu0 0
      %5513 = vmatprep.subr.bf16.mxu0 0
      %5514 = vmatpush2.bf16.msra.mxu0 0
      %5515 = vmatprep.subr.bf16.mxu0 0
      %5516 = vmatpush2.bf16.msra.mxu0 0
      %5517 = vmatprep.subr.bf16.mxu0 0
      %5518 = vmatpush2.bf16.msra.mxu0 0
      %5519 = vmatprep.subr.bf16.mxu0 0
      %5520 = vmatpush2.bf16.msra.mxu0 0
      %5521 = vmatprep.subr.bf16.mxu0 0
      %5522 = vmatpush2.bf16.msra.mxu0 0
      %5523 = vmatprep.mubr.bf16.mxu0 0
      %5524 = vmatmul.mubr.bf16.gmra.mxu0 %v5429
      %v5525 = vpop.f32.mrf.mxu0
      %v5526 = vadd.f32 0.0, %v5525
      %v5527 = vpop.f32.mrf.mxu0
      %v5528 = vpop.f32.mrf.mxu0
      %v5529 = vadd.f32 0.0, %v5528
      %v5530 = vpop.f32.mrf.mxu0
      %5531 = vmatprep.mubr.bf16.mxu0 0
      %5532 = vmatmul.mubr.bf16.gmra.mxu0 %v5432
      %v5533 = vpop.f32.mrf.mxu0
      %v5534 = vadd.f32 0.0, %v5533
      %v5535 = vpop.f32.mrf.mxu0
      %v5536 = vpop.f32.mrf.mxu0
      %v5537 = vadd.f32 0.0, %v5536
      %v5538 = vpop.f32.mrf.mxu0
      %5539 = vmatprep.mubr.bf16.mxu0 0
      %5540 = vmatmul.mubr.bf16.gmra.mxu0 %v5435
      %v5541 = vpop.f32.mrf.mxu0
      %v5542 = vadd.f32 0.0, %v5541
      %v5543 = vpop.f32.mrf.mxu0
      %v5544 = vpop.f32.mrf.mxu0
      %v5545 = vadd.f32 0.0, %v5544
      %v5546 = vpop.f32.mrf.mxu0
      %5547 = vmatprep.mubr.bf16.mxu0 0
      %5548 = vmatmul.mubr.bf16.gmra.mxu0 %v5438
      %v5549 = vpop.f32.mrf.mxu0
      %v5550 = vadd.f32 0.0, %v5549
      %v5551 = vpop.f32.mrf.mxu0
      %v5552 = vpop.f32.mrf.mxu0
      %v5553 = vadd.f32 0.0, %v5552
      %v5554 = vpop.f32.mrf.mxu0
      %5555 = vmatprep.mubr.bf16.mxu0 0
      %5556 = vmatmul.mubr.bf16.gmra.mxu0 %v5441
      %v5557 = vpop.f32.mrf.mxu0
      %v5558 = vadd.f32 0.0, %v5557
      %v5559 = vpop.f32.mrf.mxu0
      %v5560 = vpop.f32.mrf.mxu0
      %v5561 = vadd.f32 0.0, %v5560
      %v5562 = vpop.f32.mrf.mxu0
      %5563 = vmatprep.mubr.bf16.mxu0 0
      %5564 = vmatmul.mubr.bf16.gmra.mxu0 %v5444
      %v5565 = vpop.f32.mrf.mxu0
      %v5566 = vadd.f32 0.0, %v5565
      %v5567 = vpop.f32.mrf.mxu0
      %v5568 = vpop.f32.mrf.mxu0
      %v5569 = vadd.f32 0.0, %v5568
      %v5570 = vpop.f32.mrf.mxu0
      %5571 = vmatprep.mubr.bf16.mxu0 0
      %5572 = vmatmul.mubr.bf16.gmra.mxu0 %v5447
      %v5573 = vpop.f32.mrf.mxu0
      %v5574 = vadd.f32 0.0, %v5573
      %v5575 = vpop.f32.mrf.mxu0
      %v5576 = vpop.f32.mrf.mxu0
      %v5577 = vadd.f32 0.0, %v5576
      %v5578 = vpop.f32.mrf.mxu0
      %5579 = vmatprep.mubr.bf16.mxu0 0
      %5580 = vmatmul.mubr.bf16.gmra.mxu0 %v5450
      %v5581 = vpop.f32.mrf.mxu0
      %v5582 = vadd.f32 0.0, %v5581
      %v5583 = vpop.f32.mrf.mxu0
      %v5584 = vpop.f32.mrf.mxu0
      %v5585 = vadd.f32 0.0, %v5584
      %v5586 = vpop.f32.mrf.mxu0
      %5587 = vmatprep.mubr.bf16.mxu0 0
      %5588 = vmatmul.mubr.bf16.gmra.mxu0 %v5453
      %v5589 = vpop.f32.mrf.mxu0
      %v5590 = vadd.f32 0.0, %v5589
      %v5591 = vpop.f32.mrf.mxu0
      %v5592 = vpop.f32.mrf.mxu0
      %v5593 = vadd.f32 0.0, %v5592
      %v5594 = vpop.f32.mrf.mxu0
      %5595 = vmatprep.mubr.bf16.mxu0 0
      %5596 = vmatmul.mubr.bf16.gmra.mxu0 %v5456
      %v5597 = vpop.f32.mrf.mxu0
      %v5598 = vadd.f32 0.0, %v5597
      %v5599 = vpop.f32.mrf.mxu0
      %v5600 = vpop.f32.mrf.mxu0
      %v5601 = vadd.f32 0.0, %v5600
      %v5602 = vpop.f32.mrf.mxu0
      %5603 = vmatprep.mubr.bf16.mxu0 0
      %5604 = vmatmul.mubr.bf16.gmra.mxu0 %v5459
      %v5605 = vpop.f32.mrf.mxu0
      %v5606 = vadd.f32 0.0, %v5605
      %v5607 = vpop.f32.mrf.mxu0
      %v5608 = vpop.f32.mrf.mxu0
      %v5609 = vadd.f32 0.0, %v5608
      %v5610 = vpop.f32.mrf.mxu0
      %5611 = vmatprep.mubr.bf16.mxu0 0
      %5612 = vmatmul.mubr.bf16.gmra.mxu0 %v5462
      %v5613 = vpop.f32.mrf.mxu0
      %v5614 = vadd.f32 0.0, %v5613
      %v5615 = vpop.f32.mrf.mxu0
      %v5616 = vpop.f32.mrf.mxu0
      %v5617 = vadd.f32 0.0, %v5616
      %v5618 = vpop.f32.mrf.mxu0
      %5619 = vmatprep.mubr.bf16.mxu0 0
      %5620 = vmatmul.mubr.bf16.gmra.mxu0 %v5465
      %v5621 = vpop.f32.mrf.mxu0
      %v5622 = vadd.f32 0.0, %v5621
      %v5623 = vpop.f32.mrf.mxu0
      %v5624 = vpop.f32.mrf.mxu0
      %v5625 = vadd.f32 0.0, %v5624
      %v5626 = vpop.f32.mrf.mxu0
      %5627 = vmatprep.mubr.bf16.mxu0 0
      %5628 = vmatmul.mubr.bf16.gmra.mxu0 %v5468
      %v5629 = vpop.f32.mrf.mxu0
      %v5630 = vadd.f32 0.0, %v5629
      %v5631 = vpop.f32.mrf.mxu0
      %v5632 = vpop.f32.mrf.mxu0
      %v5633 = vadd.f32 0.0, %v5632
      %v5634 = vpop.f32.mrf.mxu0
      %5635 = vmatprep.mubr.bf16.mxu0 0
      %5636 = vmatmul.mubr.bf16.gmra.mxu0 %v5471
      %v5637 = vpop.f32.mrf.mxu0
      %v5638 = vadd.f32 0.0, %v5637
      %v5639 = vpop.f32.mrf.mxu0
      %v5640 = vpop.f32.mrf.mxu0
      %v5641 = vadd.f32 0.0, %v5640
      %v5642 = vpop.f32.mrf.mxu0
      %5643 = vmatprep.mubr.bf16.mxu0 0
      %5644 = vmatmul.mubr.bf16.gmra.mxu0 %v5474
      %v5645 = vpop.f32.mrf.mxu0
      %v5646 = vadd.f32 0.0, %v5645
      %v5647 = vpop.f32.mrf.mxu0
      %v5648 = vpop.f32.mrf.mxu0
      %v5649 = vadd.f32 0.0, %v5648
      %v5650 = vpop.f32.mrf.mxu0
      %5651 = vmatprep.mubr.bf16.mxu0 0
      %5652 = vmatmul.mubr.bf16.gmra.mxu0 %v5477
      %v5653 = vpop.f32.mrf.mxu0
      %v5654 = vadd.f32 0.0, %v5653
      %v5655 = vpop.f32.mrf.mxu0
      %v5656 = vpop.f32.mrf.mxu0
      %v5657 = vadd.f32 0.0, %v5656
      %v5658 = vpop.f32.mrf.mxu0
      %5659 = vmatprep.mubr.bf16.mxu0 0
      %5660 = vmatmul.mubr.bf16.gmra.mxu0 %v5480
      %v5661 = vpop.f32.mrf.mxu0
      %v5662 = vadd.f32 0.0, %v5661
      %v5663 = vpop.f32.mrf.mxu0
      %v5664 = vpop.f32.mrf.mxu0
      %v5665 = vadd.f32 0.0, %v5664
      %v5666 = vpop.f32.mrf.mxu0
      %5667 = vmatprep.mubr.bf16.mxu0 0
      %5668 = vmatmul.mubr.bf16.gmra.mxu0 %v5483
      %v5669 = vpop.f32.mrf.mxu0
      %v5670 = vadd.f32 0.0, %v5669
      %v5671 = vpop.f32.mrf.mxu0
      %v5672 = vpop.f32.mrf.mxu0
      %v5673 = vadd.f32 0.0, %v5672
      %v5674 = vpop.f32.mrf.mxu0
      %5675 = vmatprep.mubr.bf16.mxu0 0
      %5676 = vmatmul.mubr.bf16.gmra.mxu0 %v5486
      %v5677 = vpop.f32.mrf.mxu0
      %v5678 = vadd.f32 0.0, %v5677
      %v5679 = vpop.f32.mrf.mxu0
      %v5680 = vpop.f32.mrf.mxu0
      %v5681 = vadd.f32 0.0, %v5680
      %v5682 = vpop.f32.mrf.mxu0
      %5683 = vmatprep.mubr.bf16.mxu0 0
      %5684 = vmatmul.mubr.bf16.gmra.mxu0 %v5489
      %v5685 = vpop.f32.mrf.mxu0
      %v5686 = vadd.f32 0.0, %v5685
      %v5687 = vpop.f32.mrf.mxu0
      %v5688 = vpop.f32.mrf.mxu0
      %v5689 = vpop.f32.mrf.mxu0
      %5690 = vdwg.mxu0
      %v5691 = vadd.f32 %v5292, %v5526
      %v5692 = vadd.f32 %v5293, %v5529
      %v5693 = vadd.f32 %v5294, %v5534
      %v5694 = vadd.f32 %v5295, %v5537
      %v5695 = vadd.f32 %v5296, %v5542
      %v5696 = vadd.f32 %v5297, %v5545
      %v5697 = vadd.f32 %v5298, %v5550
      %v5698 = vadd.f32 %v5299, %v5553
      %v5699 = vadd.f32 %v5300, %v5558
      %v5700 = vadd.f32 %v5301, %v5561
      %v5701 = vadd.f32 %v5302, %v5566
      %v5702 = vadd.f32 %v5303, %v5569
      %v5703 = vadd.f32 %v5304, %v5574
      %v5704 = vadd.f32 %v5305, %v5577
      %v5705 = vadd.f32 %v5306, %v5582
      %v5706 = vadd.f32 %v5307, %v5585
      %v5707 = vadd.f32 %v5308, %v5590
      %v5708 = vadd.f32 %v5309, %v5593
      %v5709 = vadd.f32 %v5310, %v5598
      %v5710 = vadd.f32 %v5311, %v5601
      %v5711 = vadd.f32 %v5312, %v5606
      %v5712 = vadd.f32 %v5313, %v5609
      %v5713 = vadd.f32 %v5314, %v5614
      %v5714 = vadd.f32 %v5315, %v5617
      %v5715 = vadd.f32 %v5316, %v5622
      %v5716 = vadd.f32 %v5317, %v5625
      %v5717 = vadd.f32 %v5318, %v5630
      %v5718 = vadd.f32 %v5319, %v5633
      %v5719 = vadd.f32 %v5320, %v5638
      %v5720 = vadd.f32 %v5321, %v5641
      %v5721 = vadd.f32 %v5322, %v5646
      %v5722 = vadd.f32 %v5323, %v5649
      %v5723 = vadd.f32 %v5324, %v5654
      %v5724 = vadd.f32 %v5325, %v5657
      %v5725 = vadd.f32 %v5326, %v5662
      %v5726 = vadd.f32 %v5327, %v5665
      %v5727 = vadd.f32 %v5328, %v5670
      %v5728 = vadd.f32 %v5329, %v5673
      %v5729 = vadd.f32 %v5330, %v5678
      %v5730 = vadd.f32 %v5331, %v5681
      %v5731 = vadd.f32 %v5332, %v5686
      %v5732 = vld [vmem:[#allocation2 + $0x18] sm:$0xff]
      %v5733 = vld [vmem:[#allocation2 + $0x20] sm:$0xff]
      %v5734 = vld [vmem:[#allocation2 + $0x28] sm:$0xff]
      %v5735 = vld [vmem:[#allocation2 + $0x30] sm:$0xff]
      %v5736 = vld [vmem:[#allocation2 + $0x38] sm:$0xff]
      %v5737 = vld [vmem:[#allocation2 + $0x40] sm:$0xff]
      %v5738 = vld [vmem:[#allocation2 + $0x48] sm:$0xff]
      %v5739 = vld [vmem:[#allocation2 + $0x50] sm:$0xff]
      %v5740 = vld [vmem:[#allocation2 + $0x58] sm:$0xff]
      %v5741 = vld [vmem:[#allocation2 + $0x60] sm:$0xff]
      %v5742 = vld [vmem:[#allocation2 + $0x68] sm:$0xff]
      %v5743 = vld [vmem:[#allocation2 + $0x70] sm:$0xff]
      %v5744 = vld [vmem:[#allocation2 + $0x78] sm:$0xff]
      %v5745 = vld [vmem:[#allocation2 + $0x80] sm:$0xff]
      %v5746 = vld [vmem:[#allocation2 + $0x88] sm:$0xff]
      %v5747 = vld [vmem:[#allocation2 + $0x90] sm:$0xff]
      %v5748 = vld [vmem:[#allocation2 + $0x98] sm:$0xff]
      %v5749 = vld [vmem:[#allocation2 + $0xa0] sm:$0xff]
      %v5750 = vld [vmem:[#allocation2 + $0xa8] sm:$0xff]
      %v5751 = vld [vmem:[#allocation2 + $0xb0] sm:$0xff]
      %v5752 = vld [vmem:[#allocation2 + $0xb8] sm:$0xff]
      %v5753 = vld [vmem:[#allocation2 + $0xc0] sm:$0xff]
      %v5754 = vld [vmem:[#allocation2 + $0xc8] sm:$0xff]
      %v5755 = vld [vmem:[#allocation2 + $0xd0] sm:$0xff]
      %v5756 = vld [vmem:[#allocation2 + $0xd8] sm:$0xff]
      %v5757 = vld [vmem:[#allocation2 + $0xe0] sm:$0xff]
      %v5758 = vld [vmem:[#allocation2 + $0xe8] sm:$0xff]
      %v5759 = vld [vmem:[#allocation2 + $0xf0] sm:$0xff]
      %v5760 = vld [vmem:[#allocation2 + $0xf8] sm:$0xff]
      %v5761 = vld [vmem:[#allocation2 + $0x100] sm:$0xff]
      %v5762 = vld [vmem:[#allocation2 + $0x108] sm:$0xff]
      %v5763 = vld [vmem:[#allocation2 + $0x110] sm:$0xff]
      %v5764 = vld [vmem:[#allocation2 + $0x118] sm:$0xff]
      %v5765 = vld [vmem:[#allocation2 + $0x120] sm:$0xff]
      %v5766 = vld [vmem:[#allocation2 + $0x128] sm:$0xff]
      %v5767 = vld [vmem:[#allocation2 + $0x130] sm:$0xff]
      %v5768 = vld [vmem:[#allocation2 + $0x138] sm:$0xff]
      %v5769 = vld [vmem:[#allocation2 + $0x140] sm:$0xff]
      %v5770 = vld [vmem:[#allocation2 + $0x148] sm:$0xff]
      %v5771 = vld [vmem:[#allocation2 + $0x150] sm:$0xff]
      %v5772 = vld [vmem:[#allocation2 + $0x158] sm:$0xf]
      %v5773 = vpack.c.bf16 %v5733, %v5732
      %v5774 = vpack.c.bf16 %v5735, %v5734
      %v5775 = vpack.c.bf16 %v5737, %v5736
      %v5776 = vpack.c.bf16 %v5739, %v5738
      %v5777 = vpack.c.bf16 %v5741, %v5740
      %v5778 = vpack.c.bf16 %v5743, %v5742
      %v5779 = vpack.c.bf16 %v5745, %v5744
      %v5780 = vpack.c.bf16 %v5747, %v5746
      %v5781 = vpack.c.bf16 %v5749, %v5748
      %v5782 = vpack.c.bf16 %v5751, %v5750
      %v5783 = vpack.c.bf16 %v5753, %v5752
      %v5784 = vpack.c.bf16 %v5755, %v5754
      %v5785 = vpack.c.bf16 %v5757, %v5756
      %v5786 = vpack.c.bf16 %v5759, %v5758
      %v5787 = vpack.c.bf16 %v5761, %v5760
      %v5788 = vpack.c.bf16 %v5763, %v5762
      %v5789 = vpack.c.bf16 %v5765, %v5764
      %v5790 = vpack.c.bf16 %v5767, %v5766
      %v5791 = vpack.c.bf16 %v5769, %v5768
      %v5792 = vpack.c.bf16 %v5771, %v5770
      %v5793 = vpack.c.bf16 %v5772, %v5772
      %s5794 = scalar_lea.vmem %s4, 128
      %v5795 = vld [vmem:[%s5794] sm:$0xf]
      %v5796 = vld [vmem:[%s5794 + $0x4] sm:$0xf]
      %v5797 = vld [vmem:[%s5794 + $0x8] sm:$0xf]
      %v5798 = vld [vmem:[%s5794 + $0xc] sm:$0xf]
      %v5799 = vld [vmem:[%s5794 + $0x10] sm:$0xf]
      %v5800 = vld [vmem:[%s5794 + $0x14] sm:$0xf]
      %v5801 = vld [vmem:[%s5794 + $0x18] sm:$0xf]
      %v5802 = vld [vmem:[%s5794 + $0x1c] sm:$0xf]
      %v5811 = vunpack.c.l.b16 %v5795
      %v5812 = vunpack.c.l.b16 %v5796
      %v5813 = vunpack.c.l.b16 %v5797
      %v5814 = vunpack.c.l.b16 %v5798
      %v5815 = vunpack.c.l.b16 %v5799
      %v5816 = vunpack.c.l.b16 %v5800
      %v5817 = vunpack.c.l.b16 %v5801
      %v5818 = vunpack.c.l.b16 %v5802
      %v5819 = vpack.c.b16 %v5812, %v5811
      %v5820 = vpack.c.b16 %v5814, %v5813
      %v5821 = vpack.c.b16 %v5816, %v5815
      %v5822 = vpack.c.b16 %v5818, %v5817
      %v5828 = vsel %vm368, %v5773, 0
      %v5831 = vsel %vm368, %v5774, 0
      %v5834 = vsel %vm368, %v5775, 0
      %v5837 = vsel %vm368, %v5776, 0
      %v5840 = vsel %vm368, %v5777, 0
      %v5843 = vsel %vm368, %v5778, 0
      %v5846 = vsel %vm368, %v5779, 0
      %v5849 = vsel %vm368, %v5780, 0
      %v5852 = vsel %vm368, %v5781, 0
      %v5855 = vsel %vm368, %v5782, 0
      %v5858 = vsel %vm368, %v5783, 0
      %v5861 = vsel %vm368, %v5784, 0
      %v5864 = vsel %vm368, %v5785, 0
      %v5867 = vsel %vm368, %v5786, 0
      %v5870 = vsel %vm368, %v5787, 0
      %v5873 = vsel %vm368, %v5788, 0
      %v5876 = vsel %vm368, %v5789, 0
      %v5879 = vsel %vm368, %v5790, 0
      %v5882 = vsel %vm368, %v5791, 0
      %v5885 = vsel %vm368, %v5792, 0
      %v5888 = vsel %vm368, %v5793, 0
      %5890 = vmatprep.subr.bf16.mxu0 0
      %5891 = vmatpush1.bf16.msra.mxu0 0
      %5892 = vmatprep.subr.bf16.mxu0 0
      %5893 = vmatpush1.bf16.msra.mxu0 0
      %5894 = vmatprep.subr.bf16.mxu0 0
      %5895 = vmatpush1.bf16.msra.mxu0 0
      %5896 = vmatprep.subr.bf16.mxu0 0
      %5897 = vmatpush1.bf16.msra.mxu0 0
      %5898 = vmatprep.subr.bf16.mxu0 0
      %5899 = vmatpush1.bf16.msra.mxu0 %v5822
      %5900 = vmatprep.subr.bf16.mxu0 0
      %5901 = vmatpush1.bf16.msra.mxu0 %v5821
      %5902 = vmatprep.subr.bf16.mxu0 0
      %5903 = vmatpush1.bf16.msra.mxu0 %v5820
      %5904 = vmatprep.subr.bf16.mxu0 0
      %5905 = vmatpush1.bf16.msra.mxu0 %v5819
      %5906 = vmatprep.subr.bf16.mxu0 0
      %5907 = vmatpush2.bf16.msra.mxu0 0
      %5908 = vmatprep.subr.bf16.mxu0 0
      %5909 = vmatpush2.bf16.msra.mxu0 0
      %5910 = vmatprep.subr.bf16.mxu0 0
      %5911 = vmatpush2.bf16.msra.mxu0 0
      %5912 = vmatprep.subr.bf16.mxu0 0
      %5913 = vmatpush2.bf16.msra.mxu0 0
      %5914 = vmatprep.subr.bf16.mxu0 0
      %5915 = vmatpush2.bf16.msra.mxu0 0
      %5916 = vmatprep.subr.bf16.mxu0 0
      %5917 = vmatpush2.bf16.msra.mxu0 0
      %5918 = vmatprep.subr.bf16.mxu0 0
      %5919 = vmatpush2.bf16.msra.mxu0 0
      %5920 = vmatprep.subr.bf16.mxu0 0
      %5921 = vmatpush2.bf16.msra.mxu0 0
      %5922 = vmatprep.mubr.bf16.mxu0 0
      %5923 = vmatmul.mubr.bf16.gmra.mxu0 %v5828
      %v5924 = vpop.f32.mrf.mxu0
      %v5925 = vadd.f32 0.0, %v5924
      %v5926 = vpop.f32.mrf.mxu0
      %v5927 = vpop.f32.mrf.mxu0
      %v5928 = vadd.f32 0.0, %v5927
      %v5929 = vpop.f32.mrf.mxu0
      %5930 = vmatprep.mubr.bf16.mxu0 0
      %5931 = vmatmul.mubr.bf16.gmra.mxu0 %v5831
      %v5932 = vpop.f32.mrf.mxu0
      %v5933 = vadd.f32 0.0, %v5932
      %v5934 = vpop.f32.mrf.mxu0
      %v5935 = vpop.f32.mrf.mxu0
      %v5936 = vadd.f32 0.0, %v5935
      %v5937 = vpop.f32.mrf.mxu0
      %5938 = vmatprep.mubr.bf16.mxu0 0
      %5939 = vmatmul.mubr.bf16.gmra.mxu0 %v5834
      %v5940 = vpop.f32.mrf.mxu0
      %v5941 = vadd.f32 0.0, %v5940
      %v5942 = vpop.f32.mrf.mxu0
      %v5943 = vpop.f32.mrf.mxu0
      %v5944 = vadd.f32 0.0, %v5943
      %v5945 = vpop.f32.mrf.mxu0
      %5946 = vmatprep.mubr.bf16.mxu0 0
      %5947 = vmatmul.mubr.bf16.gmra.mxu0 %v5837
      %v5948 = vpop.f32.mrf.mxu0
      %v5949 = vadd.f32 0.0, %v5948
      %v5950 = vpop.f32.mrf.mxu0
      %v5951 = vpop.f32.mrf.mxu0
      %v5952 = vadd.f32 0.0, %v5951
      %v5953 = vpop.f32.mrf.mxu0
      %5954 = vmatprep.mubr.bf16.mxu0 0
      %5955 = vmatmul.mubr.bf16.gmra.mxu0 %v5840
      %v5956 = vpop.f32.mrf.mxu0
      %v5957 = vadd.f32 0.0, %v5956
      %v5958 = vpop.f32.mrf.mxu0
      %v5959 = vpop.f32.mrf.mxu0
      %v5960 = vadd.f32 0.0, %v5959
      %v5961 = vpop.f32.mrf.mxu0
      %5962 = vmatprep.mubr.bf16.mxu0 0
      %5963 = vmatmul.mubr.bf16.gmra.mxu0 %v5843
      %v5964 = vpop.f32.mrf.mxu0
      %v5965 = vadd.f32 0.0, %v5964
      %v5966 = vpop.f32.mrf.mxu0
      %v5967 = vpop.f32.mrf.mxu0
      %v5968 = vadd.f32 0.0, %v5967
      %v5969 = vpop.f32.mrf.mxu0
      %5970 = vmatprep.mubr.bf16.mxu0 0
      %5971 = vmatmul.mubr.bf16.gmra.mxu0 %v5846
      %v5972 = vpop.f32.mrf.mxu0
      %v5973 = vadd.f32 0.0, %v5972
      %v5974 = vpop.f32.mrf.mxu0
      %v5975 = vpop.f32.mrf.mxu0
      %v5976 = vadd.f32 0.0, %v5975
      %v5977 = vpop.f32.mrf.mxu0
      %5978 = vmatprep.mubr.bf16.mxu0 0
      %5979 = vmatmul.mubr.bf16.gmra.mxu0 %v5849
      %v5980 = vpop.f32.mrf.mxu0
      %v5981 = vadd.f32 0.0, %v5980
      %v5982 = vpop.f32.mrf.mxu0
      %v5983 = vpop.f32.mrf.mxu0
      %v5984 = vadd.f32 0.0, %v5983
      %v5985 = vpop.f32.mrf.mxu0
      %5986 = vmatprep.mubr.bf16.mxu0 0
      %5987 = vmatmul.mubr.bf16.gmra.mxu0 %v5852
      %v5988 = vpop.f32.mrf.mxu0
      %v5989 = vadd.f32 0.0, %v5988
      %v5990 = vpop.f32.mrf.mxu0
      %v5991 = vpop.f32.mrf.mxu0
      %v5992 = vadd.f32 0.0, %v5991
      %v5993 = vpop.f32.mrf.mxu0
      %5994 = vmatprep.mubr.bf16.mxu0 0
      %5995 = vmatmul.mubr.bf16.gmra.mxu0 %v5855
      %v5996 = vpop.f32.mrf.mxu0
      %v5997 = vadd.f32 0.0, %v5996
      %v5998 = vpop.f32.mrf.mxu0
      %v5999 = vpop.f32.mrf.mxu0
      %v6000 = vadd.f32 0.0, %v5999
      %v6001 = vpop.f32.mrf.mxu0
      %6002 = vmatprep.mubr.bf16.mxu0 0
      %6003 = vmatmul.mubr.bf16.gmra.mxu0 %v5858
      %v6004 = vpop.f32.mrf.mxu0
      %v6005 = vadd.f32 0.0, %v6004
      %v6006 = vpop.f32.mrf.mxu0
      %v6007 = vpop.f32.mrf.mxu0
      %v6008 = vadd.f32 0.0, %v6007
      %v6009 = vpop.f32.mrf.mxu0
      %6010 = vmatprep.mubr.bf16.mxu0 0
      %6011 = vmatmul.mubr.bf16.gmra.mxu0 %v5861
      %v6012 = vpop.f32.mrf.mxu0
      %v6013 = vadd.f32 0.0, %v6012
      %v6014 = vpop.f32.mrf.mxu0
      %v6015 = vpop.f32.mrf.mxu0
      %v6016 = vadd.f32 0.0, %v6015
      %v6017 = vpop.f32.mrf.mxu0
      %6018 = vmatprep.mubr.bf16.mxu0 0
      %6019 = vmatmul.mubr.bf16.gmra.mxu0 %v5864
      %v6020 = vpop.f32.mrf.mxu0
      %v6021 = vadd.f32 0.0, %v6020
      %v6022 = vpop.f32.mrf.mxu0
      %v6023 = vpop.f32.mrf.mxu0
      %v6024 = vadd.f32 0.0, %v6023
      %v6025 = vpop.f32.mrf.mxu0
      %6026 = vmatprep.mubr.bf16.mxu0 0
      %6027 = vmatmul.mubr.bf16.gmra.mxu0 %v5867
      %v6028 = vpop.f32.mrf.mxu0
      %v6029 = vadd.f32 0.0, %v6028
      %v6030 = vpop.f32.mrf.mxu0
      %v6031 = vpop.f32.mrf.mxu0
      %v6032 = vadd.f32 0.0, %v6031
      %v6033 = vpop.f32.mrf.mxu0
      %6034 = vmatprep.mubr.bf16.mxu0 0
      %6035 = vmatmul.mubr.bf16.gmra.mxu0 %v5870
      %v6036 = vpop.f32.mrf.mxu0
      %v6037 = vadd.f32 0.0, %v6036
      %v6038 = vpop.f32.mrf.mxu0
      %v6039 = vpop.f32.mrf.mxu0
      %v6040 = vadd.f32 0.0, %v6039
      %v6041 = vpop.f32.mrf.mxu0
      %6042 = vmatprep.mubr.bf16.mxu0 0
      %6043 = vmatmul.mubr.bf16.gmra.mxu0 %v5873
      %v6044 = vpop.f32.mrf.mxu0
      %v6045 = vadd.f32 0.0, %v6044
      %v6046 = vpop.f32.mrf.mxu0
      %v6047 = vpop.f32.mrf.mxu0
      %v6048 = vadd.f32 0.0, %v6047
      %v6049 = vpop.f32.mrf.mxu0
      %6050 = vmatprep.mubr.bf16.mxu0 0
      %6051 = vmatmul.mubr.bf16.gmra.mxu0 %v5876
      %v6052 = vpop.f32.mrf.mxu0
      %v6053 = vadd.f32 0.0, %v6052
      %v6054 = vpop.f32.mrf.mxu0
      %v6055 = vpop.f32.mrf.mxu0
      %v6056 = vadd.f32 0.0, %v6055
      %v6057 = vpop.f32.mrf.mxu0
      %6058 = vmatprep.mubr.bf16.mxu0 0
      %6059 = vmatmul.mubr.bf16.gmra.mxu0 %v5879
      %v6060 = vpop.f32.mrf.mxu0
      %v6061 = vadd.f32 0.0, %v6060
      %v6062 = vpop.f32.mrf.mxu0
      %v6063 = vpop.f32.mrf.mxu0
      %v6064 = vadd.f32 0.0, %v6063
      %v6065 = vpop.f32.mrf.mxu0
      %6066 = vmatprep.mubr.bf16.mxu0 0
      %6067 = vmatmul.mubr.bf16.gmra.mxu0 %v5882
      %v6068 = vpop.f32.mrf.mxu0
      %v6069 = vadd.f32 0.0, %v6068
      %v6070 = vpop.f32.mrf.mxu0
      %v6071 = vpop.f32.mrf.mxu0
      %v6072 = vadd.f32 0.0, %v6071
      %v6073 = vpop.f32.mrf.mxu0
      %6074 = vmatprep.mubr.bf16.mxu0 0
      %6075 = vmatmul.mubr.bf16.gmra.mxu0 %v5885
      %v6076 = vpop.f32.mrf.mxu0
      %v6077 = vadd.f32 0.0, %v6076
      %v6078 = vpop.f32.mrf.mxu0
      %v6079 = vpop.f32.mrf.mxu0
      %v6080 = vadd.f32 0.0, %v6079
      %v6081 = vpop.f32.mrf.mxu0
      %6082 = vmatprep.mubr.bf16.mxu0 0
      %6083 = vmatmul.mubr.bf16.gmra.mxu0 %v5888
      %v6084 = vpop.f32.mrf.mxu0
      %v6085 = vadd.f32 0.0, %v6084
      %v6086 = vpop.f32.mrf.mxu0
      %v6087 = vpop.f32.mrf.mxu0
      %v6088 = vpop.f32.mrf.mxu0
      %6089 = vdwg.mxu0
      %v6090 = vadd.f32 %v5691, %v5925
      %v6091 = vadd.f32 %v5692, %v5928
      %v6092 = vadd.f32 %v5693, %v5933
      %v6093 = vadd.f32 %v5694, %v5936
      %v6094 = vadd.f32 %v5695, %v5941
      %v6095 = vadd.f32 %v5696, %v5944
      %v6096 = vadd.f32 %v5697, %v5949
      %v6097 = vadd.f32 %v5698, %v5952
      %v6098 = vadd.f32 %v5699, %v5957
      %v6099 = vadd.f32 %v5700, %v5960
      %v6100 = vadd.f32 %v5701, %v5965
      %v6101 = vadd.f32 %v5702, %v5968
      %v6102 = vadd.f32 %v5703, %v5973
      %v6103 = vadd.f32 %v5704, %v5976
      %v6104 = vadd.f32 %v5705, %v5981
      %v6105 = vadd.f32 %v5706, %v5984
      %v6106 = vadd.f32 %v5707, %v5989
      %v6107 = vadd.f32 %v5708, %v5992
      %v6108 = vadd.f32 %v5709, %v5997
      %v6109 = vadd.f32 %v5710, %v6000
      %v6110 = vadd.f32 %v5711, %v6005
      %v6111 = vadd.f32 %v5712, %v6008
      %v6112 = vadd.f32 %v5713, %v6013
      %v6113 = vadd.f32 %v5714, %v6016
      %v6114 = vadd.f32 %v5715, %v6021
      %v6115 = vadd.f32 %v5716, %v6024
      %v6116 = vadd.f32 %v5717, %v6029
      %v6117 = vadd.f32 %v5718, %v6032
      %v6118 = vadd.f32 %v5719, %v6037
      %v6119 = vadd.f32 %v5720, %v6040
      %v6120 = vadd.f32 %v5721, %v6045
      %v6121 = vadd.f32 %v5722, %v6048
      %v6122 = vadd.f32 %v5723, %v6053
      %v6123 = vadd.f32 %v5724, %v6056
      %v6124 = vadd.f32 %v5725, %v6061
      %v6125 = vadd.f32 %v5726, %v6064
      %v6126 = vadd.f32 %v5727, %v6069
      %v6127 = vadd.f32 %v5728, %v6072
      %v6128 = vadd.f32 %v5729, %v6077
      %v6129 = vadd.f32 %v5730, %v6080
      %v6130 = vadd.f32 %v5731, %v6085
      %v6131 = vld [vmem:[#allocation2 + $0x19] sm:$0xff]
      %v6132 = vld [vmem:[#allocation2 + $0x21] sm:$0xff]
      %v6133 = vld [vmem:[#allocation2 + $0x29] sm:$0xff]
      %v6134 = vld [vmem:[#allocation2 + $0x31] sm:$0xff]
      %v6135 = vld [vmem:[#allocation2 + $0x39] sm:$0xff]
      %v6136 = vld [vmem:[#allocation2 + $0x41] sm:$0xff]
      %v6137 = vld [vmem:[#allocation2 + $0x49] sm:$0xff]
      %v6138 = vld [vmem:[#allocation2 + $0x51] sm:$0xff]
      %v6139 = vld [vmem:[#allocation2 + $0x59] sm:$0xff]
      %v6140 = vld [vmem:[#allocation2 + $0x61] sm:$0xff]
      %v6141 = vld [vmem:[#allocation2 + $0x69] sm:$0xff]
      %v6142 = vld [vmem:[#allocation2 + $0x71] sm:$0xff]
      %v6143 = vld [vmem:[#allocation2 + $0x79] sm:$0xff]
      %v6144 = vld [vmem:[#allocation2 + $0x81] sm:$0xff]
      %v6145 = vld [vmem:[#allocation2 + $0x89] sm:$0xff]
      %v6146 = vld [vmem:[#allocation2 + $0x91] sm:$0xff]
      %v6147 = vld [vmem:[#allocation2 + $0x99] sm:$0xff]
      %v6148 = vld [vmem:[#allocation2 + $0xa1] sm:$0xff]
      %v6149 = vld [vmem:[#allocation2 + $0xa9] sm:$0xff]
      %v6150 = vld [vmem:[#allocation2 + $0xb1] sm:$0xff]
      %v6151 = vld [vmem:[#allocation2 + $0xb9] sm:$0xff]
      %v6152 = vld [vmem:[#allocation2 + $0xc1] sm:$0xff]
      %v6153 = vld [vmem:[#allocation2 + $0xc9] sm:$0xff]
      %v6154 = vld [vmem:[#allocation2 + $0xd1] sm:$0xff]
      %v6155 = vld [vmem:[#allocation2 + $0xd9] sm:$0xff]
      %v6156 = vld [vmem:[#allocation2 + $0xe1] sm:$0xff]
      %v6157 = vld [vmem:[#allocation2 + $0xe9] sm:$0xff]
      %v6158 = vld [vmem:[#allocation2 + $0xf1] sm:$0xff]
      %v6159 = vld [vmem:[#allocation2 + $0xf9] sm:$0xff]
      %v6160 = vld [vmem:[#allocation2 + $0x101] sm:$0xff]
      %v6161 = vld [vmem:[#allocation2 + $0x109] sm:$0xff]
      %v6162 = vld [vmem:[#allocation2 + $0x111] sm:$0xff]
      %v6163 = vld [vmem:[#allocation2 + $0x119] sm:$0xff]
      %v6164 = vld [vmem:[#allocation2 + $0x121] sm:$0xff]
      %v6165 = vld [vmem:[#allocation2 + $0x129] sm:$0xff]
      %v6166 = vld [vmem:[#allocation2 + $0x131] sm:$0xff]
      %v6167 = vld [vmem:[#allocation2 + $0x139] sm:$0xff]
      %v6168 = vld [vmem:[#allocation2 + $0x141] sm:$0xff]
      %v6169 = vld [vmem:[#allocation2 + $0x149] sm:$0xff]
      %v6170 = vld [vmem:[#allocation2 + $0x151] sm:$0xff]
      %v6171 = vld [vmem:[#allocation2 + $0x159] sm:$0xf]
      %v6172 = vpack.c.bf16 %v6132, %v6131
      %v6173 = vpack.c.bf16 %v6134, %v6133
      %v6174 = vpack.c.bf16 %v6136, %v6135
      %v6175 = vpack.c.bf16 %v6138, %v6137
      %v6176 = vpack.c.bf16 %v6140, %v6139
      %v6177 = vpack.c.bf16 %v6142, %v6141
      %v6178 = vpack.c.bf16 %v6144, %v6143
      %v6179 = vpack.c.bf16 %v6146, %v6145
      %v6180 = vpack.c.bf16 %v6148, %v6147
      %v6181 = vpack.c.bf16 %v6150, %v6149
      %v6182 = vpack.c.bf16 %v6152, %v6151
      %v6183 = vpack.c.bf16 %v6154, %v6153
      %v6184 = vpack.c.bf16 %v6156, %v6155
      %v6185 = vpack.c.bf16 %v6158, %v6157
      %v6186 = vpack.c.bf16 %v6160, %v6159
      %v6187 = vpack.c.bf16 %v6162, %v6161
      %v6188 = vpack.c.bf16 %v6164, %v6163
      %v6189 = vpack.c.bf16 %v6166, %v6165
      %v6190 = vpack.c.bf16 %v6168, %v6167
      %v6191 = vpack.c.bf16 %v6170, %v6169
      %v6192 = vpack.c.bf16 %v6171, %v6171
      %s6193 = scalar_lea.vmem %s4, 160
      %v6194 = vld [vmem:[%s6193] sm:$0xf]
      %v6195 = vld [vmem:[%s6193 + $0x4] sm:$0xf]
      %v6196 = vld [vmem:[%s6193 + $0x8] sm:$0xf]
      %v6197 = vld [vmem:[%s6193 + $0xc] sm:$0xf]
      %v6198 = vld [vmem:[%s6193 + $0x10] sm:$0xf]
      %v6199 = vld [vmem:[%s6193 + $0x14] sm:$0xf]
      %v6200 = vld [vmem:[%s6193 + $0x18] sm:$0xf]
      %v6201 = vld [vmem:[%s6193 + $0x1c] sm:$0xf]
      %v6210 = vunpack.c.l.b16 %v6194
      %v6211 = vunpack.c.l.b16 %v6195
      %v6212 = vunpack.c.l.b16 %v6196
      %v6213 = vunpack.c.l.b16 %v6197
      %v6214 = vunpack.c.l.b16 %v6198
      %v6215 = vunpack.c.l.b16 %v6199
      %v6216 = vunpack.c.l.b16 %v6200
      %v6217 = vunpack.c.l.b16 %v6201
      %v6218 = vpack.c.b16 %v6211, %v6210
      %v6219 = vpack.c.b16 %v6213, %v6212
      %v6220 = vpack.c.b16 %v6215, %v6214
      %v6221 = vpack.c.b16 %v6217, %v6216
      %v6227 = vsel %vm368, %v6172, 0
      %v6230 = vsel %vm368, %v6173, 0
      %v6233 = vsel %vm368, %v6174, 0
      %v6236 = vsel %vm368, %v6175, 0
      %v6239 = vsel %vm368, %v6176, 0
      %v6242 = vsel %vm368, %v6177, 0
      %v6245 = vsel %vm368, %v6178, 0
      %v6248 = vsel %vm368, %v6179, 0
      %v6251 = vsel %vm368, %v6180, 0
      %v6254 = vsel %vm368, %v6181, 0
      %v6257 = vsel %vm368, %v6182, 0
      %v6260 = vsel %vm368, %v6183, 0
      %v6263 = vsel %vm368, %v6184, 0
      %v6266 = vsel %vm368, %v6185, 0
      %v6269 = vsel %vm368, %v6186, 0
      %v6272 = vsel %vm368, %v6187, 0
      %v6275 = vsel %vm368, %v6188, 0
      %v6278 = vsel %vm368, %v6189, 0
      %v6281 = vsel %vm368, %v6190, 0
      %v6284 = vsel %vm368, %v6191, 0
      %v6287 = vsel %vm368, %v6192, 0
      %6289 = vmatprep.subr.bf16.mxu0 0
      %6290 = vmatpush1.bf16.msra.mxu0 0
      %6291 = vmatprep.subr.bf16.mxu0 0
      %6292 = vmatpush1.bf16.msra.mxu0 0
      %6293 = vmatprep.subr.bf16.mxu0 0
      %6294 = vmatpush1.bf16.msra.mxu0 0
      %6295 = vmatprep.subr.bf16.mxu0 0
      %6296 = vmatpush1.bf16.msra.mxu0 0
      %6297 = vmatprep.subr.bf16.mxu0 0
      %6298 = vmatpush1.bf16.msra.mxu0 %v6221
      %6299 = vmatprep.subr.bf16.mxu0 0
      %6300 = vmatpush1.bf16.msra.mxu0 %v6220
      %6301 = vmatprep.subr.bf16.mxu0 0
      %6302 = vmatpush1.bf16.msra.mxu0 %v6219
      %6303 = vmatprep.subr.bf16.mxu0 0
      %6304 = vmatpush1.bf16.msra.mxu0 %v6218
      %6305 = vmatprep.subr.bf16.mxu0 0
      %6306 = vmatpush2.bf16.msra.mxu0 0
      %6307 = vmatprep.subr.bf16.mxu0 0
      %6308 = vmatpush2.bf16.msra.mxu0 0
      %6309 = vmatprep.subr.bf16.mxu0 0
      %6310 = vmatpush2.bf16.msra.mxu0 0
      %6311 = vmatprep.subr.bf16.mxu0 0
      %6312 = vmatpush2.bf16.msra.mxu0 0
      %6313 = vmatprep.subr.bf16.mxu0 0
      %6314 = vmatpush2.bf16.msra.mxu0 0
      %6315 = vmatprep.subr.bf16.mxu0 0
      %6316 = vmatpush2.bf16.msra.mxu0 0
      %6317 = vmatprep.subr.bf16.mxu0 0
      %6318 = vmatpush2.bf16.msra.mxu0 0
      %6319 = vmatprep.subr.bf16.mxu0 0
      %6320 = vmatpush2.bf16.msra.mxu0 0
      %6321 = vmatprep.mubr.bf16.mxu0 0
      %6322 = vmatmul.mubr.bf16.gmra.mxu0 %v6227
      %v6323 = vpop.f32.mrf.mxu0
      %v6324 = vadd.f32 0.0, %v6323
      %v6325 = vpop.f32.mrf.mxu0
      %v6326 = vpop.f32.mrf.mxu0
      %v6327 = vadd.f32 0.0, %v6326
      %v6328 = vpop.f32.mrf.mxu0
      %6329 = vmatprep.mubr.bf16.mxu0 0
      %6330 = vmatmul.mubr.bf16.gmra.mxu0 %v6230
      %v6331 = vpop.f32.mrf.mxu0
      %v6332 = vadd.f32 0.0, %v6331
      %v6333 = vpop.f32.mrf.mxu0
      %v6334 = vpop.f32.mrf.mxu0
      %v6335 = vadd.f32 0.0, %v6334
      %v6336 = vpop.f32.mrf.mxu0
      %6337 = vmatprep.mubr.bf16.mxu0 0
      %6338 = vmatmul.mubr.bf16.gmra.mxu0 %v6233
      %v6339 = vpop.f32.mrf.mxu0
      %v6340 = vadd.f32 0.0, %v6339
      %v6341 = vpop.f32.mrf.mxu0
      %v6342 = vpop.f32.mrf.mxu0
      %v6343 = vadd.f32 0.0, %v6342
      %v6344 = vpop.f32.mrf.mxu0
      %6345 = vmatprep.mubr.bf16.mxu0 0
      %6346 = vmatmul.mubr.bf16.gmra.mxu0 %v6236
      %v6347 = vpop.f32.mrf.mxu0
      %v6348 = vadd.f32 0.0, %v6347
      %v6349 = vpop.f32.mrf.mxu0
      %v6350 = vpop.f32.mrf.mxu0
      %v6351 = vadd.f32 0.0, %v6350
      %v6352 = vpop.f32.mrf.mxu0
      %6353 = vmatprep.mubr.bf16.mxu0 0
      %6354 = vmatmul.mubr.bf16.gmra.mxu0 %v6239
      %v6355 = vpop.f32.mrf.mxu0
      %v6356 = vadd.f32 0.0, %v6355
      %v6357 = vpop.f32.mrf.mxu0
      %v6358 = vpop.f32.mrf.mxu0
      %v6359 = vadd.f32 0.0, %v6358
      %v6360 = vpop.f32.mrf.mxu0
      %6361 = vmatprep.mubr.bf16.mxu0 0
      %6362 = vmatmul.mubr.bf16.gmra.mxu0 %v6242
      %v6363 = vpop.f32.mrf.mxu0
      %v6364 = vadd.f32 0.0, %v6363
      %v6365 = vpop.f32.mrf.mxu0
      %v6366 = vpop.f32.mrf.mxu0
      %v6367 = vadd.f32 0.0, %v6366
      %v6368 = vpop.f32.mrf.mxu0
      %6369 = vmatprep.mubr.bf16.mxu0 0
      %6370 = vmatmul.mubr.bf16.gmra.mxu0 %v6245
      %v6371 = vpop.f32.mrf.mxu0
      %v6372 = vadd.f32 0.0, %v6371
      %v6373 = vpop.f32.mrf.mxu0
      %v6374 = vpop.f32.mrf.mxu0
      %v6375 = vadd.f32 0.0, %v6374
      %v6376 = vpop.f32.mrf.mxu0
      %6377 = vmatprep.mubr.bf16.mxu0 0
      %6378 = vmatmul.mubr.bf16.gmra.mxu0 %v6248
      %v6379 = vpop.f32.mrf.mxu0
      %v6380 = vadd.f32 0.0, %v6379
      %v6381 = vpop.f32.mrf.mxu0
      %v6382 = vpop.f32.mrf.mxu0
      %v6383 = vadd.f32 0.0, %v6382
      %v6384 = vpop.f32.mrf.mxu0
      %6385 = vmatprep.mubr.bf16.mxu0 0
      %6386 = vmatmul.mubr.bf16.gmra.mxu0 %v6251
      %v6387 = vpop.f32.mrf.mxu0
      %v6388 = vadd.f32 0.0, %v6387
      %v6389 = vpop.f32.mrf.mxu0
      %v6390 = vpop.f32.mrf.mxu0
      %v6391 = vadd.f32 0.0, %v6390
      %v6392 = vpop.f32.mrf.mxu0
      %6393 = vmatprep.mubr.bf16.mxu0 0
      %6394 = vmatmul.mubr.bf16.gmra.mxu0 %v6254
      %v6395 = vpop.f32.mrf.mxu0
      %v6396 = vadd.f32 0.0, %v6395
      %v6397 = vpop.f32.mrf.mxu0
      %v6398 = vpop.f32.mrf.mxu0
      %v6399 = vadd.f32 0.0, %v6398
      %v6400 = vpop.f32.mrf.mxu0
      %6401 = vmatprep.mubr.bf16.mxu0 0
      %6402 = vmatmul.mubr.bf16.gmra.mxu0 %v6257
      %v6403 = vpop.f32.mrf.mxu0
      %v6404 = vadd.f32 0.0, %v6403
      %v6405 = vpop.f32.mrf.mxu0
      %v6406 = vpop.f32.mrf.mxu0
      %v6407 = vadd.f32 0.0, %v6406
      %v6408 = vpop.f32.mrf.mxu0
      %6409 = vmatprep.mubr.bf16.mxu0 0
      %6410 = vmatmul.mubr.bf16.gmra.mxu0 %v6260
      %v6411 = vpop.f32.mrf.mxu0
      %v6412 = vadd.f32 0.0, %v6411
      %v6413 = vpop.f32.mrf.mxu0
      %v6414 = vpop.f32.mrf.mxu0
      %v6415 = vadd.f32 0.0, %v6414
      %v6416 = vpop.f32.mrf.mxu0
      %6417 = vmatprep.mubr.bf16.mxu0 0
      %6418 = vmatmul.mubr.bf16.gmra.mxu0 %v6263
      %v6419 = vpop.f32.mrf.mxu0
      %v6420 = vadd.f32 0.0, %v6419
      %v6421 = vpop.f32.mrf.mxu0
      %v6422 = vpop.f32.mrf.mxu0
      %v6423 = vadd.f32 0.0, %v6422
      %v6424 = vpop.f32.mrf.mxu0
      %6425 = vmatprep.mubr.bf16.mxu0 0
      %6426 = vmatmul.mubr.bf16.gmra.mxu0 %v6266
      %v6427 = vpop.f32.mrf.mxu0
      %v6428 = vadd.f32 0.0, %v6427
      %v6429 = vpop.f32.mrf.mxu0
      %v6430 = vpop.f32.mrf.mxu0
      %v6431 = vadd.f32 0.0, %v6430
      %v6432 = vpop.f32.mrf.mxu0
      %6433 = vmatprep.mubr.bf16.mxu0 0
      %6434 = vmatmul.mubr.bf16.gmra.mxu0 %v6269
      %v6435 = vpop.f32.mrf.mxu0
      %v6436 = vadd.f32 0.0, %v6435
      %v6437 = vpop.f32.mrf.mxu0
      %v6438 = vpop.f32.mrf.mxu0
      %v6439 = vadd.f32 0.0, %v6438
      %v6440 = vpop.f32.mrf.mxu0
      %6441 = vmatprep.mubr.bf16.mxu0 0
      %6442 = vmatmul.mubr.bf16.gmra.mxu0 %v6272
      %v6443 = vpop.f32.mrf.mxu0
      %v6444 = vadd.f32 0.0, %v6443
      %v6445 = vpop.f32.mrf.mxu0
      %v6446 = vpop.f32.mrf.mxu0
      %v6447 = vadd.f32 0.0, %v6446
      %v6448 = vpop.f32.mrf.mxu0
      %6449 = vmatprep.mubr.bf16.mxu0 0
      %6450 = vmatmul.mubr.bf16.gmra.mxu0 %v6275
      %v6451 = vpop.f32.mrf.mxu0
      %v6452 = vadd.f32 0.0, %v6451
      %v6453 = vpop.f32.mrf.mxu0
      %v6454 = vpop.f32.mrf.mxu0
      %v6455 = vadd.f32 0.0, %v6454
      %v6456 = vpop.f32.mrf.mxu0
      %6457 = vmatprep.mubr.bf16.mxu0 0
      %6458 = vmatmul.mubr.bf16.gmra.mxu0 %v6278
      %v6459 = vpop.f32.mrf.mxu0
      %v6460 = vadd.f32 0.0, %v6459
      %v6461 = vpop.f32.mrf.mxu0
      %v6462 = vpop.f32.mrf.mxu0
      %v6463 = vadd.f32 0.0, %v6462
      %v6464 = vpop.f32.mrf.mxu0
      %6465 = vmatprep.mubr.bf16.mxu0 0
      %6466 = vmatmul.mubr.bf16.gmra.mxu0 %v6281
      %v6467 = vpop.f32.mrf.mxu0
      %v6468 = vadd.f32 0.0, %v6467
      %v6469 = vpop.f32.mrf.mxu0
      %v6470 = vpop.f32.mrf.mxu0
      %v6471 = vadd.f32 0.0, %v6470
      %v6472 = vpop.f32.mrf.mxu0
      %6473 = vmatprep.mubr.bf16.mxu0 0
      %6474 = vmatmul.mubr.bf16.gmra.mxu0 %v6284
      %v6475 = vpop.f32.mrf.mxu0
      %v6476 = vadd.f32 0.0, %v6475
      %v6477 = vpop.f32.mrf.mxu0
      %v6478 = vpop.f32.mrf.mxu0
      %v6479 = vadd.f32 0.0, %v6478
      %v6480 = vpop.f32.mrf.mxu0
      %6481 = vmatprep.mubr.bf16.mxu0 0
      %6482 = vmatmul.mubr.bf16.gmra.mxu0 %v6287
      %v6483 = vpop.f32.mrf.mxu0
      %v6484 = vadd.f32 0.0, %v6483
      %v6485 = vpop.f32.mrf.mxu0
      %v6486 = vpop.f32.mrf.mxu0
      %v6487 = vpop.f32.mrf.mxu0
      %6488 = vdwg.mxu0
      %v6489 = vadd.f32 %v6090, %v6324
      %v6490 = vadd.f32 %v6091, %v6327
      %v6491 = vadd.f32 %v6092, %v6332
      %v6492 = vadd.f32 %v6093, %v6335
      %v6493 = vadd.f32 %v6094, %v6340
      %v6494 = vadd.f32 %v6095, %v6343
      %v6495 = vadd.f32 %v6096, %v6348
      %v6496 = vadd.f32 %v6097, %v6351
      %v6497 = vadd.f32 %v6098, %v6356
      %v6498 = vadd.f32 %v6099, %v6359
      %v6499 = vadd.f32 %v6100, %v6364
      %v6500 = vadd.f32 %v6101, %v6367
      %v6501 = vadd.f32 %v6102, %v6372
      %v6502 = vadd.f32 %v6103, %v6375
      %v6503 = vadd.f32 %v6104, %v6380
      %v6504 = vadd.f32 %v6105, %v6383
      %v6505 = vadd.f32 %v6106, %v6388
      %v6506 = vadd.f32 %v6107, %v6391
      %v6507 = vadd.f32 %v6108, %v6396
      %v6508 = vadd.f32 %v6109, %v6399
      %v6509 = vadd.f32 %v6110, %v6404
      %v6510 = vadd.f32 %v6111, %v6407
      %v6511 = vadd.f32 %v6112, %v6412
      %v6512 = vadd.f32 %v6113, %v6415
      %v6513 = vadd.f32 %v6114, %v6420
      %v6514 = vadd.f32 %v6115, %v6423
      %v6515 = vadd.f32 %v6116, %v6428
      %v6516 = vadd.f32 %v6117, %v6431
      %v6517 = vadd.f32 %v6118, %v6436
      %v6518 = vadd.f32 %v6119, %v6439
      %v6519 = vadd.f32 %v6120, %v6444
      %v6520 = vadd.f32 %v6121, %v6447
      %v6521 = vadd.f32 %v6122, %v6452
      %v6522 = vadd.f32 %v6123, %v6455
      %v6523 = vadd.f32 %v6124, %v6460
      %v6524 = vadd.f32 %v6125, %v6463
      %v6525 = vadd.f32 %v6126, %v6468
      %v6526 = vadd.f32 %v6127, %v6471
      %v6527 = vadd.f32 %v6128, %v6476
      %v6528 = vadd.f32 %v6129, %v6479
      %v6529 = vadd.f32 %v6130, %v6484
      %v6530 = vld [vmem:[#allocation2 + $0x29] sm:$0xff]
      %v6531 = vld [vmem:[#allocation2 + $0x31] sm:$0xff]
      %v6532 = vld [vmem:[#allocation2 + $0x39] sm:$0xff]
      %v6533 = vld [vmem:[#allocation2 + $0x41] sm:$0xff]
      %v6534 = vld [vmem:[#allocation2 + $0x49] sm:$0xff]
      %v6535 = vld [vmem:[#allocation2 + $0x51] sm:$0xff]
      %v6536 = vld [vmem:[#allocation2 + $0x59] sm:$0xff]
      %v6537 = vld [vmem:[#allocation2 + $0x61] sm:$0xff]
      %v6538 = vld [vmem:[#allocation2 + $0x69] sm:$0xff]
      %v6539 = vld [vmem:[#allocation2 + $0x71] sm:$0xff]
      %v6540 = vld [vmem:[#allocation2 + $0x79] sm:$0xff]
      %v6541 = vld [vmem:[#allocation2 + $0x81] sm:$0xff]
      %v6542 = vld [vmem:[#allocation2 + $0x89] sm:$0xff]
      %v6543 = vld [vmem:[#allocation2 + $0x91] sm:$0xff]
      %v6544 = vld [vmem:[#allocation2 + $0x99] sm:$0xff]
      %v6545 = vld [vmem:[#allocation2 + $0xa1] sm:$0xff]
      %v6546 = vld [vmem:[#allocation2 + $0xa9] sm:$0xff]
      %v6547 = vld [vmem:[#allocation2 + $0xb1] sm:$0xff]
      %v6548 = vld [vmem:[#allocation2 + $0xb9] sm:$0xff]
      %v6549 = vld [vmem:[#allocation2 + $0xc1] sm:$0xff]
      %v6550 = vld [vmem:[#allocation2 + $0xc9] sm:$0xff]
      %v6551 = vld [vmem:[#allocation2 + $0xd1] sm:$0xff]
      %v6552 = vld [vmem:[#allocation2 + $0xd9] sm:$0xff]
      %v6553 = vld [vmem:[#allocation2 + $0xe1] sm:$0xff]
      %v6554 = vld [vmem:[#allocation2 + $0xe9] sm:$0xff]
      %v6555 = vld [vmem:[#allocation2 + $0xf1] sm:$0xff]
      %v6556 = vld [vmem:[#allocation2 + $0xf9] sm:$0xff]
      %v6557 = vld [vmem:[#allocation2 + $0x101] sm:$0xff]
      %v6558 = vld [vmem:[#allocation2 + $0x109] sm:$0xff]
      %v6559 = vld [vmem:[#allocation2 + $0x111] sm:$0xff]
      %v6560 = vld [vmem:[#allocation2 + $0x119] sm:$0xff]
      %v6561 = vld [vmem:[#allocation2 + $0x121] sm:$0xff]
      %v6562 = vld [vmem:[#allocation2 + $0x129] sm:$0xff]
      %v6563 = vld [vmem:[#allocation2 + $0x131] sm:$0xff]
      %v6564 = vld [vmem:[#allocation2 + $0x139] sm:$0xff]
      %v6565 = vld [vmem:[#allocation2 + $0x141] sm:$0xff]
      %v6566 = vld [vmem:[#allocation2 + $0x149] sm:$0xff]
      %v6567 = vld [vmem:[#allocation2 + $0x151] sm:$0xff]
      %v6568 = vld [vmem:[#allocation2 + $0x159] sm:$0xff]
      %v6569 = vld [vmem:[#allocation2 + $0x161] sm:$0xff]
      %v6570 = vld [vmem:[#allocation2 + $0x169] sm:$0xf]
      %v6571 = vpack.c.bf16 %v6531, %v6530
      %v6572 = vpack.c.bf16 %v6533, %v6532
      %v6573 = vpack.c.bf16 %v6535, %v6534
      %v6574 = vpack.c.bf16 %v6537, %v6536
      %v6575 = vpack.c.bf16 %v6539, %v6538
      %v6576 = vpack.c.bf16 %v6541, %v6540
      %v6577 = vpack.c.bf16 %v6543, %v6542
      %v6578 = vpack.c.bf16 %v6545, %v6544
      %v6579 = vpack.c.bf16 %v6547, %v6546
      %v6580 = vpack.c.bf16 %v6549, %v6548
      %v6581 = vpack.c.bf16 %v6551, %v6550
      %v6582 = vpack.c.bf16 %v6553, %v6552
      %v6583 = vpack.c.bf16 %v6555, %v6554
      %v6584 = vpack.c.bf16 %v6557, %v6556
      %v6585 = vpack.c.bf16 %v6559, %v6558
      %v6586 = vpack.c.bf16 %v6561, %v6560
      %v6587 = vpack.c.bf16 %v6563, %v6562
      %v6588 = vpack.c.bf16 %v6565, %v6564
      %v6589 = vpack.c.bf16 %v6567, %v6566
      %v6590 = vpack.c.bf16 %v6569, %v6568
      %v6591 = vpack.c.bf16 %v6570, %v6570
      %s6592 = scalar_lea.vmem %s4, 192
      %v6593 = vld [vmem:[%s6592] sm:$0xf]
      %v6594 = vld [vmem:[%s6592 + $0x4] sm:$0xf]
      %v6595 = vld [vmem:[%s6592 + $0x8] sm:$0xf]
      %v6596 = vld [vmem:[%s6592 + $0xc] sm:$0xf]
      %v6597 = vld [vmem:[%s6592 + $0x10] sm:$0xf]
      %v6598 = vld [vmem:[%s6592 + $0x14] sm:$0xf]
      %v6599 = vld [vmem:[%s6592 + $0x18] sm:$0xf]
      %v6600 = vld [vmem:[%s6592 + $0x1c] sm:$0xf]
      %v6609 = vunpack.c.l.b16 %v6593
      %v6610 = vunpack.c.l.b16 %v6594
      %v6611 = vunpack.c.l.b16 %v6595
      %v6612 = vunpack.c.l.b16 %v6596
      %v6613 = vunpack.c.l.b16 %v6597
      %v6614 = vunpack.c.l.b16 %v6598
      %v6615 = vunpack.c.l.b16 %v6599
      %v6616 = vunpack.c.l.b16 %v6600
      %v6617 = vpack.c.b16 %v6610, %v6609
      %v6618 = vpack.c.b16 %v6612, %v6611
      %v6619 = vpack.c.b16 %v6614, %v6613
      %v6620 = vpack.c.b16 %v6616, %v6615
      %v6626 = vsel %vm368, %v6571, 0
      %v6629 = vsel %vm368, %v6572, 0
      %v6632 = vsel %vm368, %v6573, 0
      %v6635 = vsel %vm368, %v6574, 0
      %v6638 = vsel %vm368, %v6575, 0
      %v6641 = vsel %vm368, %v6576, 0
      %v6644 = vsel %vm368, %v6577, 0
      %v6647 = vsel %vm368, %v6578, 0
      %v6650 = vsel %vm368, %v6579, 0
      %v6653 = vsel %vm368, %v6580, 0
      %v6656 = vsel %vm368, %v6581, 0
      %v6659 = vsel %vm368, %v6582, 0
      %v6662 = vsel %vm368, %v6583, 0
      %v6665 = vsel %vm368, %v6584, 0
      %v6668 = vsel %vm368, %v6585, 0
      %v6671 = vsel %vm368, %v6586, 0
      %v6674 = vsel %vm368, %v6587, 0
      %v6677 = vsel %vm368, %v6588, 0
      %v6680 = vsel %vm368, %v6589, 0
      %v6683 = vsel %vm368, %v6590, 0
      %v6686 = vsel %vm368, %v6591, 0
      %6688 = vmatprep.subr.bf16.mxu0 0
      %6689 = vmatpush1.bf16.msra.mxu0 0
      %6690 = vmatprep.subr.bf16.mxu0 0
      %6691 = vmatpush1.bf16.msra.mxu0 0
      %6692 = vmatprep.subr.bf16.mxu0 0
      %6693 = vmatpush1.bf16.msra.mxu0 0
      %6694 = vmatprep.subr.bf16.mxu0 0
      %6695 = vmatpush1.bf16.msra.mxu0 0
      %6696 = vmatprep.subr.bf16.mxu0 0
      %6697 = vmatpush1.bf16.msra.mxu0 %v6620
      %6698 = vmatprep.subr.bf16.mxu0 0
      %6699 = vmatpush1.bf16.msra.mxu0 %v6619
      %6700 = vmatprep.subr.bf16.mxu0 0
      %6701 = vmatpush1.bf16.msra.mxu0 %v6618
      %6702 = vmatprep.subr.bf16.mxu0 0
      %6703 = vmatpush1.bf16.msra.mxu0 %v6617
      %6704 = vmatprep.subr.bf16.mxu0 0
      %6705 = vmatpush2.bf16.msra.mxu0 0
      %6706 = vmatprep.subr.bf16.mxu0 0
      %6707 = vmatpush2.bf16.msra.mxu0 0
      %6708 = vmatprep.subr.bf16.mxu0 0
      %6709 = vmatpush2.bf16.msra.mxu0 0
      %6710 = vmatprep.subr.bf16.mxu0 0
      %6711 = vmatpush2.bf16.msra.mxu0 0
      %6712 = vmatprep.subr.bf16.mxu0 0
      %6713 = vmatpush2.bf16.msra.mxu0 0
      %6714 = vmatprep.subr.bf16.mxu0 0
      %6715 = vmatpush2.bf16.msra.mxu0 0
      %6716 = vmatprep.subr.bf16.mxu0 0
      %6717 = vmatpush2.bf16.msra.mxu0 0
      %6718 = vmatprep.subr.bf16.mxu0 0
      %6719 = vmatpush2.bf16.msra.mxu0 0
      %6720 = vmatprep.mubr.bf16.mxu0 0
      %6721 = vmatmul.mubr.bf16.gmra.mxu0 %v6626
      %v6722 = vpop.f32.mrf.mxu0
      %v6723 = vadd.f32 0.0, %v6722
      %v6724 = vpop.f32.mrf.mxu0
      %v6725 = vpop.f32.mrf.mxu0
      %v6726 = vadd.f32 0.0, %v6725
      %v6727 = vpop.f32.mrf.mxu0
      %6728 = vmatprep.mubr.bf16.mxu0 0
      %6729 = vmatmul.mubr.bf16.gmra.mxu0 %v6629
      %v6730 = vpop.f32.mrf.mxu0
      %v6731 = vadd.f32 0.0, %v6730
      %v6732 = vpop.f32.mrf.mxu0
      %v6733 = vpop.f32.mrf.mxu0
      %v6734 = vadd.f32 0.0, %v6733
      %v6735 = vpop.f32.mrf.mxu0
      %6736 = vmatprep.mubr.bf16.mxu0 0
      %6737 = vmatmul.mubr.bf16.gmra.mxu0 %v6632
      %v6738 = vpop.f32.mrf.mxu0
      %v6739 = vadd.f32 0.0, %v6738
      %v6740 = vpop.f32.mrf.mxu0
      %v6741 = vpop.f32.mrf.mxu0
      %v6742 = vadd.f32 0.0, %v6741
      %v6743 = vpop.f32.mrf.mxu0
      %6744 = vmatprep.mubr.bf16.mxu0 0
      %6745 = vmatmul.mubr.bf16.gmra.mxu0 %v6635
      %v6746 = vpop.f32.mrf.mxu0
      %v6747 = vadd.f32 0.0, %v6746
      %v6748 = vpop.f32.mrf.mxu0
      %v6749 = vpop.f32.mrf.mxu0
      %v6750 = vadd.f32 0.0, %v6749
      %v6751 = vpop.f32.mrf.mxu0
      %6752 = vmatprep.mubr.bf16.mxu0 0
      %6753 = vmatmul.mubr.bf16.gmra.mxu0 %v6638
      %v6754 = vpop.f32.mrf.mxu0
      %v6755 = vadd.f32 0.0, %v6754
      %v6756 = vpop.f32.mrf.mxu0
      %v6757 = vpop.f32.mrf.mxu0
      %v6758 = vadd.f32 0.0, %v6757
      %v6759 = vpop.f32.mrf.mxu0
      %6760 = vmatprep.mubr.bf16.mxu0 0
      %6761 = vmatmul.mubr.bf16.gmra.mxu0 %v6641
      %v6762 = vpop.f32.mrf.mxu0
      %v6763 = vadd.f32 0.0, %v6762
      %v6764 = vpop.f32.mrf.mxu0
      %v6765 = vpop.f32.mrf.mxu0
      %v6766 = vadd.f32 0.0, %v6765
      %v6767 = vpop.f32.mrf.mxu0
      %6768 = vmatprep.mubr.bf16.mxu0 0
      %6769 = vmatmul.mubr.bf16.gmra.mxu0 %v6644
      %v6770 = vpop.f32.mrf.mxu0
      %v6771 = vadd.f32 0.0, %v6770
      %v6772 = vpop.f32.mrf.mxu0
      %v6773 = vpop.f32.mrf.mxu0
      %v6774 = vadd.f32 0.0, %v6773
      %v6775 = vpop.f32.mrf.mxu0
      %6776 = vmatprep.mubr.bf16.mxu0 0
      %6777 = vmatmul.mubr.bf16.gmra.mxu0 %v6647
      %v6778 = vpop.f32.mrf.mxu0
      %v6779 = vadd.f32 0.0, %v6778
      %v6780 = vpop.f32.mrf.mxu0
      %v6781 = vpop.f32.mrf.mxu0
      %v6782 = vadd.f32 0.0, %v6781
      %v6783 = vpop.f32.mrf.mxu0
      %6784 = vmatprep.mubr.bf16.mxu0 0
      %6785 = vmatmul.mubr.bf16.gmra.mxu0 %v6650
      %v6786 = vpop.f32.mrf.mxu0
      %v6787 = vadd.f32 0.0, %v6786
      %v6788 = vpop.f32.mrf.mxu0
      %v6789 = vpop.f32.mrf.mxu0
      %v6790 = vadd.f32 0.0, %v6789
      %v6791 = vpop.f32.mrf.mxu0
      %6792 = vmatprep.mubr.bf16.mxu0 0
      %6793 = vmatmul.mubr.bf16.gmra.mxu0 %v6653
      %v6794 = vpop.f32.mrf.mxu0
      %v6795 = vadd.f32 0.0, %v6794
      %v6796 = vpop.f32.mrf.mxu0
      %v6797 = vpop.f32.mrf.mxu0
      %v6798 = vadd.f32 0.0, %v6797
      %v6799 = vpop.f32.mrf.mxu0
      %6800 = vmatprep.mubr.bf16.mxu0 0
      %6801 = vmatmul.mubr.bf16.gmra.mxu0 %v6656
      %v6802 = vpop.f32.mrf.mxu0
      %v6803 = vadd.f32 0.0, %v6802
      %v6804 = vpop.f32.mrf.mxu0
      %v6805 = vpop.f32.mrf.mxu0
      %v6806 = vadd.f32 0.0, %v6805
      %v6807 = vpop.f32.mrf.mxu0
      %6808 = vmatprep.mubr.bf16.mxu0 0
      %6809 = vmatmul.mubr.bf16.gmra.mxu0 %v6659
      %v6810 = vpop.f32.mrf.mxu0
      %v6811 = vadd.f32 0.0, %v6810
      %v6812 = vpop.f32.mrf.mxu0
      %v6813 = vpop.f32.mrf.mxu0
      %v6814 = vadd.f32 0.0, %v6813
      %v6815 = vpop.f32.mrf.mxu0
      %6816 = vmatprep.mubr.bf16.mxu0 0
      %6817 = vmatmul.mubr.bf16.gmra.mxu0 %v6662
      %v6818 = vpop.f32.mrf.mxu0
      %v6819 = vadd.f32 0.0, %v6818
      %v6820 = vpop.f32.mrf.mxu0
      %v6821 = vpop.f32.mrf.mxu0
      %v6822 = vadd.f32 0.0, %v6821
      %v6823 = vpop.f32.mrf.mxu0
      %6824 = vmatprep.mubr.bf16.mxu0 0
      %6825 = vmatmul.mubr.bf16.gmra.mxu0 %v6665
      %v6826 = vpop.f32.mrf.mxu0
      %v6827 = vadd.f32 0.0, %v6826
      %v6828 = vpop.f32.mrf.mxu0
      %v6829 = vpop.f32.mrf.mxu0
      %v6830 = vadd.f32 0.0, %v6829
      %v6831 = vpop.f32.mrf.mxu0
      %6832 = vmatprep.mubr.bf16.mxu0 0
      %6833 = vmatmul.mubr.bf16.gmra.mxu0 %v6668
      %v6834 = vpop.f32.mrf.mxu0
      %v6835 = vadd.f32 0.0, %v6834
      %v6836 = vpop.f32.mrf.mxu0
      %v6837 = vpop.f32.mrf.mxu0
      %v6838 = vadd.f32 0.0, %v6837
      %v6839 = vpop.f32.mrf.mxu0
      %6840 = vmatprep.mubr.bf16.mxu0 0
      %6841 = vmatmul.mubr.bf16.gmra.mxu0 %v6671
      %v6842 = vpop.f32.mrf.mxu0
      %v6843 = vadd.f32 0.0, %v6842
      %v6844 = vpop.f32.mrf.mxu0
      %v6845 = vpop.f32.mrf.mxu0
      %v6846 = vadd.f32 0.0, %v6845
      %v6847 = vpop.f32.mrf.mxu0
      %6848 = vmatprep.mubr.bf16.mxu0 0
      %6849 = vmatmul.mubr.bf16.gmra.mxu0 %v6674
      %v6850 = vpop.f32.mrf.mxu0
      %v6851 = vadd.f32 0.0, %v6850
      %v6852 = vpop.f32.mrf.mxu0
      %v6853 = vpop.f32.mrf.mxu0
      %v6854 = vadd.f32 0.0, %v6853
      %v6855 = vpop.f32.mrf.mxu0
      %6856 = vmatprep.mubr.bf16.mxu0 0
      %6857 = vmatmul.mubr.bf16.gmra.mxu0 %v6677
      %v6858 = vpop.f32.mrf.mxu0
      %v6859 = vadd.f32 0.0, %v6858
      %v6860 = vpop.f32.mrf.mxu0
      %v6861 = vpop.f32.mrf.mxu0
      %v6862 = vadd.f32 0.0, %v6861
      %v6863 = vpop.f32.mrf.mxu0
      %6864 = vmatprep.mubr.bf16.mxu0 0
      %6865 = vmatmul.mubr.bf16.gmra.mxu0 %v6680
      %v6866 = vpop.f32.mrf.mxu0
      %v6867 = vadd.f32 0.0, %v6866
      %v6868 = vpop.f32.mrf.mxu0
      %v6869 = vpop.f32.mrf.mxu0
      %v6870 = vadd.f32 0.0, %v6869
      %v6871 = vpop.f32.mrf.mxu0
      %6872 = vmatprep.mubr.bf16.mxu0 0
      %6873 = vmatmul.mubr.bf16.gmra.mxu0 %v6683
      %v6874 = vpop.f32.mrf.mxu0
      %v6875 = vadd.f32 0.0, %v6874
      %v6876 = vpop.f32.mrf.mxu0
      %v6877 = vpop.f32.mrf.mxu0
      %v6878 = vadd.f32 0.0, %v6877
      %v6879 = vpop.f32.mrf.mxu0
      %6880 = vmatprep.mubr.bf16.mxu0 0
      %6881 = vmatmul.mubr.bf16.gmra.mxu0 %v6686
      %v6882 = vpop.f32.mrf.mxu0
      %v6883 = vadd.f32 0.0, %v6882
      %v6884 = vpop.f32.mrf.mxu0
      %v6885 = vpop.f32.mrf.mxu0
      %v6886 = vpop.f32.mrf.mxu0
      %6887 = vdwg.mxu0
      %v6888 = vadd.f32 %v6489, %v6723
      %v6889 = vadd.f32 %v6490, %v6726
      %v6890 = vadd.f32 %v6491, %v6731
      %v6891 = vadd.f32 %v6492, %v6734
      %v6892 = vadd.f32 %v6493, %v6739
      %v6893 = vadd.f32 %v6494, %v6742
      %v6894 = vadd.f32 %v6495, %v6747
      %v6895 = vadd.f32 %v6496, %v6750
      %v6896 = vadd.f32 %v6497, %v6755
      %v6897 = vadd.f32 %v6498, %v6758
      %v6898 = vadd.f32 %v6499, %v6763
      %v6899 = vadd.f32 %v6500, %v6766
      %v6900 = vadd.f32 %v6501, %v6771
      %v6901 = vadd.f32 %v6502, %v6774
      %v6902 = vadd.f32 %v6503, %v6779
      %v6903 = vadd.f32 %v6504, %v6782
      %v6904 = vadd.f32 %v6505, %v6787
      %v6905 = vadd.f32 %v6506, %v6790
      %v6906 = vadd.f32 %v6507, %v6795
      %v6907 = vadd.f32 %v6508, %v6798
      %v6908 = vadd.f32 %v6509, %v6803
      %v6909 = vadd.f32 %v6510, %v6806
      %v6910 = vadd.f32 %v6511, %v6811
      %v6911 = vadd.f32 %v6512, %v6814
      %v6912 = vadd.f32 %v6513, %v6819
      %v6913 = vadd.f32 %v6514, %v6822
      %v6914 = vadd.f32 %v6515, %v6827
      %v6915 = vadd.f32 %v6516, %v6830
      %v6916 = vadd.f32 %v6517, %v6835
      %v6917 = vadd.f32 %v6518, %v6838
      %v6918 = vadd.f32 %v6519, %v6843
      %v6919 = vadd.f32 %v6520, %v6846
      %v6920 = vadd.f32 %v6521, %v6851
      %v6921 = vadd.f32 %v6522, %v6854
      %v6922 = vadd.f32 %v6523, %v6859
      %v6923 = vadd.f32 %v6524, %v6862
      %v6924 = vadd.f32 %v6525, %v6867
      %v6925 = vadd.f32 %v6526, %v6870
      %v6926 = vadd.f32 %v6527, %v6875
      %v6927 = vadd.f32 %v6528, %v6878
      %v6928 = vadd.f32 %v6529, %v6883
      %v6929 = vld [vmem:[#allocation2 + $0x2a] sm:$0xff]
      %v6930 = vld [vmem:[#allocation2 + $0x32] sm:$0xff]
      %v6931 = vld [vmem:[#allocation2 + $0x3a] sm:$0xff]
      %v6932 = vld [vmem:[#allocation2 + $0x42] sm:$0xff]
      %v6933 = vld [vmem:[#allocation2 + $0x4a] sm:$0xff]
      %v6934 = vld [vmem:[#allocation2 + $0x52] sm:$0xff]
      %v6935 = vld [vmem:[#allocation2 + $0x5a] sm:$0xff]
      %v6936 = vld [vmem:[#allocation2 + $0x62] sm:$0xff]
      %v6937 = vld [vmem:[#allocation2 + $0x6a] sm:$0xff]
      %v6938 = vld [vmem:[#allocation2 + $0x72] sm:$0xff]
      %v6939 = vld [vmem:[#allocation2 + $0x7a] sm:$0xff]
      %v6940 = vld [vmem:[#allocation2 + $0x82] sm:$0xff]
      %v6941 = vld [vmem:[#allocation2 + $0x8a] sm:$0xff]
      %v6942 = vld [vmem:[#allocation2 + $0x92] sm:$0xff]
      %v6943 = vld [vmem:[#allocation2 + $0x9a] sm:$0xff]
      %v6944 = vld [vmem:[#allocation2 + $0xa2] sm:$0xff]
      %v6945 = vld [vmem:[#allocation2 + $0xaa] sm:$0xff]
      %v6946 = vld [vmem:[#allocation2 + $0xb2] sm:$0xff]
      %v6947 = vld [vmem:[#allocation2 + $0xba] sm:$0xff]
      %v6948 = vld [vmem:[#allocation2 + $0xc2] sm:$0xff]
      %v6949 = vld [vmem:[#allocation2 + $0xca] sm:$0xff]
      %v6950 = vld [vmem:[#allocation2 + $0xd2] sm:$0xff]
      %v6951 = vld [vmem:[#allocation2 + $0xda] sm:$0xff]
      %v6952 = vld [vmem:[#allocation2 + $0xe2] sm:$0xff]
      %v6953 = vld [vmem:[#allocation2 + $0xea] sm:$0xff]
      %v6954 = vld [vmem:[#allocation2 + $0xf2] sm:$0xff]
      %v6955 = vld [vmem:[#allocation2 + $0xfa] sm:$0xff]
      %v6956 = vld [vmem:[#allocation2 + $0x102] sm:$0xff]
      %v6957 = vld [vmem:[#allocation2 + $0x10a] sm:$0xff]
      %v6958 = vld [vmem:[#allocation2 + $0x112] sm:$0xff]
      %v6959 = vld [vmem:[#allocation2 + $0x11a] sm:$0xff]
      %v6960 = vld [vmem:[#allocation2 + $0x122] sm:$0xff]
      %v6961 = vld [vmem:[#allocation2 + $0x12a] sm:$0xff]
      %v6962 = vld [vmem:[#allocation2 + $0x132] sm:$0xff]
      %v6963 = vld [vmem:[#allocation2 + $0x13a] sm:$0xff]
      %v6964 = vld [vmem:[#allocation2 + $0x142] sm:$0xff]
      %v6965 = vld [vmem:[#allocation2 + $0x14a] sm:$0xff]
      %v6966 = vld [vmem:[#allocation2 + $0x152] sm:$0xff]
      %v6967 = vld [vmem:[#allocation2 + $0x15a] sm:$0xff]
      %v6968 = vld [vmem:[#allocation2 + $0x162] sm:$0xff]
      %v6969 = vld [vmem:[#allocation2 + $0x16a] sm:$0xf]
      %v6970 = vpack.c.bf16 %v6930, %v6929
      %v6971 = vpack.c.bf16 %v6932, %v6931
      %v6972 = vpack.c.bf16 %v6934, %v6933
      %v6973 = vpack.c.bf16 %v6936, %v6935
      %v6974 = vpack.c.bf16 %v6938, %v6937
      %v6975 = vpack.c.bf16 %v6940, %v6939
      %v6976 = vpack.c.bf16 %v6942, %v6941
      %v6977 = vpack.c.bf16 %v6944, %v6943
      %v6978 = vpack.c.bf16 %v6946, %v6945
      %v6979 = vpack.c.bf16 %v6948, %v6947
      %v6980 = vpack.c.bf16 %v6950, %v6949
      %v6981 = vpack.c.bf16 %v6952, %v6951
      %v6982 = vpack.c.bf16 %v6954, %v6953
      %v6983 = vpack.c.bf16 %v6956, %v6955
      %v6984 = vpack.c.bf16 %v6958, %v6957
      %v6985 = vpack.c.bf16 %v6960, %v6959
      %v6986 = vpack.c.bf16 %v6962, %v6961
      %v6987 = vpack.c.bf16 %v6964, %v6963
      %v6988 = vpack.c.bf16 %v6966, %v6965
      %v6989 = vpack.c.bf16 %v6968, %v6967
      %v6990 = vpack.c.bf16 %v6969, %v6969
      %s6991 = scalar_lea.vmem %s4, 224
      %v6992 = vld [vmem:[%s6991] sm:$0xf]
      %v6993 = vld [vmem:[%s6991 + $0x4] sm:$0xf]
      %v6994 = vld [vmem:[%s6991 + $0x8] sm:$0xf]
      %v6995 = vld [vmem:[%s6991 + $0xc] sm:$0xf]
      %v6996 = vld [vmem:[%s6991 + $0x10] sm:$0xf]
      %v6997 = vld [vmem:[%s6991 + $0x14] sm:$0xf]
      %v6998 = vld [vmem:[%s6991 + $0x18] sm:$0xf]
      %v6999 = vld [vmem:[%s6991 + $0x1c] sm:$0xf]
      %v7008 = vunpack.c.l.b16 %v6992
      %v7009 = vunpack.c.l.b16 %v6993
      %v7010 = vunpack.c.l.b16 %v6994
      %v7011 = vunpack.c.l.b16 %v6995
      %v7012 = vunpack.c.l.b16 %v6996
      %v7013 = vunpack.c.l.b16 %v6997
      %v7014 = vunpack.c.l.b16 %v6998
      %v7015 = vunpack.c.l.b16 %v6999
      %v7016 = vpack.c.b16 %v7009, %v7008
      %v7017 = vpack.c.b16 %v7011, %v7010
      %v7018 = vpack.c.b16 %v7013, %v7012
      %v7019 = vpack.c.b16 %v7015, %v7014
      %v7025 = vsel %vm368, %v6970, 0
      %v7028 = vsel %vm368, %v6971, 0
      %v7031 = vsel %vm368, %v6972, 0
      %v7034 = vsel %vm368, %v6973, 0
      %v7037 = vsel %vm368, %v6974, 0
      %v7040 = vsel %vm368, %v6975, 0
      %v7043 = vsel %vm368, %v6976, 0
      %v7046 = vsel %vm368, %v6977, 0
      %v7049 = vsel %vm368, %v6978, 0
      %v7052 = vsel %vm368, %v6979, 0
      %v7055 = vsel %vm368, %v6980, 0
      %v7058 = vsel %vm368, %v6981, 0
      %v7061 = vsel %vm368, %v6982, 0
      %v7064 = vsel %vm368, %v6983, 0
      %v7067 = vsel %vm368, %v6984, 0
      %v7070 = vsel %vm368, %v6985, 0
      %v7073 = vsel %vm368, %v6986, 0
      %v7076 = vsel %vm368, %v6987, 0
      %v7079 = vsel %vm368, %v6988, 0
      %v7082 = vsel %vm368, %v6989, 0
      %v7085 = vsel %vm368, %v6990, 0
      %7087 = vmatprep.subr.bf16.mxu0 0
      %7088 = vmatpush1.bf16.msra.mxu0 0
      %7089 = vmatprep.subr.bf16.mxu0 0
      %7090 = vmatpush1.bf16.msra.mxu0 0
      %7091 = vmatprep.subr.bf16.mxu0 0
      %7092 = vmatpush1.bf16.msra.mxu0 0
      %7093 = vmatprep.subr.bf16.mxu0 0
      %7094 = vmatpush1.bf16.msra.mxu0 0
      %7095 = vmatprep.subr.bf16.mxu0 0
      %7096 = vmatpush1.bf16.msra.mxu0 %v7019
      %7097 = vmatprep.subr.bf16.mxu0 0
      %7098 = vmatpush1.bf16.msra.mxu0 %v7018
      %7099 = vmatprep.subr.bf16.mxu0 0
      %7100 = vmatpush1.bf16.msra.mxu0 %v7017
      %7101 = vmatprep.subr.bf16.mxu0 0
      %7102 = vmatpush1.bf16.msra.mxu0 %v7016
      %7103 = vmatprep.subr.bf16.mxu0 0
      %7104 = vmatpush2.bf16.msra.mxu0 0
      %7105 = vmatprep.subr.bf16.mxu0 0
      %7106 = vmatpush2.bf16.msra.mxu0 0
      %7107 = vmatprep.subr.bf16.mxu0 0
      %7108 = vmatpush2.bf16.msra.mxu0 0
      %7109 = vmatprep.subr.bf16.mxu0 0
      %7110 = vmatpush2.bf16.msra.mxu0 0
      %7111 = vmatprep.subr.bf16.mxu0 0
      %7112 = vmatpush2.bf16.msra.mxu0 0
      %7113 = vmatprep.subr.bf16.mxu0 0
      %7114 = vmatpush2.bf16.msra.mxu0 0
      %7115 = vmatprep.subr.bf16.mxu0 0
      %7116 = vmatpush2.bf16.msra.mxu0 0
      %7117 = vmatprep.subr.bf16.mxu0 0
      %7118 = vmatpush2.bf16.msra.mxu0 0
      %7119 = vmatprep.mubr.bf16.mxu0 0
      %7120 = vmatmul.mubr.bf16.gmra.mxu0 %v7025
      %v7121 = vpop.f32.mrf.mxu0
      %v7122 = vadd.f32 0.0, %v7121
      %v7123 = vpop.f32.mrf.mxu0
      %v7124 = vpop.f32.mrf.mxu0
      %v7125 = vadd.f32 0.0, %v7124
      %v7126 = vpop.f32.mrf.mxu0
      %7127 = vmatprep.mubr.bf16.mxu0 0
      %7128 = vmatmul.mubr.bf16.gmra.mxu0 %v7028
      %v7129 = vpop.f32.mrf.mxu0
      %v7130 = vadd.f32 0.0, %v7129
      %v7131 = vpop.f32.mrf.mxu0
      %v7132 = vpop.f32.mrf.mxu0
      %v7133 = vadd.f32 0.0, %v7132
      %v7134 = vpop.f32.mrf.mxu0
      %7135 = vmatprep.mubr.bf16.mxu0 0
      %7136 = vmatmul.mubr.bf16.gmra.mxu0 %v7031
      %v7137 = vpop.f32.mrf.mxu0
      %v7138 = vadd.f32 0.0, %v7137
      %v7139 = vpop.f32.mrf.mxu0
      %v7140 = vpop.f32.mrf.mxu0
      %v7141 = vadd.f32 0.0, %v7140
      %v7142 = vpop.f32.mrf.mxu0
      %7143 = vmatprep.mubr.bf16.mxu0 0
      %7144 = vmatmul.mubr.bf16.gmra.mxu0 %v7034
      %v7145 = vpop.f32.mrf.mxu0
      %v7146 = vadd.f32 0.0, %v7145
      %v7147 = vpop.f32.mrf.mxu0
      %v7148 = vpop.f32.mrf.mxu0
      %v7149 = vadd.f32 0.0, %v7148
      %v7150 = vpop.f32.mrf.mxu0
      %7151 = vmatprep.mubr.bf16.mxu0 0
      %7152 = vmatmul.mubr.bf16.gmra.mxu0 %v7037
      %v7153 = vpop.f32.mrf.mxu0
      %v7154 = vadd.f32 0.0, %v7153
      %v7155 = vpop.f32.mrf.mxu0
      %v7156 = vpop.f32.mrf.mxu0
      %v7157 = vadd.f32 0.0, %v7156
      %v7158 = vpop.f32.mrf.mxu0
      %7159 = vmatprep.mubr.bf16.mxu0 0
      %7160 = vmatmul.mubr.bf16.gmra.mxu0 %v7040
      %v7161 = vpop.f32.mrf.mxu0
      %v7162 = vadd.f32 0.0, %v7161
      %v7163 = vpop.f32.mrf.mxu0
      %v7164 = vpop.f32.mrf.mxu0
      %v7165 = vadd.f32 0.0, %v7164
      %v7166 = vpop.f32.mrf.mxu0
      %7167 = vmatprep.mubr.bf16.mxu0 0
      %7168 = vmatmul.mubr.bf16.gmra.mxu0 %v7043
      %v7169 = vpop.f32.mrf.mxu0
      %v7170 = vadd.f32 0.0, %v7169
      %v7171 = vpop.f32.mrf.mxu0
      %v7172 = vpop.f32.mrf.mxu0
      %v7173 = vadd.f32 0.0, %v7172
      %v7174 = vpop.f32.mrf.mxu0
      %7175 = vmatprep.mubr.bf16.mxu0 0
      %7176 = vmatmul.mubr.bf16.gmra.mxu0 %v7046
      %v7177 = vpop.f32.mrf.mxu0
      %v7178 = vadd.f32 0.0, %v7177
      %v7179 = vpop.f32.mrf.mxu0
      %v7180 = vpop.f32.mrf.mxu0
      %v7181 = vadd.f32 0.0, %v7180
      %v7182 = vpop.f32.mrf.mxu0
      %7183 = vmatprep.mubr.bf16.mxu0 0
      %7184 = vmatmul.mubr.bf16.gmra.mxu0 %v7049
      %v7185 = vpop.f32.mrf.mxu0
      %v7186 = vadd.f32 0.0, %v7185
      %v7187 = vpop.f32.mrf.mxu0
      %v7188 = vpop.f32.mrf.mxu0
      %v7189 = vadd.f32 0.0, %v7188
      %v7190 = vpop.f32.mrf.mxu0
      %7191 = vmatprep.mubr.bf16.mxu0 0
      %7192 = vmatmul.mubr.bf16.gmra.mxu0 %v7052
      %v7193 = vpop.f32.mrf.mxu0
      %v7194 = vadd.f32 0.0, %v7193
      %v7195 = vpop.f32.mrf.mxu0
      %v7196 = vpop.f32.mrf.mxu0
      %v7197 = vadd.f32 0.0, %v7196
      %v7198 = vpop.f32.mrf.mxu0
      %7199 = vmatprep.mubr.bf16.mxu0 0
      %7200 = vmatmul.mubr.bf16.gmra.mxu0 %v7055
      %v7201 = vpop.f32.mrf.mxu0
      %v7202 = vadd.f32 0.0, %v7201
      %v7203 = vpop.f32.mrf.mxu0
      %v7204 = vpop.f32.mrf.mxu0
      %v7205 = vadd.f32 0.0, %v7204
      %v7206 = vpop.f32.mrf.mxu0
      %7207 = vmatprep.mubr.bf16.mxu0 0
      %7208 = vmatmul.mubr.bf16.gmra.mxu0 %v7058
      %v7209 = vpop.f32.mrf.mxu0
      %v7210 = vadd.f32 0.0, %v7209
      %v7211 = vpop.f32.mrf.mxu0
      %v7212 = vpop.f32.mrf.mxu0
      %v7213 = vadd.f32 0.0, %v7212
      %v7214 = vpop.f32.mrf.mxu0
      %7215 = vmatprep.mubr.bf16.mxu0 0
      %7216 = vmatmul.mubr.bf16.gmra.mxu0 %v7061
      %v7217 = vpop.f32.mrf.mxu0
      %v7218 = vadd.f32 0.0, %v7217
      %v7219 = vpop.f32.mrf.mxu0
      %v7220 = vpop.f32.mrf.mxu0
      %v7221 = vadd.f32 0.0, %v7220
      %v7222 = vpop.f32.mrf.mxu0
      %7223 = vmatprep.mubr.bf16.mxu0 0
      %7224 = vmatmul.mubr.bf16.gmra.mxu0 %v7064
      %v7225 = vpop.f32.mrf.mxu0
      %v7226 = vadd.f32 0.0, %v7225
      %v7227 = vpop.f32.mrf.mxu0
      %v7228 = vpop.f32.mrf.mxu0
      %v7229 = vadd.f32 0.0, %v7228
      %v7230 = vpop.f32.mrf.mxu0
      %7231 = vmatprep.mubr.bf16.mxu0 0
      %7232 = vmatmul.mubr.bf16.gmra.mxu0 %v7067
      %v7233 = vpop.f32.mrf.mxu0
      %v7234 = vadd.f32 0.0, %v7233
      %v7235 = vpop.f32.mrf.mxu0
      %v7236 = vpop.f32.mrf.mxu0
      %v7237 = vadd.f32 0.0, %v7236
      %v7238 = vpop.f32.mrf.mxu0
      %7239 = vmatprep.mubr.bf16.mxu0 0
      %7240 = vmatmul.mubr.bf16.gmra.mxu0 %v7070
      %v7241 = vpop.f32.mrf.mxu0
      %v7242 = vadd.f32 0.0, %v7241
      %v7243 = vpop.f32.mrf.mxu0
      %v7244 = vpop.f32.mrf.mxu0
      %v7245 = vadd.f32 0.0, %v7244
      %v7246 = vpop.f32.mrf.mxu0
      %7247 = vmatprep.mubr.bf16.mxu0 0
      %7248 = vmatmul.mubr.bf16.gmra.mxu0 %v7073
      %v7249 = vpop.f32.mrf.mxu0
      %v7250 = vadd.f32 0.0, %v7249
      %v7251 = vpop.f32.mrf.mxu0
      %v7252 = vpop.f32.mrf.mxu0
      %v7253 = vadd.f32 0.0, %v7252
      %v7254 = vpop.f32.mrf.mxu0
      %7255 = vmatprep.mubr.bf16.mxu0 0
      %7256 = vmatmul.mubr.bf16.gmra.mxu0 %v7076
      %v7257 = vpop.f32.mrf.mxu0
      %v7258 = vadd.f32 0.0, %v7257
      %v7259 = vpop.f32.mrf.mxu0
      %v7260 = vpop.f32.mrf.mxu0
      %v7261 = vadd.f32 0.0, %v7260
      %v7262 = vpop.f32.mrf.mxu0
      %7263 = vmatprep.mubr.bf16.mxu0 0
      %7264 = vmatmul.mubr.bf16.gmra.mxu0 %v7079
      %v7265 = vpop.f32.mrf.mxu0
      %v7266 = vadd.f32 0.0, %v7265
      %v7267 = vpop.f32.mrf.mxu0
      %v7268 = vpop.f32.mrf.mxu0
      %v7269 = vadd.f32 0.0, %v7268
      %v7270 = vpop.f32.mrf.mxu0
      %7271 = vmatprep.mubr.bf16.mxu0 0
      %7272 = vmatmul.mubr.bf16.gmra.mxu0 %v7082
      %v7273 = vpop.f32.mrf.mxu0
      %v7274 = vadd.f32 0.0, %v7273
      %v7275 = vpop.f32.mrf.mxu0
      %v7276 = vpop.f32.mrf.mxu0
      %v7277 = vadd.f32 0.0, %v7276
      %v7278 = vpop.f32.mrf.mxu0
      %7279 = vmatprep.mubr.bf16.mxu0 0
      %7280 = vmatmul.mubr.bf16.gmra.mxu0 %v7085
      %v7281 = vpop.f32.mrf.mxu0
      %v7282 = vadd.f32 0.0, %v7281
      %v7283 = vpop.f32.mrf.mxu0
      %v7284 = vpop.f32.mrf.mxu0
      %v7285 = vpop.f32.mrf.mxu0
      %7286 = vdwg.mxu0
      %v7287 = vadd.f32 %v6888, %v7122
      %v7288 = vadd.f32 %v6889, %v7125
      %v7289 = vadd.f32 %v6890, %v7130
      %v7290 = vadd.f32 %v6891, %v7133
      %v7291 = vadd.f32 %v6892, %v7138
      %v7292 = vadd.f32 %v6893, %v7141
      %v7293 = vadd.f32 %v6894, %v7146
      %v7294 = vadd.f32 %v6895, %v7149
      %v7295 = vadd.f32 %v6896, %v7154
      %v7296 = vadd.f32 %v6897, %v7157
      %v7297 = vadd.f32 %v6898, %v7162
      %v7298 = vadd.f32 %v6899, %v7165
      %v7299 = vadd.f32 %v6900, %v7170
      %v7300 = vadd.f32 %v6901, %v7173
      %v7301 = vadd.f32 %v6902, %v7178
      %v7302 = vadd.f32 %v6903, %v7181
      %v7303 = vadd.f32 %v6904, %v7186
      %v7304 = vadd.f32 %v6905, %v7189
      %v7305 = vadd.f32 %v6906, %v7194
      %v7306 = vadd.f32 %v6907, %v7197
      %v7307 = vadd.f32 %v6908, %v7202
      %v7308 = vadd.f32 %v6909, %v7205
      %v7309 = vadd.f32 %v6910, %v7210
      %v7310 = vadd.f32 %v6911, %v7213
      %v7311 = vadd.f32 %v6912, %v7218
      %v7312 = vadd.f32 %v6913, %v7221
      %v7313 = vadd.f32 %v6914, %v7226
      %v7314 = vadd.f32 %v6915, %v7229
      %v7315 = vadd.f32 %v6916, %v7234
      %v7316 = vadd.f32 %v6917, %v7237
      %v7317 = vadd.f32 %v6918, %v7242
      %v7318 = vadd.f32 %v6919, %v7245
      %v7319 = vadd.f32 %v6920, %v7250
      %v7320 = vadd.f32 %v6921, %v7253
      %v7321 = vadd.f32 %v6922, %v7258
      %v7322 = vadd.f32 %v6923, %v7261
      %v7323 = vadd.f32 %v6924, %v7266
      %v7324 = vadd.f32 %v6925, %v7269
      %v7325 = vadd.f32 %v6926, %v7274
      %v7326 = vadd.f32 %v6927, %v7277
      %v7327 = vadd.f32 %v6928, %v7282
      %v7328 = vld [vmem:[#allocation2 + $0x2b] sm:$0xff]
      %v7329 = vld [vmem:[#allocation2 + $0x33] sm:$0xff]
      %v7330 = vld [vmem:[#allocation2 + $0x3b] sm:$0xff]
      %v7331 = vld [vmem:[#allocation2 + $0x43] sm:$0xff]
      %v7332 = vld [vmem:[#allocation2 + $0x4b] sm:$0xff]
      %v7333 = vld [vmem:[#allocation2 + $0x53] sm:$0xff]
      %v7334 = vld [vmem:[#allocation2 + $0x5b] sm:$0xff]
      %v7335 = vld [vmem:[#allocation2 + $0x63] sm:$0xff]
      %v7336 = vld [vmem:[#allocation2 + $0x6b] sm:$0xff]
      %v7337 = vld [vmem:[#allocation2 + $0x73] sm:$0xff]
      %v7338 = vld [vmem:[#allocation2 + $0x7b] sm:$0xff]
      %v7339 = vld [vmem:[#allocation2 + $0x83] sm:$0xff]
      %v7340 = vld [vmem:[#allocation2 + $0x8b] sm:$0xff]
      %v7341 = vld [vmem:[#allocation2 + $0x93] sm:$0xff]
      %v7342 = vld [vmem:[#allocation2 + $0x9b] sm:$0xff]
      %v7343 = vld [vmem:[#allocation2 + $0xa3] sm:$0xff]
      %v7344 = vld [vmem:[#allocation2 + $0xab] sm:$0xff]
      %v7345 = vld [vmem:[#allocation2 + $0xb3] sm:$0xff]
      %v7346 = vld [vmem:[#allocation2 + $0xbb] sm:$0xff]
      %v7347 = vld [vmem:[#allocation2 + $0xc3] sm:$0xff]
      %v7348 = vld [vmem:[#allocation2 + $0xcb] sm:$0xff]
      %v7349 = vld [vmem:[#allocation2 + $0xd3] sm:$0xff]
      %v7350 = vld [vmem:[#allocation2 + $0xdb] sm:$0xff]
      %v7351 = vld [vmem:[#allocation2 + $0xe3] sm:$0xff]
      %v7352 = vld [vmem:[#allocation2 + $0xeb] sm:$0xff]
      %v7353 = vld [vmem:[#allocation2 + $0xf3] sm:$0xff]
      %v7354 = vld [vmem:[#allocation2 + $0xfb] sm:$0xff]
      %v7355 = vld [vmem:[#allocation2 + $0x103] sm:$0xff]
      %v7356 = vld [vmem:[#allocation2 + $0x10b] sm:$0xff]
      %v7357 = vld [vmem:[#allocation2 + $0x113] sm:$0xff]
      %v7358 = vld [vmem:[#allocation2 + $0x11b] sm:$0xff]
      %v7359 = vld [vmem:[#allocation2 + $0x123] sm:$0xff]
      %v7360 = vld [vmem:[#allocation2 + $0x12b] sm:$0xff]
      %v7361 = vld [vmem:[#allocation2 + $0x133] sm:$0xff]
      %v7362 = vld [vmem:[#allocation2 + $0x13b] sm:$0xff]
      %v7363 = vld [vmem:[#allocation2 + $0x143] sm:$0xff]
      %v7364 = vld [vmem:[#allocation2 + $0x14b] sm:$0xff]
      %v7365 = vld [vmem:[#allocation2 + $0x153] sm:$0xff]
      %v7366 = vld [vmem:[#allocation2 + $0x15b] sm:$0xff]
      %v7367 = vld [vmem:[#allocation2 + $0x163] sm:$0xff]
      %v7368 = vld [vmem:[#allocation2 + $0x16b] sm:$0xf]
      %v7369 = vpack.c.bf16 %v7329, %v7328
      %v7370 = vpack.c.bf16 %v7331, %v7330
      %v7371 = vpack.c.bf16 %v7333, %v7332
      %v7372 = vpack.c.bf16 %v7335, %v7334
      %v7373 = vpack.c.bf16 %v7337, %v7336
      %v7374 = vpack.c.bf16 %v7339, %v7338
      %v7375 = vpack.c.bf16 %v7341, %v7340
      %v7376 = vpack.c.bf16 %v7343, %v7342
      %v7377 = vpack.c.bf16 %v7345, %v7344
      %v7378 = vpack.c.bf16 %v7347, %v7346
      %v7379 = vpack.c.bf16 %v7349, %v7348
      %v7380 = vpack.c.bf16 %v7351, %v7350
      %v7381 = vpack.c.bf16 %v7353, %v7352
      %v7382 = vpack.c.bf16 %v7355, %v7354
      %v7383 = vpack.c.bf16 %v7357, %v7356
      %v7384 = vpack.c.bf16 %v7359, %v7358
      %v7385 = vpack.c.bf16 %v7361, %v7360
      %v7386 = vpack.c.bf16 %v7363, %v7362
      %v7387 = vpack.c.bf16 %v7365, %v7364
      %v7388 = vpack.c.bf16 %v7367, %v7366
      %v7389 = vpack.c.bf16 %v7368, %v7368
      %s7390 = scalar_lea.vmem %s4, 256
      %v7391 = vld [vmem:[%s7390] sm:$0xf]
      %v7392 = vld [vmem:[%s7390 + $0x4] sm:$0xf]
      %v7393 = vld [vmem:[%s7390 + $0x8] sm:$0xf]
      %v7394 = vld [vmem:[%s7390 + $0xc] sm:$0xf]
      %v7395 = vld [vmem:[%s7390 + $0x10] sm:$0xf]
      %v7396 = vld [vmem:[%s7390 + $0x14] sm:$0xf]
      %v7397 = vld [vmem:[%s7390 + $0x18] sm:$0xf]
      %v7398 = vld [vmem:[%s7390 + $0x1c] sm:$0xf]
      %v7407 = vunpack.c.l.b16 %v7391
      %v7408 = vunpack.c.l.b16 %v7392
      %v7409 = vunpack.c.l.b16 %v7393
      %v7410 = vunpack.c.l.b16 %v7394
      %v7411 = vunpack.c.l.b16 %v7395
      %v7412 = vunpack.c.l.b16 %v7396
      %v7413 = vunpack.c.l.b16 %v7397
      %v7414 = vunpack.c.l.b16 %v7398
      %v7415 = vpack.c.b16 %v7408, %v7407
      %v7416 = vpack.c.b16 %v7410, %v7409
      %v7417 = vpack.c.b16 %v7412, %v7411
      %v7418 = vpack.c.b16 %v7414, %v7413
      %v7424 = vsel %vm368, %v7369, 0
      %v7427 = vsel %vm368, %v7370, 0
      %v7430 = vsel %vm368, %v7371, 0
      %v7433 = vsel %vm368, %v7372, 0
      %v7436 = vsel %vm368, %v7373, 0
      %v7439 = vsel %vm368, %v7374, 0
      %v7442 = vsel %vm368, %v7375, 0
      %v7445 = vsel %vm368, %v7376, 0
      %v7448 = vsel %vm368, %v7377, 0
      %v7451 = vsel %vm368, %v7378, 0
      %v7454 = vsel %vm368, %v7379, 0
      %v7457 = vsel %vm368, %v7380, 0
      %v7460 = vsel %vm368, %v7381, 0
      %v7463 = vsel %vm368, %v7382, 0
      %v7466 = vsel %vm368, %v7383, 0
      %v7469 = vsel %vm368, %v7384, 0
      %v7472 = vsel %vm368, %v7385, 0
      %v7475 = vsel %vm368, %v7386, 0
      %v7478 = vsel %vm368, %v7387, 0
      %v7481 = vsel %vm368, %v7388, 0
      %v7484 = vsel %vm368, %v7389, 0
      %7486 = vmatprep.subr.bf16.mxu0 0
      %7487 = vmatpush1.bf16.msra.mxu0 0
      %7488 = vmatprep.subr.bf16.mxu0 0
      %7489 = vmatpush1.bf16.msra.mxu0 0
      %7490 = vmatprep.subr.bf16.mxu0 0
      %7491 = vmatpush1.bf16.msra.mxu0 0
      %7492 = vmatprep.subr.bf16.mxu0 0
      %7493 = vmatpush1.bf16.msra.mxu0 0
      %7494 = vmatprep.subr.bf16.mxu0 0
      %7495 = vmatpush1.bf16.msra.mxu0 %v7418
      %7496 = vmatprep.subr.bf16.mxu0 0
      %7497 = vmatpush1.bf16.msra.mxu0 %v7417
      %7498 = vmatprep.subr.bf16.mxu0 0
      %7499 = vmatpush1.bf16.msra.mxu0 %v7416
      %7500 = vmatprep.subr.bf16.mxu0 0
      %7501 = vmatpush1.bf16.msra.mxu0 %v7415
      %7502 = vmatprep.subr.bf16.mxu0 0
      %7503 = vmatpush2.bf16.msra.mxu0 0
      %7504 = vmatprep.subr.bf16.mxu0 0
      %7505 = vmatpush2.bf16.msra.mxu0 0
      %7506 = vmatprep.subr.bf16.mxu0 0
      %7507 = vmatpush2.bf16.msra.mxu0 0
      %7508 = vmatprep.subr.bf16.mxu0 0
      %7509 = vmatpush2.bf16.msra.mxu0 0
      %7510 = vmatprep.subr.bf16.mxu0 0
      %7511 = vmatpush2.bf16.msra.mxu0 0
      %7512 = vmatprep.subr.bf16.mxu0 0
      %7513 = vmatpush2.bf16.msra.mxu0 0
      %7514 = vmatprep.subr.bf16.mxu0 0
      %7515 = vmatpush2.bf16.msra.mxu0 0
      %7516 = vmatprep.subr.bf16.mxu0 0
      %7517 = vmatpush2.bf16.msra.mxu0 0
      %7518 = vmatprep.mubr.bf16.mxu0 0
      %7519 = vmatmul.mubr.bf16.gmra.mxu0 %v7424
      %v7520 = vpop.f32.mrf.mxu0
      %v7521 = vadd.f32 0.0, %v7520
      %v7522 = vpop.f32.mrf.mxu0
      %v7523 = vpop.f32.mrf.mxu0
      %v7524 = vadd.f32 0.0, %v7523
      %v7525 = vpop.f32.mrf.mxu0
      %7526 = vmatprep.mubr.bf16.mxu0 0
      %7527 = vmatmul.mubr.bf16.gmra.mxu0 %v7427
      %v7528 = vpop.f32.mrf.mxu0
      %v7529 = vadd.f32 0.0, %v7528
      %v7530 = vpop.f32.mrf.mxu0
      %v7531 = vpop.f32.mrf.mxu0
      %v7532 = vadd.f32 0.0, %v7531
      %v7533 = vpop.f32.mrf.mxu0
      %7534 = vmatprep.mubr.bf16.mxu0 0
      %7535 = vmatmul.mubr.bf16.gmra.mxu0 %v7430
      %v7536 = vpop.f32.mrf.mxu0
      %v7537 = vadd.f32 0.0, %v7536
      %v7538 = vpop.f32.mrf.mxu0
      %v7539 = vpop.f32.mrf.mxu0
      %v7540 = vadd.f32 0.0, %v7539
      %v7541 = vpop.f32.mrf.mxu0
      %7542 = vmatprep.mubr.bf16.mxu0 0
      %7543 = vmatmul.mubr.bf16.gmra.mxu0 %v7433
      %v7544 = vpop.f32.mrf.mxu0
      %v7545 = vadd.f32 0.0, %v7544
      %v7546 = vpop.f32.mrf.mxu0
      %v7547 = vpop.f32.mrf.mxu0
      %v7548 = vadd.f32 0.0, %v7547
      %v7549 = vpop.f32.mrf.mxu0
      %7550 = vmatprep.mubr.bf16.mxu0 0
      %7551 = vmatmul.mubr.bf16.gmra.mxu0 %v7436
      %v7552 = vpop.f32.mrf.mxu0
      %v7553 = vadd.f32 0.0, %v7552
      %v7554 = vpop.f32.mrf.mxu0
      %v7555 = vpop.f32.mrf.mxu0
      %v7556 = vadd.f32 0.0, %v7555
      %v7557 = vpop.f32.mrf.mxu0
      %7558 = vmatprep.mubr.bf16.mxu0 0
      %7559 = vmatmul.mubr.bf16.gmra.mxu0 %v7439
      %v7560 = vpop.f32.mrf.mxu0
      %v7561 = vadd.f32 0.0, %v7560
      %v7562 = vpop.f32.mrf.mxu0
      %v7563 = vpop.f32.mrf.mxu0
      %v7564 = vadd.f32 0.0, %v7563
      %v7565 = vpop.f32.mrf.mxu0
      %7566 = vmatprep.mubr.bf16.mxu0 0
      %7567 = vmatmul.mubr.bf16.gmra.mxu0 %v7442
      %v7568 = vpop.f32.mrf.mxu0
      %v7569 = vadd.f32 0.0, %v7568
      %v7570 = vpop.f32.mrf.mxu0
      %v7571 = vpop.f32.mrf.mxu0
      %v7572 = vadd.f32 0.0, %v7571
      %v7573 = vpop.f32.mrf.mxu0
      %7574 = vmatprep.mubr.bf16.mxu0 0
      %7575 = vmatmul.mubr.bf16.gmra.mxu0 %v7445
      %v7576 = vpop.f32.mrf.mxu0
      %v7577 = vadd.f32 0.0, %v7576
      %v7578 = vpop.f32.mrf.mxu0
      %v7579 = vpop.f32.mrf.mxu0
      %v7580 = vadd.f32 0.0, %v7579
      %v7581 = vpop.f32.mrf.mxu0
      %7582 = vmatprep.mubr.bf16.mxu0 0
      %7583 = vmatmul.mubr.bf16.gmra.mxu0 %v7448
      %v7584 = vpop.f32.mrf.mxu0
      %v7585 = vadd.f32 0.0, %v7584
      %v7586 = vpop.f32.mrf.mxu0
      %v7587 = vpop.f32.mrf.mxu0
      %v7588 = vadd.f32 0.0, %v7587
      %v7589 = vpop.f32.mrf.mxu0
      %7590 = vmatprep.mubr.bf16.mxu0 0
      %7591 = vmatmul.mubr.bf16.gmra.mxu0 %v7451
      %v7592 = vpop.f32.mrf.mxu0
      %v7593 = vadd.f32 0.0, %v7592
      %v7594 = vpop.f32.mrf.mxu0
      %v7595 = vpop.f32.mrf.mxu0
      %v7596 = vadd.f32 0.0, %v7595
      %v7597 = vpop.f32.mrf.mxu0
      %7598 = vmatprep.mubr.bf16.mxu0 0
      %7599 = vmatmul.mubr.bf16.gmra.mxu0 %v7454
      %v7600 = vpop.f32.mrf.mxu0
      %v7601 = vadd.f32 0.0, %v7600
      %v7602 = vpop.f32.mrf.mxu0
      %v7603 = vpop.f32.mrf.mxu0
      %v7604 = vadd.f32 0.0, %v7603
      %v7605 = vpop.f32.mrf.mxu0
      %7606 = vmatprep.mubr.bf16.mxu0 0
      %7607 = vmatmul.mubr.bf16.gmra.mxu0 %v7457
      %v7608 = vpop.f32.mrf.mxu0
      %v7609 = vadd.f32 0.0, %v7608
      %v7610 = vpop.f32.mrf.mxu0
      %v7611 = vpop.f32.mrf.mxu0
      %v7612 = vadd.f32 0.0, %v7611
      %v7613 = vpop.f32.mrf.mxu0
      %7614 = vmatprep.mubr.bf16.mxu0 0
      %7615 = vmatmul.mubr.bf16.gmra.mxu0 %v7460
      %v7616 = vpop.f32.mrf.mxu0
      %v7617 = vadd.f32 0.0, %v7616
      %v7618 = vpop.f32.mrf.mxu0
      %v7619 = vpop.f32.mrf.mxu0
      %v7620 = vadd.f32 0.0, %v7619
      %v7621 = vpop.f32.mrf.mxu0
      %7622 = vmatprep.mubr.bf16.mxu0 0
      %7623 = vmatmul.mubr.bf16.gmra.mxu0 %v7463
      %v7624 = vpop.f32.mrf.mxu0
      %v7625 = vadd.f32 0.0, %v7624
      %v7626 = vpop.f32.mrf.mxu0
      %v7627 = vpop.f32.mrf.mxu0
      %v7628 = vadd.f32 0.0, %v7627
      %v7629 = vpop.f32.mrf.mxu0
      %7630 = vmatprep.mubr.bf16.mxu0 0
      %7631 = vmatmul.mubr.bf16.gmra.mxu0 %v7466
      %v7632 = vpop.f32.mrf.mxu0
      %v7633 = vadd.f32 0.0, %v7632
      %v7634 = vpop.f32.mrf.mxu0
      %v7635 = vpop.f32.mrf.mxu0
      %v7636 = vadd.f32 0.0, %v7635
      %v7637 = vpop.f32.mrf.mxu0
      %7638 = vmatprep.mubr.bf16.mxu0 0
      %7639 = vmatmul.mubr.bf16.gmra.mxu0 %v7469
      %v7640 = vpop.f32.mrf.mxu0
      %v7641 = vadd.f32 0.0, %v7640
      %v7642 = vpop.f32.mrf.mxu0
      %v7643 = vpop.f32.mrf.mxu0
      %v7644 = vadd.f32 0.0, %v7643
      %v7645 = vpop.f32.mrf.mxu0
      %7646 = vmatprep.mubr.bf16.mxu0 0
      %7647 = vmatmul.mubr.bf16.gmra.mxu0 %v7472
      %v7648 = vpop.f32.mrf.mxu0
      %v7649 = vadd.f32 0.0, %v7648
      %v7650 = vpop.f32.mrf.mxu0
      %v7651 = vpop.f32.mrf.mxu0
      %v7652 = vadd.f32 0.0, %v7651
      %v7653 = vpop.f32.mrf.mxu0
      %7654 = vmatprep.mubr.bf16.mxu0 0
      %7655 = vmatmul.mubr.bf16.gmra.mxu0 %v7475
      %v7656 = vpop.f32.mrf.mxu0
      %v7657 = vadd.f32 0.0, %v7656
      %v7658 = vpop.f32.mrf.mxu0
      %v7659 = vpop.f32.mrf.mxu0
      %v7660 = vadd.f32 0.0, %v7659
      %v7661 = vpop.f32.mrf.mxu0
      %7662 = vmatprep.mubr.bf16.mxu0 0
      %7663 = vmatmul.mubr.bf16.gmra.mxu0 %v7478
      %v7664 = vpop.f32.mrf.mxu0
      %v7665 = vadd.f32 0.0, %v7664
      %v7666 = vpop.f32.mrf.mxu0
      %v7667 = vpop.f32.mrf.mxu0
      %v7668 = vadd.f32 0.0, %v7667
      %v7669 = vpop.f32.mrf.mxu0
      %7670 = vmatprep.mubr.bf16.mxu0 0
      %7671 = vmatmul.mubr.bf16.gmra.mxu0 %v7481
      %v7672 = vpop.f32.mrf.mxu0
      %v7673 = vadd.f32 0.0, %v7672
      %v7674 = vpop.f32.mrf.mxu0
      %v7675 = vpop.f32.mrf.mxu0
      %v7676 = vadd.f32 0.0, %v7675
      %v7677 = vpop.f32.mrf.mxu0
      %7678 = vmatprep.mubr.bf16.mxu0 0
      %7679 = vmatmul.mubr.bf16.gmra.mxu0 %v7484
      %v7680 = vpop.f32.mrf.mxu0
      %v7681 = vadd.f32 0.0, %v7680
      %v7682 = vpop.f32.mrf.mxu0
      %v7683 = vpop.f32.mrf.mxu0
      %v7684 = vpop.f32.mrf.mxu0
      %7685 = vdwg.mxu0
      %v7686 = vadd.f32 %v7287, %v7521
      %v7687 = vadd.f32 %v7288, %v7524
      %v7688 = vadd.f32 %v7289, %v7529
      %v7689 = vadd.f32 %v7290, %v7532
      %v7690 = vadd.f32 %v7291, %v7537
      %v7691 = vadd.f32 %v7292, %v7540
      %v7692 = vadd.f32 %v7293, %v7545
      %v7693 = vadd.f32 %v7294, %v7548
      %v7694 = vadd.f32 %v7295, %v7553
      %v7695 = vadd.f32 %v7296, %v7556
      %v7696 = vadd.f32 %v7297, %v7561
      %v7697 = vadd.f32 %v7298, %v7564
      %v7698 = vadd.f32 %v7299, %v7569
      %v7699 = vadd.f32 %v7300, %v7572
      %v7700 = vadd.f32 %v7301, %v7577
      %v7701 = vadd.f32 %v7302, %v7580
      %v7702 = vadd.f32 %v7303, %v7585
      %v7703 = vadd.f32 %v7304, %v7588
      %v7704 = vadd.f32 %v7305, %v7593
      %v7705 = vadd.f32 %v7306, %v7596
      %v7706 = vadd.f32 %v7307, %v7601
      %v7707 = vadd.f32 %v7308, %v7604
      %v7708 = vadd.f32 %v7309, %v7609
      %v7709 = vadd.f32 %v7310, %v7612
      %v7710 = vadd.f32 %v7311, %v7617
      %v7711 = vadd.f32 %v7312, %v7620
      %v7712 = vadd.f32 %v7313, %v7625
      %v7713 = vadd.f32 %v7314, %v7628
      %v7714 = vadd.f32 %v7315, %v7633
      %v7715 = vadd.f32 %v7316, %v7636
      %v7716 = vadd.f32 %v7317, %v7641
      %v7717 = vadd.f32 %v7318, %v7644
      %v7718 = vadd.f32 %v7319, %v7649
      %v7719 = vadd.f32 %v7320, %v7652
      %v7720 = vadd.f32 %v7321, %v7657
      %v7721 = vadd.f32 %v7322, %v7660
      %v7722 = vadd.f32 %v7323, %v7665
      %v7723 = vadd.f32 %v7324, %v7668
      %v7724 = vadd.f32 %v7325, %v7673
      %v7725 = vadd.f32 %v7326, %v7676
      %v7726 = vadd.f32 %v7327, %v7681
      %v7727 = vxor.u32 %v7686, 2147483648
      %v7728 = vxor.u32 %v7687, 2147483648
      %v7729 = vxor.u32 %v7688, 2147483648
      %v7730 = vxor.u32 %v7689, 2147483648
      %v7731 = vxor.u32 %v7690, 2147483648
      %v7732 = vxor.u32 %v7691, 2147483648
      %v7733 = vxor.u32 %v7692, 2147483648
      %v7734 = vxor.u32 %v7693, 2147483648
      %v7735 = vxor.u32 %v7694, 2147483648
      %v7736 = vxor.u32 %v7695, 2147483648
      %v7737 = vxor.u32 %v7696, 2147483648
      %v7738 = vxor.u32 %v7697, 2147483648
      %v7739 = vxor.u32 %v7698, 2147483648
      %v7740 = vxor.u32 %v7699, 2147483648
      %v7741 = vxor.u32 %v7700, 2147483648
      %v7742 = vxor.u32 %v7701, 2147483648
      %v7743 = vxor.u32 %v7702, 2147483648
      %v7744 = vxor.u32 %v7703, 2147483648
      %v7745 = vxor.u32 %v7704, 2147483648
      %v7746 = vxor.u32 %v7705, 2147483648
      %v7747 = vxor.u32 %v7706, 2147483648
      %v7748 = vxor.u32 %v7707, 2147483648
      %v7749 = vxor.u32 %v7708, 2147483648
      %v7750 = vxor.u32 %v7709, 2147483648
      %v7751 = vxor.u32 %v7710, 2147483648
      %v7752 = vxor.u32 %v7711, 2147483648
      %v7753 = vxor.u32 %v7712, 2147483648
      %v7754 = vxor.u32 %v7713, 2147483648
      %v7755 = vxor.u32 %v7714, 2147483648
      %v7756 = vxor.u32 %v7715, 2147483648
      %v7757 = vxor.u32 %v7716, 2147483648
      %v7758 = vxor.u32 %v7717, 2147483648
      %v7759 = vxor.u32 %v7718, 2147483648
      %v7760 = vxor.u32 %v7719, 2147483648
      %v7761 = vxor.u32 %v7720, 2147483648
      %v7762 = vxor.u32 %v7721, 2147483648
      %v7763 = vxor.u32 %v7722, 2147483648
      %v7764 = vxor.u32 %v7723, 2147483648
      %v7765 = vxor.u32 %v7724, 2147483648
      %v7766 = vxor.u32 %v7725, 2147483648
      %v7767 = vxor.u32 %v7726, 2147483648
      %v7768 = vmul.f32 %v7727, 1.442695
      %v7769 = vpow.pop %v7768
      %v7770 = vmul.f32 %v7728, 1.442695
      %v7771 = vpow.pop %v7770
      %v7772 = vmul.f32 %v7729, 1.442695
      %v7773 = vpow.pop %v7772
      %v7774 = vmul.f32 %v7730, 1.442695
      %v7775 = vpow.pop %v7774
      %v7776 = vmul.f32 %v7731, 1.442695
      %v7777 = vpow.pop %v7776
      %v7778 = vmul.f32 %v7732, 1.442695
      %v7779 = vpow.pop %v7778
      %v7780 = vmul.f32 %v7733, 1.442695
      %v7781 = vpow.pop %v7780
      %v7782 = vmul.f32 %v7734, 1.442695
      %v7783 = vpow.pop %v7782
      %v7784 = vmul.f32 %v7735, 1.442695
      %v7785 = vpow.pop %v7784
      %v7786 = vmul.f32 %v7736, 1.442695
      %v7787 = vpow.pop %v7786
      %v7788 = vmul.f32 %v7737, 1.442695
      %v7789 = vpow.pop %v7788
      %v7790 = vmul.f32 %v7738, 1.442695
      %v7791 = vpow.pop %v7790
      %v7792 = vmul.f32 %v7739, 1.442695
      %v7793 = vpow.pop %v7792
      %v7794 = vmul.f32 %v7740, 1.442695
      %v7795 = vpow.pop %v7794
      %v7796 = vmul.f32 %v7741, 1.442695
      %v7797 = vpow.pop %v7796
      %v7798 = vmul.f32 %v7742, 1.442695
      %v7799 = vpow.pop %v7798
      %v7800 = vmul.f32 %v7743, 1.442695
      %v7801 = vpow.pop %v7800
      %v7802 = vmul.f32 %v7744, 1.442695
      %v7803 = vpow.pop %v7802
      %v7804 = vmul.f32 %v7745, 1.442695
      %v7805 = vpow.pop %v7804
      %v7806 = vmul.f32 %v7746, 1.442695
      %v7807 = vpow.pop %v7806
      %v7808 = vmul.f32 %v7747, 1.442695
      %v7809 = vpow.pop %v7808
      %v7810 = vmul.f32 %v7748, 1.442695
      %v7811 = vpow.pop %v7810
      %v7812 = vmul.f32 %v7749, 1.442695
      %v7813 = vpow.pop %v7812
      %v7814 = vmul.f32 %v7750, 1.442695
      %v7815 = vpow.pop %v7814
      %v7816 = vmul.f32 %v7751, 1.442695
      %v7817 = vpow.pop %v7816
      %v7818 = vmul.f32 %v7752, 1.442695
      %v7819 = vpow.pop %v7818
      %v7820 = vmul.f32 %v7753, 1.442695
      %v7821 = vpow.pop %v7820
      %v7822 = vmul.f32 %v7754, 1.442695
      %v7823 = vpow.pop %v7822
      %v7824 = vmul.f32 %v7755, 1.442695
      %v7825 = vpow.pop %v7824
      %v7826 = vmul.f32 %v7756, 1.442695
      %v7827 = vpow.pop %v7826
      %v7828 = vmul.f32 %v7757, 1.442695
      %v7829 = vpow.pop %v7828
      %v7830 = vmul.f32 %v7758, 1.442695
      %v7831 = vpow.pop %v7830
      %v7832 = vmul.f32 %v7759, 1.442695
      %v7833 = vpow.pop %v7832
      %v7834 = vmul.f32 %v7760, 1.442695
      %v7835 = vpow.pop %v7834
      %v7836 = vmul.f32 %v7761, 1.442695
      %v7837 = vpow.pop %v7836
      %v7838 = vmul.f32 %v7762, 1.442695
      %v7839 = vpow.pop %v7838
      %v7840 = vmul.f32 %v7763, 1.442695
      %v7841 = vpow.pop %v7840
      %v7842 = vmul.f32 %v7764, 1.442695
      %v7843 = vpow.pop %v7842
      %v7844 = vmul.f32 %v7765, 1.442695
      %v7845 = vpow.pop %v7844
      %v7846 = vmul.f32 %v7766, 1.442695
      %v7847 = vpow.pop %v7846
      %v7848 = vmul.f32 %v7767, 1.442695
      %v7849 = vpow.pop %v7848
      %v7850 = vadd.f32 %v7769, 1.0
      %v7851 = vadd.f32 %v7771, 1.0
      %v7852 = vadd.f32 %v7773, 1.0
      %v7853 = vadd.f32 %v7775, 1.0
      %v7854 = vadd.f32 %v7777, 1.0
      %v7855 = vadd.f32 %v7779, 1.0
      %v7856 = vadd.f32 %v7781, 1.0
      %v7857 = vadd.f32 %v7783, 1.0
      %v7858 = vadd.f32 %v7785, 1.0
      %v7859 = vadd.f32 %v7787, 1.0
      %v7860 = vadd.f32 %v7789, 1.0
      %v7861 = vadd.f32 %v7791, 1.0
      %v7862 = vadd.f32 %v7793, 1.0
      %v7863 = vadd.f32 %v7795, 1.0
      %v7864 = vadd.f32 %v7797, 1.0
      %v7865 = vadd.f32 %v7799, 1.0
      %v7866 = vadd.f32 %v7801, 1.0
      %v7867 = vadd.f32 %v7803, 1.0
      %v7868 = vadd.f32 %v7805, 1.0
      %v7869 = vadd.f32 %v7807, 1.0
      %v7870 = vadd.f32 %v7809, 1.0
      %v7871 = vadd.f32 %v7811, 1.0
      %v7872 = vadd.f32 %v7813, 1.0
      %v7873 = vadd.f32 %v7815, 1.0
      %v7874 = vadd.f32 %v7817, 1.0
      %v7875 = vadd.f32 %v7819, 1.0
      %v7876 = vadd.f32 %v7821, 1.0
      %v7877 = vadd.f32 %v7823, 1.0
      %v7878 = vadd.f32 %v7825, 1.0
      %v7879 = vadd.f32 %v7827, 1.0
      %v7880 = vadd.f32 %v7829, 1.0
      %v7881 = vadd.f32 %v7831, 1.0
      %v7882 = vadd.f32 %v7833, 1.0
      %v7883 = vadd.f32 %v7835, 1.0
      %v7884 = vadd.f32 %v7837, 1.0
      %v7885 = vadd.f32 %v7839, 1.0
      %v7886 = vadd.f32 %v7841, 1.0
      %v7887 = vadd.f32 %v7843, 1.0
      %v7888 = vadd.f32 %v7845, 1.0
      %v7889 = vadd.f32 %v7847, 1.0
      %v7890 = vadd.f32 %v7849, 1.0
      %v7891 = vrcp.pop %v7850
      %v7892 = vmul.f32 1.0, %v7891
      %v7893 = vrcp.pop %v7851
      %v7894 = vmul.f32 1.0, %v7893
      %v7895 = vrcp.pop %v7852
      %v7896 = vmul.f32 1.0, %v7895
      %v7897 = vrcp.pop %v7853
      %v7898 = vmul.f32 1.0, %v7897
      %v7899 = vrcp.pop %v7854
      %v7900 = vmul.f32 1.0, %v7899
      %v7901 = vrcp.pop %v7855
      %v7902 = vmul.f32 1.0, %v7901
      %v7903 = vrcp.pop %v7856
      %v7904 = vmul.f32 1.0, %v7903
      %v7905 = vrcp.pop %v7857
      %v7906 = vmul.f32 1.0, %v7905
      %v7907 = vrcp.pop %v7858
      %v7908 = vmul.f32 1.0, %v7907
      %v7909 = vrcp.pop %v7859
      %v7910 = vmul.f32 1.0, %v7909
      %v7911 = vrcp.pop %v7860
      %v7912 = vmul.f32 1.0, %v7911
      %v7913 = vrcp.pop %v7861
      %v7914 = vmul.f32 1.0, %v7913
      %v7915 = vrcp.pop %v7862
      %v7916 = vmul.f32 1.0, %v7915
      %v7917 = vrcp.pop %v7863
      %v7918 = vmul.f32 1.0, %v7917
      %v7919 = vrcp.pop %v7864
      %v7920 = vmul.f32 1.0, %v7919
      %v7921 = vrcp.pop %v7865
      %v7922 = vmul.f32 1.0, %v7921
      %v7923 = vrcp.pop %v7866
      %v7924 = vmul.f32 1.0, %v7923
      %v7925 = vrcp.pop %v7867
      %v7926 = vmul.f32 1.0, %v7925
      %v7927 = vrcp.pop %v7868
      %v7928 = vmul.f32 1.0, %v7927
      %v7929 = vrcp.pop %v7869
      %v7930 = vmul.f32 1.0, %v7929
      %v7931 = vrcp.pop %v7870
      %v7932 = vmul.f32 1.0, %v7931
      %v7933 = vrcp.pop %v7871
      %v7934 = vmul.f32 1.0, %v7933
      %v7935 = vrcp.pop %v7872
      %v7936 = vmul.f32 1.0, %v7935
      %v7937 = vrcp.pop %v7873
      %v7938 = vmul.f32 1.0, %v7937
      %v7939 = vrcp.pop %v7874
      %v7940 = vmul.f32 1.0, %v7939
      %v7941 = vrcp.pop %v7875
      %v7942 = vmul.f32 1.0, %v7941
      %v7943 = vrcp.pop %v7876
      %v7944 = vmul.f32 1.0, %v7943
      %v7945 = vrcp.pop %v7877
      %v7946 = vmul.f32 1.0, %v7945
      %v7947 = vrcp.pop %v7878
      %v7948 = vmul.f32 1.0, %v7947
      %v7949 = vrcp.pop %v7879
      %v7950 = vmul.f32 1.0, %v7949
      %v7951 = vrcp.pop %v7880
      %v7952 = vmul.f32 1.0, %v7951
      %v7953 = vrcp.pop %v7881
      %v7954 = vmul.f32 1.0, %v7953
      %v7955 = vrcp.pop %v7882
      %v7956 = vmul.f32 1.0, %v7955
      %v7957 = vrcp.pop %v7883
      %v7958 = vmul.f32 1.0, %v7957
      %v7959 = vrcp.pop %v7884
      %v7960 = vmul.f32 1.0, %v7959
      %v7961 = vrcp.pop %v7885
      %v7962 = vmul.f32 1.0, %v7961
      %v7963 = vrcp.pop %v7886
      %v7964 = vmul.f32 1.0, %v7963
      %v7965 = vrcp.pop %v7887
      %v7966 = vmul.f32 1.0, %v7965
      %v7967 = vrcp.pop %v7888
      %v7968 = vmul.f32 1.0, %v7967
      %v7969 = vrcp.pop %v7889
      %v7970 = vmul.f32 1.0, %v7969
      %v7971 = vrcp.pop %v7890
      %v7972 = vmul.f32 1.0, %v7971
      %v7973 = vmul.f32 %v7892, %v3934
      %v7974 = vmul.f32 %v7894, %v3939
      %v7975 = vmul.f32 %v7896, %v3944
      %v7976 = vmul.f32 %v7898, %v3949
      %v7977 = vmul.f32 %v7900, %v3954
      %v7978 = vmul.f32 %v7902, %v3959
      %v7979 = vmul.f32 %v7904, %v3964
      %v7980 = vmul.f32 %v7906, %v3969
      %v7981 = vmul.f32 %v7908, %v3974
      %v7982 = vmul.f32 %v7910, %v3979
      %v7983 = vmul.f32 %v7912, %v3984
      %v7984 = vmul.f32 %v7914, %v3989
      %v7985 = vmul.f32 %v7916, %v3994
      %v7986 = vmul.f32 %v7918, %v3999
      %v7987 = vmul.f32 %v7920, %v4004
      %v7988 = vmul.f32 %v7922, %v4009
      %v7989 = vmul.f32 %v7924, %v4014
      %v7990 = vmul.f32 %v7926, %v4019
      %v7991 = vmul.f32 %v7928, %v4024
      %v7992 = vmul.f32 %v7930, %v4029
      %v7993 = vmul.f32 %v7932, %v4034
      %v7994 = vmul.f32 %v7934, %v4039
      %v7995 = vmul.f32 %v7936, %v4044
      %v7996 = vmul.f32 %v7938, %v4049
      %v7997 = vmul.f32 %v7940, %v4054
      %v7998 = vmul.f32 %v7942, %v4059
      %v7999 = vmul.f32 %v7944, %v4064
      %v8000 = vmul.f32 %v7946, %v4069
      %v8001 = vmul.f32 %v7948, %v4074
      %v8002 = vmul.f32 %v7950, %v4079
      %v8003 = vmul.f32 %v7952, %v4084
      %v8004 = vmul.f32 %v7954, %v4089
      %v8005 = vmul.f32 %v7956, %v4094
      %v8006 = vmul.f32 %v7958, %v4099
      %v8007 = vmul.f32 %v7960, %v4104
      %v8008 = vmul.f32 %v7962, %v4109
      %v8009 = vmul.f32 %v7964, %v4114
      %v8010 = vmul.f32 %v7966, %v4119
      %v8011 = vmul.f32 %v7968, %v4124
      %v8012 = vmul.f32 %v7970, %v4129
      %v8013 = vmul.f32 %v7972, %v4134
      %8014 = vst.msk [vmem:[#allocation3 + $0x18] sm:$0xff] %vm375, %v7973
      %8015 = vst.msk [vmem:[#allocation3 + $0x20] sm:$0xff] %vm375, %v7974
      %8016 = vst.msk [vmem:[#allocation3 + $0x28] sm:$0xff] %vm375, %v7975
      %8017 = vst.msk [vmem:[#allocation3 + $0x30] sm:$0xff] %vm375, %v7976
      %8018 = vst.msk [vmem:[#allocation3 + $0x38] sm:$0xff] %vm375, %v7977
      %8019 = vst.msk [vmem:[#allocation3 + $0x40] sm:$0xff] %vm375, %v7978
      %8020 = vst.msk [vmem:[#allocation3 + $0x48] sm:$0xff] %vm375, %v7979
      %8021 = vst.msk [vmem:[#allocation3 + $0x50] sm:$0xff] %vm375, %v7980
      %8022 = vst.msk [vmem:[#allocation3 + $0x58] sm:$0xff] %vm375, %v7981
      %8023 = vst.msk [vmem:[#allocation3 + $0x60] sm:$0xff] %vm375, %v7982
      %8024 = vst.msk [vmem:[#allocation3 + $0x68] sm:$0xff] %vm375, %v7983
      %8025 = vst.msk [vmem:[#allocation3 + $0x70] sm:$0xff] %vm375, %v7984
      %8026 = vst.msk [vmem:[#allocation3 + $0x78] sm:$0xff] %vm375, %v7985
      %8027 = vst.msk [vmem:[#allocation3 + $0x80] sm:$0xff] %vm375, %v7986
      %8028 = vst.msk [vmem:[#allocation3 + $0x88] sm:$0xff] %vm375, %v7987
      %8029 = vst.msk [vmem:[#allocation3 + $0x90] sm:$0xff] %vm375, %v7988
      %8030 = vst.msk [vmem:[#allocation3 + $0x98] sm:$0xff] %vm375, %v7989
      %8031 = vst.msk [vmem:[#allocation3 + $0xa0] sm:$0xff] %vm375, %v7990
      %8032 = vst.msk [vmem:[#allocation3 + $0xa8] sm:$0xff] %vm375, %v7991
      %8033 = vst.msk [vmem:[#allocation3 + $0xb0] sm:$0xff] %vm375, %v7992
      %8034 = vst.msk [vmem:[#allocation3 + $0xb8] sm:$0xff] %vm375, %v7993
      %8035 = vst.msk [vmem:[#allocation3 + $0xc0] sm:$0xff] %vm375, %v7994
      %8036 = vst.msk [vmem:[#allocation3 + $0xc8] sm:$0xff] %vm375, %v7995
      %8037 = vst.msk [vmem:[#allocation3 + $0xd0] sm:$0xff] %vm375, %v7996
      %8038 = vst.msk [vmem:[#allocation3 + $0xd8] sm:$0xff] %vm375, %v7997
      %8039 = vst.msk [vmem:[#allocation3 + $0xe0] sm:$0xff] %vm375, %v7998
      %8040 = vst.msk [vmem:[#allocation3 + $0xe8] sm:$0xff] %vm375, %v7999
      %8041 = vst.msk [vmem:[#allocation3 + $0xf0] sm:$0xff] %vm375, %v8000
      %8042 = vst.msk [vmem:[#allocation3 + $0xf8] sm:$0xff] %vm375, %v8001
      %8043 = vst.msk [vmem:[#allocation3 + $0x100] sm:$0xff] %vm375, %v8002
      %8044 = vst.msk [vmem:[#allocation3 + $0x108] sm:$0xff] %vm375, %v8003
      %8045 = vst.msk [vmem:[#allocation3 + $0x110] sm:$0xff] %vm375, %v8004
      %8046 = vst.msk [vmem:[#allocation3 + $0x118] sm:$0xff] %vm375, %v8005
      %8047 = vst.msk [vmem:[#allocation3 + $0x120] sm:$0xff] %vm375, %v8006
      %8048 = vst.msk [vmem:[#allocation3 + $0x128] sm:$0xff] %vm375, %v8007
      %8049 = vst.msk [vmem:[#allocation3 + $0x130] sm:$0xff] %vm375, %v8008
      %8050 = vst.msk [vmem:[#allocation3 + $0x138] sm:$0xff] %vm375, %v8009
      %8051 = vst.msk [vmem:[#allocation3 + $0x140] sm:$0xff] %vm375, %v8010
      %8052 = vst.msk [vmem:[#allocation3 + $0x148] sm:$0xff] %vm375, %v8011
      %8053 = vst.msk [vmem:[#allocation3 + $0x150] sm:$0xff] %vm375, %v8012
      %vm8054 = vcmask 11264
      %8055 = vst.msk [vmem:[#allocation3 + $0x158] sm:$0xf] %vm8054, %v8013
      %v8056 = vld [vmem:[#allocation3 + $0x5] sm:$0xff]
      %v8057 = vld [vmem:[#allocation3 + $0xd] sm:$0xff]
      %v8058 = vld [vmem:[#allocation3 + $0x15] sm:$0xff]
      %v8059 = vld [vmem:[#allocation3 + $0x1d] sm:$0xff]
      %v8060 = vld [vmem:[#allocation3 + $0x25] sm:$0xff]
      %v8061 = vld [vmem:[#allocation3 + $0x2d] sm:$0xff]
      %v8062 = vld [vmem:[#allocation3 + $0x35] sm:$0xff]
      %v8063 = vld [vmem:[#allocation3 + $0x3d] sm:$0xff]
      %v8064 = vld [vmem:[#allocation3 + $0x45] sm:$0xff]
      %v8065 = vld [vmem:[#allocation3 + $0x4d] sm:$0xff]
      %v8066 = vld [vmem:[#allocation3 + $0x55] sm:$0xff]
      %v8067 = vld [vmem:[#allocation3 + $0x5d] sm:$0xff]
      %v8068 = vld [vmem:[#allocation3 + $0x65] sm:$0xff]
      %v8069 = vld [vmem:[#allocation3 + $0x6d] sm:$0xff]
      %v8070 = vld [vmem:[#allocation3 + $0x75] sm:$0xff]
      %v8071 = vld [vmem:[#allocation3 + $0x7d] sm:$0xff]
      %v8072 = vld [vmem:[#allocation3 + $0x85] sm:$0xff]
      %v8073 = vld [vmem:[#allocation3 + $0x8d] sm:$0xff]
      %v8074 = vld [vmem:[#allocation3 + $0x95] sm:$0xff]
      %v8075 = vld [vmem:[#allocation3 + $0x9d] sm:$0xff]
      %v8076 = vld [vmem:[#allocation3 + $0xa5] sm:$0xff]
      %v8077 = vld [vmem:[#allocation3 + $0xad] sm:$0xff]
      %v8078 = vld [vmem:[#allocation3 + $0xb5] sm:$0xff]
      %v8079 = vld [vmem:[#allocation3 + $0xbd] sm:$0xff]
      %v8080 = vld [vmem:[#allocation3 + $0xc5] sm:$0xff]
      %v8081 = vld [vmem:[#allocation3 + $0xcd] sm:$0xff]
      %v8082 = vld [vmem:[#allocation3 + $0xd5] sm:$0xff]
      %v8083 = vld [vmem:[#allocation3 + $0xdd] sm:$0xff]
      %v8084 = vld [vmem:[#allocation3 + $0xe5] sm:$0xff]
      %v8085 = vld [vmem:[#allocation3 + $0xed] sm:$0xff]
      %v8086 = vld [vmem:[#allocation3 + $0xf5] sm:$0xff]
      %v8087 = vld [vmem:[#allocation3 + $0xfd] sm:$0xff]
      %v8088 = vld [vmem:[#allocation3 + $0x105] sm:$0xff]
      %v8089 = vld [vmem:[#allocation3 + $0x10d] sm:$0xff]
      %v8090 = vld [vmem:[#allocation3 + $0x115] sm:$0xff]
      %v8091 = vld [vmem:[#allocation3 + $0x11d] sm:$0xff]
      %v8092 = vld [vmem:[#allocation3 + $0x125] sm:$0xff]
      %v8093 = vld [vmem:[#allocation3 + $0x12d] sm:$0xff]
      %v8094 = vld [vmem:[#allocation3 + $0x135] sm:$0xff]
      %v8095 = vld [vmem:[#allocation3 + $0x13d] sm:$0xff]
      %v8096 = vld [vmem:[#allocation3 + $0x145] sm:$0xf]
      %v8097 = vld [vmem:[%s5] sm:$0x1]
      %v8099 = vlaneseq
      %v8100 = vshrl.u32 %v8099, 7
      %v8101 = vsub.s32 0, %v8100
      %v8102 = vrot.slane %v8097, %v8101
      %v8104 = vmul.f32 %v8056, %v8102
      %v8105 = vmul.f32 %v8057, %v8102
      %v8106 = vmul.f32 %v8058, %v8102
      %v8107 = vmul.f32 %v8059, %v8102
      %v8108 = vmul.f32 %v8060, %v8102
      %v8109 = vmul.f32 %v8061, %v8102
      %v8110 = vmul.f32 %v8062, %v8102
      %v8111 = vmul.f32 %v8063, %v8102
      %v8112 = vmul.f32 %v8064, %v8102
      %v8113 = vmul.f32 %v8065, %v8102
      %v8114 = vmul.f32 %v8066, %v8102
      %v8115 = vmul.f32 %v8067, %v8102
      %v8116 = vmul.f32 %v8068, %v8102
      %v8117 = vmul.f32 %v8069, %v8102
      %v8118 = vmul.f32 %v8070, %v8102
      %v8119 = vmul.f32 %v8071, %v8102
      %v8120 = vmul.f32 %v8072, %v8102
      %v8121 = vmul.f32 %v8073, %v8102
      %v8122 = vmul.f32 %v8074, %v8102
      %v8123 = vmul.f32 %v8075, %v8102
      %v8124 = vmul.f32 %v8076, %v8102
      %v8125 = vmul.f32 %v8077, %v8102
      %v8126 = vmul.f32 %v8078, %v8102
      %v8127 = vmul.f32 %v8079, %v8102
      %v8128 = vmul.f32 %v8080, %v8102
      %v8129 = vmul.f32 %v8081, %v8102
      %v8130 = vmul.f32 %v8082, %v8102
      %v8131 = vmul.f32 %v8083, %v8102
      %v8132 = vmul.f32 %v8084, %v8102
      %v8133 = vmul.f32 %v8085, %v8102
      %v8134 = vmul.f32 %v8086, %v8102
      %v8135 = vmul.f32 %v8087, %v8102
      %v8136 = vmul.f32 %v8088, %v8102
      %v8137 = vmul.f32 %v8089, %v8102
      %v8138 = vmul.f32 %v8090, %v8102
      %v8139 = vmul.f32 %v8091, %v8102
      %v8140 = vmul.f32 %v8092, %v8102
      %v8141 = vmul.f32 %v8093, %v8102
      %v8142 = vmul.f32 %v8094, %v8102
      %v8143 = vmul.f32 %v8095, %v8102
      %v8144 = vmul.f32 %v8096, %v8102
      %v8145 = vadd.f32 %v8104, 0.0
      %v8146 = vadd.f32 %v8105, 0.0
      %v8147 = vadd.f32 %v8106, 0.0
      %v8148 = vadd.f32 %v8107, 0.0
      %v8149 = vadd.f32 %v8108, 0.0
      %v8150 = vadd.f32 %v8109, 0.0
      %v8151 = vadd.f32 %v8110, 0.0
      %v8152 = vadd.f32 %v8111, 0.0
      %v8153 = vadd.f32 %v8112, 0.0
      %v8154 = vadd.f32 %v8113, 0.0
      %v8155 = vadd.f32 %v8114, 0.0
      %v8156 = vadd.f32 %v8115, 0.0
      %v8157 = vadd.f32 %v8116, 0.0
      %v8158 = vadd.f32 %v8117, 0.0
      %v8159 = vadd.f32 %v8118, 0.0
      %v8160 = vadd.f32 %v8119, 0.0
      %v8161 = vadd.f32 %v8120, 0.0
      %v8162 = vadd.f32 %v8121, 0.0
      %v8163 = vadd.f32 %v8122, 0.0
      %v8164 = vadd.f32 %v8123, 0.0
      %v8165 = vadd.f32 %v8124, 0.0
      %v8166 = vadd.f32 %v8125, 0.0
      %v8167 = vadd.f32 %v8126, 0.0
      %v8168 = vadd.f32 %v8127, 0.0
      %v8169 = vadd.f32 %v8128, 0.0
      %v8170 = vadd.f32 %v8129, 0.0
      %v8171 = vadd.f32 %v8130, 0.0
      %v8172 = vadd.f32 %v8131, 0.0
      %v8173 = vadd.f32 %v8132, 0.0
      %v8174 = vadd.f32 %v8133, 0.0
      %v8175 = vadd.f32 %v8134, 0.0
      %v8176 = vadd.f32 %v8135, 0.0
      %v8177 = vadd.f32 %v8136, 0.0
      %v8178 = vadd.f32 %v8137, 0.0
      %v8179 = vadd.f32 %v8138, 0.0
      %v8180 = vadd.f32 %v8139, 0.0
      %v8181 = vadd.f32 %v8140, 0.0
      %v8182 = vadd.f32 %v8141, 0.0
      %v8183 = vadd.f32 %v8142, 0.0
      %v8184 = vadd.f32 %v8143, 0.0
      %v8185 = vadd.f32 %v8144, 0.0
      %v8186 = vld [vmem:[#allocation3 + $0x6] sm:$0xff]
      %v8187 = vld [vmem:[#allocation3 + $0xe] sm:$0xff]
      %v8188 = vld [vmem:[#allocation3 + $0x16] sm:$0xff]
      %v8189 = vld [vmem:[#allocation3 + $0x1e] sm:$0xff]
      %v8190 = vld [vmem:[#allocation3 + $0x26] sm:$0xff]
      %v8191 = vld [vmem:[#allocation3 + $0x2e] sm:$0xff]
      %v8192 = vld [vmem:[#allocation3 + $0x36] sm:$0xff]
      %v8193 = vld [vmem:[#allocation3 + $0x3e] sm:$0xff]
      %v8194 = vld [vmem:[#allocation3 + $0x46] sm:$0xff]
      %v8195 = vld [vmem:[#allocation3 + $0x4e] sm:$0xff]
      %v8196 = vld [vmem:[#allocation3 + $0x56] sm:$0xff]
      %v8197 = vld [vmem:[#allocation3 + $0x5e] sm:$0xff]
      %v8198 = vld [vmem:[#allocation3 + $0x66] sm:$0xff]
      %v8199 = vld [vmem:[#allocation3 + $0x6e] sm:$0xff]
      %v8200 = vld [vmem:[#allocation3 + $0x76] sm:$0xff]
      %v8201 = vld [vmem:[#allocation3 + $0x7e] sm:$0xff]
      %v8202 = vld [vmem:[#allocation3 + $0x86] sm:$0xff]
      %v8203 = vld [vmem:[#allocation3 + $0x8e] sm:$0xff]
      %v8204 = vld [vmem:[#allocation3 + $0x96] sm:$0xff]
      %v8205 = vld [vmem:[#allocation3 + $0x9e] sm:$0xff]
      %v8206 = vld [vmem:[#allocation3 + $0xa6] sm:$0xff]
      %v8207 = vld [vmem:[#allocation3 + $0xae] sm:$0xff]
      %v8208 = vld [vmem:[#allocation3 + $0xb6] sm:$0xff]
      %v8209 = vld [vmem:[#allocation3 + $0xbe] sm:$0xff]
      %v8210 = vld [vmem:[#allocation3 + $0xc6] sm:$0xff]
      %v8211 = vld [vmem:[#allocation3 + $0xce] sm:$0xff]
      %v8212 = vld [vmem:[#allocation3 + $0xd6] sm:$0xff]
      %v8213 = vld [vmem:[#allocation3 + $0xde] sm:$0xff]
      %v8214 = vld [vmem:[#allocation3 + $0xe6] sm:$0xff]
      %v8215 = vld [vmem:[#allocation3 + $0xee] sm:$0xff]
      %v8216 = vld [vmem:[#allocation3 + $0xf6] sm:$0xff]
      %v8217 = vld [vmem:[#allocation3 + $0xfe] sm:$0xff]
      %v8218 = vld [vmem:[#allocation3 + $0x106] sm:$0xff]
      %v8219 = vld [vmem:[#allocation3 + $0x10e] sm:$0xff]
      %v8220 = vld [vmem:[#allocation3 + $0x116] sm:$0xff]
      %v8221 = vld [vmem:[#allocation3 + $0x11e] sm:$0xff]
      %v8222 = vld [vmem:[#allocation3 + $0x126] sm:$0xff]
      %v8223 = vld [vmem:[#allocation3 + $0x12e] sm:$0xff]
      %v8224 = vld [vmem:[#allocation3 + $0x136] sm:$0xff]
      %v8225 = vld [vmem:[#allocation3 + $0x13e] sm:$0xff]
      %v8226 = vld [vmem:[#allocation3 + $0x146] sm:$0xf]
      %s8227 = scalar_lea.vmem %s5, 1
      %v8228 = vld [vmem:[%s8227] sm:$0x1]
      %v8230 = vlaneseq
      %v8231 = vshrl.u32 %v8230, 7
      %v8232 = vsub.s32 0, %v8231
      %v8233 = vrot.slane %v8228, %v8232
      %v8235 = vmul.f32 %v8186, %v8233
      %v8236 = vmul.f32 %v8187, %v8233
      %v8237 = vmul.f32 %v8188, %v8233
      %v8238 = vmul.f32 %v8189, %v8233
      %v8239 = vmul.f32 %v8190, %v8233
      %v8240 = vmul.f32 %v8191, %v8233
      %v8241 = vmul.f32 %v8192, %v8233
      %v8242 = vmul.f32 %v8193, %v8233
      %v8243 = vmul.f32 %v8194, %v8233
      %v8244 = vmul.f32 %v8195, %v8233
      %v8245 = vmul.f32 %v8196, %v8233
      %v8246 = vmul.f32 %v8197, %v8233
      %v8247 = vmul.f32 %v8198, %v8233
      %v8248 = vmul.f32 %v8199, %v8233
      %v8249 = vmul.f32 %v8200, %v8233
      %v8250 = vmul.f32 %v8201, %v8233
      %v8251 = vmul.f32 %v8202, %v8233
      %v8252 = vmul.f32 %v8203, %v8233
      %v8253 = vmul.f32 %v8204, %v8233
      %v8254 = vmul.f32 %v8205, %v8233
      %v8255 = vmul.f32 %v8206, %v8233
      %v8256 = vmul.f32 %v8207, %v8233
      %v8257 = vmul.f32 %v8208, %v8233
      %v8258 = vmul.f32 %v8209, %v8233
      %v8259 = vmul.f32 %v8210, %v8233
      %v8260 = vmul.f32 %v8211, %v8233
      %v8261 = vmul.f32 %v8212, %v8233
      %v8262 = vmul.f32 %v8213, %v8233
      %v8263 = vmul.f32 %v8214, %v8233
      %v8264 = vmul.f32 %v8215, %v8233
      %v8265 = vmul.f32 %v8216, %v8233
      %v8266 = vmul.f32 %v8217, %v8233
      %v8267 = vmul.f32 %v8218, %v8233
      %v8268 = vmul.f32 %v8219, %v8233
      %v8269 = vmul.f32 %v8220, %v8233
      %v8270 = vmul.f32 %v8221, %v8233
      %v8271 = vmul.f32 %v8222, %v8233
      %v8272 = vmul.f32 %v8223, %v8233
      %v8273 = vmul.f32 %v8224, %v8233
      %v8274 = vmul.f32 %v8225, %v8233
      %v8275 = vmul.f32 %v8226, %v8233
      %v8276 = vadd.f32 %v8145, %v8235
      %v8277 = vadd.f32 %v8146, %v8236
      %v8278 = vadd.f32 %v8147, %v8237
      %v8279 = vadd.f32 %v8148, %v8238
      %v8280 = vadd.f32 %v8149, %v8239
      %v8281 = vadd.f32 %v8150, %v8240
      %v8282 = vadd.f32 %v8151, %v8241
      %v8283 = vadd.f32 %v8152, %v8242
      %v8284 = vadd.f32 %v8153, %v8243
      %v8285 = vadd.f32 %v8154, %v8244
      %v8286 = vadd.f32 %v8155, %v8245
      %v8287 = vadd.f32 %v8156, %v8246
      %v8288 = vadd.f32 %v8157, %v8247
      %v8289 = vadd.f32 %v8158, %v8248
      %v8290 = vadd.f32 %v8159, %v8249
      %v8291 = vadd.f32 %v8160, %v8250
      %v8292 = vadd.f32 %v8161, %v8251
      %v8293 = vadd.f32 %v8162, %v8252
      %v8294 = vadd.f32 %v8163, %v8253
      %v8295 = vadd.f32 %v8164, %v8254
      %v8296 = vadd.f32 %v8165, %v8255
      %v8297 = vadd.f32 %v8166, %v8256
      %v8298 = vadd.f32 %v8167, %v8257
      %v8299 = vadd.f32 %v8168, %v8258
      %v8300 = vadd.f32 %v8169, %v8259
      %v8301 = vadd.f32 %v8170, %v8260
      %v8302 = vadd.f32 %v8171, %v8261
      %v8303 = vadd.f32 %v8172, %v8262
      %v8304 = vadd.f32 %v8173, %v8263
      %v8305 = vadd.f32 %v8174, %v8264
      %v8306 = vadd.f32 %v8175, %v8265
      %v8307 = vadd.f32 %v8176, %v8266
      %v8308 = vadd.f32 %v8177, %v8267
      %v8309 = vadd.f32 %v8178, %v8268
      %v8310 = vadd.f32 %v8179, %v8269
      %v8311 = vadd.f32 %v8180, %v8270
      %v8312 = vadd.f32 %v8181, %v8271
      %v8313 = vadd.f32 %v8182, %v8272
      %v8314 = vadd.f32 %v8183, %v8273
      %v8315 = vadd.f32 %v8184, %v8274
      %v8316 = vadd.f32 %v8185, %v8275
      %v8317 = vld [vmem:[#allocation3 + $0x7] sm:$0xff]
      %v8318 = vld [vmem:[#allocation3 + $0xf] sm:$0xff]
      %v8319 = vld [vmem:[#allocation3 + $0x17] sm:$0xff]
      %v8320 = vld [vmem:[#allocation3 + $0x1f] sm:$0xff]
      %v8321 = vld [vmem:[#allocation3 + $0x27] sm:$0xff]
      %v8322 = vld [vmem:[#allocation3 + $0x2f] sm:$0xff]
      %v8323 = vld [vmem:[#allocation3 + $0x37] sm:$0xff]
      %v8324 = vld [vmem:[#allocation3 + $0x3f] sm:$0xff]
      %v8325 = vld [vmem:[#allocation3 + $0x47] sm:$0xff]
      %v8326 = vld [vmem:[#allocation3 + $0x4f] sm:$0xff]
      %v8327 = vld [vmem:[#allocation3 + $0x57] sm:$0xff]
      %v8328 = vld [vmem:[#allocation3 + $0x5f] sm:$0xff]
      %v8329 = vld [vmem:[#allocation3 + $0x67] sm:$0xff]
      %v8330 = vld [vmem:[#allocation3 + $0x6f] sm:$0xff]
      %v8331 = vld [vmem:[#allocation3 + $0x77] sm:$0xff]
      %v8332 = vld [vmem:[#allocation3 + $0x7f] sm:$0xff]
      %v8333 = vld [vmem:[#allocation3 + $0x87] sm:$0xff]
      %v8334 = vld [vmem:[#allocation3 + $0x8f] sm:$0xff]
      %v8335 = vld [vmem:[#allocation3 + $0x97] sm:$0xff]
      %v8336 = vld [vmem:[#allocation3 + $0x9f] sm:$0xff]
      %v8337 = vld [vmem:[#allocation3 + $0xa7] sm:$0xff]
      %v8338 = vld [vmem:[#allocation3 + $0xaf] sm:$0xff]
      %v8339 = vld [vmem:[#allocation3 + $0xb7] sm:$0xff]
      %v8340 = vld [vmem:[#allocation3 + $0xbf] sm:$0xff]
      %v8341 = vld [vmem:[#allocation3 + $0xc7] sm:$0xff]
      %v8342 = vld [vmem:[#allocation3 + $0xcf] sm:$0xff]
      %v8343 = vld [vmem:[#allocation3 + $0xd7] sm:$0xff]
      %v8344 = vld [vmem:[#allocation3 + $0xdf] sm:$0xff]
      %v8345 = vld [vmem:[#allocation3 + $0xe7] sm:$0xff]
      %v8346 = vld [vmem:[#allocation3 + $0xef] sm:$0xff]
      %v8347 = vld [vmem:[#allocation3 + $0xf7] sm:$0xff]
      %v8348 = vld [vmem:[#allocation3 + $0xff] sm:$0xff]
      %v8349 = vld [vmem:[#allocation3 + $0x107] sm:$0xff]
      %v8350 = vld [vmem:[#allocation3 + $0x10f] sm:$0xff]
      %v8351 = vld [vmem:[#allocation3 + $0x117] sm:$0xff]
      %v8352 = vld [vmem:[#allocation3 + $0x11f] sm:$0xff]
      %v8353 = vld [vmem:[#allocation3 + $0x127] sm:$0xff]
      %v8354 = vld [vmem:[#allocation3 + $0x12f] sm:$0xff]
      %v8355 = vld [vmem:[#allocation3 + $0x137] sm:$0xff]
      %v8356 = vld [vmem:[#allocation3 + $0x13f] sm:$0xff]
      %v8357 = vld [vmem:[#allocation3 + $0x147] sm:$0xf]
      %s8358 = scalar_lea.vmem %s5, 2
      %v8359 = vld [vmem:[%s8358] sm:$0x1]
      %v8361 = vlaneseq
      %v8362 = vshrl.u32 %v8361, 7
      %v8363 = vsub.s32 0, %v8362
      %v8364 = vrot.slane %v8359, %v8363
      %v8366 = vmul.f32 %v8317, %v8364
      %v8367 = vmul.f32 %v8318, %v8364
      %v8368 = vmul.f32 %v8319, %v8364
      %v8369 = vmul.f32 %v8320, %v8364
      %v8370 = vmul.f32 %v8321, %v8364
      %v8371 = vmul.f32 %v8322, %v8364
      %v8372 = vmul.f32 %v8323, %v8364
      %v8373 = vmul.f32 %v8324, %v8364
      %v8374 = vmul.f32 %v8325, %v8364
      %v8375 = vmul.f32 %v8326, %v8364
      %v8376 = vmul.f32 %v8327, %v8364
      %v8377 = vmul.f32 %v8328, %v8364
      %v8378 = vmul.f32 %v8329, %v8364
      %v8379 = vmul.f32 %v8330, %v8364
      %v8380 = vmul.f32 %v8331, %v8364
      %v8381 = vmul.f32 %v8332, %v8364
      %v8382 = vmul.f32 %v8333, %v8364
      %v8383 = vmul.f32 %v8334, %v8364
      %v8384 = vmul.f32 %v8335, %v8364
      %v8385 = vmul.f32 %v8336, %v8364
      %v8386 = vmul.f32 %v8337, %v8364
      %v8387 = vmul.f32 %v8338, %v8364
      %v8388 = vmul.f32 %v8339, %v8364
      %v8389 = vmul.f32 %v8340, %v8364
      %v8390 = vmul.f32 %v8341, %v8364
      %v8391 = vmul.f32 %v8342, %v8364
      %v8392 = vmul.f32 %v8343, %v8364
      %v8393 = vmul.f32 %v8344, %v8364
      %v8394 = vmul.f32 %v8345, %v8364
      %v8395 = vmul.f32 %v8346, %v8364
      %v8396 = vmul.f32 %v8347, %v8364
      %v8397 = vmul.f32 %v8348, %v8364
      %v8398 = vmul.f32 %v8349, %v8364
      %v8399 = vmul.f32 %v8350, %v8364
      %v8400 = vmul.f32 %v8351, %v8364
      %v8401 = vmul.f32 %v8352, %v8364
      %v8402 = vmul.f32 %v8353, %v8364
      %v8403 = vmul.f32 %v8354, %v8364
      %v8404 = vmul.f32 %v8355, %v8364
      %v8405 = vmul.f32 %v8356, %v8364
      %v8406 = vmul.f32 %v8357, %v8364
      %v8407 = vadd.f32 %v8276, %v8366
      %v8408 = vadd.f32 %v8277, %v8367
      %v8409 = vadd.f32 %v8278, %v8368
      %v8410 = vadd.f32 %v8279, %v8369
      %v8411 = vadd.f32 %v8280, %v8370
      %v8412 = vadd.f32 %v8281, %v8371
      %v8413 = vadd.f32 %v8282, %v8372
      %v8414 = vadd.f32 %v8283, %v8373
      %v8415 = vadd.f32 %v8284, %v8374
      %v8416 = vadd.f32 %v8285, %v8375
      %v8417 = vadd.f32 %v8286, %v8376
      %v8418 = vadd.f32 %v8287, %v8377
      %v8419 = vadd.f32 %v8288, %v8378
      %v8420 = vadd.f32 %v8289, %v8379
      %v8421 = vadd.f32 %v8290, %v8380
      %v8422 = vadd.f32 %v8291, %v8381
      %v8423 = vadd.f32 %v8292, %v8382
      %v8424 = vadd.f32 %v8293, %v8383
      %v8425 = vadd.f32 %v8294, %v8384
      %v8426 = vadd.f32 %v8295, %v8385
      %v8427 = vadd.f32 %v8296, %v8386
      %v8428 = vadd.f32 %v8297, %v8387
      %v8429 = vadd.f32 %v8298, %v8388
      %v8430 = vadd.f32 %v8299, %v8389
      %v8431 = vadd.f32 %v8300, %v8390
      %v8432 = vadd.f32 %v8301, %v8391
      %v8433 = vadd.f32 %v8302, %v8392
      %v8434 = vadd.f32 %v8303, %v8393
      %v8435 = vadd.f32 %v8304, %v8394
      %v8436 = vadd.f32 %v8305, %v8395
      %v8437 = vadd.f32 %v8306, %v8396
      %v8438 = vadd.f32 %v8307, %v8397
      %v8439 = vadd.f32 %v8308, %v8398
      %v8440 = vadd.f32 %v8309, %v8399
      %v8441 = vadd.f32 %v8310, %v8400
      %v8442 = vadd.f32 %v8311, %v8401
      %v8443 = vadd.f32 %v8312, %v8402
      %v8444 = vadd.f32 %v8313, %v8403
      %v8445 = vadd.f32 %v8314, %v8404
      %v8446 = vadd.f32 %v8315, %v8405
      %v8447 = vadd.f32 %v8316, %v8406
      %v8448 = vld [vmem:[#allocation3 + $0x147] sm:$0xff]
      %v8449 = vld [vmem:[#allocation3 + $0x14f] sm:$0xff]
      %v8450 = vld [vmem:[#allocation3 + $0x157] sm:$0xf]
      %s8451 = scalar_lea.vmem %s5, 3
      %v8452 = vld [vmem:[%s8451] sm:$0x1]
      %v8454 = vlaneseq
      %v8455 = vshrl.u32 %v8454, 7
      %v8456 = vsub.s32 0, %v8455
      %v8457 = vrot.slane %v8452, %v8456
      %v8459 = vmul.f32 %v8319, %v8457
      %v8460 = vmul.f32 %v8320, %v8457
      %v8461 = vmul.f32 %v8321, %v8457
      %v8462 = vmul.f32 %v8322, %v8457
      %v8463 = vmul.f32 %v8323, %v8457
      %v8464 = vmul.f32 %v8324, %v8457
      %v8465 = vmul.f32 %v8325, %v8457
      %v8466 = vmul.f32 %v8326, %v8457
      %v8467 = vmul.f32 %v8327, %v8457
      %v8468 = vmul.f32 %v8328, %v8457
      %v8469 = vmul.f32 %v8329, %v8457
      %v8470 = vmul.f32 %v8330, %v8457
      %v8471 = vmul.f32 %v8331, %v8457
      %v8472 = vmul.f32 %v8332, %v8457
      %v8473 = vmul.f32 %v8333, %v8457
      %v8474 = vmul.f32 %v8334, %v8457
      %v8475 = vmul.f32 %v8335, %v8457
      %v8476 = vmul.f32 %v8336, %v8457
      %v8477 = vmul.f32 %v8337, %v8457
      %v8478 = vmul.f32 %v8338, %v8457
      %v8479 = vmul.f32 %v8339, %v8457
      %v8480 = vmul.f32 %v8340, %v8457
      %v8481 = vmul.f32 %v8341, %v8457
      %v8482 = vmul.f32 %v8342, %v8457
      %v8483 = vmul.f32 %v8343, %v8457
      %v8484 = vmul.f32 %v8344, %v8457
      %v8485 = vmul.f32 %v8345, %v8457
      %v8486 = vmul.f32 %v8346, %v8457
      %v8487 = vmul.f32 %v8347, %v8457
      %v8488 = vmul.f32 %v8348, %v8457
      %v8489 = vmul.f32 %v8349, %v8457
      %v8490 = vmul.f32 %v8350, %v8457
      %v8491 = vmul.f32 %v8351, %v8457
      %v8492 = vmul.f32 %v8352, %v8457
      %v8493 = vmul.f32 %v8353, %v8457
      %v8494 = vmul.f32 %v8354, %v8457
      %v8495 = vmul.f32 %v8355, %v8457
      %v8496 = vmul.f32 %v8356, %v8457
      %v8497 = vmul.f32 %v8448, %v8457
      %v8498 = vmul.f32 %v8449, %v8457
      %v8499 = vmul.f32 %v8450, %v8457
      %v8500 = vadd.f32 %v8407, %v8459
      %v8501 = vadd.f32 %v8408, %v8460
      %v8502 = vadd.f32 %v8409, %v8461
      %v8503 = vadd.f32 %v8410, %v8462
      %v8504 = vadd.f32 %v8411, %v8463
      %v8505 = vadd.f32 %v8412, %v8464
      %v8506 = vadd.f32 %v8413, %v8465
      %v8507 = vadd.f32 %v8414, %v8466
      %v8508 = vadd.f32 %v8415, %v8467
      %v8509 = vadd.f32 %v8416, %v8468
      %v8510 = vadd.f32 %v8417, %v8469
      %v8511 = vadd.f32 %v8418, %v8470
      %v8512 = vadd.f32 %v8419, %v8471
      %v8513 = vadd.f32 %v8420, %v8472
      %v8514 = vadd.f32 %v8421, %v8473
      %v8515 = vadd.f32 %v8422, %v8474
      %v8516 = vadd.f32 %v8423, %v8475
      %v8517 = vadd.f32 %v8424, %v8476
      %v8518 = vadd.f32 %v8425, %v8477
      %v8519 = vadd.f32 %v8426, %v8478
      %v8520 = vadd.f32 %v8427, %v8479
      %v8521 = vadd.f32 %v8428, %v8480
      %v8522 = vadd.f32 %v8429, %v8481
      %v8523 = vadd.f32 %v8430, %v8482
      %v8524 = vadd.f32 %v8431, %v8483
      %v8525 = vadd.f32 %v8432, %v8484
      %v8526 = vadd.f32 %v8433, %v8485
      %v8527 = vadd.f32 %v8434, %v8486
      %v8528 = vadd.f32 %v8435, %v8487
      %v8529 = vadd.f32 %v8436, %v8488
      %v8530 = vadd.f32 %v8437, %v8489
      %v8531 = vadd.f32 %v8438, %v8490
      %v8532 = vadd.f32 %v8439, %v8491
      %v8533 = vadd.f32 %v8440, %v8492
      %v8534 = vadd.f32 %v8441, %v8493
      %v8535 = vadd.f32 %v8442, %v8494
      %v8536 = vadd.f32 %v8443, %v8495
      %v8537 = vadd.f32 %v8444, %v8496
      %v8538 = vadd.f32 %v8445, %v8497
      %v8539 = vadd.f32 %v8446, %v8498
      %v8540 = vadd.f32 %v8447, %v8499
      %v8541 = vld [vmem:[#allocation3 + $0x18] sm:$0xff]
      %v8542 = vld [vmem:[#allocation3 + $0x20] sm:$0xff]
      %v8543 = vld [vmem:[#allocation3 + $0x28] sm:$0xff]
      %v8544 = vld [vmem:[#allocation3 + $0x30] sm:$0xff]
      %v8545 = vld [vmem:[#allocation3 + $0x38] sm:$0xff]
      %v8546 = vld [vmem:[#allocation3 + $0x40] sm:$0xff]
      %v8547 = vld [vmem:[#allocation3 + $0x48] sm:$0xff]
      %v8548 = vld [vmem:[#allocation3 + $0x50] sm:$0xff]
      %v8549 = vld [vmem:[#allocation3 + $0x58] sm:$0xff]
      %v8550 = vld [vmem:[#allocation3 + $0x60] sm:$0xff]
      %v8551 = vld [vmem:[#allocation3 + $0x68] sm:$0xff]
      %v8552 = vld [vmem:[#allocation3 + $0x70] sm:$0xff]
      %v8553 = vld [vmem:[#allocation3 + $0x78] sm:$0xff]
      %v8554 = vld [vmem:[#allocation3 + $0x80] sm:$0xff]
      %v8555 = vld [vmem:[#allocation3 + $0x88] sm:$0xff]
      %v8556 = vld [vmem:[#allocation3 + $0x90] sm:$0xff]
      %v8557 = vld [vmem:[#allocation3 + $0x98] sm:$0xff]
      %v8558 = vld [vmem:[#allocation3 + $0xa0] sm:$0xff]
      %v8559 = vld [vmem:[#allocation3 + $0xa8] sm:$0xff]
      %v8560 = vld [vmem:[#allocation3 + $0xb0] sm:$0xff]
      %v8561 = vld [vmem:[#allocation3 + $0xb8] sm:$0xff]
      %v8562 = vld [vmem:[#allocation3 + $0xc0] sm:$0xff]
      %v8563 = vld [vmem:[#allocation3 + $0xc8] sm:$0xff]
      %v8564 = vld [vmem:[#allocation3 + $0xd0] sm:$0xff]
      %v8565 = vld [vmem:[#allocation3 + $0xd8] sm:$0xff]
      %v8566 = vld [vmem:[#allocation3 + $0xe0] sm:$0xff]
      %v8567 = vld [vmem:[#allocation3 + $0xe8] sm:$0xff]
      %v8568 = vld [vmem:[#allocation3 + $0xf0] sm:$0xff]
      %v8569 = vld [vmem:[#allocation3 + $0xf8] sm:$0xff]
      %v8570 = vld [vmem:[#allocation3 + $0x100] sm:$0xff]
      %v8571 = vld [vmem:[#allocation3 + $0x108] sm:$0xff]
      %v8572 = vld [vmem:[#allocation3 + $0x110] sm:$0xff]
      %v8573 = vld [vmem:[#allocation3 + $0x118] sm:$0xff]
      %v8574 = vld [vmem:[#allocation3 + $0x120] sm:$0xff]
      %v8575 = vld [vmem:[#allocation3 + $0x128] sm:$0xff]
      %v8576 = vld [vmem:[#allocation3 + $0x130] sm:$0xff]
      %v8577 = vld [vmem:[#allocation3 + $0x138] sm:$0xff]
      %v8578 = vld [vmem:[#allocation3 + $0x140] sm:$0xff]
      %v8579 = vld [vmem:[#allocation3 + $0x148] sm:$0xff]
      %v8580 = vld [vmem:[#allocation3 + $0x150] sm:$0xff]
      %v8581 = vld [vmem:[#allocation3 + $0x158] sm:$0xf]
      %s8582 = scalar_lea.vmem %s5, 4
      %v8583 = vld [vmem:[%s8582] sm:$0x1]
      %v8585 = vlaneseq
      %v8586 = vshrl.u32 %v8585, 7
      %v8587 = vsub.s32 0, %v8586
      %v8588 = vrot.slane %v8583, %v8587
      %v8590 = vmul.f32 %v8541, %v8588
      %v8591 = vmul.f32 %v8542, %v8588
      %v8592 = vmul.f32 %v8543, %v8588
      %v8593 = vmul.f32 %v8544, %v8588
      %v8594 = vmul.f32 %v8545, %v8588
      %v8595 = vmul.f32 %v8546, %v8588
      %v8596 = vmul.f32 %v8547, %v8588
      %v8597 = vmul.f32 %v8548, %v8588
      %v8598 = vmul.f32 %v8549, %v8588
      %v8599 = vmul.f32 %v8550, %v8588
      %v8600 = vmul.f32 %v8551, %v8588
      %v8601 = vmul.f32 %v8552, %v8588
      %v8602 = vmul.f32 %v8553, %v8588
      %v8603 = vmul.f32 %v8554, %v8588
      %v8604 = vmul.f32 %v8555, %v8588
      %v8605 = vmul.f32 %v8556, %v8588
      %v8606 = vmul.f32 %v8557, %v8588
      %v8607 = vmul.f32 %v8558, %v8588
      %v8608 = vmul.f32 %v8559, %v8588
      %v8609 = vmul.f32 %v8560, %v8588
      %v8610 = vmul.f32 %v8561, %v8588
      %v8611 = vmul.f32 %v8562, %v8588
      %v8612 = vmul.f32 %v8563, %v8588
      %v8613 = vmul.f32 %v8564, %v8588
      %v8614 = vmul.f32 %v8565, %v8588
      %v8615 = vmul.f32 %v8566, %v8588
      %v8616 = vmul.f32 %v8567, %v8588
      %v8617 = vmul.f32 %v8568, %v8588
      %v8618 = vmul.f32 %v8569, %v8588
      %v8619 = vmul.f32 %v8570, %v8588
      %v8620 = vmul.f32 %v8571, %v8588
      %v8621 = vmul.f32 %v8572, %v8588
      %v8622 = vmul.f32 %v8573, %v8588
      %v8623 = vmul.f32 %v8574, %v8588
      %v8624 = vmul.f32 %v8575, %v8588
      %v8625 = vmul.f32 %v8576, %v8588
      %v8626 = vmul.f32 %v8577, %v8588
      %v8627 = vmul.f32 %v8578, %v8588
      %v8628 = vmul.f32 %v8579, %v8588
      %v8629 = vmul.f32 %v8580, %v8588
      %v8630 = vmul.f32 %v8581, %v8588
      %v8631 = vadd.f32 %v8500, %v8590
      %v8632 = vadd.f32 %v8501, %v8591
      %v8633 = vadd.f32 %v8502, %v8592
      %v8634 = vadd.f32 %v8503, %v8593
      %v8635 = vadd.f32 %v8504, %v8594
      %v8636 = vadd.f32 %v8505, %v8595
      %v8637 = vadd.f32 %v8506, %v8596
      %v8638 = vadd.f32 %v8507, %v8597
      %v8639 = vadd.f32 %v8508, %v8598
      %v8640 = vadd.f32 %v8509, %v8599
      %v8641 = vadd.f32 %v8510, %v8600
      %v8642 = vadd.f32 %v8511, %v8601
      %v8643 = vadd.f32 %v8512, %v8602
      %v8644 = vadd.f32 %v8513, %v8603
      %v8645 = vadd.f32 %v8514, %v8604
      %v8646 = vadd.f32 %v8515, %v8605
      %v8647 = vadd.f32 %v8516, %v8606
      %v8648 = vadd.f32 %v8517, %v8607
      %v8649 = vadd.f32 %v8518, %v8608
      %v8650 = vadd.f32 %v8519, %v8609
      %v8651 = vadd.f32 %v8520, %v8610
      %v8652 = vadd.f32 %v8521, %v8611
      %v8653 = vadd.f32 %v8522, %v8612
      %v8654 = vadd.f32 %v8523, %v8613
      %v8655 = vadd.f32 %v8524, %v8614
      %v8656 = vadd.f32 %v8525, %v8615
      %v8657 = vadd.f32 %v8526, %v8616
      %v8658 = vadd.f32 %v8527, %v8617
      %v8659 = vadd.f32 %v8528, %v8618
      %v8660 = vadd.f32 %v8529, %v8619
      %v8661 = vadd.f32 %v8530, %v8620
      %v8662 = vadd.f32 %v8531, %v8621
      %v8663 = vadd.f32 %v8532, %v8622
      %v8664 = vadd.f32 %v8533, %v8623
      %v8665 = vadd.f32 %v8534, %v8624
      %v8666 = vadd.f32 %v8535, %v8625
      %v8667 = vadd.f32 %v8536, %v8626
      %v8668 = vadd.f32 %v8537, %v8627
      %v8669 = vadd.f32 %v8538, %v8628
      %v8670 = vadd.f32 %v8539, %v8629
      %v8671 = vadd.f32 %v8540, %v8630
      %v8672 = vld [vmem:[#allocation3 + $0x19] sm:$0xff]
      %v8673 = vld [vmem:[#allocation3 + $0x21] sm:$0xff]
      %v8674 = vld [vmem:[#allocation3 + $0x29] sm:$0xff]
      %v8675 = vld [vmem:[#allocation3 + $0x31] sm:$0xff]
      %v8676 = vld [vmem:[#allocation3 + $0x39] sm:$0xff]
      %v8677 = vld [vmem:[#allocation3 + $0x41] sm:$0xff]
      %v8678 = vld [vmem:[#allocation3 + $0x49] sm:$0xff]
      %v8679 = vld [vmem:[#allocation3 + $0x51] sm:$0xff]
      %v8680 = vld [vmem:[#allocation3 + $0x59] sm:$0xff]
      %v8681 = vld [vmem:[#allocation3 + $0x61] sm:$0xff]
      %v8682 = vld [vmem:[#allocation3 + $0x69] sm:$0xff]
      %v8683 = vld [vmem:[#allocation3 + $0x71] sm:$0xff]
      %v8684 = vld [vmem:[#allocation3 + $0x79] sm:$0xff]
      %v8685 = vld [vmem:[#allocation3 + $0x81] sm:$0xff]
      %v8686 = vld [vmem:[#allocation3 + $0x89] sm:$0xff]
      %v8687 = vld [vmem:[#allocation3 + $0x91] sm:$0xff]
      %v8688 = vld [vmem:[#allocation3 + $0x99] sm:$0xff]
      %v8689 = vld [vmem:[#allocation3 + $0xa1] sm:$0xff]
      %v8690 = vld [vmem:[#allocation3 + $0xa9] sm:$0xff]
      %v8691 = vld [vmem:[#allocation3 + $0xb1] sm:$0xff]
      %v8692 = vld [vmem:[#allocation3 + $0xb9] sm:$0xff]
      %v8693 = vld [vmem:[#allocation3 + $0xc1] sm:$0xff]
      %v8694 = vld [vmem:[#allocation3 + $0xc9] sm:$0xff]
      %v8695 = vld [vmem:[#allocation3 + $0xd1] sm:$0xff]
      %v8696 = vld [vmem:[#allocation3 + $0xd9] sm:$0xff]
      %v8697 = vld [vmem:[#allocation3 + $0xe1] sm:$0xff]
      %v8698 = vld [vmem:[#allocation3 + $0xe9] sm:$0xff]
      %v8699 = vld [vmem:[#allocation3 + $0xf1] sm:$0xff]
      %v8700 = vld [vmem:[#allocation3 + $0xf9] sm:$0xff]
      %v8701 = vld [vmem:[#allocation3 + $0x101] sm:$0xff]
      %v8702 = vld [vmem:[#allocation3 + $0x109] sm:$0xff]
      %v8703 = vld [vmem:[#allocation3 + $0x111] sm:$0xff]
      %v8704 = vld [vmem:[#allocation3 + $0x119] sm:$0xff]
      %v8705 = vld [vmem:[#allocation3 + $0x121] sm:$0xff]
      %v8706 = vld [vmem:[#allocation3 + $0x129] sm:$0xff]
      %v8707 = vld [vmem:[#allocation3 + $0x131] sm:$0xff]
      %v8708 = vld [vmem:[#allocation3 + $0x139] sm:$0xff]
      %v8709 = vld [vmem:[#allocation3 + $0x141] sm:$0xff]
      %v8710 = vld [vmem:[#allocation3 + $0x149] sm:$0xff]
      %v8711 = vld [vmem:[#allocation3 + $0x151] sm:$0xff]
      %v8712 = vld [vmem:[#allocation3 + $0x159] sm:$0xf]
      %s8713 = scalar_lea.vmem %s5, 5
      %v8714 = vld [vmem:[%s8713] sm:$0x1]
      %v8716 = vlaneseq
      %v8717 = vshrl.u32 %v8716, 7
      %v8718 = vsub.s32 0, %v8717
      %v8719 = vrot.slane %v8714, %v8718
      %v8721 = vmul.f32 %v8672, %v8719
      %v8722 = vmul.f32 %v8673, %v8719
      %v8723 = vmul.f32 %v8674, %v8719
      %v8724 = vmul.f32 %v8675, %v8719
      %v8725 = vmul.f32 %v8676, %v8719
      %v8726 = vmul.f32 %v8677, %v8719
      %v8727 = vmul.f32 %v8678, %v8719
      %v8728 = vmul.f32 %v8679, %v8719
      %v8729 = vmul.f32 %v8680, %v8719
      %v8730 = vmul.f32 %v8681, %v8719
      %v8731 = vmul.f32 %v8682, %v8719
      %v8732 = vmul.f32 %v8683, %v8719
      %v8733 = vmul.f32 %v8684, %v8719
      %v8734 = vmul.f32 %v8685, %v8719
      %v8735 = vmul.f32 %v8686, %v8719
      %v8736 = vmul.f32 %v8687, %v8719
      %v8737 = vmul.f32 %v8688, %v8719
      %v8738 = vmul.f32 %v8689, %v8719
      %v8739 = vmul.f32 %v8690, %v8719
      %v8740 = vmul.f32 %v8691, %v8719
      %v8741 = vmul.f32 %v8692, %v8719
      %v8742 = vmul.f32 %v8693, %v8719
      %v8743 = vmul.f32 %v8694, %v8719
      %v8744 = vmul.f32 %v8695, %v8719
      %v8745 = vmul.f32 %v8696, %v8719
      %v8746 = vmul.f32 %v8697, %v8719
      %v8747 = vmul.f32 %v8698, %v8719
      %v8748 = vmul.f32 %v8699, %v8719
      %v8749 = vmul.f32 %v8700, %v8719
      %v8750 = vmul.f32 %v8701, %v8719
      %v8751 = vmul.f32 %v8702, %v8719
      %v8752 = vmul.f32 %v8703, %v8719
      %v8753 = vmul.f32 %v8704, %v8719
      %v8754 = vmul.f32 %v8705, %v8719
      %v8755 = vmul.f32 %v8706, %v8719
      %v8756 = vmul.f32 %v8707, %v8719
      %v8757 = vmul.f32 %v8708, %v8719
      %v8758 = vmul.f32 %v8709, %v8719
      %v8759 = vmul.f32 %v8710, %v8719
      %v8760 = vmul.f32 %v8711, %v8719
      %v8761 = vmul.f32 %v8712, %v8719
      %v8762 = vadd.f32 %v8631, %v8721
      %v8763 = vadd.f32 %v8632, %v8722
      %v8764 = vadd.f32 %v8633, %v8723
      %v8765 = vadd.f32 %v8634, %v8724
      %v8766 = vadd.f32 %v8635, %v8725
      %v8767 = vadd.f32 %v8636, %v8726
      %v8768 = vadd.f32 %v8637, %v8727
      %v8769 = vadd.f32 %v8638, %v8728
      %v8770 = vadd.f32 %v8639, %v8729
      %v8771 = vadd.f32 %v8640, %v8730
      %v8772 = vadd.f32 %v8641, %v8731
      %v8773 = vadd.f32 %v8642, %v8732
      %v8774 = vadd.f32 %v8643, %v8733
      %v8775 = vadd.f32 %v8644, %v8734
      %v8776 = vadd.f32 %v8645, %v8735
      %v8777 = vadd.f32 %v8646, %v8736
      %v8778 = vadd.f32 %v8647, %v8737
      %v8779 = vadd.f32 %v8648, %v8738
      %v8780 = vadd.f32 %v8649, %v8739
      %v8781 = vadd.f32 %v8650, %v8740
      %v8782 = vadd.f32 %v8651, %v8741
      %v8783 = vadd.f32 %v8652, %v8742
      %v8784 = vadd.f32 %v8653, %v8743
      %v8785 = vadd.f32 %v8654, %v8744
      %v8786 = vadd.f32 %v8655, %v8745
      %v8787 = vadd.f32 %v8656, %v8746
      %v8788 = vadd.f32 %v8657, %v8747
      %v8789 = vadd.f32 %v8658, %v8748
      %v8790 = vadd.f32 %v8659, %v8749
      %v8791 = vadd.f32 %v8660, %v8750
      %v8792 = vadd.f32 %v8661, %v8751
      %v8793 = vadd.f32 %v8662, %v8752
      %v8794 = vadd.f32 %v8663, %v8753
      %v8795 = vadd.f32 %v8664, %v8754
      %v8796 = vadd.f32 %v8665, %v8755
      %v8797 = vadd.f32 %v8666, %v8756
      %v8798 = vadd.f32 %v8667, %v8757
      %v8799 = vadd.f32 %v8668, %v8758
      %v8800 = vadd.f32 %v8669, %v8759
      %v8801 = vadd.f32 %v8670, %v8760
      %v8802 = vadd.f32 %v8671, %v8761
      %v8803 = vld [vmem:[#allocation3 + $0x159] sm:$0xff]
      %v8804 = vld [vmem:[#allocation3 + $0x161] sm:$0xff]
      %v8805 = vld [vmem:[#allocation3 + $0x169] sm:$0xf]
      %s8806 = scalar_lea.vmem %s5, 6
      %v8807 = vld [vmem:[%s8806] sm:$0x1]
      %v8809 = vlaneseq
      %v8810 = vshrl.u32 %v8809, 7
      %v8811 = vsub.s32 0, %v8810
      %v8812 = vrot.slane %v8807, %v8811
      %v8814 = vmul.f32 %v8674, %v8812
      %v8815 = vmul.f32 %v8675, %v8812
      %v8816 = vmul.f32 %v8676, %v8812
      %v8817 = vmul.f32 %v8677, %v8812
      %v8818 = vmul.f32 %v8678, %v8812
      %v8819 = vmul.f32 %v8679, %v8812
      %v8820 = vmul.f32 %v8680, %v8812
      %v8821 = vmul.f32 %v8681, %v8812
      %v8822 = vmul.f32 %v8682, %v8812
      %v8823 = vmul.f32 %v8683, %v8812
      %v8824 = vmul.f32 %v8684, %v8812
      %v8825 = vmul.f32 %v8685, %v8812
      %v8826 = vmul.f32 %v8686, %v8812
      %v8827 = vmul.f32 %v8687, %v8812
      %v8828 = vmul.f32 %v8688, %v8812
      %v8829 = vmul.f32 %v8689, %v8812
      %v8830 = vmul.f32 %v8690, %v8812
      %v8831 = vmul.f32 %v8691, %v8812
      %v8832 = vmul.f32 %v8692, %v8812
      %v8833 = vmul.f32 %v8693, %v8812
      %v8834 = vmul.f32 %v8694, %v8812
      %v8835 = vmul.f32 %v8695, %v8812
      %v8836 = vmul.f32 %v8696, %v8812
      %v8837 = vmul.f32 %v8697, %v8812
      %v8838 = vmul.f32 %v8698, %v8812
      %v8839 = vmul.f32 %v8699, %v8812
      %v8840 = vmul.f32 %v8700, %v8812
      %v8841 = vmul.f32 %v8701, %v8812
      %v8842 = vmul.f32 %v8702, %v8812
      %v8843 = vmul.f32 %v8703, %v8812
      %v8844 = vmul.f32 %v8704, %v8812
      %v8845 = vmul.f32 %v8705, %v8812
      %v8846 = vmul.f32 %v8706, %v8812
      %v8847 = vmul.f32 %v8707, %v8812
      %v8848 = vmul.f32 %v8708, %v8812
      %v8849 = vmul.f32 %v8709, %v8812
      %v8850 = vmul.f32 %v8710, %v8812
      %v8851 = vmul.f32 %v8711, %v8812
      %v8852 = vmul.f32 %v8803, %v8812
      %v8853 = vmul.f32 %v8804, %v8812
      %v8854 = vmul.f32 %v8805, %v8812
      %v8855 = vadd.f32 %v8762, %v8814
      %v8856 = vadd.f32 %v8763, %v8815
      %v8857 = vadd.f32 %v8764, %v8816
      %v8858 = vadd.f32 %v8765, %v8817
      %v8859 = vadd.f32 %v8766, %v8818
      %v8860 = vadd.f32 %v8767, %v8819
      %v8861 = vadd.f32 %v8768, %v8820
      %v8862 = vadd.f32 %v8769, %v8821
      %v8863 = vadd.f32 %v8770, %v8822
      %v8864 = vadd.f32 %v8771, %v8823
      %v8865 = vadd.f32 %v8772, %v8824
      %v8866 = vadd.f32 %v8773, %v8825
      %v8867 = vadd.f32 %v8774, %v8826
      %v8868 = vadd.f32 %v8775, %v8827
      %v8869 = vadd.f32 %v8776, %v8828
      %v8870 = vadd.f32 %v8777, %v8829
      %v8871 = vadd.f32 %v8778, %v8830
      %v8872 = vadd.f32 %v8779, %v8831
      %v8873 = vadd.f32 %v8780, %v8832
      %v8874 = vadd.f32 %v8781, %v8833
      %v8875 = vadd.f32 %v8782, %v8834
      %v8876 = vadd.f32 %v8783, %v8835
      %v8877 = vadd.f32 %v8784, %v8836
      %v8878 = vadd.f32 %v8785, %v8837
      %v8879 = vadd.f32 %v8786, %v8838
      %v8880 = vadd.f32 %v8787, %v8839
      %v8881 = vadd.f32 %v8788, %v8840
      %v8882 = vadd.f32 %v8789, %v8841
      %v8883 = vadd.f32 %v8790, %v8842
      %v8884 = vadd.f32 %v8791, %v8843
      %v8885 = vadd.f32 %v8792, %v8844
      %v8886 = vadd.f32 %v8793, %v8845
      %v8887 = vadd.f32 %v8794, %v8846
      %v8888 = vadd.f32 %v8795, %v8847
      %v8889 = vadd.f32 %v8796, %v8848
      %v8890 = vadd.f32 %v8797, %v8849
      %v8891 = vadd.f32 %v8798, %v8850
      %v8892 = vadd.f32 %v8799, %v8851
      %v8893 = vadd.f32 %v8800, %v8852
      %v8894 = vadd.f32 %v8801, %v8853
      %v8895 = vadd.f32 %v8802, %v8854
      %v8896 = vld [vmem:[#allocation3 + $0x2a] sm:$0xff]
      %v8897 = vld [vmem:[#allocation3 + $0x32] sm:$0xff]
      %v8898 = vld [vmem:[#allocation3 + $0x3a] sm:$0xff]
      %v8899 = vld [vmem:[#allocation3 + $0x42] sm:$0xff]
      %v8900 = vld [vmem:[#allocation3 + $0x4a] sm:$0xff]
      %v8901 = vld [vmem:[#allocation3 + $0x52] sm:$0xff]
      %v8902 = vld [vmem:[#allocation3 + $0x5a] sm:$0xff]
      %v8903 = vld [vmem:[#allocation3 + $0x62] sm:$0xff]
      %v8904 = vld [vmem:[#allocation3 + $0x6a] sm:$0xff]
      %v8905 = vld [vmem:[#allocation3 + $0x72] sm:$0xff]
      %v8906 = vld [vmem:[#allocation3 + $0x7a] sm:$0xff]
      %v8907 = vld [vmem:[#allocation3 + $0x82] sm:$0xff]
      %v8908 = vld [vmem:[#allocation3 + $0x8a] sm:$0xff]
      %v8909 = vld [vmem:[#allocation3 + $0x92] sm:$0xff]
      %v8910 = vld [vmem:[#allocation3 + $0x9a] sm:$0xff]
      %v8911 = vld [vmem:[#allocation3 + $0xa2] sm:$0xff]
      %v8912 = vld [vmem:[#allocation3 + $0xaa] sm:$0xff]
      %v8913 = vld [vmem:[#allocation3 + $0xb2] sm:$0xff]
      %v8914 = vld [vmem:[#allocation3 + $0xba] sm:$0xff]
      %v8915 = vld [vmem:[#allocation3 + $0xc2] sm:$0xff]
      %v8916 = vld [vmem:[#allocation3 + $0xca] sm:$0xff]
      %v8917 = vld [vmem:[#allocation3 + $0xd2] sm:$0xff]
      %v8918 = vld [vmem:[#allocation3 + $0xda] sm:$0xff]
      %v8919 = vld [vmem:[#allocation3 + $0xe2] sm:$0xff]
      %v8920 = vld [vmem:[#allocation3 + $0xea] sm:$0xff]
      %v8921 = vld [vmem:[#allocation3 + $0xf2] sm:$0xff]
      %v8922 = vld [vmem:[#allocation3 + $0xfa] sm:$0xff]
      %v8923 = vld [vmem:[#allocation3 + $0x102] sm:$0xff]
      %v8924 = vld [vmem:[#allocation3 + $0x10a] sm:$0xff]
      %v8925 = vld [vmem:[#allocation3 + $0x112] sm:$0xff]
      %v8926 = vld [vmem:[#allocation3 + $0x11a] sm:$0xff]
      %v8927 = vld [vmem:[#allocation3 + $0x122] sm:$0xff]
      %v8928 = vld [vmem:[#allocation3 + $0x12a] sm:$0xff]
      %v8929 = vld [vmem:[#allocation3 + $0x132] sm:$0xff]
      %v8930 = vld [vmem:[#allocation3 + $0x13a] sm:$0xff]
      %v8931 = vld [vmem:[#allocation3 + $0x142] sm:$0xff]
      %v8932 = vld [vmem:[#allocation3 + $0x14a] sm:$0xff]
      %v8933 = vld [vmem:[#allocation3 + $0x152] sm:$0xff]
      %v8934 = vld [vmem:[#allocation3 + $0x15a] sm:$0xff]
      %v8935 = vld [vmem:[#allocation3 + $0x162] sm:$0xff]
      %v8936 = vld [vmem:[#allocation3 + $0x16a] sm:$0xf]
      %s8937 = scalar_lea.vmem %s5, 7
      %v8938 = vld [vmem:[%s8937] sm:$0x1]
      %v8940 = vlaneseq
      %v8941 = vshrl.u32 %v8940, 7
      %v8942 = vsub.s32 0, %v8941
      %v8943 = vrot.slane %v8938, %v8942
      %v8945 = vmul.f32 %v8896, %v8943
      %v8946 = vmul.f32 %v8897, %v8943
      %v8947 = vmul.f32 %v8898, %v8943
      %v8948 = vmul.f32 %v8899, %v8943
      %v8949 = vmul.f32 %v8900, %v8943
      %v8950 = vmul.f32 %v8901, %v8943
      %v8951 = vmul.f32 %v8902, %v8943
      %v8952 = vmul.f32 %v8903, %v8943
      %v8953 = vmul.f32 %v8904, %v8943
      %v8954 = vmul.f32 %v8905, %v8943
      %v8955 = vmul.f32 %v8906, %v8943
      %v8956 = vmul.f32 %v8907, %v8943
      %v8957 = vmul.f32 %v8908, %v8943
      %v8958 = vmul.f32 %v8909, %v8943
      %v8959 = vmul.f32 %v8910, %v8943
      %v8960 = vmul.f32 %v8911, %v8943
      %v8961 = vmul.f32 %v8912, %v8943
      %v8962 = vmul.f32 %v8913, %v8943
      %v8963 = vmul.f32 %v8914, %v8943
      %v8964 = vmul.f32 %v8915, %v8943
      %v8965 = vmul.f32 %v8916, %v8943
      %v8966 = vmul.f32 %v8917, %v8943
      %v8967 = vmul.f32 %v8918, %v8943
      %v8968 = vmul.f32 %v8919, %v8943
      %v8969 = vmul.f32 %v8920, %v8943
      %v8970 = vmul.f32 %v8921, %v8943
      %v8971 = vmul.f32 %v8922, %v8943
      %v8972 = vmul.f32 %v8923, %v8943
      %v8973 = vmul.f32 %v8924, %v8943
      %v8974 = vmul.f32 %v8925, %v8943
      %v8975 = vmul.f32 %v8926, %v8943
      %v8976 = vmul.f32 %v8927, %v8943
      %v8977 = vmul.f32 %v8928, %v8943
      %v8978 = vmul.f32 %v8929, %v8943
      %v8979 = vmul.f32 %v8930, %v8943
      %v8980 = vmul.f32 %v8931, %v8943
      %v8981 = vmul.f32 %v8932, %v8943
      %v8982 = vmul.f32 %v8933, %v8943
      %v8983 = vmul.f32 %v8934, %v8943
      %v8984 = vmul.f32 %v8935, %v8943
      %v8985 = vmul.f32 %v8936, %v8943
      %v8986 = vadd.f32 %v8855, %v8945
      %v8987 = vadd.f32 %v8856, %v8946
      %v8988 = vadd.f32 %v8857, %v8947
      %v8989 = vadd.f32 %v8858, %v8948
      %v8990 = vadd.f32 %v8859, %v8949
      %v8991 = vadd.f32 %v8860, %v8950
      %v8992 = vadd.f32 %v8861, %v8951
      %v8993 = vadd.f32 %v8862, %v8952
      %v8994 = vadd.f32 %v8863, %v8953
      %v8995 = vadd.f32 %v8864, %v8954
      %v8996 = vadd.f32 %v8865, %v8955
      %v8997 = vadd.f32 %v8866, %v8956
      %v8998 = vadd.f32 %v8867, %v8957
      %v8999 = vadd.f32 %v8868, %v8958
      %v9000 = vadd.f32 %v8869, %v8959
      %v9001 = vadd.f32 %v8870, %v8960
      %v9002 = vadd.f32 %v8871, %v8961
      %v9003 = vadd.f32 %v8872, %v8962
      %v9004 = vadd.f32 %v8873, %v8963
      %v9005 = vadd.f32 %v8874, %v8964
      %v9006 = vadd.f32 %v8875, %v8965
      %v9007 = vadd.f32 %v8876, %v8966
      %v9008 = vadd.f32 %v8877, %v8967
      %v9009 = vadd.f32 %v8878, %v8968
      %v9010 = vadd.f32 %v8879, %v8969
      %v9011 = vadd.f32 %v8880, %v8970
      %v9012 = vadd.f32 %v8881, %v8971
      %v9013 = vadd.f32 %v8882, %v8972
      %v9014 = vadd.f32 %v8883, %v8973
      %v9015 = vadd.f32 %v8884, %v8974
      %v9016 = vadd.f32 %v8885, %v8975
      %v9017 = vadd.f32 %v8886, %v8976
      %v9018 = vadd.f32 %v8887, %v8977
      %v9019 = vadd.f32 %v8888, %v8978
      %v9020 = vadd.f32 %v8889, %v8979
      %v9021 = vadd.f32 %v8890, %v8980
      %v9022 = vadd.f32 %v8891, %v8981
      %v9023 = vadd.f32 %v8892, %v8982
      %v9024 = vadd.f32 %v8893, %v8983
      %v9025 = vadd.f32 %v8894, %v8984
      %v9026 = vadd.f32 %v8895, %v8985
      %v9027 = vld [vmem:[#allocation3 + $0x2b] sm:$0xff]
      %v9028 = vld [vmem:[#allocation3 + $0x33] sm:$0xff]
      %v9029 = vld [vmem:[#allocation3 + $0x3b] sm:$0xff]
      %v9030 = vld [vmem:[#allocation3 + $0x43] sm:$0xff]
      %v9031 = vld [vmem:[#allocation3 + $0x4b] sm:$0xff]
      %v9032 = vld [vmem:[#allocation3 + $0x53] sm:$0xff]
      %v9033 = vld [vmem:[#allocation3 + $0x5b] sm:$0xff]
      %v9034 = vld [vmem:[#allocation3 + $0x63] sm:$0xff]
      %v9035 = vld [vmem:[#allocation3 + $0x6b] sm:$0xff]
      %v9036 = vld [vmem:[#allocation3 + $0x73] sm:$0xff]
      %v9037 = vld [vmem:[#allocation3 + $0x7b] sm:$0xff]
      %v9038 = vld [vmem:[#allocation3 + $0x83] sm:$0xff]
      %v9039 = vld [vmem:[#allocation3 + $0x8b] sm:$0xff]
      %v9040 = vld [vmem:[#allocation3 + $0x93] sm:$0xff]
      %v9041 = vld [vmem:[#allocation3 + $0x9b] sm:$0xff]
      %v9042 = vld [vmem:[#allocation3 + $0xa3] sm:$0xff]
      %v9043 = vld [vmem:[#allocation3 + $0xab] sm:$0xff]
      %v9044 = vld [vmem:[#allocation3 + $0xb3] sm:$0xff]
      %v9045 = vld [vmem:[#allocation3 + $0xbb] sm:$0xff]
      %v9046 = vld [vmem:[#allocation3 + $0xc3] sm:$0xff]
      %v9047 = vld [vmem:[#allocation3 + $0xcb] sm:$0xff]
      %v9048 = vld [vmem:[#allocation3 + $0xd3] sm:$0xff]
      %v9049 = vld [vmem:[#allocation3 + $0xdb] sm:$0xff]
      %v9050 = vld [vmem:[#allocation3 + $0xe3] sm:$0xff]
      %v9051 = vld [vmem:[#allocation3 + $0xeb] sm:$0xff]
      %v9052 = vld [vmem:[#allocation3 + $0xf3] sm:$0xff]
      %v9053 = vld [vmem:[#allocation3 + $0xfb] sm:$0xff]
      %v9054 = vld [vmem:[#allocation3 + $0x103] sm:$0xff]
      %v9055 = vld [vmem:[#allocation3 + $0x10b] sm:$0xff]
      %v9056 = vld [vmem:[#allocation3 + $0x113] sm:$0xff]
      %v9057 = vld [vmem:[#allocation3 + $0x11b] sm:$0xff]
      %v9058 = vld [vmem:[#allocation3 + $0x123] sm:$0xff]
      %v9059 = vld [vmem:[#allocation3 + $0x12b] sm:$0xff]
      %v9060 = vld [vmem:[#allocation3 + $0x133] sm:$0xff]
      %v9061 = vld [vmem:[#allocation3 + $0x13b] sm:$0xff]
      %v9062 = vld [vmem:[#allocation3 + $0x143] sm:$0xff]
      %v9063 = vld [vmem:[#allocation3 + $0x14b] sm:$0xff]
      %v9064 = vld [vmem:[#allocation3 + $0x153] sm:$0xff]
      %v9065 = vld [vmem:[#allocation3 + $0x15b] sm:$0xff]
      %v9066 = vld [vmem:[#allocation3 + $0x163] sm:$0xff]
      %v9067 = vld [vmem:[#allocation3 + $0x16b] sm:$0xf]
      %s9068 = scalar_lea.vmem %s5, 8
      %v9069 = vld [vmem:[%s9068] sm:$0x1]
      %v9071 = vlaneseq
      %v9072 = vshrl.u32 %v9071, 7
      %v9073 = vsub.s32 0, %v9072
      %v9074 = vrot.slane %v9069, %v9073
      %v9076 = vmul.f32 %v9027, %v9074
      %v9077 = vmul.f32 %v9028, %v9074
      %v9078 = vmul.f32 %v9029, %v9074
      %v9079 = vmul.f32 %v9030, %v9074
      %v9080 = vmul.f32 %v9031, %v9074
      %v9081 = vmul.f32 %v9032, %v9074
      %v9082 = vmul.f32 %v9033, %v9074
      %v9083 = vmul.f32 %v9034, %v9074
      %v9084 = vmul.f32 %v9035, %v9074
      %v9085 = vmul.f32 %v9036, %v9074
      %v9086 = vmul.f32 %v9037, %v9074
      %v9087 = vmul.f32 %v9038, %v9074
      %v9088 = vmul.f32 %v9039, %v9074
      %v9089 = vmul.f32 %v9040, %v9074
      %v9090 = vmul.f32 %v9041, %v9074
      %v9091 = vmul.f32 %v9042, %v9074
      %v9092 = vmul.f32 %v9043, %v9074
      %v9093 = vmul.f32 %v9044, %v9074
      %v9094 = vmul.f32 %v9045, %v9074
      %v9095 = vmul.f32 %v9046, %v9074
      %v9096 = vmul.f32 %v9047, %v9074
      %v9097 = vmul.f32 %v9048, %v9074
      %v9098 = vmul.f32 %v9049, %v9074
      %v9099 = vmul.f32 %v9050, %v9074
      %v9100 = vmul.f32 %v9051, %v9074
      %v9101 = vmul.f32 %v9052, %v9074
      %v9102 = vmul.f32 %v9053, %v9074
      %v9103 = vmul.f32 %v9054, %v9074
      %v9104 = vmul.f32 %v9055, %v9074
      %v9105 = vmul.f32 %v9056, %v9074
      %v9106 = vmul.f32 %v9057, %v9074
      %v9107 = vmul.f32 %v9058, %v9074
      %v9108 = vmul.f32 %v9059, %v9074
      %v9109 = vmul.f32 %v9060, %v9074
      %v9110 = vmul.f32 %v9061, %v9074
      %v9111 = vmul.f32 %v9062, %v9074
      %v9112 = vmul.f32 %v9063, %v9074
      %v9113 = vmul.f32 %v9064, %v9074
      %v9114 = vmul.f32 %v9065, %v9074
      %v9115 = vmul.f32 %v9066, %v9074
      %v9116 = vmul.f32 %v9067, %v9074
      %v9117 = vadd.f32 %v8986, %v9076
      %v9118 = vadd.f32 %v8987, %v9077
      %v9119 = vadd.f32 %v8988, %v9078
      %v9120 = vadd.f32 %v8989, %v9079
      %v9121 = vadd.f32 %v8990, %v9080
      %v9122 = vadd.f32 %v8991, %v9081
      %v9123 = vadd.f32 %v8992, %v9082
      %v9124 = vadd.f32 %v8993, %v9083
      %v9125 = vadd.f32 %v8994, %v9084
      %v9126 = vadd.f32 %v8995, %v9085
      %v9127 = vadd.f32 %v8996, %v9086
      %v9128 = vadd.f32 %v8997, %v9087
      %v9129 = vadd.f32 %v8998, %v9088
      %v9130 = vadd.f32 %v8999, %v9089
      %v9131 = vadd.f32 %v9000, %v9090
      %v9132 = vadd.f32 %v9001, %v9091
      %v9133 = vadd.f32 %v9002, %v9092
      %v9134 = vadd.f32 %v9003, %v9093
      %v9135 = vadd.f32 %v9004, %v9094
      %v9136 = vadd.f32 %v9005, %v9095
      %v9137 = vadd.f32 %v9006, %v9096
      %v9138 = vadd.f32 %v9007, %v9097
      %v9139 = vadd.f32 %v9008, %v9098
      %v9140 = vadd.f32 %v9009, %v9099
      %v9141 = vadd.f32 %v9010, %v9100
      %v9142 = vadd.f32 %v9011, %v9101
      %v9143 = vadd.f32 %v9012, %v9102
      %v9144 = vadd.f32 %v9013, %v9103
      %v9145 = vadd.f32 %v9014, %v9104
      %v9146 = vadd.f32 %v9015, %v9105
      %v9147 = vadd.f32 %v9016, %v9106
      %v9148 = vadd.f32 %v9017, %v9107
      %v9149 = vadd.f32 %v9018, %v9108
      %v9150 = vadd.f32 %v9019, %v9109
      %v9151 = vadd.f32 %v9020, %v9110
      %v9152 = vadd.f32 %v9021, %v9111
      %v9153 = vadd.f32 %v9022, %v9112
      %v9154 = vadd.f32 %v9023, %v9113
      %v9155 = vadd.f32 %v9024, %v9114
      %v9156 = vadd.f32 %v9025, %v9115
      %v9157 = vadd.f32 %v9026, %v9116
      %v9158 = vsel %vm375, %v9117, 0.0
      %9159 = vadd.xlane.f32.xlu0 %v9158
      %v9160 = vpop.xlane.xlu0 %9159
      %v9161 = vsel %vm375, %v9118, 0.0
      %9162 = vadd.xlane.f32.xlu0 %v9161
      %v9163 = vpop.xlane.xlu0 %9162
      %v9164 = vsel %vm375, %v9119, 0.0
      %9165 = vadd.xlane.f32.xlu0 %v9164
      %v9166 = vpop.xlane.xlu0 %9165
      %v9167 = vsel %vm375, %v9120, 0.0
      %9168 = vadd.xlane.f32.xlu0 %v9167
      %v9169 = vpop.xlane.xlu0 %9168
      %v9170 = vsel %vm375, %v9121, 0.0
      %9171 = vadd.xlane.f32.xlu0 %v9170
      %v9172 = vpop.xlane.xlu0 %9171
      %v9173 = vsel %vm375, %v9122, 0.0
      %9174 = vadd.xlane.f32.xlu0 %v9173
      %v9175 = vpop.xlane.xlu0 %9174
      %v9176 = vsel %vm375, %v9123, 0.0
      %9177 = vadd.xlane.f32.xlu0 %v9176
      %v9178 = vpop.xlane.xlu0 %9177
      %v9179 = vsel %vm375, %v9124, 0.0
      %9180 = vadd.xlane.f32.xlu0 %v9179
      %v9181 = vpop.xlane.xlu0 %9180
      %v9182 = vsel %vm375, %v9125, 0.0
      %9183 = vadd.xlane.f32.xlu0 %v9182
      %v9184 = vpop.xlane.xlu0 %9183
      %v9185 = vsel %vm375, %v9126, 0.0
      %9186 = vadd.xlane.f32.xlu0 %v9185
      %v9187 = vpop.xlane.xlu0 %9186
      %v9188 = vsel %vm375, %v9127, 0.0
      %9189 = vadd.xlane.f32.xlu0 %v9188
      %v9190 = vpop.xlane.xlu0 %9189
      %v9191 = vsel %vm375, %v9128, 0.0
      %9192 = vadd.xlane.f32.xlu0 %v9191
      %v9193 = vpop.xlane.xlu0 %9192
      %v9194 = vsel %vm375, %v9129, 0.0
      %9195 = vadd.xlane.f32.xlu0 %v9194
      %v9196 = vpop.xlane.xlu0 %9195
      %v9197 = vsel %vm375, %v9130, 0.0
      %9198 = vadd.xlane.f32.xlu0 %v9197
      %v9199 = vpop.xlane.xlu0 %9198
      %v9200 = vsel %vm375, %v9131, 0.0
      %9201 = vadd.xlane.f32.xlu0 %v9200
      %v9202 = vpop.xlane.xlu0 %9201
      %v9203 = vsel %vm375, %v9132, 0.0
      %9204 = vadd.xlane.f32.xlu0 %v9203
      %v9205 = vpop.xlane.xlu0 %9204
      %v9206 = vsel %vm375, %v9133, 0.0
      %9207 = vadd.xlane.f32.xlu0 %v9206
      %v9208 = vpop.xlane.xlu0 %9207
      %v9209 = vsel %vm375, %v9134, 0.0
      %9210 = vadd.xlane.f32.xlu0 %v9209
      %v9211 = vpop.xlane.xlu0 %9210
      %v9212 = vsel %vm375, %v9135, 0.0
      %9213 = vadd.xlane.f32.xlu0 %v9212
      %v9214 = vpop.xlane.xlu0 %9213
      %v9215 = vsel %vm375, %v9136, 0.0
      %9216 = vadd.xlane.f32.xlu0 %v9215
      %v9217 = vpop.xlane.xlu0 %9216
      %v9218 = vsel %vm375, %v9137, 0.0
      %9219 = vadd.xlane.f32.xlu0 %v9218
      %v9220 = vpop.xlane.xlu0 %9219
      %v9221 = vsel %vm375, %v9138, 0.0
      %9222 = vadd.xlane.f32.xlu0 %v9221
      %v9223 = vpop.xlane.xlu0 %9222
      %v9224 = vsel %vm375, %v9139, 0.0
      %9225 = vadd.xlane.f32.xlu0 %v9224
      %v9226 = vpop.xlane.xlu0 %9225
      %v9227 = vsel %vm375, %v9140, 0.0
      %9228 = vadd.xlane.f32.xlu0 %v9227
      %v9229 = vpop.xlane.xlu0 %9228
      %v9230 = vsel %vm375, %v9141, 0.0
      %9231 = vadd.xlane.f32.xlu0 %v9230
      %v9232 = vpop.xlane.xlu0 %9231
      %v9233 = vsel %vm375, %v9142, 0.0
      %9234 = vadd.xlane.f32.xlu0 %v9233
      %v9235 = vpop.xlane.xlu0 %9234
      %v9236 = vsel %vm375, %v9143, 0.0
      %9237 = vadd.xlane.f32.xlu0 %v9236
      %v9238 = vpop.xlane.xlu0 %9237
      %v9239 = vsel %vm375, %v9144, 0.0
      %9240 = vadd.xlane.f32.xlu0 %v9239
      %v9241 = vpop.xlane.xlu0 %9240
      %v9242 = vsel %vm375, %v9145, 0.0
      %9243 = vadd.xlane.f32.xlu0 %v9242
      %v9244 = vpop.xlane.xlu0 %9243
      %v9245 = vsel %vm375, %v9146, 0.0
      %9246 = vadd.xlane.f32.xlu0 %v9245
      %v9247 = vpop.xlane.xlu0 %9246
      %v9248 = vsel %vm375, %v9147, 0.0
      %9249 = vadd.xlane.f32.xlu0 %v9248
      %v9250 = vpop.xlane.xlu0 %9249
      %v9251 = vsel %vm375, %v9148, 0.0
      %9252 = vadd.xlane.f32.xlu0 %v9251
      %v9253 = vpop.xlane.xlu0 %9252
      %v9254 = vsel %vm375, %v9149, 0.0
      %9255 = vadd.xlane.f32.xlu0 %v9254
      %v9256 = vpop.xlane.xlu0 %9255
      %v9257 = vsel %vm375, %v9150, 0.0
      %9258 = vadd.xlane.f32.xlu0 %v9257
      %v9259 = vpop.xlane.xlu0 %9258
      %v9260 = vsel %vm375, %v9151, 0.0
      %9261 = vadd.xlane.f32.xlu0 %v9260
      %v9262 = vpop.xlane.xlu0 %9261
      %v9263 = vsel %vm375, %v9152, 0.0
      %9264 = vadd.xlane.f32.xlu0 %v9263
      %v9265 = vpop.xlane.xlu0 %9264
      %v9266 = vsel %vm375, %v9153, 0.0
      %9267 = vadd.xlane.f32.xlu0 %v9266
      %v9268 = vpop.xlane.xlu0 %9267
      %v9269 = vsel %vm375, %v9154, 0.0
      %9270 = vadd.xlane.f32.xlu0 %v9269
      %v9271 = vpop.xlane.xlu0 %9270
      %v9272 = vsel %vm375, %v9155, 0.0
      %9273 = vadd.xlane.f32.xlu0 %v9272
      %v9274 = vpop.xlane.xlu0 %9273
      %v9275 = vsel %vm375, %v9156, 0.0
      %9276 = vadd.xlane.f32.xlu0 %v9275
      %v9277 = vpop.xlane.xlu0 %9276
      %v9278 = vsel %vm8054, %v9157, 0.0
      %9279 = vadd.xlane.f32.xlu0 %v9278
      %v9280 = vpop.xlane.xlu0 %9279
      %v9281 = vxor.u32 %v9160, 2147483648
      %v9282 = vxor.u32 %v9163, 2147483648
      %v9283 = vxor.u32 %v9166, 2147483648
      %v9284 = vxor.u32 %v9169, 2147483648
      %v9285 = vxor.u32 %v9172, 2147483648
      %v9286 = vxor.u32 %v9175, 2147483648
      %v9287 = vxor.u32 %v9178, 2147483648
      %v9288 = vxor.u32 %v9181, 2147483648
      %v9289 = vxor.u32 %v9184, 2147483648
      %v9290 = vxor.u32 %v9187, 2147483648
      %v9291 = vxor.u32 %v9190, 2147483648
      %v9292 = vxor.u32 %v9193, 2147483648
      %v9293 = vxor.u32 %v9196, 2147483648
      %v9294 = vxor.u32 %v9199, 2147483648
      %v9295 = vxor.u32 %v9202, 2147483648
      %v9296 = vxor.u32 %v9205, 2147483648
      %v9297 = vxor.u32 %v9208, 2147483648
      %v9298 = vxor.u32 %v9211, 2147483648
      %v9299 = vxor.u32 %v9214, 2147483648
      %v9300 = vxor.u32 %v9217, 2147483648
      %v9301 = vxor.u32 %v9220, 2147483648
      %v9302 = vxor.u32 %v9223, 2147483648
      %v9303 = vxor.u32 %v9226, 2147483648
      %v9304 = vxor.u32 %v9229, 2147483648
      %v9305 = vxor.u32 %v9232, 2147483648
      %v9306 = vxor.u32 %v9235, 2147483648
      %v9307 = vxor.u32 %v9238, 2147483648
      %v9308 = vxor.u32 %v9241, 2147483648
      %v9309 = vxor.u32 %v9244, 2147483648
      %v9310 = vxor.u32 %v9247, 2147483648
      %v9311 = vxor.u32 %v9250, 2147483648
      %v9312 = vxor.u32 %v9253, 2147483648
      %v9313 = vxor.u32 %v9256, 2147483648
      %v9314 = vxor.u32 %v9259, 2147483648
      %v9315 = vxor.u32 %v9262, 2147483648
      %v9316 = vxor.u32 %v9265, 2147483648
      %v9317 = vxor.u32 %v9268, 2147483648
      %v9318 = vxor.u32 %v9271, 2147483648
      %v9319 = vxor.u32 %v9274, 2147483648
      %v9320 = vxor.u32 %v9277, 2147483648
      %v9321 = vxor.u32 %v9280, 2147483648
      %v9322 = vmul.f32 %v9281, 1.442695
      %v9323 = vpow.pop %v9322
      %v9324 = vmul.f32 %v9282, 1.442695
      %v9325 = vpow.pop %v9324
      %v9326 = vmul.f32 %v9283, 1.442695
      %v9327 = vpow.pop %v9326
      %v9328 = vmul.f32 %v9284, 1.442695
      %v9329 = vpow.pop %v9328
      %v9330 = vmul.f32 %v9285, 1.442695
      %v9331 = vpow.pop %v9330
      %v9332 = vmul.f32 %v9286, 1.442695
      %v9333 = vpow.pop %v9332
      %v9334 = vmul.f32 %v9287, 1.442695
      %v9335 = vpow.pop %v9334
      %v9336 = vmul.f32 %v9288, 1.442695
      %v9337 = vpow.pop %v9336
      %v9338 = vmul.f32 %v9289, 1.442695
      %v9339 = vpow.pop %v9338
      %v9340 = vmul.f32 %v9290, 1.442695
      %v9341 = vpow.pop %v9340
      %v9342 = vmul.f32 %v9291, 1.442695
      %v9343 = vpow.pop %v9342
      %v9344 = vmul.f32 %v9292, 1.442695
      %v9345 = vpow.pop %v9344
      %v9346 = vmul.f32 %v9293, 1.442695
      %v9347 = vpow.pop %v9346
      %v9348 = vmul.f32 %v9294, 1.442695
      %v9349 = vpow.pop %v9348
      %v9350 = vmul.f32 %v9295, 1.442695
      %v9351 = vpow.pop %v9350
      %v9352 = vmul.f32 %v9296, 1.442695
      %v9353 = vpow.pop %v9352
      %v9354 = vmul.f32 %v9297, 1.442695
      %v9355 = vpow.pop %v9354
      %v9356 = vmul.f32 %v9298, 1.442695
      %v9357 = vpow.pop %v9356
      %v9358 = vmul.f32 %v9299, 1.442695
      %v9359 = vpow.pop %v9358
      %v9360 = vmul.f32 %v9300, 1.442695
      %v9361 = vpow.pop %v9360
      %v9362 = vmul.f32 %v9301, 1.442695
      %v9363 = vpow.pop %v9362
      %v9364 = vmul.f32 %v9302, 1.442695
      %v9365 = vpow.pop %v9364
      %v9366 = vmul.f32 %v9303, 1.442695
      %v9367 = vpow.pop %v9366
      %v9368 = vmul.f32 %v9304, 1.442695
      %v9369 = vpow.pop %v9368
      %v9370 = vmul.f32 %v9305, 1.442695
      %v9371 = vpow.pop %v9370
      %v9372 = vmul.f32 %v9306, 1.442695
      %v9373 = vpow.pop %v9372
      %v9374 = vmul.f32 %v9307, 1.442695
      %v9375 = vpow.pop %v9374
      %v9376 = vmul.f32 %v9308, 1.442695
      %v9377 = vpow.pop %v9376
      %v9378 = vmul.f32 %v9309, 1.442695
      %v9379 = vpow.pop %v9378
      %v9380 = vmul.f32 %v9310, 1.442695
      %v9381 = vpow.pop %v9380
      %v9382 = vmul.f32 %v9311, 1.442695
      %v9383 = vpow.pop %v9382
      %v9384 = vmul.f32 %v9312, 1.442695
      %v9385 = vpow.pop %v9384
      %v9386 = vmul.f32 %v9313, 1.442695
      %v9387 = vpow.pop %v9386
      %v9388 = vmul.f32 %v9314, 1.442695
      %v9389 = vpow.pop %v9388
      %v9390 = vmul.f32 %v9315, 1.442695
      %v9391 = vpow.pop %v9390
      %v9392 = vmul.f32 %v9316, 1.442695
      %v9393 = vpow.pop %v9392
      %v9394 = vmul.f32 %v9317, 1.442695
      %v9395 = vpow.pop %v9394
      %v9396 = vmul.f32 %v9318, 1.442695
      %v9397 = vpow.pop %v9396
      %v9398 = vmul.f32 %v9319, 1.442695
      %v9399 = vpow.pop %v9398
      %v9400 = vmul.f32 %v9320, 1.442695
      %v9401 = vpow.pop %v9400
      %v9402 = vmul.f32 %v9321, 1.442695
      %v9403 = vpow.pop %v9402
      %v9404 = vadd.f32 %v9323, 1.0
      %v9405 = vadd.f32 %v9325, 1.0
      %v9406 = vadd.f32 %v9327, 1.0
      %v9407 = vadd.f32 %v9329, 1.0
      %v9408 = vadd.f32 %v9331, 1.0
      %v9409 = vadd.f32 %v9333, 1.0
      %v9410 = vadd.f32 %v9335, 1.0
      %v9411 = vadd.f32 %v9337, 1.0
      %v9412 = vadd.f32 %v9339, 1.0
      %v9413 = vadd.f32 %v9341, 1.0
      %v9414 = vadd.f32 %v9343, 1.0
      %v9415 = vadd.f32 %v9345, 1.0
      %v9416 = vadd.f32 %v9347, 1.0
      %v9417 = vadd.f32 %v9349, 1.0
      %v9418 = vadd.f32 %v9351, 1.0
      %v9419 = vadd.f32 %v9353, 1.0
      %v9420 = vadd.f32 %v9355, 1.0
      %v9421 = vadd.f32 %v9357, 1.0
      %v9422 = vadd.f32 %v9359, 1.0
      %v9423 = vadd.f32 %v9361, 1.0
      %v9424 = vadd.f32 %v9363, 1.0
      %v9425 = vadd.f32 %v9365, 1.0
      %v9426 = vadd.f32 %v9367, 1.0
      %v9427 = vadd.f32 %v9369, 1.0
      %v9428 = vadd.f32 %v9371, 1.0
      %v9429 = vadd.f32 %v9373, 1.0
      %v9430 = vadd.f32 %v9375, 1.0
      %v9431 = vadd.f32 %v9377, 1.0
      %v9432 = vadd.f32 %v9379, 1.0
      %v9433 = vadd.f32 %v9381, 1.0
      %v9434 = vadd.f32 %v9383, 1.0
      %v9435 = vadd.f32 %v9385, 1.0
      %v9436 = vadd.f32 %v9387, 1.0
      %v9437 = vadd.f32 %v9389, 1.0
      %v9438 = vadd.f32 %v9391, 1.0
      %v9439 = vadd.f32 %v9393, 1.0
      %v9440 = vadd.f32 %v9395, 1.0
      %v9441 = vadd.f32 %v9397, 1.0
      %v9442 = vadd.f32 %v9399, 1.0
      %v9443 = vadd.f32 %v9401, 1.0
      %v9444 = vadd.f32 %v9403, 1.0
      %v9445 = vrcp.pop %v9404
      %v9446 = vmul.f32 1.0, %v9445
      %v9447 = vrcp.pop %v9405
      %v9448 = vmul.f32 1.0, %v9447
      %v9449 = vrcp.pop %v9406
      %v9450 = vmul.f32 1.0, %v9449
      %v9451 = vrcp.pop %v9407
      %v9452 = vmul.f32 1.0, %v9451
      %v9453 = vrcp.pop %v9408
      %v9454 = vmul.f32 1.0, %v9453
      %v9455 = vrcp.pop %v9409
      %v9456 = vmul.f32 1.0, %v9455
      %v9457 = vrcp.pop %v9410
      %v9458 = vmul.f32 1.0, %v9457
      %v9459 = vrcp.pop %v9411
      %v9460 = vmul.f32 1.0, %v9459
      %v9461 = vrcp.pop %v9412
      %v9462 = vmul.f32 1.0, %v9461
      %v9463 = vrcp.pop %v9413
      %v9464 = vmul.f32 1.0, %v9463
      %v9465 = vrcp.pop %v9414
      %v9466 = vmul.f32 1.0, %v9465
      %v9467 = vrcp.pop %v9415
      %v9468 = vmul.f32 1.0, %v9467
      %v9469 = vrcp.pop %v9416
      %v9470 = vmul.f32 1.0, %v9469
      %v9471 = vrcp.pop %v9417
      %v9472 = vmul.f32 1.0, %v9471
      %v9473 = vrcp.pop %v9418
      %v9474 = vmul.f32 1.0, %v9473
      %v9475 = vrcp.pop %v9419
      %v9476 = vmul.f32 1.0, %v9475
      %v9477 = vrcp.pop %v9420
      %v9478 = vmul.f32 1.0, %v9477
      %v9479 = vrcp.pop %v9421
      %v9480 = vmul.f32 1.0, %v9479
      %v9481 = vrcp.pop %v9422
      %v9482 = vmul.f32 1.0, %v9481
      %v9483 = vrcp.pop %v9423
      %v9484 = vmul.f32 1.0, %v9483
      %v9485 = vrcp.pop %v9424
      %v9486 = vmul.f32 1.0, %v9485
      %v9487 = vrcp.pop %v9425
      %v9488 = vmul.f32 1.0, %v9487
      %v9489 = vrcp.pop %v9426
      %v9490 = vmul.f32 1.0, %v9489
      %v9491 = vrcp.pop %v9427
      %v9492 = vmul.f32 1.0, %v9491
      %v9493 = vrcp.pop %v9428
      %v9494 = vmul.f32 1.0, %v9493
      %v9495 = vrcp.pop %v9429
      %v9496 = vmul.f32 1.0, %v9495
      %v9497 = vrcp.pop %v9430
      %v9498 = vmul.f32 1.0, %v9497
      %v9499 = vrcp.pop %v9431
      %v9500 = vmul.f32 1.0, %v9499
      %v9501 = vrcp.pop %v9432
      %v9502 = vmul.f32 1.0, %v9501
      %v9503 = vrcp.pop %v9433
      %v9504 = vmul.f32 1.0, %v9503
      %v9505 = vrcp.pop %v9434
      %v9506 = vmul.f32 1.0, %v9505
      %v9507 = vrcp.pop %v9435
      %v9508 = vmul.f32 1.0, %v9507
      %v9509 = vrcp.pop %v9436
      %v9510 = vmul.f32 1.0, %v9509
      %v9511 = vrcp.pop %v9437
      %v9512 = vmul.f32 1.0, %v9511
      %v9513 = vrcp.pop %v9438
      %v9514 = vmul.f32 1.0, %v9513
      %v9515 = vrcp.pop %v9439
      %v9516 = vmul.f32 1.0, %v9515
      %v9517 = vrcp.pop %v9440
      %v9518 = vmul.f32 1.0, %v9517
      %v9519 = vrcp.pop %v9441
      %v9520 = vmul.f32 1.0, %v9519
      %v9521 = vrcp.pop %v9442
      %v9522 = vmul.f32 1.0, %v9521
      %v9523 = vrcp.pop %v9443
      %v9524 = vmul.f32 1.0, %v9523
      %v9525 = vrcp.pop %v9444
      %v9526 = vmul.f32 1.0, %v9525
      %v9527 = vmul.f32 %v9446, %v327
      %v9528 = vmul.f32 %v9448, %v328
      %v9529 = vmul.f32 %v9450, %v329
      %v9530 = vmul.f32 %v9452, %v330
      %v9531 = vmul.f32 %v9454, %v331
      %v9532 = vmul.f32 %v9456, %v332
      %v9533 = vmul.f32 %v9458, %v333
      %v9534 = vmul.f32 %v9460, %v334
      %v9535 = vmul.f32 %v9462, %v335
      %v9536 = vmul.f32 %v9464, %v336
      %v9537 = vmul.f32 %v9466, %v337
      %v9538 = vmul.f32 %v9468, %v338
      %v9539 = vmul.f32 %v9470, %v339
      %v9540 = vmul.f32 %v9472, %v340
      %v9541 = vmul.f32 %v9474, %v341
      %v9542 = vmul.f32 %v9476, %v342
      %v9543 = vmul.f32 %v9478, %v343
      %v9544 = vmul.f32 %v9480, %v344
      %v9545 = vmul.f32 %v9482, %v345
      %v9546 = vmul.f32 %v9484, %v346
      %v9547 = vmul.f32 %v9486, %v347
      %v9548 = vmul.f32 %v9488, %v348
      %v9549 = vmul.f32 %v9490, %v349
      %v9550 = vmul.f32 %v9492, %v350
      %v9551 = vmul.f32 %v9494, %v351
      %v9552 = vmul.f32 %v9496, %v352
      %v9553 = vmul.f32 %v9498, %v353
      %v9554 = vmul.f32 %v9500, %v354
      %v9555 = vmul.f32 %v9502, %v355
      %v9556 = vmul.f32 %v9504, %v356
      %v9557 = vmul.f32 %v9506, %v357
      %v9558 = vmul.f32 %v9508, %v358
      %v9559 = vmul.f32 %v9510, %v359
      %v9560 = vmul.f32 %v9512, %v360
      %v9561 = vmul.f32 %v9514, %v361
      %v9562 = vmul.f32 %v9516, %v362
      %v9563 = vmul.f32 %v9518, %v363
      %v9564 = vmul.f32 %v9520, %v364
      %v9565 = vmul.f32 %v9522, %v365
      %v9566 = vmul.f32 %v9524, %v366
      %v9567 = vmul.f32 %v9526, %v367
      %v9568 = vld [vmem:[%s320] sm:$0xff]
      %v9569 = vld [vmem:[%s320 + $0x8] sm:$0xff]
      %v9570 = vld [vmem:[%s320 + $0x10] sm:$0xff]
      %v9571 = vld [vmem:[%s320 + $0x18] sm:$0xff]
      %v9572 = vld [vmem:[%s320 + $0x20] sm:$0xff]
      %v9573 = vld [vmem:[%s320 + $0x28] sm:$0xff]
      %v9574 = vld [vmem:[%s320 + $0x30] sm:$0xff]
      %v9575 = vld [vmem:[%s320 + $0x38] sm:$0xff]
      %v9576 = vld [vmem:[%s320 + $0x40] sm:$0xff]
      %v9577 = vld [vmem:[%s320 + $0x48] sm:$0xff]
      %v9578 = vld [vmem:[%s320 + $0x50] sm:$0xff]
      %v9579 = vld [vmem:[%s320 + $0x58] sm:$0xff]
      %v9580 = vld [vmem:[%s320 + $0x60] sm:$0xff]
      %v9581 = vld [vmem:[%s320 + $0x68] sm:$0xff]
      %v9582 = vld [vmem:[%s320 + $0x70] sm:$0xff]
      %v9583 = vld [vmem:[%s320 + $0x78] sm:$0xff]
      %v9584 = vld [vmem:[%s320 + $0x80] sm:$0xff]
      %v9585 = vld [vmem:[%s320 + $0x88] sm:$0xff]
      %v9586 = vld [vmem:[%s320 + $0x90] sm:$0xff]
      %v9587 = vld [vmem:[%s320 + $0x98] sm:$0xff]
      %v9588 = vld [vmem:[%s320 + $0xa0] sm:$0xff]
      %v9589 = vld [vmem:[%s320 + $0xa8] sm:$0xff]
      %v9590 = vld [vmem:[%s320 + $0xb0] sm:$0xff]
      %v9591 = vld [vmem:[%s320 + $0xb8] sm:$0xff]
      %v9592 = vld [vmem:[%s320 + $0xc0] sm:$0xff]
      %v9593 = vld [vmem:[%s320 + $0xc8] sm:$0xff]
      %v9594 = vld [vmem:[%s320 + $0xd0] sm:$0xff]
      %v9595 = vld [vmem:[%s320 + $0xd8] sm:$0xff]
      %v9596 = vld [vmem:[%s320 + $0xe0] sm:$0xff]
      %v9597 = vld [vmem:[%s320 + $0xe8] sm:$0xff]
      %v9598 = vld [vmem:[%s320 + $0xf0] sm:$0xff]
      %v9599 = vld [vmem:[%s320 + $0xf8] sm:$0xff]
      %v9600 = vld [vmem:[%s320 + $0x100] sm:$0xff]
      %v9601 = vld [vmem:[%s320 + $0x108] sm:$0xff]
      %v9602 = vld [vmem:[%s320 + $0x110] sm:$0xff]
      %v9603 = vld [vmem:[%s320 + $0x118] sm:$0xff]
      %v9604 = vld [vmem:[%s320 + $0x120] sm:$0xff]
      %v9605 = vld [vmem:[%s320 + $0x128] sm:$0xff]
      %v9606 = vld [vmem:[%s320 + $0x130] sm:$0xff]
      %v9607 = vld [vmem:[%s320 + $0x138] sm:$0xff]
      %v9608 = vld [vmem:[%s320 + $0x140] sm:$0xf]
      %vm9609 = vcmask 261120
      %v9610 = vsel %vm9609, %v9568, 0.0
      %v9611 = vsel %vm9609, %v9569, 0.0
      %v9612 = vadd.f32 %v9610, %v9611
      %v9613 = vsel %vm9609, %v9570, 0.0
      %v9614 = vadd.f32 %v9612, %v9613
      %v9615 = vsel %vm9609, %v9571, 0.0
      %v9616 = vadd.f32 %v9614, %v9615
      %v9617 = vsel %vm9609, %v9572, 0.0
      %v9618 = vadd.f32 %v9616, %v9617
      %v9619 = vsel %vm9609, %v9573, 0.0
      %v9620 = vadd.f32 %v9618, %v9619
      %v9621 = vsel %vm9609, %v9574, 0.0
      %v9622 = vadd.f32 %v9620, %v9621
      %v9623 = vsel %vm9609, %v9575, 0.0
      %v9624 = vadd.f32 %v9622, %v9623
      %v9625 = vsel %vm9609, %v9576, 0.0
      %v9626 = vadd.f32 %v9624, %v9625
      %v9627 = vsel %vm9609, %v9577, 0.0
      %v9628 = vadd.f32 %v9626, %v9627
      %v9629 = vsel %vm9609, %v9578, 0.0
      %v9630 = vadd.f32 %v9628, %v9629
      %v9631 = vsel %vm9609, %v9579, 0.0
      %v9632 = vadd.f32 %v9630, %v9631
      %v9633 = vsel %vm9609, %v9580, 0.0
      %v9634 = vadd.f32 %v9632, %v9633
      %v9635 = vsel %vm9609, %v9581, 0.0
      %v9636 = vadd.f32 %v9634, %v9635
      %v9637 = vsel %vm9609, %v9582, 0.0
      %v9638 = vadd.f32 %v9636, %v9637
      %v9639 = vsel %vm9609, %v9583, 0.0
      %v9640 = vadd.f32 %v9638, %v9639
      %v9641 = vsel %vm9609, %v9584, 0.0
      %v9642 = vadd.f32 %v9640, %v9641
      %v9643 = vsel %vm9609, %v9585, 0.0
      %v9644 = vadd.f32 %v9642, %v9643
      %v9645 = vsel %vm9609, %v9586, 0.0
      %v9646 = vadd.f32 %v9644, %v9645
      %v9647 = vsel %vm9609, %v9587, 0.0
      %v9648 = vadd.f32 %v9646, %v9647
      %v9649 = vsel %vm9609, %v9588, 0.0
      %v9650 = vadd.f32 %v9648, %v9649
      %v9651 = vsel %vm9609, %v9589, 0.0
      %v9652 = vadd.f32 %v9650, %v9651
      %v9653 = vsel %vm9609, %v9590, 0.0
      %v9654 = vadd.f32 %v9652, %v9653
      %v9655 = vsel %vm9609, %v9591, 0.0
      %v9656 = vadd.f32 %v9654, %v9655
      %v9657 = vsel %vm9609, %v9592, 0.0
      %v9658 = vadd.f32 %v9656, %v9657
      %v9659 = vsel %vm9609, %v9593, 0.0
      %v9660 = vadd.f32 %v9658, %v9659
      %v9661 = vsel %vm9609, %v9594, 0.0
      %v9662 = vadd.f32 %v9660, %v9661
      %v9663 = vsel %vm9609, %v9595, 0.0
      %v9664 = vadd.f32 %v9662, %v9663
      %v9665 = vsel %vm9609, %v9596, 0.0
      %v9666 = vadd.f32 %v9664, %v9665
      %v9667 = vsel %vm9609, %v9597, 0.0
      %v9668 = vadd.f32 %v9666, %v9667
      %v9669 = vsel %vm9609, %v9598, 0.0
      %v9670 = vadd.f32 %v9668, %v9669
      %v9671 = vsel %vm9609, %v9599, 0.0
      %v9672 = vadd.f32 %v9670, %v9671
      %v9673 = vsel %vm9609, %v9600, 0.0
      %v9674 = vadd.f32 %v9672, %v9673
      %v9675 = vsel %vm9609, %v9601, 0.0
      %v9676 = vadd.f32 %v9674, %v9675
      %v9677 = vsel %vm9609, %v9602, 0.0
      %v9678 = vadd.f32 %v9676, %v9677
      %v9679 = vsel %vm9609, %v9603, 0.0
      %v9680 = vadd.f32 %v9678, %v9679
      %v9681 = vsel %vm9609, %v9604, 0.0
      %v9682 = vadd.f32 %v9680, %v9681
      %v9683 = vsel %vm9609, %v9605, 0.0
      %v9684 = vadd.f32 %v9682, %v9683
      %v9685 = vsel %vm9609, %v9606, 0.0
      %v9686 = vadd.f32 %v9684, %v9685
      %v9687 = vsel %vm9609, %v9607, 0.0
      %v9688 = vadd.f32 %v9686, %v9687
      %vm9689 = vcmask 257024
      %v9690 = vsel %vm9689, %v9608, 0.0
      %v9691 = vadd.f32 %v9688, %v9690
      %v9692 = vrot.slane %v9691, 4
      %v9693 = vadd.f32 %v9691, %v9692
      %v9694 = vrot.slane %v9693, 2
      %v9695 = vadd.f32 %v9693, %v9694
      %v9696 = vrot.slane %v9695, 1
      %v9697 = vadd.f32 %v9695, %v9696
      %v9698 = vmul.f32 %v9697, 0.00390625
      %v9699 = vld [vmem:[%s6] sm:$0xff]
      %v9700 = vld [vmem:[%s6 + $0x8] sm:$0xff]
      %v9701 = vld [vmem:[%s6 + $0x10] sm:$0xff]
      %v9702 = vld [vmem:[%s6 + $0x18] sm:$0xff]
      %v9704 = vsel %vm9609, %v9698, 0
      %9706 = vmatprep.subr.mxu0 0.0
      %9707 = vmatpush1.msra.mxu0 0.0
      %9708 = vmatprep.subr.mxu0 0.0
      %9709 = vmatpush1.msra.mxu0 0.0
      %9710 = vmatprep.subr.mxu0 0.0
      %9711 = vmatpush1.msra.mxu0 0.0
      %9712 = vmatprep.subr.mxu0 0.0
      %9713 = vmatpush1.msra.mxu0 0.0
      %9714 = vmatprep.subr.mxu0 0.0
      %9715 = vmatpush1.msra.mxu0 0.0
      %9716 = vmatprep.subr.mxu0 0.0
      %9717 = vmatpush1.msra.mxu0 0.0
      %9718 = vmatprep.subr.mxu0 0.0
      %9719 = vmatpush1.msra.mxu0 0.0
      %9720 = vmatprep.subr.mxu0 0.0
      %9721 = vmatpush1.msra.mxu0 0.0
      %9722 = vmatprep.subr.mxu0 0.0
      %9723 = vmatpush1.msra.mxu0 0.0
      %9724 = vmatprep.subr.mxu0 0.0
      %9725 = vmatpush1.msra.mxu0 0.0
      %9726 = vmatprep.subr.mxu0 0.0
      %9727 = vmatpush1.msra.mxu0 0.0
      %9728 = vmatprep.subr.mxu0 0.0
      %9729 = vmatpush1.msra.mxu0 0.0
      %9730 = vmatprep.subr.mxu0 0.0
      %9731 = vmatpush1.msra.mxu0 %v9702
      %9732 = vmatprep.subr.mxu0 0.0
      %9733 = vmatpush1.msra.mxu0 %v9701
      %9734 = vmatprep.subr.mxu0 0.0
      %9735 = vmatpush1.msra.mxu0 %v9700
      %9736 = vmatprep.subr.mxu0 0.0
      %9737 = vmatpush1.msra.mxu0 %v9699
      %9738 = vmatprep.subr.mxu0 0.0
      %9739 = vmatpush2.msra.mxu0 0.0
      %9740 = vmatprep.subr.mxu0 0.0
      %9741 = vmatpush2.msra.mxu0 0.0
      %9742 = vmatprep.subr.mxu0 0.0
      %9743 = vmatpush2.msra.mxu0 0.0
      %9744 = vmatprep.subr.mxu0 0.0
      %9745 = vmatpush2.msra.mxu0 0.0
      %9746 = vmatprep.subr.mxu0 0.0
      %9747 = vmatpush2.msra.mxu0 0.0
      %9748 = vmatprep.subr.mxu0 0.0
      %9749 = vmatpush2.msra.mxu0 0.0
      %9750 = vmatprep.subr.mxu0 0.0
      %9751 = vmatpush2.msra.mxu0 0.0
      %9752 = vmatprep.subr.mxu0 0.0
      %9753 = vmatpush2.msra.mxu0 0.0
      %9754 = vmatprep.subr.mxu0 0.0
      %9755 = vmatpush2.msra.mxu0 0.0
      %9756 = vmatprep.subr.mxu0 0.0
      %9757 = vmatpush2.msra.mxu0 0.0
      %9758 = vmatprep.subr.mxu0 0.0
      %9759 = vmatpush2.msra.mxu0 0.0
      %9760 = vmatprep.subr.mxu0 0.0
      %9761 = vmatpush2.msra.mxu0 0.0
      %9762 = vmatprep.subr.mxu0 0.0
      %9763 = vmatpush2.msra.mxu0 0.0
      %9764 = vmatprep.subr.mxu0 0.0
      %9765 = vmatpush2.msra.mxu0 0.0
      %9766 = vmatprep.subr.mxu0 0.0
      %9767 = vmatpush2.msra.mxu0 0.0
      %9768 = vmatprep.subr.mxu0 0.0
      %9769 = vmatpush2.msra.mxu0 0.0
      %9770 = vmatprep.mubr.f32.mxu0 0.0
      %9771 = vmatmul.mubr.f32.gmra.mxu0 %v9704
      %v9772 = vpop.f32.mrf.mxu0
      %v9773 = vadd.f32 0.0, %v9772
      %v9774 = vpop.f32.mrf.mxu0
      %9775 = vdwg.mxu0
      %v9776 = vmax.f32 %v9773, 0.0
      %v9777 = vld [vmem:[%s7] sm:$0x3]
      %v9779 = vsel %vm375, %v9776, 0
      %vm9781 = vcmask 1041408
      %v9783 = vsel %vm9781, %v9777, 0
      %9785 = vmatprep.subr.mxu0 0.0
      %9786 = vmatpush1.msra.mxu0 0.0
      %9787 = vmatprep.subr.mxu0 0.0
      %9788 = vmatpush1.msra.mxu0 0.0
      %9789 = vmatprep.subr.mxu0 0.0
      %9790 = vmatpush1.msra.mxu0 0.0
      %9791 = vmatprep.subr.mxu0 0.0
      %9792 = vmatpush1.msra.mxu0 0.0
      %9793 = vmatprep.subr.mxu0 0.0
      %9794 = vmatpush1.msra.mxu0 0.0
      %9795 = vmatprep.subr.mxu0 0.0
      %9796 = vmatpush1.msra.mxu0 0.0
      %9797 = vmatprep.subr.mxu0 0.0
      %9798 = vmatpush1.msra.mxu0 0.0
      %9799 = vmatprep.subr.mxu0 0.0
      %9800 = vmatpush1.msra.mxu0 0.0
      %9801 = vmatprep.subr.mxu0 0.0
      %9802 = vmatpush1.msra.mxu0 0.0
      %9803 = vmatprep.subr.mxu0 0.0
      %9804 = vmatpush1.msra.mxu0 0.0
      %9805 = vmatprep.subr.mxu0 0.0
      %9806 = vmatpush1.msra.mxu0 0.0
      %9807 = vmatprep.subr.mxu0 0.0
      %9808 = vmatpush1.msra.mxu0 0.0
      %9809 = vmatprep.subr.mxu0 0.0
      %9810 = vmatpush1.msra.mxu0 0.0
      %9811 = vmatprep.subr.mxu0 0.0
      %9812 = vmatpush1.msra.mxu0 0.0
      %9813 = vmatprep.subr.mxu0 0.0
      %9814 = vmatpush1.msra.mxu0 0.0
      %9815 = vmatprep.subr.mxu0 0.0
      %9816 = vmatpush1.msra.mxu0 %v9783
      %9817 = vmatprep.subr.mxu0 0.0
      %9818 = vmatpush2.msra.mxu0 0.0
      %9819 = vmatprep.subr.mxu0 0.0
      %9820 = vmatpush2.msra.mxu0 0.0
      %9821 = vmatprep.subr.mxu0 0.0
      %9822 = vmatpush2.msra.mxu0 0.0
      %9823 = vmatprep.subr.mxu0 0.0
      %9824 = vmatpush2.msra.mxu0 0.0
      %9825 = vmatprep.subr.mxu0 0.0
      %9826 = vmatpush2.msra.mxu0 0.0
      %9827 = vmatprep.subr.mxu0 0.0
      %9828 = vmatpush2.msra.mxu0 0.0
      %9829 = vmatprep.subr.mxu0 0.0
      %9830 = vmatpush2.msra.mxu0 0.0
      %9831 = vmatprep.subr.mxu0 0.0
      %9832 = vmatpush2.msra.mxu0 0.0
      %9833 = vmatprep.subr.mxu0 0.0
      %9834 = vmatpush2.msra.mxu0 0.0
      %9835 = vmatprep.subr.mxu0 0.0
      %9836 = vmatpush2.msra.mxu0 0.0
      %9837 = vmatprep.subr.mxu0 0.0
      %9838 = vmatpush2.msra.mxu0 0.0
      %9839 = vmatprep.subr.mxu0 0.0
      %9840 = vmatpush2.msra.mxu0 0.0
      %9841 = vmatprep.subr.mxu0 0.0
      %9842 = vmatpush2.msra.mxu0 0.0
      %9843 = vmatprep.subr.mxu0 0.0
      %9844 = vmatpush2.msra.mxu0 0.0
      %9845 = vmatprep.subr.mxu0 0.0
      %9846 = vmatpush2.msra.mxu0 0.0
      %9847 = vmatprep.subr.mxu0 0.0
      %9848 = vmatpush2.msra.mxu0 0.0
      %9849 = vmatprep.mubr.f32.mxu0 0.0
      %9850 = vmatmul.mubr.f32.gmra.mxu0 %v9779
      %v9851 = vpop.f32.mrf.mxu0
      %v9852 = vadd.f32 0.0, %v9851
      %v9853 = vpop.f32.mrf.mxu0
      %9854 = vdwg.mxu0
      %v9855 = vxor.u32 %v9852, 2147483648
      %v9856 = vmul.f32 %v9855, 1.442695
      %v9857 = vpow.pop %v9856
      %v9858 = vadd.f32 %v9857, 1.0
      %v9859 = vrcp.pop %v9858
      %v9860 = vmul.f32 1.0, %v9859
      %v9861 = vlaneseq
      %v9862 = vshrl.u32 %v9861, 7
      %v9863 = vsub.s32 0, %v9862
      %v9864 = vrot.slane %v9860, %v9863
      %v9865 = vmul.f32 %v9568, %v9864
      %v9866 = vmul.f32 %v9569, %v9864
      %v9867 = vmul.f32 %v9570, %v9864
      %v9868 = vmul.f32 %v9571, %v9864
      %v9869 = vmul.f32 %v9572, %v9864
      %v9870 = vmul.f32 %v9573, %v9864
      %v9871 = vmul.f32 %v9574, %v9864
      %v9872 = vmul.f32 %v9575, %v9864
      %v9873 = vmul.f32 %v9576, %v9864
      %v9874 = vmul.f32 %v9577, %v9864
      %v9875 = vmul.f32 %v9578, %v9864
      %v9876 = vmul.f32 %v9579, %v9864
      %v9877 = vmul.f32 %v9580, %v9864
      %v9878 = vmul.f32 %v9581, %v9864
      %v9879 = vmul.f32 %v9582, %v9864
      %v9880 = vmul.f32 %v9583, %v9864
      %v9881 = vmul.f32 %v9584, %v9864
      %v9882 = vmul.f32 %v9585, %v9864
      %v9883 = vmul.f32 %v9586, %v9864
      %v9884 = vmul.f32 %v9587, %v9864
      %v9885 = vmul.f32 %v9588, %v9864
      %v9886 = vmul.f32 %v9589, %v9864
      %v9887 = vmul.f32 %v9590, %v9864
      %v9888 = vmul.f32 %v9591, %v9864
      %v9889 = vmul.f32 %v9592, %v9864
      %v9890 = vmul.f32 %v9593, %v9864
      %v9891 = vmul.f32 %v9594, %v9864
      %v9892 = vmul.f32 %v9595, %v9864
      %v9893 = vmul.f32 %v9596, %v9864
      %v9894 = vmul.f32 %v9597, %v9864
      %v9895 = vmul.f32 %v9598, %v9864
      %v9896 = vmul.f32 %v9599, %v9864
      %v9897 = vmul.f32 %v9600, %v9864
      %v9898 = vmul.f32 %v9601, %v9864
      %v9899 = vmul.f32 %v9602, %v9864
      %v9900 = vmul.f32 %v9603, %v9864
      %v9901 = vmul.f32 %v9604, %v9864
      %v9902 = vmul.f32 %v9605, %v9864
      %v9903 = vmul.f32 %v9606, %v9864
      %v9904 = vmul.f32 %v9607, %v9864
      %v9905 = vmul.f32 %v9608, %v9864
      %9907 = vset.pattern.permute.xlu0 0
      %9908 = vperm.xlu0 %9907, %v9527
      %v9909 = vpop.permute.xlu0 %9908
      %9912 = vset.pattern.permute.xlu0 0
      %9913 = vperm.xlu0 %9912, %v9528
      %v9914 = vpop.permute.xlu0 %9913
      %9917 = vset.pattern.permute.xlu0 0
      %9918 = vperm.xlu0 %9917, %v9529
      %v9919 = vpop.permute.xlu0 %9918
      %9922 = vset.pattern.permute.xlu0 0
      %9923 = vperm.xlu0 %9922, %v9530
      %v9924 = vpop.permute.xlu0 %9923
      %9927 = vset.pattern.permute.xlu0 0
      %9928 = vperm.xlu0 %9927, %v9531
      %v9929 = vpop.permute.xlu0 %9928
      %9932 = vset.pattern.permute.xlu0 0
      %9933 = vperm.xlu0 %9932, %v9532
      %v9934 = vpop.permute.xlu0 %9933
      %9937 = vset.pattern.permute.xlu0 0
      %9938 = vperm.xlu0 %9937, %v9533
      %v9939 = vpop.permute.xlu0 %9938
      %9942 = vset.pattern.permute.xlu0 0
      %9943 = vperm.xlu0 %9942, %v9534
      %v9944 = vpop.permute.xlu0 %9943
      %9947 = vset.pattern.permute.xlu0 0
      %9948 = vperm.xlu0 %9947, %v9535
      %v9949 = vpop.permute.xlu0 %9948
      %9952 = vset.pattern.permute.xlu0 0
      %9953 = vperm.xlu0 %9952, %v9536
      %v9954 = vpop.permute.xlu0 %9953
      %9957 = vset.pattern.permute.xlu0 0
      %9958 = vperm.xlu0 %9957, %v9537
      %v9959 = vpop.permute.xlu0 %9958
      %9962 = vset.pattern.permute.xlu0 0
      %9963 = vperm.xlu0 %9962, %v9538
      %v9964 = vpop.permute.xlu0 %9963
      %9967 = vset.pattern.permute.xlu0 0
      %9968 = vperm.xlu0 %9967, %v9539
      %v9969 = vpop.permute.xlu0 %9968
      %9972 = vset.pattern.permute.xlu0 0
      %9973 = vperm.xlu0 %9972, %v9540
      %v9974 = vpop.permute.xlu0 %9973
      %9977 = vset.pattern.permute.xlu0 0
      %9978 = vperm.xlu0 %9977, %v9541
      %v9979 = vpop.permute.xlu0 %9978
      %9982 = vset.pattern.permute.xlu0 0
      %9983 = vperm.xlu0 %9982, %v9542
      %v9984 = vpop.permute.xlu0 %9983
      %9987 = vset.pattern.permute.xlu0 0
      %9988 = vperm.xlu0 %9987, %v9543
      %v9989 = vpop.permute.xlu0 %9988
      %9992 = vset.pattern.permute.xlu0 0
      %9993 = vperm.xlu0 %9992, %v9544
      %v9994 = vpop.permute.xlu0 %9993
      %9997 = vset.pattern.permute.xlu0 0
      %9998 = vperm.xlu0 %9997, %v9545
      %v9999 = vpop.permute.xlu0 %9998
      %10002 = vset.pattern.permute.xlu0 0
      %10003 = vperm.xlu0 %10002, %v9546
      %v10004 = vpop.permute.xlu0 %10003
      %10007 = vset.pattern.permute.xlu0 0
      %10008 = vperm.xlu0 %10007, %v9547
      %v10009 = vpop.permute.xlu0 %10008
      %10012 = vset.pattern.permute.xlu0 0
      %10013 = vperm.xlu0 %10012, %v9548
      %v10014 = vpop.permute.xlu0 %10013
      %10017 = vset.pattern.permute.xlu0 0
      %10018 = vperm.xlu0 %10017, %v9549
      %v10019 = vpop.permute.xlu0 %10018
      %10022 = vset.pattern.permute.xlu0 0
      %10023 = vperm.xlu0 %10022, %v9550
      %v10024 = vpop.permute.xlu0 %10023
      %10027 = vset.pattern.permute.xlu0 0
      %10028 = vperm.xlu0 %10027, %v9551
      %v10029 = vpop.permute.xlu0 %10028
      %10032 = vset.pattern.permute.xlu0 0
      %10033 = vperm.xlu0 %10032, %v9552
      %v10034 = vpop.permute.xlu0 %10033
      %10037 = vset.pattern.permute.xlu0 0
      %10038 = vperm.xlu0 %10037, %v9553
      %v10039 = vpop.permute.xlu0 %10038
      %10042 = vset.pattern.permute.xlu0 0
      %10043 = vperm.xlu0 %10042, %v9554
      %v10044 = vpop.permute.xlu0 %10043
      %10047 = vset.pattern.permute.xlu0 0
      %10048 = vperm.xlu0 %10047, %v9555
      %v10049 = vpop.permute.xlu0 %10048
      %10052 = vset.pattern.permute.xlu0 0
      %10053 = vperm.xlu0 %10052, %v9556
      %v10054 = vpop.permute.xlu0 %10053
      %10057 = vset.pattern.permute.xlu0 0
      %10058 = vperm.xlu0 %10057, %v9557
      %v10059 = vpop.permute.xlu0 %10058
      %10062 = vset.pattern.permute.xlu0 0
      %10063 = vperm.xlu0 %10062, %v9558
      %v10064 = vpop.permute.xlu0 %10063
      %10067 = vset.pattern.permute.xlu0 0
      %10068 = vperm.xlu0 %10067, %v9559
      %v10069 = vpop.permute.xlu0 %10068
      %10072 = vset.pattern.permute.xlu0 0
      %10073 = vperm.xlu0 %10072, %v9560
      %v10074 = vpop.permute.xlu0 %10073
      %10077 = vset.pattern.permute.xlu0 0
      %10078 = vperm.xlu0 %10077, %v9561
      %v10079 = vpop.permute.xlu0 %10078
      %10082 = vset.pattern.permute.xlu0 0
      %10083 = vperm.xlu0 %10082, %v9562
      %v10084 = vpop.permute.xlu0 %10083
      %10087 = vset.pattern.permute.xlu0 0
      %10088 = vperm.xlu0 %10087, %v9563
      %v10089 = vpop.permute.xlu0 %10088
      %10092 = vset.pattern.permute.xlu0 0
      %10093 = vperm.xlu0 %10092, %v9564
      %v10094 = vpop.permute.xlu0 %10093
      %10097 = vset.pattern.permute.xlu0 0
      %10098 = vperm.xlu0 %10097, %v9565
      %v10099 = vpop.permute.xlu0 %10098
      %10102 = vset.pattern.permute.xlu0 0
      %10103 = vperm.xlu0 %10102, %v9566
      %v10104 = vpop.permute.xlu0 %10103
      %10107 = vset.pattern.permute.xlu0 0
      %10108 = vperm.xlu0 %10107, %v9567
      %v10109 = vpop.permute.xlu0 %10108
      %v10111 = vmul.f32 %v9865, %v9909
      %v10112 = vmul.f32 %v9866, %v9914
      %v10113 = vmul.f32 %v9867, %v9919
      %v10114 = vmul.f32 %v9868, %v9924
      %v10115 = vmul.f32 %v9869, %v9929
      %v10116 = vmul.f32 %v9870, %v9934
      %v10117 = vmul.f32 %v9871, %v9939
      %v10118 = vmul.f32 %v9872, %v9944
      %v10119 = vmul.f32 %v9873, %v9949
      %v10120 = vmul.f32 %v9874, %v9954
      %v10121 = vmul.f32 %v9875, %v9959
      %v10122 = vmul.f32 %v9876, %v9964
      %v10123 = vmul.f32 %v9877, %v9969
      %v10124 = vmul.f32 %v9878, %v9974
      %v10125 = vmul.f32 %v9879, %v9979
      %v10126 = vmul.f32 %v9880, %v9984
      %v10127 = vmul.f32 %v9881, %v9989
      %v10128 = vmul.f32 %v9882, %v9994
      %v10129 = vmul.f32 %v9883, %v9999
      %v10130 = vmul.f32 %v9884, %v10004
      %v10131 = vmul.f32 %v9885, %v10009
      %v10132 = vmul.f32 %v9886, %v10014
      %v10133 = vmul.f32 %v9887, %v10019
      %v10134 = vmul.f32 %v9888, %v10024
      %v10135 = vmul.f32 %v9889, %v10029
      %v10136 = vmul.f32 %v9890, %v10034
      %v10137 = vmul.f32 %v9891, %v10039
      %v10138 = vmul.f32 %v9892, %v10044
      %v10139 = vmul.f32 %v9893, %v10049
      %v10140 = vmul.f32 %v9894, %v10054
      %v10141 = vmul.f32 %v9895, %v10059
      %v10142 = vmul.f32 %v9896, %v10064
      %v10143 = vmul.f32 %v9897, %v10069
      %v10144 = vmul.f32 %v9898, %v10074
      %v10145 = vmul.f32 %v9899, %v10079
      %v10146 = vmul.f32 %v9900, %v10084
      %v10147 = vmul.f32 %v9901, %v10089
      %v10148 = vmul.f32 %v9902, %v10094
      %v10149 = vmul.f32 %v9903, %v10099
      %v10150 = vmul.f32 %v9904, %v10104
      %v10151 = vmul.f32 %v9905, %v10109
      %10152 = vst.msk [vmem:[%s325] sm:$0xff] %vm9609, %v10111
      %10153 = vst.msk [vmem:[%s325 + $0x8] sm:$0xff] %vm9609, %v10112
      %10154 = vst.msk [vmem:[%s325 + $0x10] sm:$0xff] %vm9609, %v10113
      %10155 = vst.msk [vmem:[%s325 + $0x18] sm:$0xff] %vm9609, %v10114
      %10156 = vst.msk [vmem:[%s325 + $0x20] sm:$0xff] %vm9609, %v10115
      %10157 = vst.msk [vmem:[%s325 + $0x28] sm:$0xff] %vm9609, %v10116
      %10158 = vst.msk [vmem:[%s325 + $0x30] sm:$0xff] %vm9609, %v10117
      %10159 = vst.msk [vmem:[%s325 + $0x38] sm:$0xff] %vm9609, %v10118
      %10160 = vst.msk [vmem:[%s325 + $0x40] sm:$0xff] %vm9609, %v10119
      %10161 = vst.msk [vmem:[%s325 + $0x48] sm:$0xff] %vm9609, %v10120
      %10162 = vst.msk [vmem:[%s325 + $0x50] sm:$0xff] %vm9609, %v10121
      %10163 = vst.msk [vmem:[%s325 + $0x58] sm:$0xff] %vm9609, %v10122
      %10164 = vst.msk [vmem:[%s325 + $0x60] sm:$0xff] %vm9609, %v10123
      %10165 = vst.msk [vmem:[%s325 + $0x68] sm:$0xff] %vm9609, %v10124
      %10166 = vst.msk [vmem:[%s325 + $0x70] sm:$0xff] %vm9609, %v10125
      %10167 = vst.msk [vmem:[%s325 + $0x78] sm:$0xff] %vm9609, %v10126
      %10168 = vst.msk [vmem:[%s325 + $0x80] sm:$0xff] %vm9609, %v10127
      %10169 = vst.msk [vmem:[%s325 + $0x88] sm:$0xff] %vm9609, %v10128
      %10170 = vst.msk [vmem:[%s325 + $0x90] sm:$0xff] %vm9609, %v10129
      %10171 = vst.msk [vmem:[%s325 + $0x98] sm:$0xff] %vm9609, %v10130
      %10172 = vst.msk [vmem:[%s325 + $0xa0] sm:$0xff] %vm9609, %v10131
      %10173 = vst.msk [vmem:[%s325 + $0xa8] sm:$0xff] %vm9609, %v10132
      %10174 = vst.msk [vmem:[%s325 + $0xb0] sm:$0xff] %vm9609, %v10133
      %10175 = vst.msk [vmem:[%s325 + $0xb8] sm:$0xff] %vm9609, %v10134
      %10176 = vst.msk [vmem:[%s325 + $0xc0] sm:$0xff] %vm9609, %v10135
      %10177 = vst.msk [vmem:[%s325 + $0xc8] sm:$0xff] %vm9609, %v10136
      %10178 = vst.msk [vmem:[%s325 + $0xd0] sm:$0xff] %vm9609, %v10137
      %10179 = vst.msk [vmem:[%s325 + $0xd8] sm:$0xff] %vm9609, %v10138
      %10180 = vst.msk [vmem:[%s325 + $0xe0] sm:$0xff] %vm9609, %v10139
      %10181 = vst.msk [vmem:[%s325 + $0xe8] sm:$0xff] %vm9609, %v10140
      %10182 = vst.msk [vmem:[%s325 + $0xf0] sm:$0xff] %vm9609, %v10141
      %10183 = vst.msk [vmem:[%s325 + $0xf8] sm:$0xff] %vm9609, %v10142
      %10184 = vst.msk [vmem:[%s325 + $0x100] sm:$0xff] %vm9609, %v10143
      %10185 = vst.msk [vmem:[%s325 + $0x108] sm:$0xff] %vm9609, %v10144
      %10186 = vst.msk [vmem:[%s325 + $0x110] sm:$0xff] %vm9609, %v10145
      %10187 = vst.msk [vmem:[%s325 + $0x118] sm:$0xff] %vm9609, %v10146
      %10188 = vst.msk [vmem:[%s325 + $0x120] sm:$0xff] %vm9609, %v10147
      %10189 = vst.msk [vmem:[%s325 + $0x128] sm:$0xff] %vm9609, %v10148
      %10190 = vst.msk [vmem:[%s325 + $0x130] sm:$0xff] %vm9609, %v10149
      %10191 = vst.msk [vmem:[%s325 + $0x138] sm:$0xff] %vm9609, %v10150
      %10192 = vst.msk [vmem:[%s325 + $0x140] sm:$0xf] %vm9689, %v10151
      %p10193 = scmp.lt.s32.totalorder %s19, 1
      %s10194 = scalar_select %p10193, %s19, 1
      %s10195 = smul.addr %s10194, 41
      %s10196 = smul.addr %s10195, 8
      %s10197 = scalar_lea.vmem %s8, %s10196
      // Predicated region
      $region53: #{three_head_attention.3} parent=51 // pred_check
        %p10198 = pneg %p215
      $region54: #{three_head_attention.3} parent=51 // pred_check_branch
        %10200 = sbr.rel (%p10198) target = $region56
      $region55: #{three_head_attention.3} parent=51 // pred_region
        _
      $region56: #{three_head_attention.3} parent=51 // pred_fallthru
        _
    $region52: #{three_head_attention.3} parent=5 // pred_fallthru
      _
    %p10201 = scmp.le.s32.totalorder 2, %s14
    // Predicated region
    $region57: #{three_head_attention.3} parent=5 // pred_check
      %p10202 = pneg %p10201
    $region58: #{three_head_attention.3} parent=5 // pred_check_branch
      %10204 = sbr.rel (%p10202) target = $region60
    $region59: #{three_head_attention.3} parent=5 // pred_region
      %s10205 = ssub.s32 %s14, 2
      // Predicated region
      $region61: #{three_head_attention.3} parent=59 // pred_check
        %p10206 = pneg %p221
      $region62: #{three_head_attention.3} parent=59 // pred_check_branch
        %10208 = sbr.rel (%p10206) target = $region64
      $region63: #{three_head_attention.3} parent=59 // pred_region
        %p10209 = scmp.lt.s32.totalorder %s20, 1
        %s10210 = scalar_select %p10209, %s20, 1
        %s10211 = smul.addr %s10210, 41
        %s10212 = smul.addr %s10211, 8
        %s10213 = scalar_lea.vmem %s8, %s10212
      $region64: #{three_head_attention.3} parent=59 // pred_fallthru
        _
    $region60: #{three_head_attention.3} parent=5 // pred_fallthru
      _
  $region6: #{three_head_attention.3} parent=0 // loop_footer
    %s18 = sadd.s32 1, %s14
  $region7: #{three_head_attention.3} parent=0 // loop_footer_branch
    %13 = sbr.rel target = $region3
  $region8: #{three_head_attention.3} parent=0 // loop_exit
    _

</llo_original>
